<compile_context>
chip_gen: v5e
topology: v5e:2x2
jax: 0.10.0
libtpu: 0.0.40
codegen_flags: <defaults>
</compile_context>

<pallas_src>
import functools

import jax
import jax.numpy as jnp
from jax import lax
from jax.experimental import pallas as pl
from jax.experimental.pallas import tpu as pltpu

EPS = 1e-5
VMEM_LIMIT_BYTES = 48 * 1024 * 1024  # leaves double-buffer headroom on v7x (64 MiB)


# --------------------------------------------------------------------------- #
# In-kernel helpers
# --------------------------------------------------------------------------- #
def _fill_padded(pad_ref, interior, Hn, Wn):
    """Write `interior` (Hn, Wn, C) into pad_ref (Hn+2, Wn+2, C) with zero halo.

    Only the four 1-pixel halo strips are zeroed (cheap), and it is done every
    grid step so the kernel stays correct when the batch axis is sharded
    across TensorCores ("parallel" semantics -> per-core scratch).
    """
    C = pad_ref.shape[-1]
    zrow = jnp.zeros((1, Wn + 2, C), jnp.float32)
    zcol = jnp.zeros((Hn + 2, 1, C), jnp.float32)
    pad_ref[0:1, :, :] = zrow
    pad_ref[Hn + 1:Hn + 2, :, :] = zrow
    pad_ref[:, 0:1, :] = zcol
    pad_ref[:, Wn + 1:Wn + 2, :] = zcol
    pad_ref[1:Hn + 1, 1:Wn + 1, :] = interior


def _fill_patches(patch_ref, xpad, Ho, Wo, stride):
    """im2col: write the 9 shifted taps of xpad into patch_ref (Ho*Wo, 9*C)."""
    C = xpad.shape[-1]
    t = 0
    for dy in range(3):
        for dx in range(3):
            piece = lax.slice(
                xpad,
                (dy, dx, 0),
                (dy + (Ho - 1) * stride + 1, dx + (Wo - 1) * stride + 1, C),
                (stride, stride, 1),
            )
            patch_ref[:, t * C:(t + 1) * C] = piece.reshape(Ho * Wo, C)
            t += 1


# --------------------------------------------------------------------------- #
# Pass 1: conv1 (and projection-shortcut conv) + per-image BN partial sums
# --------------------------------------------------------------------------- #
def _make_pass1(H, W, Cin, Ho, Wo, stride, use_proj):
    P = Ho * Wo

    def kernel(*refs):
        if use_proj:
            (x_ref, w1_ref, ws_ref,
             c1_ref, s1_ref, q1_ref, sc_ref, ss_ref, qs_ref,
             xpad_ref, patch_ref) = refs
        else:
            (x_ref, w1_ref,
             c1_ref, s1_ref, q1_ref,
             xpad_ref, patch_ref) = refs

        x = x_ref[0]                                          # (H, W, Cin)
        _fill_padded(xpad_ref, x, H, W)
        _fill_patches(patch_ref, xpad_ref[...], Ho, Wo, stride)

        # conv1 as ONE MXU matmul per image: (P, 9*Cin) @ (9*Cin, Cout)
        c1 = jnp.dot(patch_ref[...], w1_ref[...],
                     preferred_element_type=jnp.float32)
        c1_ref[0] = c1
        # per-image partial statistics for the two-phase BatchNorm
        s1_ref[0] = jnp.sum(c1, axis=0, keepdims=True)
        q1_ref[0] = jnp.sum(c1 * c1, axis=0, keepdims=True)

        if use_proj:
            # 1x1 conv shortcut: strided center sampling (no padding).
            xs = lax.slice(
                x, (0, 0, 0),
                ((Ho - 1) * stride + 1, (Wo - 1) * stride + 1, Cin),
                (stride, stride, 1))                          # (Ho, Wo, Cin)
            sc = jnp.dot(xs.reshape(P, Cin), ws_ref[...],
                         preferred_element_type=jnp.float32)
            sc_ref[0] = sc
            ss_ref[0] = jnp.sum(sc, axis=0, keepdims=True)
            qs_ref[0] = jnp.sum(sc * sc, axis=0, keepdims=True)

    return kernel


# --------------------------------------------------------------------------- #
# Pass 2: folded BN1 + ReLU, conv2, per-image BN2 partial sums
# --------------------------------------------------------------------------- #
def _make_pass2(Ho, Wo, Cout):
    def kernel(c1_ref, scale1_ref, bias1_ref, w2_ref,
               relu_ref, c2_ref, s2_ref, q2_ref,
               rpad_ref, patch_ref):
        # BN folded to a single scale/bias (computed from global batch stats).
        r1 = jnp.maximum(c1_ref[0] * scale1_ref[...] + bias1_ref[...], 0.0)
        relu_ref[0] = r1

        _fill_padded(rpad_ref, r1.reshape(Ho, Wo, Cout), Ho, Wo)
        _fill_patches(patch_ref, rpad_ref[...], Ho, Wo, 1)

        c2 = jnp.dot(patch_ref[...], w2_ref[...],
                     preferred_element_type=jnp.float32)
        c2_ref[0] = c2
        s2_ref[0] = jnp.sum(c2, axis=0, keepdims=True)
        q2_ref[0] = jnp.sum(c2 * c2, axis=0, keepdims=True)

    return kernel


# --------------------------------------------------------------------------- #
# Pass 3: folded BN2 + folded shortcut-BN + residual add + final ReLU
# --------------------------------------------------------------------------- #
def _pass3_kernel(c2_ref, sc_ref, scale2_ref, bias2_ref, scs_ref, bcs_ref,
                  out_ref, bn2_ref):
    bn2 = c2_ref[0] * scale2_ref[...] + bias2_ref[...]
    sh = sc_ref[0] * scs_ref[...] + bcs_ref[...]       # identity uses scale=1, bias=0
    bn2_ref[0] = bn2
    out_ref[0] = jnp.maximum(bn2 + sh, 0.0)


# --------------------------------------------------------------------------- #
# Wrapper
# --------------------------------------------------------------------------- #
def _bn_fold(s, q, count, gamma, beta):
    """Global batch stats from per-image partial sums -> folded scale/bias."""
    mean = jnp.sum(s, axis=0) / count                     # (1, C)
    var = jnp.sum(q, axis=0) / count - mean * mean        # biased variance
    scale = gamma.reshape(1, -1) * lax.rsqrt(var + EPS)
    bias = beta.reshape(1, -1) - mean * scale
    return scale, bias


@functools.partial(jax.jit, static_argnums=(2,))
def basic_block_forward(x_nchw, params, stride):
    """BasicBlock forward. x_nchw: (N, Cin, H, W) f32. Returns (out, [relu, bn2])."""
    N, Cin, H, W = x_nchw.shape
    Cout = params["w1"].shape[0]
    use_proj = (stride != 1) or (Cin != Cout)

    Ho = (H + 2 - 3) // stride + 1
    Wo = (W + 2 - 3) // stride + 1
    P = Ho * Wo

    # Layout glue (cheap, done once): NCHW -> NHWC activations,
    # OIHW -> (9*Ci, Co) conv weights matching the in-kernel im2col order.
    x = jnp.transpose(x_nchw, (0, 2, 3, 1)).astype(jnp.float32)
    w1 = jnp.transpose(params["w1"], (2, 3, 1, 0)).reshape(9 * Cin, Cout)
    w2 = jnp.transpose(params["w2"], (2, 3, 1, 0)).reshape(9 * Cout, Cout)

    cparams = pltpu.CompilerParams(dimension_semantics=("parallel",),
                                   vmem_limit_bytes=VMEM_LIMIT_BYTES)

    img_spec = lambda C: pl.BlockSpec((1, P, C), lambda i: (i, 0, 0))
    stat_spec = lambda C: pl.BlockSpec((1, 1, C), lambda i: (i, 0, 0))
    full_spec = lambda shape: pl.BlockSpec(shape, lambda i: (0,) * len(shape))

    img_sds = jax.ShapeDtypeStruct((N, P, Cout), jnp.float32)
    stat_sds = jax.ShapeDtypeStruct((N, 1, Cout), jnp.float32)

    # ---------------- pass 1: conv1 (+ projection conv) + partial BN stats ----
    p1_kernel = _make_pass1(H, W, Cin, Ho, Wo, stride, use_proj)
    p1_in = [x, w1]
    p1_in_specs = [pl.BlockSpec((1, H, W, Cin), lambda i: (i, 0, 0, 0)),
                   full_spec((9 * Cin, Cout))]
    p1_out_shape = [img_sds, stat_sds, stat_sds]
    p1_out_specs = [img_spec(Cout), stat_spec(Cout), stat_spec(Cout)]
    if use_proj:
        ws = jnp.transpose(params["ws"][:, :, 0, 0], (1, 0))   # (Cin, Cout)
        p1_in.append(ws)
        p1_in_specs.append(full_spec((Cin, Cout)))
        p1_out_shape += [img_sds, stat_sds, stat_sds]
        p1_out_specs += [img_spec(Cout), stat_spec(Cout), stat_spec(Cout)]

    p1_out = pl.pallas_call(
        p1_kernel,
        grid=(N,),
        in_specs=p1_in_specs,
        out_specs=tuple(p1_out_specs),
        out_shape=tuple(p1_out_shape),
        scratch_shapes=[pltpu.VMEM((H + 2, W + 2, Cin), jnp.float32),
                        pltpu.VMEM((P, 9 * Cin), jnp.float32)],
        compiler_params=cparams,
    )(*p1_in)
    if use_proj:
        c1, s1, q1, sc, ss, qs = p1_out
    else:
        c1, s1, q1 = p1_out

    count = float(N * P)
    scale1, bias1 = _bn_fold(s1, q1, count, params["g1"], params["b1"])

    # ---------------- pass 2: BN1(fold)+ReLU, conv2, partial BN2 stats --------
    p2_kernel = _make_pass2(Ho, Wo, Cout)
    relu, c2, s2, q2 = pl.pallas_call(
        p2_kernel,
        grid=(N,),
        in_specs=[img_spec(Cout), full_spec((1, Cout)), full_spec((1, Cout)),
                  full_spec((9 * Cout, Cout))],
        out_specs=(img_spec(Cout), img_spec(Cout), stat_spec(Cout), stat_spec(Cout)),
        out_shape=(img_sds, img_sds, stat_sds, stat_sds),
        scratch_shapes=[pltpu.VMEM((Ho + 2, Wo + 2, Cout), jnp.float32),
                        pltpu.VMEM((P, 9 * Cout), jnp.float32)],
        compiler_params=cparams,
    )(c1, scale1, bias1, w2)

    scale2, bias2 = _bn_fold(s2, q2, count, params["g2"], params["b2"])
    if use_proj:
        scale_s, bias_s = _bn_fold(ss, qs, count, params["gs"], params["bs"])
        shortcut = sc
    else:
        # identity shortcut (stride == 1 and Cin == Cout): x * 1 + 0 is exact
        scale_s = jnp.ones((1, Cout), jnp.float32)
        bias_s = jnp.zeros((1, Cout), jnp.float32)
        shortcut = x.reshape(N, P, Cout)

    # ---------------- pass 3: folded BN2 / shortcut-BN + residual ReLU --------
    out, bn2 = pl.pallas_call(
        _pass3_kernel,
        grid=(N,),
        in_specs=[img_spec(Cout), img_spec(Cout)] + [full_spec((1, Cout))] * 4,
        out_specs=(img_spec(Cout), img_spec(Cout)),
        out_shape=(img_sds, img_sds),
        compiler_params=cparams,
    )(c2, shortcut, scale2, bias2, scale_s, bias_s)

    def to_nchw(t):
        return jnp.transpose(t.reshape(N, Ho, Wo, Cout), (0, 3, 1, 2))

    return to_nchw(out), [to_nchw(relu), to_nchw(bn2)]


# --------------------------------------------------------------------------- #
# Test scaffolding
# --------------------------------------------------------------------------- #
def init_params(key, Cin, Cout, stride):
    k1, k2, k3 = jax.random.split(key, 3)
    p = {
        "w1": 0.1 * jax.random.normal(k1, (Cout, Cin, 3, 3), jnp.float32),
        "g1": jnp.ones((Cout,), jnp.float32),
        "b1": jnp.zeros((Cout,), jnp.float32),
        "w2": 0.1 * jax.random.normal(k2, (Cout, Cout, 3, 3), jnp.float32),
        "g2": jnp.ones((Cout,), jnp.float32),
        "b2": jnp.zeros((Cout,), jnp.float32),
    }
    if stride != 1 or Cin != Cout:
        p["ws"] = 0.1 * jax.random.normal(k3, (Cout, Cin, 1, 1), jnp.float32)
        p["gs"] = jnp.ones((Cout,), jnp.float32)
        p["bs"] = jnp.zeros((Cout,), jnp.float32)
    return p


def ref_forward(x, p, stride):
    """Pure-JAX (XLA) reference of the PyTorch forward, NCHW."""
    def conv(x, w, s, pad):
        return lax.conv_general_dilated(
            x, w, (s, s), [(pad, pad), (pad, pad)],
            dimension_numbers=("NCHW", "OIHW", "NCHW"))

    def bn(x, g, b):
        mean = jnp.mean(x, axis=(0, 2, 3), keepdims=True)
        var = jnp.mean((x - mean) ** 2, axis=(0, 2, 3), keepdims=True)
        return ((x - mean) * lax.rsqrt(var + EPS) * g.reshape(1, -1, 1, 1)
                + b.reshape(1, -1, 1, 1))

    c1 = conv(x, p["w1"], stride, 1)
    r1 = jnp.maximum(bn(c1, p["g1"], p["b1"]), 0.0)
    c2 = conv(r1, p["w2"], 1, 1)
    b2 = bn(c2, p["g2"], p["b2"])
    if "ws" in p:
        sc = bn(conv(x, p["ws"], stride, 0), p["gs"], p["bs"])
    else:
        sc = x
    return jnp.maximum(b2 + sc, 0.0), r1, b2


if __name__ == "__main__":
    N, Cin, Cout, H, W, stride = 2, 4, 8, 16, 16, 1  # Cin != Cout -> projection shortcut
    key = jax.random.PRNGKey(0)
    kx, kp = jax.random.split(key)
    x = jax.random.normal(kx, (N, Cin, H, W), jnp.float32)
    params = init_params(kp, Cin, Cout, stride)

    out, aux = basic_block_forward(x, params, stride)
    jax.block_until_ready((out, aux))

    r_out, r_relu, r_bn2 = ref_forward(x, params, stride)
    assert out.shape == (N, Cout, H, W)
    assert aux[0].shape == (N, Cout, H, W) and aux[1].shape == (N, Cout, H, W)
    assert jnp.allclose(out, r_out, rtol=5e-4, atol=5e-4)
    assert jnp.allclose(aux[0], r_relu, rtol=5e-4, atol=5e-4)
    assert jnp.allclose(aux[1], r_bn2, rtol=5e-4, atol=5e-4)
    print("KERNEL_OK")
</pallas_src>

<mosaic_0001>
module attributes {stable_mosaic.version = 11 : i64} {
  func.func @kernel(%arg0: i32, %arg1: memref<1x16x16x4xf32, #tpu.memory_space<vmem>>, %arg2: memref<36x8xf32, #tpu.memory_space<vmem>>, %arg3: memref<4x8xf32, #tpu.memory_space<vmem>>, %arg4: memref<1x256x8xf32, #tpu.memory_space<vmem>>, %arg5: memref<1x1x8xf32, #tpu.memory_space<vmem>>, %arg6: memref<1x1x8xf32, #tpu.memory_space<vmem>>, %arg7: memref<1x256x8xf32, #tpu.memory_space<vmem>>, %arg8: memref<1x1x8xf32, #tpu.memory_space<vmem>>, %arg9: memref<1x1x8xf32, #tpu.memory_space<vmem>>, %arg10: memref<18x18x4xf32, #tpu.memory_space<vmem>>, %arg11: memref<256x36xf32, #tpu.memory_space<vmem>>) attributes {dimension_semantics = [#tpu.dimension_semantics<parallel>], iteration_bounds = array<i64: 2>, scalar_prefetch = 0 : i64, scratch_operands = 2 : i64, tpu.core_type = #tpu.core_type<tc>, window_params = [{transform_indices = @transform_0, window_bounds = array<i64: 1, 16, 16, 4>}, {pipeline_mode = #tpu.pipeline_mode<synchronous>, transform_indices = @transform_1, window_bounds = array<i64: 36, 8>}, {pipeline_mode = #tpu.pipeline_mode<synchronous>, transform_indices = @transform_2, window_bounds = array<i64: 4, 8>}, {transform_indices = @transform_3, window_bounds = array<i64: 1, 256, 8>}, {transform_indices = @transform_4, window_bounds = array<i64: 1, 1, 8>}, {transform_indices = @transform_5, window_bounds = array<i64: 1, 1, 8>}, {transform_indices = @transform_6, window_bounds = array<i64: 1, 256, 8>}, {transform_indices = @transform_7, window_bounds = array<i64: 1, 1, 8>}, {transform_indices = @transform_8, window_bounds = array<i64: 1, 1, 8>}]} {
    %c0 = arith.constant 0 : index
    %c0_0 = arith.constant 0 : index
    %c0_1 = arith.constant 0 : index
    %c0_2 = arith.constant 0 : index
    %0 = vector.load %arg1[%c0, %c0_0, %c0_1, %c0_2] : memref<1x16x16x4xf32, #tpu.memory_space<vmem>>, vector<1x16x16x4xf32>
    %1 = vector.shape_cast %0 : vector<1x16x16x4xf32> to vector<16x16x4xf32>
    %cst = arith.constant 0.000000e+00 : f32
    %2 = vector.broadcast %cst : f32 to vector<1x18x4xf32>
    %cst_3 = arith.constant 0.000000e+00 : f32
    %3 = vector.broadcast %cst_3 : f32 to vector<18x1x4xf32>
    %c0_4 = arith.constant 0 : index
    %c0_5 = arith.constant 0 : index
    %c0_6 = arith.constant 0 : index
    %4 = vector.load %arg10[%c0_4, %c0_5, %c0_6] : memref<18x18x4xf32, #tpu.memory_space<vmem>>, vector<1x18x4xf32>
    tpu.vector_store %arg10[%c0_4, %c0_5, %c0_6], %2 {strides = array<i32>} : memref<18x18x4xf32, #tpu.memory_space<vmem>>, vector<1x18x4xf32>,
    %c17 = arith.constant 17 : index
    %c0_7 = arith.constant 0 : index
    %c0_8 = arith.constant 0 : index
    %5 = vector.load %arg10[%c17, %c0_7, %c0_8] : memref<18x18x4xf32, #tpu.memory_space<vmem>>, vector<1x18x4xf32>
    tpu.vector_store %arg10[%c17, %c0_7, %c0_8], %2 {strides = array<i32>} : memref<18x18x4xf32, #tpu.memory_space<vmem>>, vector<1x18x4xf32>,
    %c0_9 = arith.constant 0 : index
    %c0_10 = arith.constant 0 : index
    %c0_11 = arith.constant 0 : index
    %6 = vector.load %arg10[%c0_9, %c0_10, %c0_11] : memref<18x18x4xf32, #tpu.memory_space<vmem>>, vector<18x1x4xf32>
    tpu.vector_store %arg10[%c0_9, %c0_10, %c0_11], %3 {strides = array<i32>} : memref<18x18x4xf32, #tpu.memory_space<vmem>>, vector<18x1x4xf32>,
    %c0_12 = arith.constant 0 : index
    %c17_13 = arith.constant 17 : index
    %c0_14 = arith.constant 0 : index
    %7 = vector.load %arg10[%c0_12, %c17_13, %c0_14] : memref<18x18x4xf32, #tpu.memory_space<vmem>>, vector<18x1x4xf32>
    tpu.vector_store %arg10[%c0_12, %c17_13, %c0_14], %3 {strides = array<i32>} : memref<18x18x4xf32, #tpu.memory_space<vmem>>, vector<18x1x4xf32>,
    %c1 = arith.constant 1 : index
    %c1_15 = arith.constant 1 : index
    %c0_16 = arith.constant 0 : index
    %8 = vector.load %arg10[%c1, %c1_15, %c0_16] : memref<18x18x4xf32, #tpu.memory_space<vmem>>, vector<16x16x4xf32>
    tpu.vector_store %arg10[%c1, %c1_15, %c0_16], %1 {strides = array<i32>} : memref<18x18x4xf32, #tpu.memory_space<vmem>>, vector<16x16x4xf32>,
    %c0_17 = arith.constant 0 : index
    %c0_18 = arith.constant 0 : index
    %c0_19 = arith.constant 0 : index
    %9 = vector.load %arg10[%c0_17, %c0_18, %c0_19] : memref<18x18x4xf32, #tpu.memory_space<vmem>>, vector<18x18x4xf32>
    %10 = vector.extract_strided_slice %9 {offsets = [0, 0, 0], sizes = [16, 16, 4], strides = [1, 1, 1]} : vector<18x18x4xf32> to vector<16x16x4xf32>
    %11 = vector.shape_cast %10 : vector<16x16x4xf32> to vector<256x4xf32>
    %c0_20 = arith.constant 0 : index
    %c0_21 = arith.constant 0 : index
    %12 = vector.load %arg11[%c0_20, %c0_21] : memref<256x36xf32, #tpu.memory_space<vmem>>, vector<256x4xf32>
    tpu.vector_store %arg11[%c0_20, %c0_21], %11 {strides = array<i32>} : memref<256x36xf32, #tpu.memory_space<vmem>>, vector<256x4xf32>,
    %13 = vector.extract_strided_slice %9 {offsets = [0, 1, 0], sizes = [16, 16, 4], strides = [1, 1, 1]} : vector<18x18x4xf32> to vector<16x16x4xf32>
    %14 = vector.shape_cast %13 : vector<16x16x4xf32> to vector<256x4xf32>
    %c0_22 = arith.constant 0 : index
    %c4 = arith.constant 4 : index
    %15 = vector.load %arg11[%c0_22, %c4] : memref<256x36xf32, #tpu.memory_space<vmem>>, vector<256x4xf32>
    tpu.vector_store %arg11[%c0_22, %c4], %14 {strides = array<i32>} : memref<256x36xf32, #tpu.memory_space<vmem>>, vector<256x4xf32>,
    %16 = vector.extract_strided_slice %9 {offsets = [0, 2, 0], sizes = [16, 16, 4], strides = [1, 1, 1]} : vector<18x18x4xf32> to vector<16x16x4xf32>
    %17 = vector.shape_cast %16 : vector<16x16x4xf32> to vector<256x4xf32>
    %c0_23 = arith.constant 0 : index
    %c8 = arith.constant 8 : index
    %18 = vector.load %arg11[%c0_23, %c8] : memref<256x36xf32, #tpu.memory_space<vmem>>, vector<256x4xf32>
    tpu.vector_store %arg11[%c0_23, %c8], %17 {strides = array<i32>} : memref<256x36xf32, #tpu.memory_space<vmem>>, vector<256x4xf32>,
    %19 = vector.extract_strided_slice %9 {offsets = [1, 0, 0], sizes = [16, 16, 4], strides = [1, 1, 1]} : vector<18x18x4xf32> to vector<16x16x4xf32>
    %20 = vector.shape_cast %19 : vector<16x16x4xf32> to vector<256x4xf32>
    %c0_24 = arith.constant 0 : index
    %c12 = arith.constant 12 : index
    %21 = vector.load %arg11[%c0_24, %c12] : memref<256x36xf32, #tpu.memory_space<vmem>>, vector<256x4xf32>
    tpu.vector_store %arg11[%c0_24, %c12], %20 {strides = array<i32>} : memref<256x36xf32, #tpu.memory_space<vmem>>, vector<256x4xf32>,
    %22 = vector.extract_strided_slice %9 {offsets = [1, 1, 0], sizes = [16, 16, 4], strides = [1, 1, 1]} : vector<18x18x4xf32> to vector<16x16x4xf32>
    %23 = vector.shape_cast %22 : vector<16x16x4xf32> to vector<256x4xf32>
    %c0_25 = arith.constant 0 : index
    %c16 = arith.constant 16 : index
    %24 = vector.load %arg11[%c0_25, %c16] : memref<256x36xf32, #tpu.memory_space<vmem>>, vector<256x4xf32>
    tpu.vector_store %arg11[%c0_25, %c16], %23 {strides = array<i32>} : memref<256x36xf32, #tpu.memory_space<vmem>>, vector<256x4xf32>,
    %25 = vector.extract_strided_slice %9 {offsets = [1, 2, 0], sizes = [16, 16, 4], strides = [1, 1, 1]} : vector<18x18x4xf32> to vector<16x16x4xf32>
    %26 = vector.shape_cast %25 : vector<16x16x4xf32> to vector<256x4xf32>
    %c0_26 = arith.constant 0 : index
    %c20 = arith.constant 20 : index
    %27 = vector.load %arg11[%c0_26, %c20] : memref<256x36xf32, #tpu.memory_space<vmem>>, vector<256x4xf32>
    tpu.vector_store %arg11[%c0_26, %c20], %26 {strides = array<i32>} : memref<256x36xf32, #tpu.memory_space<vmem>>, vector<256x4xf32>,
    %28 = vector.extract_strided_slice %9 {offsets = [2, 0, 0], sizes = [16, 16, 4], strides = [1, 1, 1]} : vector<18x18x4xf32> to vector<16x16x4xf32>
    %29 = vector.shape_cast %28 : vector<16x16x4xf32> to vector<256x4xf32>
    %c0_27 = arith.constant 0 : index
    %c24 = arith.constant 24 : index
    %30 = vector.load %arg11[%c0_27, %c24] : memref<256x36xf32, #tpu.memory_space<vmem>>, vector<256x4xf32>
    tpu.vector_store %arg11[%c0_27, %c24], %29 {strides = array<i32>} : memref<256x36xf32, #tpu.memory_space<vmem>>, vector<256x4xf32>,
    %31 = vector.extract_strided_slice %9 {offsets = [2, 1, 0], sizes = [16, 16, 4], strides = [1, 1, 1]} : vector<18x18x4xf32> to vector<16x16x4xf32>
    %32 = vector.shape_cast %31 : vector<16x16x4xf32> to vector<256x4xf32>
    %c0_28 = arith.constant 0 : index
    %c28 = arith.constant 28 : index
    %33 = vector.load %arg11[%c0_28, %c28] : memref<256x36xf32, #tpu.memory_space<vmem>>, vector<256x4xf32>
    tpu.vector_store %arg11[%c0_28, %c28], %32 {strides = array<i32>} : memref<256x36xf32, #tpu.memory_space<vmem>>, vector<256x4xf32>,
    %34 = vector.extract_strided_slice %9 {offsets = [2, 2, 0], sizes = [16, 16, 4], strides = [1, 1, 1]} : vector<18x18x4xf32> to vector<16x16x4xf32>
    %35 = vector.shape_cast %34 : vector<16x16x4xf32> to vector<256x4xf32>
    %c0_29 = arith.constant 0 : index
    %c32 = arith.constant 32 : index
    %36 = vector.load %arg11[%c0_29, %c32] : memref<256x36xf32, #tpu.memory_space<vmem>>, vector<256x4xf32>
    tpu.vector_store %arg11[%c0_29, %c32], %35 {strides = array<i32>} : memref<256x36xf32, #tpu.memory_space<vmem>>, vector<256x4xf32>,
    %c0_30 = arith.constant 0 : index
    %c0_31 = arith.constant 0 : index
    %37 = vector.load %arg11[%c0_30, %c0_31] : memref<256x36xf32, #tpu.memory_space<vmem>>, vector<256x36xf32>
    %c0_32 = arith.constant 0 : index
    %c0_33 = arith.constant 0 : index
    %38 = vector.load %arg2[%c0_32, %c0_33] : memref<36x8xf32, #tpu.memory_space<vmem>>, vector<36x8xf32>
    %cst_34 = arith.constant dense<0.000000e+00> : vector<256x8xf32>
    %39 = tpu.matmul %37, %38, %cst_34 {dimension_numbers = #tpu.dot_dimension_numbers<[1], [0], [0], [1], [0, 0, 1, 1], [], []>} : vector<256x36xf32>, vector<36x8xf32>, vector<256x8xf32> -> vector<256x8xf32>
    %c0_35 = arith.constant 0 : index
    %c0_36 = arith.constant 0 : index
    %c0_37 = arith.constant 0 : index
    %40 = vector.load %arg4[%c0_35, %c0_36, %c0_37] : memref<1x256x8xf32, #tpu.memory_space<vmem>>, vector<1x256x8xf32>
    %41 = vector.shape_cast %40 : vector<1x256x8xf32> to vector<256x8xf32>
    %42 = vector.shape_cast %39 : vector<256x8xf32> to vector<1x256x8xf32>
    tpu.vector_store %arg4[%c0_35, %c0_36, %c0_37], %42 {strides = array<i32>} : memref<1x256x8xf32, #tpu.memory_space<vmem>>, vector<1x256x8xf32>,
    %cst_38 = arith.constant dense<0.000000e+00> : vector<8xf32>
    %43 = vector.multi_reduction <add>, %39, %cst_38 [0] : vector<256x8xf32> to vector<8xf32>
    %44 = vector.shape_cast %43 : vector<8xf32> to vector<1x8xf32>
    %c0_39 = arith.constant 0 : index
    %c0_40 = arith.constant 0 : index
    %c0_41 = arith.constant 0 : index
    %45 = vector.load %arg5[%c0_39, %c0_40, %c0_41] : memref<1x1x8xf32, #tpu.memory_space<vmem>>, vector<1x1x8xf32>
    %46 = vector.shape_cast %45 : vector<1x1x8xf32> to vector<1x8xf32>
    %47 = vector.shape_cast %44 : vector<1x8xf32> to vector<1x1x8xf32>
    tpu.vector_store %arg5[%c0_39, %c0_40, %c0_41], %47 {strides = array<i32>} : memref<1x1x8xf32, #tpu.memory_space<vmem>>, vector<1x1x8xf32>,
    %48 = arith.mulf %39, %39 : vector<256x8xf32>
    %cst_42 = arith.constant dense<0.000000e+00> : vector<8xf32>
    %49 = vector.multi_reduction <add>, %48, %cst_42 [0] : vector<256x8xf32> to vector<8xf32>
    %50 = vector.shape_cast %49 : vector<8xf32> to vector<1x8xf32>
    %c0_43 = arith.constant 0 : index
    %c0_44 = arith.constant 0 : index
    %c0_45 = arith.constant 0 : index
    %51 = vector.load %arg6[%c0_43, %c0_44, %c0_45] : memref<1x1x8xf32, #tpu.memory_space<vmem>>, vector<1x1x8xf32>
    %52 = vector.shape_cast %51 : vector<1x1x8xf32> to vector<1x8xf32>
    %53 = vector.shape_cast %50 : vector<1x8xf32> to vector<1x1x8xf32>
    tpu.vector_store %arg6[%c0_43, %c0_44, %c0_45], %53 {strides = array<i32>} : memref<1x1x8xf32, #tpu.memory_space<vmem>>, vector<1x1x8xf32>,
    %54 = vector.extract_strided_slice %1 {offsets = [0, 0, 0], sizes = [16, 16, 4], strides = [1, 1, 1]} : vector<16x16x4xf32> to vector<16x16x4xf32>
    %55 = vector.shape_cast %54 : vector<16x16x4xf32> to vector<256x4xf32>
    %c0_46 = arith.constant 0 : index
    %c0_47 = arith.constant 0 : index
    %56 = vector.load %arg3[%c0_46, %c0_47] : memref<4x8xf32, #tpu.memory_space<vmem>>, vector<4x8xf32>
    %cst_48 = arith.constant dense<0.000000e+00> : vector<256x8xf32>
    %57 = tpu.matmul %55, %56, %cst_48 {dimension_numbers = #tpu.dot_dimension_numbers<[1], [0], [0], [1], [0, 0, 1, 1], [], []>} : vector<256x4xf32>, vector<4x8xf32>, vector<256x8xf32> -> vector<256x8xf32>
    %c0_49 = arith.constant 0 : index
    %c0_50 = arith.constant 0 : index
    %c0_51 = arith.constant 0 : index
    %58 = vector.load %arg7[%c0_49, %c0_50, %c0_51] : memref<1x256x8xf32, #tpu.memory_space<vmem>>, vector<1x256x8xf32>
    %59 = vector.shape_cast %58 : vector<1x256x8xf32> to vector<256x8xf32>
    %60 = vector.shape_cast %57 : vector<256x8xf32> to vector<1x256x8xf32>
    tpu.vector_store %arg7[%c0_49, %c0_50, %c0_51], %60 {strides = array<i32>} : memref<1x256x8xf32, #tpu.memory_space<vmem>>, vector<1x256x8xf32>,
    %cst_52 = arith.constant dense<0.000000e+00> : vector<8xf32>
    %61 = vector.multi_reduction <add>, %57, %cst_52 [0] : vector<256x8xf32> to vector<8xf32>
    %62 = vector.shape_cast %61 : vector<8xf32> to vector<1x8xf32>
    %c0_53 = arith.constant 0 : index
    %c0_54 = arith.constant 0 : index
    %c0_55 = arith.constant 0 : index
    %63 = vector.load %arg8[%c0_53, %c0_54, %c0_55] : memref<1x1x8xf32, #tpu.memory_space<vmem>>, vector<1x1x8xf32>
    %64 = vector.shape_cast %63 : vector<1x1x8xf32> to vector<1x8xf32>
    %65 = vector.shape_cast %62 : vector<1x8xf32> to vector<1x1x8xf32>
    tpu.vector_store %arg8[%c0_53, %c0_54, %c0_55], %65 {strides = array<i32>} : memref<1x1x8xf32, #tpu.memory_space<vmem>>, vector<1x1x8xf32>,
    %66 = arith.mulf %57, %57 : vector<256x8xf32>
    %cst_56 = arith.constant dense<0.000000e+00> : vector<8xf32>
    %67 = vector.multi_reduction <add>, %66, %cst_56 [0] : vector<256x8xf32> to vector<8xf32>
    %68 = vector.shape_cast %67 : vector<8xf32> to vector<1x8xf32>
    %c0_57 = arith.constant 0 : index
    %c0_58 = arith.constant 0 : index
    %c0_59 = arith.constant 0 : index
    %69 = vector.load %arg9[%c0_57, %c0_58, %c0_59] : memref<1x1x8xf32, #tpu.memory_space<vmem>>, vector<1x1x8xf32>
    %70 = vector.shape_cast %69 : vector<1x1x8xf32> to vector<1x8xf32>
    %71 = vector.shape_cast %68 : vector<1x8xf32> to vector<1x1x8xf32>
    tpu.vector_store %arg9[%c0_57, %c0_58, %c0_59], %71 {strides = array<i32>} : memref<1x1x8xf32, #tpu.memory_space<vmem>>, vector<1x1x8xf32>,
    return
  }
  func.func @transform_0(%arg0: i32) -> (i32, i32, i32, i32) {
    %c0_i32 = arith.constant 0 : i32
    %c0_i32_0 = arith.constant 0 : i32
    %c0_i32_1 = arith.constant 0 : i32
    %c0_i32_2 = arith.constant 0 : i32
    return %arg0, %c0_i32, %c0_i32_0, %c0_i32_1 : i32, i32, i32, i32
  }
  func.func @transform_1(%arg0: i32) -> (i32, i32) {
    %c0_i32 = arith.constant 0 : i32
    %c0_i32_0 = arith.constant 0 : i32
    %c0_i32_1 = arith.constant 0 : i32
    return %c0_i32, %c0_i32_0 : i32, i32
  }
  func.func @transform_2(%arg0: i32) -> (i32, i32) {
    %c0_i32 = arith.constant 0 : i32
    %c0_i32_0 = arith.constant 0 : i32
    %c0_i32_1 = arith.constant 0 : i32
    return %c0_i32, %c0_i32_0 : i32, i32
  }
  func.func @transform_3(%arg0: i32) -> (i32, i32, i32) {
    %c0_i32 = arith.constant 0 : i32
    %c0_i32_0 = arith.constant 0 : i32
    %c0_i32_1 = arith.constant 0 : i32
    return %arg0, %c0_i32, %c0_i32_0 : i32, i32, i32
  }
  func.func @transform_4(%arg0: i32) -> (i32, i32, i32) {
    %c0_i32 = arith.constant 0 : i32
    %c0_i32_0 = arith.constant 0 : i32
    %c0_i32_1 = arith.constant 0 : i32
    return %arg0, %c0_i32, %c0_i32_0 : i32, i32, i32
  }
  func.func @transform_5(%arg0: i32) -> (i32, i32, i32) {
    %c0_i32 = arith.constant 0 : i32
    %c0_i32_0 = arith.constant 0 : i32
    %c0_i32_1 = arith.constant 0 : i32
    return %arg0, %c0_i32, %c0_i32_0 : i32, i32, i32
  }
  func.func @transform_6(%arg0: i32) -> (i32, i32, i32) {
    %c0_i32 = arith.constant 0 : i32
    %c0_i32_0 = arith.constant 0 : i32
    %c0_i32_1 = arith.constant 0 : i32
    return %arg0, %c0_i32, %c0_i32_0 : i32, i32, i32
  }
  func.func @transform_7(%arg0: i32) -> (i32, i32, i32) {
    %c0_i32 = arith.constant 0 : i32
    %c0_i32_0 = arith.constant 0 : i32
    %c0_i32_1 = arith.constant 0 : i32
    return %arg0, %c0_i32, %c0_i32_0 : i32, i32, i32
  }
  func.func @transform_8(%arg0: i32) -> (i32, i32, i32) {
    %c0_i32 = arith.constant 0 : i32
    %c0_i32_0 = arith.constant 0 : i32
    %c0_i32_1 = arith.constant 0 : i32
    return %arg0, %c0_i32, %c0_i32_0 : i32, i32, i32
  }
}

module attributes {stable_mosaic.version = 11 : i64} {
  func.func @kernel(%arg0: i32, %arg1: memref<1x256x8xf32, #tpu.memory_space<vmem>>, %arg2: memref<1x8xf32, #tpu.memory_space<vmem>>, %arg3: memref<1x8xf32, #tpu.memory_space<vmem>>, %arg4: memref<72x8xf32, #tpu.memory_space<vmem>>, %arg5: memref<1x256x8xf32, #tpu.memory_space<vmem>>, %arg6: memref<1x256x8xf32, #tpu.memory_space<vmem>>, %arg7: memref<1x1x8xf32, #tpu.memory_space<vmem>>, %arg8: memref<1x1x8xf32, #tpu.memory_space<vmem>>, %arg9: memref<18x18x8xf32, #tpu.memory_space<vmem>>, %arg10: memref<256x72xf32, #tpu.memory_space<vmem>>) attributes {dimension_semantics = [#tpu.dimension_semantics<parallel>], iteration_bounds = array<i64: 2>, scalar_prefetch = 0 : i64, scratch_operands = 2 : i64, tpu.core_type = #tpu.core_type<tc>, window_params = [{transform_indices = @transform_0, window_bounds = array<i64: 1, 256, 8>}, {pipeline_mode = #tpu.pipeline_mode<synchronous>, transform_indices = @transform_1, window_bounds = array<i64: 1, 8>}, {pipeline_mode = #tpu.pipeline_mode<synchronous>, transform_indices = @transform_2, window_bounds = array<i64: 1, 8>}, {pipeline_mode = #tpu.pipeline_mode<synchronous>, transform_indices = @transform_3, window_bounds = array<i64: 72, 8>}, {transform_indices = @transform_4, window_bounds = array<i64: 1, 256, 8>}, {transform_indices = @transform_5, window_bounds = array<i64: 1, 256, 8>}, {transform_indices = @transform_6, window_bounds = array<i64: 1, 1, 8>}, {transform_indices = @transform_7, window_bounds = array<i64: 1, 1, 8>}]} {
    %c0 = arith.constant 0 : index
    %c0_0 = arith.constant 0 : index
    %c0_1 = arith.constant 0 : index
    %0 = vector.load %arg1[%c0, %c0_0, %c0_1] : memref<1x256x8xf32, #tpu.memory_space<vmem>>, vector<1x256x8xf32>
    %1 = vector.shape_cast %0 : vector<1x256x8xf32> to vector<256x8xf32>
    %c0_2 = arith.constant 0 : index
    %c0_3 = arith.constant 0 : index
    %2 = vector.load %arg2[%c0_2, %c0_3] : memref<1x8xf32, #tpu.memory_space<vmem>>, vector<1x8xf32>
    %3 = vector.broadcast %2 : vector<1x8xf32> to vector<256x8xf32>
    %4 = arith.mulf %1, %3 : vector<256x8xf32>
    %c0_4 = arith.constant 0 : index
    %c0_5 = arith.constant 0 : index
    %5 = vector.load %arg3[%c0_4, %c0_5] : memref<1x8xf32, #tpu.memory_space<vmem>>, vector<1x8xf32>
    %6 = vector.broadcast %5 : vector<1x8xf32> to vector<256x8xf32>
    %7 = arith.addf %4, %6 : vector<256x8xf32>
    %cst = arith.constant 0.000000e+00 : f32
    %8 = vector.broadcast %cst : f32 to vector<256x8xf32>
    %9 = arith.maximumf %7, %8 : vector<256x8xf32>
    %c0_6 = arith.constant 0 : index
    %c0_7 = arith.constant 0 : index
    %c0_8 = arith.constant 0 : index
    %10 = vector.load %arg5[%c0_6, %c0_7, %c0_8] : memref<1x256x8xf32, #tpu.memory_space<vmem>>, vector<1x256x8xf32>
    %11 = vector.shape_cast %10 : vector<1x256x8xf32> to vector<256x8xf32>
    %12 = vector.shape_cast %9 : vector<256x8xf32> to vector<1x256x8xf32>
    tpu.vector_store %arg5[%c0_6, %c0_7, %c0_8], %12 {strides = array<i32>} : memref<1x256x8xf32, #tpu.memory_space<vmem>>, vector<1x256x8xf32>,
    %13 = vector.shape_cast %9 : vector<256x8xf32> to vector<16x16x8xf32>
    %cst_9 = arith.constant 0.000000e+00 : f32
    %14 = vector.broadcast %cst_9 : f32 to vector<1x18x8xf32>
    %cst_10 = arith.constant 0.000000e+00 : f32
    %15 = vector.broadcast %cst_10 : f32 to vector<18x1x8xf32>
    %c0_11 = arith.constant 0 : index
    %c0_12 = arith.constant 0 : index
    %c0_13 = arith.constant 0 : index
    %16 = vector.load %arg9[%c0_11, %c0_12, %c0_13] : memref<18x18x8xf32, #tpu.memory_space<vmem>>, vector<1x18x8xf32>
    tpu.vector_store %arg9[%c0_11, %c0_12, %c0_13], %14 {strides = array<i32>} : memref<18x18x8xf32, #tpu.memory_space<vmem>>, vector<1x18x8xf32>,
    %c17 = arith.constant 17 : index
    %c0_14 = arith.constant 0 : index
    %c0_15 = arith.constant 0 : index
    %17 = vector.load %arg9[%c17, %c0_14, %c0_15] : memref<18x18x8xf32, #tpu.memory_space<vmem>>, vector<1x18x8xf32>
    tpu.vector_store %arg9[%c17, %c0_14, %c0_15], %14 {strides = array<i32>} : memref<18x18x8xf32, #tpu.memory_space<vmem>>, vector<1x18x8xf32>,
    %c0_16 = arith.constant 0 : index
    %c0_17 = arith.constant 0 : index
    %c0_18 = arith.constant 0 : index
    %18 = vector.load %arg9[%c0_16, %c0_17, %c0_18] : memref<18x18x8xf32, #tpu.memory_space<vmem>>, vector<18x1x8xf32>
    tpu.vector_store %arg9[%c0_16, %c0_17, %c0_18], %15 {strides = array<i32>} : memref<18x18x8xf32, #tpu.memory_space<vmem>>, vector<18x1x8xf32>,
    %c0_19 = arith.constant 0 : index
    %c17_20 = arith.constant 17 : index
    %c0_21 = arith.constant 0 : index
    %19 = vector.load %arg9[%c0_19, %c17_20, %c0_21] : memref<18x18x8xf32, #tpu.memory_space<vmem>>, vector<18x1x8xf32>
    tpu.vector_store %arg9[%c0_19, %c17_20, %c0_21], %15 {strides = array<i32>} : memref<18x18x8xf32, #tpu.memory_space<vmem>>, vector<18x1x8xf32>,
    %c1 = arith.constant 1 : index
    %c1_22 = arith.constant 1 : index
    %c0_23 = arith.constant 0 : index
    %20 = vector.load %arg9[%c1, %c1_22, %c0_23] : memref<18x18x8xf32, #tpu.memory_space<vmem>>, vector<16x16x8xf32>
    tpu.vector_store %arg9[%c1, %c1_22, %c0_23], %13 {strides = array<i32>} : memref<18x18x8xf32, #tpu.memory_space<vmem>>, vector<16x16x8xf32>,
    %c0_24 = arith.constant 0 : index
    %c0_25 = arith.constant 0 : index
    %c0_26 = arith.constant 0 : index
    %21 = vector.load %arg9[%c0_24, %c0_25, %c0_26] : memref<18x18x8xf32, #tpu.memory_space<vmem>>, vector<18x18x8xf32>
    %22 = vector.extract_strided_slice %21 {offsets = [0, 0, 0], sizes = [16, 16, 8], strides = [1, 1, 1]} : vector<18x18x8xf32> to vector<16x16x8xf32>
    %23 = vector.shape_cast %22 : vector<16x16x8xf32> to vector<256x8xf32>
    %c0_27 = arith.constant 0 : index
    %c0_28 = arith.constant 0 : index
    %24 = vector.load %arg10[%c0_27, %c0_28] : memref<256x72xf32, #tpu.memory_space<vmem>>, vector<256x8xf32>
    tpu.vector_store %arg10[%c0_27, %c0_28], %23 {strides = array<i32>} : memref<256x72xf32, #tpu.memory_space<vmem>>, vector<256x8xf32>,
    %25 = vector.extract_strided_slice %21 {offsets = [0, 1, 0], sizes = [16, 16, 8], strides = [1, 1, 1]} : vector<18x18x8xf32> to vector<16x16x8xf32>
    %26 = vector.shape_cast %25 : vector<16x16x8xf32> to vector<256x8xf32>
    %c0_29 = arith.constant 0 : index
    %c8 = arith.constant 8 : index
    %27 = vector.load %arg10[%c0_29, %c8] : memref<256x72xf32, #tpu.memory_space<vmem>>, vector<256x8xf32>
    tpu.vector_store %arg10[%c0_29, %c8], %26 {strides = array<i32>} : memref<256x72xf32, #tpu.memory_space<vmem>>, vector<256x8xf32>,
    %28 = vector.extract_strided_slice %21 {offsets = [0, 2, 0], sizes = [16, 16, 8], strides = [1, 1, 1]} : vector<18x18x8xf32> to vector<16x16x8xf32>
    %29 = vector.shape_cast %28 : vector<16x16x8xf32> to vector<256x8xf32>
    %c0_30 = arith.constant 0 : index
    %c16 = arith.constant 16 : index
    %30 = vector.load %arg10[%c0_30, %c16] : memref<256x72xf32, #tpu.memory_space<vmem>>, vector<256x8xf32>
    tpu.vector_store %arg10[%c0_30, %c16], %29 {strides = array<i32>} : memref<256x72xf32, #tpu.memory_space<vmem>>, vector<256x8xf32>,
    %31 = vector.extract_strided_slice %21 {offsets = [1, 0, 0], sizes = [16, 16, 8], strides = [1, 1, 1]} : vector<18x18x8xf32> to vector<16x16x8xf32>
    %32 = vector.shape_cast %31 : vector<16x16x8xf32> to vector<256x8xf32>
    %c0_31 = arith.constant 0 : index
    %c24 = arith.constant 24 : index
    %33 = vector.load %arg10[%c0_31, %c24] : memref<256x72xf32, #tpu.memory_space<vmem>>, vector<256x8xf32>
    tpu.vector_store %arg10[%c0_31, %c24], %32 {strides = array<i32>} : memref<256x72xf32, #tpu.memory_space<vmem>>, vector<256x8xf32>,
    %34 = vector.extract_strided_slice %21 {offsets = [1, 1, 0], sizes = [16, 16, 8], strides = [1, 1, 1]} : vector<18x18x8xf32> to vector<16x16x8xf32>
    %35 = vector.shape_cast %34 : vector<16x16x8xf32> to vector<256x8xf32>
    %c0_32 = arith.constant 0 : index
    %c32 = arith.constant 32 : index
    %36 = vector.load %arg10[%c0_32, %c32] : memref<256x72xf32, #tpu.memory_space<vmem>>, vector<256x8xf32>
    tpu.vector_store %arg10[%c0_32, %c32], %35 {strides = array<i32>} : memref<256x72xf32, #tpu.memory_space<vmem>>, vector<256x8xf32>,
    %37 = vector.extract_strided_slice %21 {offsets = [1, 2, 0], sizes = [16, 16, 8], strides = [1, 1, 1]} : vector<18x18x8xf32> to vector<16x16x8xf32>
    %38 = vector.shape_cast %37 : vector<16x16x8xf32> to vector<256x8xf32>
    %c0_33 = arith.constant 0 : index
    %c40 = arith.constant 40 : index
    %39 = vector.load %arg10[%c0_33, %c40] : memref<256x72xf32, #tpu.memory_space<vmem>>, vector<256x8xf32>
    tpu.vector_store %arg10[%c0_33, %c40], %38 {strides = array<i32>} : memref<256x72xf32, #tpu.memory_space<vmem>>, vector<256x8xf32>,
    %40 = vector.extract_strided_slice %21 {offsets = [2, 0, 0], sizes = [16, 16, 8], strides = [1, 1, 1]} : vector<18x18x8xf32> to vector<16x16x8xf32>
    %41 = vector.shape_cast %40 : vector<16x16x8xf32> to vector<256x8xf32>
    %c0_34 = arith.constant 0 : index
    %c48 = arith.constant 48 : index
    %42 = vector.load %arg10[%c0_34, %c48] : memref<256x72xf32, #tpu.memory_space<vmem>>, vector<256x8xf32>
    tpu.vector_store %arg10[%c0_34, %c48], %41 {strides = array<i32>} : memref<256x72xf32, #tpu.memory_space<vmem>>, vector<256x8xf32>,
    %43 = vector.extract_strided_slice %21 {offsets = [2, 1, 0], sizes = [16, 16, 8], strides = [1, 1, 1]} : vector<18x18x8xf32> to vector<16x16x8xf32>
    %44 = vector.shape_cast %43 : vector<16x16x8xf32> to vector<256x8xf32>
    %c0_35 = arith.constant 0 : index
    %c56 = arith.constant 56 : index
    %45 = vector.load %arg10[%c0_35, %c56] : memref<256x72xf32, #tpu.memory_space<vmem>>, vector<256x8xf32>
    tpu.vector_store %arg10[%c0_35, %c56], %44 {strides = array<i32>} : memref<256x72xf32, #tpu.memory_space<vmem>>, vector<256x8xf32>,
    %46 = vector.extract_strided_slice %21 {offsets = [2, 2, 0], sizes = [16, 16, 8], strides = [1, 1, 1]} : vector<18x18x8xf32> to vector<16x16x8xf32>
    %47 = vector.shape_cast %46 : vector<16x16x8xf32> to vector<256x8xf32>
    %c0_36 = arith.constant 0 : index
    %c64 = arith.constant 64 : index
    %48 = vector.load %arg10[%c0_36, %c64] : memref<256x72xf32, #tpu.memory_space<vmem>>, vector<256x8xf32>
    tpu.vector_store %arg10[%c0_36, %c64], %47 {strides = array<i32>} : memref<256x72xf32, #tpu.memory_space<vmem>>, vector<256x8xf32>,
    %c0_37 = arith.constant 0 : index
    %c0_38 = arith.constant 0 : index
    %49 = vector.load %arg10[%c0_37, %c0_38] : memref<256x72xf32, #tpu.memory_space<vmem>>, vector<256x72xf32>
    %c0_39 = arith.constant 0 : index
    %c0_40 = arith.constant 0 : index
    %50 = vector.load %arg4[%c0_39, %c0_40] : memref<72x8xf32, #tpu.memory_space<vmem>>, vector<72x8xf32>
    %cst_41 = arith.constant dense<0.000000e+00> : vector<256x8xf32>
    %51 = tpu.matmul %49, %50, %cst_41 {dimension_numbers = #tpu.dot_dimension_numbers<[1], [0], [0], [1], [0, 0, 1, 1], [], []>} : vector<256x72xf32>, vector<72x8xf32>, vector<256x8xf32> -> vector<256x8xf32>
    %c0_42 = arith.constant 0 : index
    %c0_43 = arith.constant 0 : index
    %c0_44 = arith.constant 0 : index
    %52 = vector.load %arg6[%c0_42, %c0_43, %c0_44] : memref<1x256x8xf32, #tpu.memory_space<vmem>>, vector<1x256x8xf32>
    %53 = vector.shape_cast %52 : vector<1x256x8xf32> to vector<256x8xf32>
    %54 = vector.shape_cast %51 : vector<256x8xf32> to vector<1x256x8xf32>
    tpu.vector_store %arg6[%c0_42, %c0_43, %c0_44], %54 {strides = array<i32>} : memref<1x256x8xf32, #tpu.memory_space<vmem>>, vector<1x256x8xf32>,
    %cst_45 = arith.constant dense<0.000000e+00> : vector<8xf32>
    %55 = vector.multi_reduction <add>, %51, %cst_45 [0] : vector<256x8xf32> to vector<8xf32>
    %56 = vector.shape_cast %55 : vector<8xf32> to vector<1x8xf32>
    %c0_46 = arith.constant 0 : index
    %c0_47 = arith.constant 0 : index
    %c0_48 = arith.constant 0 : index
    %57 = vector.load %arg7[%c0_46, %c0_47, %c0_48] : memref<1x1x8xf32, #tpu.memory_space<vmem>>, vector<1x1x8xf32>
    %58 = vector.shape_cast %57 : vector<1x1x8xf32> to vector<1x8xf32>
    %59 = vector.shape_cast %56 : vector<1x8xf32> to vector<1x1x8xf32>
    tpu.vector_store %arg7[%c0_46, %c0_47, %c0_48], %59 {strides = array<i32>} : memref<1x1x8xf32, #tpu.memory_space<vmem>>, vector<1x1x8xf32>,
    %60 = arith.mulf %51, %51 : vector<256x8xf32>
    %cst_49 = arith.constant dense<0.000000e+00> : vector<8xf32>
    %61 = vector.multi_reduction <add>, %60, %cst_49 [0] : vector<256x8xf32> to vector<8xf32>
    %62 = vector.shape_cast %61 : vector<8xf32> to vector<1x8xf32>
    %c0_50 = arith.constant 0 : index
    %c0_51 = arith.constant 0 : index
    %c0_52 = arith.constant 0 : index
    %63 = vector.load %arg8[%c0_50, %c0_51, %c0_52] : memref<1x1x8xf32, #tpu.memory_space<vmem>>, vector<1x1x8xf32>
    %64 = vector.shape_cast %63 : vector<1x1x8xf32> to vector<1x8xf32>
    %65 = vector.shape_cast %62 : vector<1x8xf32> to vector<1x1x8xf32>
    tpu.vector_store %arg8[%c0_50, %c0_51, %c0_52], %65 {strides = array<i32>} : memref<1x1x8xf32, #tpu.memory_space<vmem>>, vector<1x1x8xf32>,
    return
  }
  func.func @transform_0(%arg0: i32) -> (i32, i32, i32) {
    %c0_i32 = arith.constant 0 : i32
    %c0_i32_0 = arith.constant 0 : i32
    %c0_i32_1 = arith.constant 0 : i32
    return %arg0, %c0_i32, %c0_i32_0 : i32, i32, i32
  }
  func.func @transform_1(%arg0: i32) -> (i32, i32) {
    %c0_i32 = arith.constant 0 : i32
    %c0_i32_0 = arith.constant 0 : i32
    %c0_i32_1 = arith.constant 0 : i32
    return %c0_i32, %c0_i32_0 : i32, i32
  }
  func.func @transform_2(%arg0: i32) -> (i32, i32) {
    %c0_i32 = arith.constant 0 : i32
    %c0_i32_0 = arith.constant 0 : i32
    %c0_i32_1 = arith.constant 0 : i32
    return %c0_i32, %c0_i32_0 : i32, i32
  }
  func.func @transform_3(%arg0: i32) -> (i32, i32) {
    %c0_i32 = arith.constant 0 : i32
    %c0_i32_0 = arith.constant 0 : i32
    %c0_i32_1 = arith.constant 0 : i32
    return %c0_i32, %c0_i32_0 : i32, i32
  }
  func.func @transform_4(%arg0: i32) -> (i32, i32, i32) {
    %c0_i32 = arith.constant 0 : i32
    %c0_i32_0 = arith.constant 0 : i32
    %c0_i32_1 = arith.constant 0 : i32
    return %arg0, %c0_i32, %c0_i32_0 : i32, i32, i32
  }
  func.func @transform_5(%arg0: i32) -> (i32, i32, i32) {
    %c0_i32 = arith.constant 0 : i32
    %c0_i32_0 = arith.constant 0 : i32
    %c0_i32_1 = arith.constant 0 : i32
    return %arg0, %c0_i32, %c0_i32_0 : i32, i32, i32
  }
  func.func @transform_6(%arg0: i32) -> (i32, i32, i32) {
    %c0_i32 = arith.constant 0 : i32
    %c0_i32_0 = arith.constant 0 : i32
    %c0_i32_1 = arith.constant 0 : i32
    return %arg0, %c0_i32, %c0_i32_0 : i32, i32, i32
  }
  func.func @transform_7(%arg0: i32) -> (i32, i32, i32) {
    %c0_i32 = arith.constant 0 : i32
    %c0_i32_0 = arith.constant 0 : i32
    %c0_i32_1 = arith.constant 0 : i32
    return %arg0, %c0_i32, %c0_i32_0 : i32, i32, i32
  }
}

module attributes {stable_mosaic.version = 11 : i64} {
  func.func @_pass3_kernel(%arg0: i32, %arg1: memref<1x256x8xf32, #tpu.memory_space<vmem>>, %arg2: memref<1x256x8xf32, #tpu.memory_space<vmem>>, %arg3: memref<1x8xf32, #tpu.memory_space<vmem>>, %arg4: memref<1x8xf32, #tpu.memory_space<vmem>>, %arg5: memref<1x8xf32, #tpu.memory_space<vmem>>, %arg6: memref<1x8xf32, #tpu.memory_space<vmem>>, %arg7: memref<1x256x8xf32, #tpu.memory_space<vmem>>, %arg8: memref<1x256x8xf32, #tpu.memory_space<vmem>>) attributes {dimension_semantics = [#tpu.dimension_semantics<parallel>], iteration_bounds = array<i64: 2>, scalar_prefetch = 0 : i64, scratch_operands = 0 : i64, tpu.core_type = #tpu.core_type<tc>, window_params = [{transform_indices = @transform_0, window_bounds = array<i64: 1, 256, 8>}, {transform_indices = @transform_1, window_bounds = array<i64: 1, 256, 8>}, {pipeline_mode = #tpu.pipeline_mode<synchronous>, transform_indices = @transform_2, window_bounds = array<i64: 1, 8>}, {pipeline_mode = #tpu.pipeline_mode<synchronous>, transform_indices = @transform_3, window_bounds = array<i64: 1, 8>}, {pipeline_mode = #tpu.pipeline_mode<synchronous>, transform_indices = @transform_4, window_bounds = array<i64: 1, 8>}, {pipeline_mode = #tpu.pipeline_mode<synchronous>, transform_indices = @transform_5, window_bounds = array<i64: 1, 8>}, {transform_indices = @transform_6, window_bounds = array<i64: 1, 256, 8>}, {transform_indices = @transform_7, window_bounds = array<i64: 1, 256, 8>}]} {
    %c0 = arith.constant 0 : index
    %c0_0 = arith.constant 0 : index
    %c0_1 = arith.constant 0 : index
    %0 = vector.load %arg1[%c0, %c0_0, %c0_1] : memref<1x256x8xf32, #tpu.memory_space<vmem>>, vector<1x256x8xf32>
    %1 = vector.shape_cast %0 : vector<1x256x8xf32> to vector<256x8xf32>
    %c0_2 = arith.constant 0 : index
    %c0_3 = arith.constant 0 : index
    %2 = vector.load %arg3[%c0_2, %c0_3] : memref<1x8xf32, #tpu.memory_space<vmem>>, vector<1x8xf32>
    %3 = vector.broadcast %2 : vector<1x8xf32> to vector<256x8xf32>
    %4 = arith.mulf %1, %3 : vector<256x8xf32>
    %c0_4 = arith.constant 0 : index
    %c0_5 = arith.constant 0 : index
    %5 = vector.load %arg4[%c0_4, %c0_5] : memref<1x8xf32, #tpu.memory_space<vmem>>, vector<1x8xf32>
    %6 = vector.broadcast %5 : vector<1x8xf32> to vector<256x8xf32>
    %7 = arith.addf %4, %6 : vector<256x8xf32>
    %c0_6 = arith.constant 0 : index
    %c0_7 = arith.constant 0 : index
    %c0_8 = arith.constant 0 : index
    %8 = vector.load %arg2[%c0_6, %c0_7, %c0_8] : memref<1x256x8xf32, #tpu.memory_space<vmem>>, vector<1x256x8xf32>
    %9 = vector.shape_cast %8 : vector<1x256x8xf32> to vector<256x8xf32>
    %c0_9 = arith.constant 0 : index
    %c0_10 = arith.constant 0 : index
    %10 = vector.load %arg5[%c0_9, %c0_10] : memref<1x8xf32, #tpu.memory_space<vmem>>, vector<1x8xf32>
    %11 = vector.broadcast %10 : vector<1x8xf32> to vector<256x8xf32>
    %12 = arith.mulf %9, %11 : vector<256x8xf32>
    %c0_11 = arith.constant 0 : index
    %c0_12 = arith.constant 0 : index
    %13 = vector.load %arg6[%c0_11, %c0_12] : memref<1x8xf32, #tpu.memory_space<vmem>>, vector<1x8xf32>
    %14 = vector.broadcast %13 : vector<1x8xf32> to vector<256x8xf32>
    %15 = arith.addf %12, %14 : vector<256x8xf32>
    %c0_13 = arith.constant 0 : index
    %c0_14 = arith.constant 0 : index
    %c0_15 = arith.constant 0 : index
    %16 = vector.load %arg8[%c0_13, %c0_14, %c0_15] : memref<1x256x8xf32, #tpu.memory_space<vmem>>, vector<1x256x8xf32>
    %17 = vector.shape_cast %16 : vector<1x256x8xf32> to vector<256x8xf32>
    %18 = vector.shape_cast %7 : vector<256x8xf32> to vector<1x256x8xf32>
    tpu.vector_store %arg8[%c0_13, %c0_14, %c0_15], %18 {strides = array<i32>} : memref<1x256x8xf32, #tpu.memory_space<vmem>>, vector<1x256x8xf32>,
    %19 = arith.addf %7, %15 : vector<256x8xf32>
    %cst = arith.constant 0.000000e+00 : f32
    %20 = vector.broadcast %cst : f32 to vector<256x8xf32>
    %21 = arith.maximumf %19, %20 : vector<256x8xf32>
    %c0_16 = arith.constant 0 : index
    %c0_17 = arith.constant 0 : index
    %c0_18 = arith.constant 0 : index
    %22 = vector.load %arg7[%c0_16, %c0_17, %c0_18] : memref<1x256x8xf32, #tpu.memory_space<vmem>>, vector<1x256x8xf32>
    %23 = vector.shape_cast %22 : vector<1x256x8xf32> to vector<256x8xf32>
    %24 = vector.shape_cast %21 : vector<256x8xf32> to vector<1x256x8xf32>
    tpu.vector_store %arg7[%c0_16, %c0_17, %c0_18], %24 {strides = array<i32>} : memref<1x256x8xf32, #tpu.memory_space<vmem>>, vector<1x256x8xf32>,
    return
  }
  func.func @transform_0(%arg0: i32) -> (i32, i32, i32) {
    %c0_i32 = arith.constant 0 : i32
    %c0_i32_0 = arith.constant 0 : i32
    %c0_i32_1 = arith.constant 0 : i32
    return %arg0, %c0_i32, %c0_i32_0 : i32, i32, i32
  }
  func.func @transform_1(%arg0: i32) -> (i32, i32, i32) {
    %c0_i32 = arith.constant 0 : i32
    %c0_i32_0 = arith.constant 0 : i32
    %c0_i32_1 = arith.constant 0 : i32
    return %arg0, %c0_i32, %c0_i32_0 : i32, i32, i32
  }
  func.func @transform_2(%arg0: i32) -> (i32, i32) {
    %c0_i32 = arith.constant 0 : i32
    %c0_i32_0 = arith.constant 0 : i32
    %c0_i32_1 = arith.constant 0 : i32
    return %c0_i32, %c0_i32_0 : i32, i32
  }
  func.func @transform_3(%arg0: i32) -> (i32, i32) {
    %c0_i32 = arith.constant 0 : i32
    %c0_i32_0 = arith.constant 0 : i32
    %c0_i32_1 = arith.constant 0 : i32
    return %c0_i32, %c0_i32_0 : i32, i32
  }
  func.func @transform_4(%arg0: i32) -> (i32, i32) {
    %c0_i32 = arith.constant 0 : i32
    %c0_i32_0 = arith.constant 0 : i32
    %c0_i32_1 = arith.constant 0 : i32
    return %c0_i32, %c0_i32_0 : i32, i32
  }
  func.func @transform_5(%arg0: i32) -> (i32, i32) {
    %c0_i32 = arith.constant 0 : i32
    %c0_i32_0 = arith.constant 0 : i32
    %c0_i32_1 = arith.constant 0 : i32
    return %c0_i32, %c0_i32_0 : i32, i32
  }
  func.func @transform_6(%arg0: i32) -> (i32, i32, i32) {
    %c0_i32 = arith.constant 0 : i32
    %c0_i32_0 = arith.constant 0 : i32
    %c0_i32_1 = arith.constant 0 : i32
    return %arg0, %c0_i32, %c0_i32_0 : i32, i32, i32
  }
  func.func @transform_7(%arg0: i32) -> (i32, i32, i32) {
    %c0_i32 = arith.constant 0 : i32
    %c0_i32_0 = arith.constant 0 : i32
    %c0_i32_1 = arith.constant 0 : i32
    return %arg0, %c0_i32, %c0_i32_0 : i32, i32, i32
  }
}

</mosaic_0001>

<llo_original>
// kernel: basic_block_forward.5
$region0: #{basic_block_forward.5}
  #allocation0 [shape = 'u32[]', space=smem, size = 0x4, offset = 0x4, fixed_abs, tag = 'smem constant byte address 0x4 - core index']
  #allocation1 [shape = 'u32[72,128]{1,0:T(1,128)}', space=vmem, size = 0x9000, scoped, tag = 'internal scratch']
  %s0 = inlined_call_operand.vmem [shape: f32[2,256,8], index: 0, kind: input, shape index: {}]
  %s1 = inlined_call_operand.vmem [shape: f32[2,256,8], index: 1, kind: input, shape index: {}]
  %s2 = inlined_call_operand.vmem [shape: f32[1,8], index: 2, kind: input, shape index: {}]
  %s3 = inlined_call_operand.vmem [shape: f32[1,8], index: 3, kind: input, shape index: {}]
  %s4 = inlined_call_operand.vmem [shape: f32[1,8], index: 4, kind: input, shape index: {}]
  %s5 = inlined_call_operand.vmem [shape: f32[1,8], index: 5, kind: input, shape index: {}]
  %s6 = inlined_call_operand.vmem [shape: f32[2,256,8], index: 6, kind: output, shape index: {0}]
  %s7 = inlined_call_operand.vmem [shape: f32[2,256,8], index: 7, kind: output, shape index: {1}]
  %8 = xla_tuple %s6, %s7
  %s9 = sld [smem:[#allocation0]]
  $region65: #{basic_block_forward.5} parent=0
    _
  %s11 = ssub.s32 1, %s9
  %s12 = scalar_select 0, %s11, %s9
  loop: start=0, step=1, limit=4
  $region2: #{basic_block_forward.5} parent=0 // loop_pre_header
    _
  $region3: #{basic_block_forward.5} parent=0 // loop_header
    %s14 = sphi 0, %s18
    %p15 = scmp.ge.s32.totalorder %s14, 4
    %s24 = sphi 0, %s26
    %s27 = sphi 0, %s24
    %s28 = sphi 0, %s27
    %s44 = sphi 0, %s28
    %s50 = sphi 0, %s52
    %s53 = sphi 0, %s50
    %s54 = sphi 0, %s53
    %s70 = sphi 0, %s54
    %s74 = sphi 0, %s74
    %s76 = sphi 0, %s74
    %s77 = sphi 0, %s76
    %s91 = sphi 0, %s77
    %s95 = sphi 0, %s95
    %s97 = sphi 0, %s95
    %s98 = sphi 0, %s97
    %s112 = sphi 0, %s98
    %s116 = sphi 0, %s116
    %s118 = sphi 0, %s116
    %s119 = sphi 0, %s118
    %s133 = sphi 0, %s119
    %s137 = sphi 0, %s137
    %s139 = sphi 0, %s137
    %s140 = sphi 0, %s139
    %s154 = sphi 0, %s140
    %s160 = sphi 0, %s162
    %s163 = sphi 0, %s160
    %s164 = sphi 0, %s163
    %s180 = sphi 0, %s164
    %s186 = sphi 0, %s188
    %s189 = sphi 0, %s186
    %s190 = sphi 0, %s189
    %s206 = sphi 0, %s190
  $region4: #{basic_block_forward.5} parent=0 // loop_header_branch
    %17 = sbr.rel (%p15) target = $region8
  $region5: #{basic_block_forward.5} parent=0 // loop_body
    %s19 = ssub.s32 %s14, 1
    %s20 = ssub.s32 %s14, 2
    %s21 = sadd.s32 %s14, 1
    %s22 = ssub.s32 %s14, %s21
    %p23 = scmp.eq.s32.totalorder %s22, 0
    %s25 = sadd.s32 %s24, 1
    %s26 = scalar_select %p23, %s24, %s25
    %p29 = pneg %p23
    %p30 = scmp.eq.s32.totalorder %s14, 1
    %p31 = por %p29, %p30
    %p32 = scmp.ne.s32.totalorder %s24, %s27
    %p33 = scmp.eq.s32.totalorder %s14, 0
    %p34 = por %p32, %p33
    %p35 = scmp.ne.s32.totalorder %s24, %s27
    %p36 = scmp.eq.s32.totalorder %s19, 1
    %p37 = por %p35, %p36
    %p38 = scmp.ne.s32.totalorder %s27, %s28
    %p39 = scmp.eq.s32.totalorder %s19, 0
    %p40 = por %p38, %p39
    %p41 = scmp.ne.s32.totalorder %s27, %s28
    %p42 = scmp.eq.s32.totalorder %s20, 1
    %p43 = por %p41, %p42
    %p45 = scmp.ne.s32.totalorder %s28, %s44
    %p46 = scmp.eq.s32.totalorder %s20, 0
    %p47 = por %p45, %p46
    %s48 = ssub.s32 %s14, %s21
    %p49 = scmp.eq.s32.totalorder %s48, 0
    %s51 = sadd.s32 %s50, 1
    %s52 = scalar_select %p49, %s50, %s51
    %p55 = pneg %p49
    %p56 = scmp.eq.s32.totalorder %s14, 1
    %p57 = por %p55, %p56
    %p58 = scmp.ne.s32.totalorder %s50, %s53
    %p59 = scmp.eq.s32.totalorder %s14, 0
    %p60 = por %p58, %p59
    %p61 = scmp.ne.s32.totalorder %s50, %s53
    %p62 = scmp.eq.s32.totalorder %s19, 1
    %p63 = por %p61, %p62
    %p64 = scmp.ne.s32.totalorder %s53, %s54
    %p65 = scmp.eq.s32.totalorder %s19, 0
    %p66 = por %p64, %p65
    %p67 = scmp.ne.s32.totalorder %s53, %s54
    %p68 = scmp.eq.s32.totalorder %s20, 1
    %p69 = por %p67, %p68
    %p71 = scmp.ne.s32.totalorder %s54, %s70
    %p72 = scmp.eq.s32.totalorder %s20, 0
    %p73 = por %p71, %p72
    %s75 = sadd.s32 %s74, 1
    %p78 = scmp.eq.s32.totalorder %s14, 1
    %p79 = scmp.ne.s32.totalorder %s74, %s76
    %p80 = scmp.eq.s32.totalorder %s14, 0
    %p81 = por %p79, %p80
    %p82 = scmp.ne.s32.totalorder %s74, %s76
    %p83 = scmp.eq.s32.totalorder %s19, 1
    %p84 = por %p82, %p83
    %p85 = scmp.ne.s32.totalorder %s76, %s77
    %p86 = scmp.eq.s32.totalorder %s19, 0
    %p87 = por %p85, %p86
    %p88 = scmp.ne.s32.totalorder %s76, %s77
    %p89 = scmp.eq.s32.totalorder %s20, 1
    %p90 = por %p88, %p89
    %p92 = scmp.ne.s32.totalorder %s77, %s91
    %p93 = scmp.eq.s32.totalorder %s20, 0
    %p94 = por %p92, %p93
    %s96 = sadd.s32 %s95, 1
    %p99 = scmp.eq.s32.totalorder %s14, 1
    %p100 = scmp.ne.s32.totalorder %s95, %s97
    %p101 = scmp.eq.s32.totalorder %s14, 0
    %p102 = por %p100, %p101
    %p103 = scmp.ne.s32.totalorder %s95, %s97
    %p104 = scmp.eq.s32.totalorder %s19, 1
    %p105 = por %p103, %p104
    %p106 = scmp.ne.s32.totalorder %s97, %s98
    %p107 = scmp.eq.s32.totalorder %s19, 0
    %p108 = por %p106, %p107
    %p109 = scmp.ne.s32.totalorder %s97, %s98
    %p110 = scmp.eq.s32.totalorder %s20, 1
    %p111 = por %p109, %p110
    %p113 = scmp.ne.s32.totalorder %s98, %s112
    %p114 = scmp.eq.s32.totalorder %s20, 0
    %p115 = por %p113, %p114
    %s117 = sadd.s32 %s116, 1
    %p120 = scmp.eq.s32.totalorder %s14, 1
    %p121 = scmp.ne.s32.totalorder %s116, %s118
    %p122 = scmp.eq.s32.totalorder %s14, 0
    %p123 = por %p121, %p122
    %p124 = scmp.ne.s32.totalorder %s116, %s118
    %p125 = scmp.eq.s32.totalorder %s19, 1
    %p126 = por %p124, %p125
    %p127 = scmp.ne.s32.totalorder %s118, %s119
    %p128 = scmp.eq.s32.totalorder %s19, 0
    %p129 = por %p127, %p128
    %p130 = scmp.ne.s32.totalorder %s118, %s119
    %p131 = scmp.eq.s32.totalorder %s20, 1
    %p132 = por %p130, %p131
    %p134 = scmp.ne.s32.totalorder %s119, %s133
    %p135 = scmp.eq.s32.totalorder %s20, 0
    %p136 = por %p134, %p135
    %s138 = sadd.s32 %s137, 1
    %p141 = scmp.eq.s32.totalorder %s14, 1
    %p142 = scmp.ne.s32.totalorder %s137, %s139
    %p143 = scmp.eq.s32.totalorder %s14, 0
    %p144 = por %p142, %p143
    %p145 = scmp.ne.s32.totalorder %s137, %s139
    %p146 = scmp.eq.s32.totalorder %s19, 1
    %p147 = por %p145, %p146
    %p148 = scmp.ne.s32.totalorder %s139, %s140
    %p149 = scmp.eq.s32.totalorder %s19, 0
    %p150 = por %p148, %p149
    %p151 = scmp.ne.s32.totalorder %s139, %s140
    %p152 = scmp.eq.s32.totalorder %s20, 1
    %p153 = por %p151, %p152
    %p155 = scmp.ne.s32.totalorder %s140, %s154
    %p156 = scmp.eq.s32.totalorder %s20, 0
    %p157 = por %p155, %p156
    %s158 = ssub.s32 %s14, %s21
    %p159 = scmp.eq.s32.totalorder %s158, 0
    %s161 = sadd.s32 %s160, 1
    %s162 = scalar_select %p159, %s160, %s161
    %p165 = pneg %p159
    %p166 = scmp.eq.s32.totalorder %s14, 1
    %p167 = por %p165, %p166
    %p168 = scmp.ne.s32.totalorder %s160, %s163
    %p169 = scmp.eq.s32.totalorder %s14, 0
    %p170 = por %p168, %p169
    %p171 = scmp.ne.s32.totalorder %s160, %s163
    %p172 = scmp.eq.s32.totalorder %s19, 1
    %p173 = por %p171, %p172
    %p174 = scmp.ne.s32.totalorder %s163, %s164
    %p175 = scmp.eq.s32.totalorder %s19, 0
    %p176 = por %p174, %p175
    %p177 = scmp.ne.s32.totalorder %s163, %s164
    %p178 = scmp.eq.s32.totalorder %s20, 1
    %p179 = por %p177, %p178
    %p181 = scmp.ne.s32.totalorder %s164, %s180
    %p182 = scmp.eq.s32.totalorder %s20, 0
    %p183 = por %p181, %p182
    %s184 = ssub.s32 %s14, %s21
    %p185 = scmp.eq.s32.totalorder %s184, 0
    %s187 = sadd.s32 %s186, 1
    %s188 = scalar_select %p185, %s186, %s187
    %p191 = pneg %p185
    %p192 = scmp.eq.s32.totalorder %s14, 1
    %p193 = por %p191, %p192
    %p194 = scmp.ne.s32.totalorder %s186, %s189
    %p195 = scmp.eq.s32.totalorder %s14, 0
    %p196 = por %p194, %p195
    %p197 = scmp.ne.s32.totalorder %s186, %s189
    %p198 = scmp.eq.s32.totalorder %s19, 1
    %p199 = por %p197, %p198
    %p200 = scmp.ne.s32.totalorder %s189, %s190
    %p201 = scmp.eq.s32.totalorder %s19, 0
    %p202 = por %p200, %p201
    %p203 = scmp.ne.s32.totalorder %s189, %s190
    %p204 = scmp.eq.s32.totalorder %s20, 1
    %p205 = por %p203, %p204
    %p207 = scmp.ne.s32.totalorder %s190, %s206
    %p208 = scmp.eq.s32.totalorder %s20, 0
    %p209 = por %p207, %p208
    %p210 = scmp.le.s32.totalorder 1, %s14
    %p211 = scmp.lt.s32.totalorder %s14, 3
    %p212 = pnand %p210, %p211
    %p213 = pneg %p212
    // Predicated region
    $region9: #{basic_block_forward.5} parent=5 // pred_check
      _
    $region10: #{basic_block_forward.5} parent=5 // pred_check_branch
      %215 = sbr.rel (%p212) target = $region12
    $region11: #{basic_block_forward.5} parent=5 // pred_region
      %s216 = ssub.s32 %s14, 1
      // Predicated region
      $region13: #{basic_block_forward.5} parent=11 // pred_check
        %p217 = pneg %p87
      $region14: #{basic_block_forward.5} parent=11 // pred_check_branch
        %219 = sbr.rel (%p217) target = $region16
      $region15: #{basic_block_forward.5} parent=11 // pred_region
        _
      $region16: #{basic_block_forward.5} parent=11 // pred_fallthru
        _
      // Predicated region
      $region17: #{basic_block_forward.5} parent=11 // pred_check
        %p220 = pneg %p108
      $region18: #{basic_block_forward.5} parent=11 // pred_check_branch
        %222 = sbr.rel (%p220) target = $region20
      $region19: #{basic_block_forward.5} parent=11 // pred_region
        _
      $region20: #{basic_block_forward.5} parent=11 // pred_fallthru
        _
      // Predicated region
      $region21: #{basic_block_forward.5} parent=11 // pred_check
        %p223 = pneg %p129
      $region22: #{basic_block_forward.5} parent=11 // pred_check_branch
        %225 = sbr.rel (%p223) target = $region24
      $region23: #{basic_block_forward.5} parent=11 // pred_region
        _
      $region24: #{basic_block_forward.5} parent=11 // pred_fallthru
        _
      // Predicated region
      $region25: #{basic_block_forward.5} parent=11 // pred_check
        %p226 = pneg %p150
      $region26: #{basic_block_forward.5} parent=11 // pred_check_branch
        %228 = sbr.rel (%p226) target = $region28
      $region27: #{basic_block_forward.5} parent=11 // pred_region
        _
      $region28: #{basic_block_forward.5} parent=11 // pred_fallthru
        _
    $region12: #{basic_block_forward.5} parent=5 // pred_fallthru
      _
    %p229 = scmp.lt.s32.totalorder %s14, 2
    // Predicated region
    $region29: #{basic_block_forward.5} parent=5 // pred_check
      %p230 = pneg %p229
    $region30: #{basic_block_forward.5} parent=5 // pred_check_branch
      %232 = sbr.rel (%p230) target = $region32
    $region31: #{basic_block_forward.5} parent=5 // pred_region
      // Predicated region
      $region33: #{basic_block_forward.5} parent=31 // pred_check
        %p233 = pneg %p34
      $region34: #{basic_block_forward.5} parent=31 // pred_check_branch
        %235 = sbr.rel (%p233) target = $region36
      $region35: #{basic_block_forward.5} parent=31 // pred_region
        %p236 = scmp.lt.s32.totalorder %s14, 1
        %s237 = scalar_select %p236, %s14, 1
        %s238 = smul.addr %s237, 32
        %s239 = smul.addr %s238, 8
        %s240 = scalar_lea.vmem %s0, %s239
      $region36: #{basic_block_forward.5} parent=31 // pred_fallthru
        _
      // Predicated region
      $region37: #{basic_block_forward.5} parent=31 // pred_check
        %p241 = pneg %p60
      $region38: #{basic_block_forward.5} parent=31 // pred_check_branch
        %243 = sbr.rel (%p241) target = $region40
      $region39: #{basic_block_forward.5} parent=31 // pred_region
        %p244 = scmp.lt.s32.totalorder %s14, 1
        %s245 = scalar_select %p244, %s14, 1
        %s246 = smul.addr %s245, 32
        %s247 = smul.addr %s246, 8
        %s248 = scalar_lea.vmem %s1, %s247
      $region40: #{basic_block_forward.5} parent=31 // pred_fallthru
        _
    $region32: #{basic_block_forward.5} parent=5 // pred_fallthru
      _
    %p249 = scmp.le.s32.totalorder 1, %s14
    %p250 = scmp.lt.s32.totalorder %s14, 3
    %p251 = pnand %p249, %p250
    %p252 = pneg %p251
    // Predicated region
    $region41: #{basic_block_forward.5} parent=5 // pred_check
      _
    $region42: #{basic_block_forward.5} parent=5 // pred_check_branch
      %254 = sbr.rel (%p251) target = $region44
    $region43: #{basic_block_forward.5} parent=5 // pred_region
      %s255 = ssub.s32 %s14, 1
      %p256 = scmp.lt.s32.totalorder %s19, 1
      %s257 = scalar_select %p256, %s19, 1
      %s258 = smul.addr %s257, 32
      %s259 = smul.addr %s258, 8
      %s260 = scalar_lea.vmem %s0, %s259
      %p261 = pneg %p40
      %p262 = pneg %p37
      %p263 = scmp.lt.s32.totalorder %s19, 1
      %s264 = scalar_select %p263, %s19, 1
      %s265 = smul.addr %s264, 32
      %s266 = smul.addr %s265, 8
      %s267 = scalar_lea.vmem %s1, %s266
      %p268 = pneg %p66
      %p269 = pneg %p63
      %p270 = pneg %p87
      %p271 = pneg %p84
      %p272 = pneg %p108
      %p273 = pneg %p105
      %p274 = pneg %p129
      %p275 = pneg %p126
      %p276 = pneg %p150
      %p277 = pneg %p147
      %p278 = pneg %p176
      %p279 = pneg %p173
      %p280 = scmp.lt.s32.totalorder %s19, 1
      %s281 = scalar_select %p280, %s19, 1
      %s282 = smul.addr %s281, 32
      %s283 = smul.addr %s282, 8
      %s284 = scalar_lea.vmem %s6, %s283
      %p285 = pneg %p202
      %p286 = pneg %p199
      %p287 = scmp.lt.s32.totalorder %s19, 1
      %s288 = scalar_select %p287, %s19, 1
      %s289 = smul.addr %s288, 32
      %s290 = smul.addr %s289, 8
      %s291 = scalar_lea.vmem %s7, %s290
      %p292 = scmp.lt.s32.totalorder %s19, 1
      %s293 = scalar_select %p292, %s19, 1
      %s294 = smul.addr %s293, 32
      %s295 = smul.addr %s294, 8
      %s296 = scalar_lea.vmem %s0, %s295
      %p297 = scmp.lt.s32.totalorder %s19, 1
      %s298 = scalar_select %p297, %s19, 1
      %s299 = smul.addr %s298, 32
      %s300 = smul.addr %s299, 8
      %s301 = scalar_lea.vmem %s1, %s300
      %p302 = scmp.lt.s32.totalorder %s19, 1
      %s303 = scalar_select %p302, %s19, 1
      %s304 = smul.addr %s303, 32
      %s305 = smul.addr %s304, 8
      %s306 = scalar_lea.vmem %s6, %s305
      %p307 = scmp.lt.s32.totalorder %s19, 1
      %s308 = scalar_select %p307, %s19, 1
      %s309 = smul.addr %s308, 32
      %s310 = smul.addr %s309, 8
      %s311 = scalar_lea.vmem %s7, %s310
      %v312 = vld [vmem:[%s296] sm:$0xff]
      %v313 = vld [vmem:[%s296 + $0x8] sm:$0xff]
      %v314 = vld [vmem:[%s296 + $0x10] sm:$0xff]
      %v315 = vld [vmem:[%s296 + $0x18] sm:$0xff]
      %v316 = vld [vmem:[%s296 + $0x20] sm:$0xff]
      %v317 = vld [vmem:[%s296 + $0x28] sm:$0xff]
      %v318 = vld [vmem:[%s296 + $0x30] sm:$0xff]
      %v319 = vld [vmem:[%s296 + $0x38] sm:$0xff]
      %v320 = vld [vmem:[%s296 + $0x40] sm:$0xff]
      %v321 = vld [vmem:[%s296 + $0x48] sm:$0xff]
      %v322 = vld [vmem:[%s296 + $0x50] sm:$0xff]
      %v323 = vld [vmem:[%s296 + $0x58] sm:$0xff]
      %v324 = vld [vmem:[%s296 + $0x60] sm:$0xff]
      %v325 = vld [vmem:[%s296 + $0x68] sm:$0xff]
      %v326 = vld [vmem:[%s296 + $0x70] sm:$0xff]
      %v327 = vld [vmem:[%s296 + $0x78] sm:$0xff]
      %v328 = vld [vmem:[%s296 + $0x80] sm:$0xff]
      %v329 = vld [vmem:[%s296 + $0x88] sm:$0xff]
      %v330 = vld [vmem:[%s296 + $0x90] sm:$0xff]
      %v331 = vld [vmem:[%s296 + $0x98] sm:$0xff]
      %v332 = vld [vmem:[%s296 + $0xa0] sm:$0xff]
      %v333 = vld [vmem:[%s296 + $0xa8] sm:$0xff]
      %v334 = vld [vmem:[%s296 + $0xb0] sm:$0xff]
      %v335 = vld [vmem:[%s296 + $0xb8] sm:$0xff]
      %v336 = vld [vmem:[%s296 + $0xc0] sm:$0xff]
      %v337 = vld [vmem:[%s296 + $0xc8] sm:$0xff]
      %v338 = vld [vmem:[%s296 + $0xd0] sm:$0xff]
      %v339 = vld [vmem:[%s296 + $0xd8] sm:$0xff]
      %v340 = vld [vmem:[%s296 + $0xe0] sm:$0xff]
      %v341 = vld [vmem:[%s296 + $0xe8] sm:$0xff]
      %v342 = vld [vmem:[%s296 + $0xf0] sm:$0xff]
      %v343 = vld [vmem:[%s296 + $0xf8] sm:$0xff]
      %v344 = vld [vmem:[%s2] sm:$0x1]
      %v346 = vperm.slane %v344, 0
      %v348 = vmul.f32 %v312, %v346
      %v349 = vmul.f32 %v313, %v346
      %v350 = vmul.f32 %v314, %v346
      %v351 = vmul.f32 %v315, %v346
      %v352 = vmul.f32 %v316, %v346
      %v353 = vmul.f32 %v317, %v346
      %v354 = vmul.f32 %v318, %v346
      %v355 = vmul.f32 %v319, %v346
      %v356 = vmul.f32 %v320, %v346
      %v357 = vmul.f32 %v321, %v346
      %v358 = vmul.f32 %v322, %v346
      %v359 = vmul.f32 %v323, %v346
      %v360 = vmul.f32 %v324, %v346
      %v361 = vmul.f32 %v325, %v346
      %v362 = vmul.f32 %v326, %v346
      %v363 = vmul.f32 %v327, %v346
      %v364 = vmul.f32 %v328, %v346
      %v365 = vmul.f32 %v329, %v346
      %v366 = vmul.f32 %v330, %v346
      %v367 = vmul.f32 %v331, %v346
      %v368 = vmul.f32 %v332, %v346
      %v369 = vmul.f32 %v333, %v346
      %v370 = vmul.f32 %v334, %v346
      %v371 = vmul.f32 %v335, %v346
      %v372 = vmul.f32 %v336, %v346
      %v373 = vmul.f32 %v337, %v346
      %v374 = vmul.f32 %v338, %v346
      %v375 = vmul.f32 %v339, %v346
      %v376 = vmul.f32 %v340, %v346
      %v377 = vmul.f32 %v341, %v346
      %v378 = vmul.f32 %v342, %v346
      %v379 = vmul.f32 %v343, %v346
      %v380 = vld [vmem:[%s3] sm:$0x1]
      %v382 = vperm.slane %v380, 0
      %v384 = vadd.f32 %v348, %v382
      %v385 = vadd.f32 %v349, %v382
      %v386 = vadd.f32 %v350, %v382
      %v387 = vadd.f32 %v351, %v382
      %v388 = vadd.f32 %v352, %v382
      %v389 = vadd.f32 %v353, %v382
      %v390 = vadd.f32 %v354, %v382
      %v391 = vadd.f32 %v355, %v382
      %v392 = vadd.f32 %v356, %v382
      %v393 = vadd.f32 %v357, %v382
      %v394 = vadd.f32 %v358, %v382
      %v395 = vadd.f32 %v359, %v382
      %v396 = vadd.f32 %v360, %v382
      %v397 = vadd.f32 %v361, %v382
      %v398 = vadd.f32 %v362, %v382
      %v399 = vadd.f32 %v363, %v382
      %v400 = vadd.f32 %v364, %v382
      %v401 = vadd.f32 %v365, %v382
      %v402 = vadd.f32 %v366, %v382
      %v403 = vadd.f32 %v367, %v382
      %v404 = vadd.f32 %v368, %v382
      %v405 = vadd.f32 %v369, %v382
      %v406 = vadd.f32 %v370, %v382
      %v407 = vadd.f32 %v371, %v382
      %v408 = vadd.f32 %v372, %v382
      %v409 = vadd.f32 %v373, %v382
      %v410 = vadd.f32 %v374, %v382
      %v411 = vadd.f32 %v375, %v382
      %v412 = vadd.f32 %v376, %v382
      %v413 = vadd.f32 %v377, %v382
      %v414 = vadd.f32 %v378, %v382
      %v415 = vadd.f32 %v379, %v382
      %v416 = vld [vmem:[%s301] sm:$0xff]
      %v417 = vld [vmem:[%s301 + $0x8] sm:$0xff]
      %v418 = vld [vmem:[%s301 + $0x10] sm:$0xff]
      %v419 = vld [vmem:[%s301 + $0x18] sm:$0xff]
      %v420 = vld [vmem:[%s301 + $0x20] sm:$0xff]
      %v421 = vld [vmem:[%s301 + $0x28] sm:$0xff]
      %v422 = vld [vmem:[%s301 + $0x30] sm:$0xff]
      %v423 = vld [vmem:[%s301 + $0x38] sm:$0xff]
      %v424 = vld [vmem:[%s301 + $0x40] sm:$0xff]
      %v425 = vld [vmem:[%s301 + $0x48] sm:$0xff]
      %v426 = vld [vmem:[%s301 + $0x50] sm:$0xff]
      %v427 = vld [vmem:[%s301 + $0x58] sm:$0xff]
      %v428 = vld [vmem:[%s301 + $0x60] sm:$0xff]
      %v429 = vld [vmem:[%s301 + $0x68] sm:$0xff]
      %v430 = vld [vmem:[%s301 + $0x70] sm:$0xff]
      %v431 = vld [vmem:[%s301 + $0x78] sm:$0xff]
      %v432 = vld [vmem:[%s301 + $0x80] sm:$0xff]
      %v433 = vld [vmem:[%s301 + $0x88] sm:$0xff]
      %v434 = vld [vmem:[%s301 + $0x90] sm:$0xff]
      %v435 = vld [vmem:[%s301 + $0x98] sm:$0xff]
      %v436 = vld [vmem:[%s301 + $0xa0] sm:$0xff]
      %v437 = vld [vmem:[%s301 + $0xa8] sm:$0xff]
      %v438 = vld [vmem:[%s301 + $0xb0] sm:$0xff]
      %v439 = vld [vmem:[%s301 + $0xb8] sm:$0xff]
      %v440 = vld [vmem:[%s301 + $0xc0] sm:$0xff]
      %v441 = vld [vmem:[%s301 + $0xc8] sm:$0xff]
      %v442 = vld [vmem:[%s301 + $0xd0] sm:$0xff]
      %v443 = vld [vmem:[%s301 + $0xd8] sm:$0xff]
      %v444 = vld [vmem:[%s301 + $0xe0] sm:$0xff]
      %v445 = vld [vmem:[%s301 + $0xe8] sm:$0xff]
      %v446 = vld [vmem:[%s301 + $0xf0] sm:$0xff]
      %v447 = vld [vmem:[%s301 + $0xf8] sm:$0xff]
      %v448 = vld [vmem:[%s4] sm:$0x1]
      %v450 = vperm.slane %v448, 0
      %v452 = vmul.f32 %v416, %v450
      %v453 = vmul.f32 %v417, %v450
      %v454 = vmul.f32 %v418, %v450
      %v455 = vmul.f32 %v419, %v450
      %v456 = vmul.f32 %v420, %v450
      %v457 = vmul.f32 %v421, %v450
      %v458 = vmul.f32 %v422, %v450
      %v459 = vmul.f32 %v423, %v450
      %v460 = vmul.f32 %v424, %v450
      %v461 = vmul.f32 %v425, %v450
      %v462 = vmul.f32 %v426, %v450
      %v463 = vmul.f32 %v427, %v450
      %v464 = vmul.f32 %v428, %v450
      %v465 = vmul.f32 %v429, %v450
      %v466 = vmul.f32 %v430, %v450
      %v467 = vmul.f32 %v431, %v450
      %v468 = vmul.f32 %v432, %v450
      %v469 = vmul.f32 %v433, %v450
      %v470 = vmul.f32 %v434, %v450
      %v471 = vmul.f32 %v435, %v450
      %v472 = vmul.f32 %v436, %v450
      %v473 = vmul.f32 %v437, %v450
      %v474 = vmul.f32 %v438, %v450
      %v475 = vmul.f32 %v439, %v450
      %v476 = vmul.f32 %v440, %v450
      %v477 = vmul.f32 %v441, %v450
      %v478 = vmul.f32 %v442, %v450
      %v479 = vmul.f32 %v443, %v450
      %v480 = vmul.f32 %v444, %v450
      %v481 = vmul.f32 %v445, %v450
      %v482 = vmul.f32 %v446, %v450
      %v483 = vmul.f32 %v447, %v450
      %v484 = vld [vmem:[%s5] sm:$0x1]
      %v486 = vperm.slane %v484, 0
      %v488 = vadd.f32 %v452, %v486
      %v489 = vadd.f32 %v453, %v486
      %v490 = vadd.f32 %v454, %v486
      %v491 = vadd.f32 %v455, %v486
      %v492 = vadd.f32 %v456, %v486
      %v493 = vadd.f32 %v457, %v486
      %v494 = vadd.f32 %v458, %v486
      %v495 = vadd.f32 %v459, %v486
      %v496 = vadd.f32 %v460, %v486
      %v497 = vadd.f32 %v461, %v486
      %v498 = vadd.f32 %v462, %v486
      %v499 = vadd.f32 %v463, %v486
      %v500 = vadd.f32 %v464, %v486
      %v501 = vadd.f32 %v465, %v486
      %v502 = vadd.f32 %v466, %v486
      %v503 = vadd.f32 %v467, %v486
      %v504 = vadd.f32 %v468, %v486
      %v505 = vadd.f32 %v469, %v486
      %v506 = vadd.f32 %v470, %v486
      %v507 = vadd.f32 %v471, %v486
      %v508 = vadd.f32 %v472, %v486
      %v509 = vadd.f32 %v473, %v486
      %v510 = vadd.f32 %v474, %v486
      %v511 = vadd.f32 %v475, %v486
      %v512 = vadd.f32 %v476, %v486
      %v513 = vadd.f32 %v477, %v486
      %v514 = vadd.f32 %v478, %v486
      %v515 = vadd.f32 %v479, %v486
      %v516 = vadd.f32 %v480, %v486
      %v517 = vadd.f32 %v481, %v486
      %v518 = vadd.f32 %v482, %v486
      %v519 = vadd.f32 %v483, %v486
      %vm520 = vcmask 64512
      %521 = vst.msk [vmem:[%s311] sm:$0xff] %vm520, %v384
      %522 = vst.msk [vmem:[%s311 + $0x8] sm:$0xff] %vm520, %v385
      %523 = vst.msk [vmem:[%s311 + $0x10] sm:$0xff] %vm520, %v386
      %524 = vst.msk [vmem:[%s311 + $0x18] sm:$0xff] %vm520, %v387
      %525 = vst.msk [vmem:[%s311 + $0x20] sm:$0xff] %vm520, %v388
      %526 = vst.msk [vmem:[%s311 + $0x28] sm:$0xff] %vm520, %v389
      %527 = vst.msk [vmem:[%s311 + $0x30] sm:$0xff] %vm520, %v390
      %528 = vst.msk [vmem:[%s311 + $0x38] sm:$0xff] %vm520, %v391
      %529 = vst.msk [vmem:[%s311 + $0x40] sm:$0xff] %vm520, %v392
      %530 = vst.msk [vmem:[%s311 + $0x48] sm:$0xff] %vm520, %v393
      %531 = vst.msk [vmem:[%s311 + $0x50] sm:$0xff] %vm520, %v394
      %532 = vst.msk [vmem:[%s311 + $0x58] sm:$0xff] %vm520, %v395
      %533 = vst.msk [vmem:[%s311 + $0x60] sm:$0xff] %vm520, %v396
      %534 = vst.msk [vmem:[%s311 + $0x68] sm:$0xff] %vm520, %v397
      %535 = vst.msk [vmem:[%s311 + $0x70] sm:$0xff] %vm520, %v398
      %536 = vst.msk [vmem:[%s311 + $0x78] sm:$0xff] %vm520, %v399
      %537 = vst.msk [vmem:[%s311 + $0x80] sm:$0xff] %vm520, %v400
      %538 = vst.msk [vmem:[%s311 + $0x88] sm:$0xff] %vm520, %v401
      %539 = vst.msk [vmem:[%s311 + $0x90] sm:$0xff] %vm520, %v402
      %540 = vst.msk [vmem:[%s311 + $0x98] sm:$0xff] %vm520, %v403
      %541 = vst.msk [vmem:[%s311 + $0xa0] sm:$0xff] %vm520, %v404
      %542 = vst.msk [vmem:[%s311 + $0xa8] sm:$0xff] %vm520, %v405
      %543 = vst.msk [vmem:[%s311 + $0xb0] sm:$0xff] %vm520, %v406
      %544 = vst.msk [vmem:[%s311 + $0xb8] sm:$0xff] %vm520, %v407
      %545 = vst.msk [vmem:[%s311 + $0xc0] sm:$0xff] %vm520, %v408
      %546 = vst.msk [vmem:[%s311 + $0xc8] sm:$0xff] %vm520, %v409
      %547 = vst.msk [vmem:[%s311 + $0xd0] sm:$0xff] %vm520, %v410
      %548 = vst.msk [vmem:[%s311 + $0xd8] sm:$0xff] %vm520, %v411
      %549 = vst.msk [vmem:[%s311 + $0xe0] sm:$0xff] %vm520, %v412
      %550 = vst.msk [vmem:[%s311 + $0xe8] sm:$0xff] %vm520, %v413
      %551 = vst.msk [vmem:[%s311 + $0xf0] sm:$0xff] %vm520, %v414
      %552 = vst.msk [vmem:[%s311 + $0xf8] sm:$0xff] %vm520, %v415
      %v553 = vadd.f32 %v384, %v488
      %v554 = vadd.f32 %v385, %v489
      %v555 = vadd.f32 %v386, %v490
      %v556 = vadd.f32 %v387, %v491
      %v557 = vadd.f32 %v388, %v492
      %v558 = vadd.f32 %v389, %v493
      %v559 = vadd.f32 %v390, %v494
      %v560 = vadd.f32 %v391, %v495
      %v561 = vadd.f32 %v392, %v496
      %v562 = vadd.f32 %v393, %v497
      %v563 = vadd.f32 %v394, %v498
      %v564 = vadd.f32 %v395, %v499
      %v565 = vadd.f32 %v396, %v500
      %v566 = vadd.f32 %v397, %v501
      %v567 = vadd.f32 %v398, %v502
      %v568 = vadd.f32 %v399, %v503
      %v569 = vadd.f32 %v400, %v504
      %v570 = vadd.f32 %v401, %v505
      %v571 = vadd.f32 %v402, %v506
      %v572 = vadd.f32 %v403, %v507
      %v573 = vadd.f32 %v404, %v508
      %v574 = vadd.f32 %v405, %v509
      %v575 = vadd.f32 %v406, %v510
      %v576 = vadd.f32 %v407, %v511
      %v577 = vadd.f32 %v408, %v512
      %v578 = vadd.f32 %v409, %v513
      %v579 = vadd.f32 %v410, %v514
      %v580 = vadd.f32 %v411, %v515
      %v581 = vadd.f32 %v412, %v516
      %v582 = vadd.f32 %v413, %v517
      %v583 = vadd.f32 %v414, %v518
      %v584 = vadd.f32 %v415, %v519
      %v585 = vmax.f32 %v553, 0.0
      %v586 = vmax.f32 %v554, 0.0
      %v587 = vmax.f32 %v555, 0.0
      %v588 = vmax.f32 %v556, 0.0
      %v589 = vmax.f32 %v557, 0.0
      %v590 = vmax.f32 %v558, 0.0
      %v591 = vmax.f32 %v559, 0.0
      %v592 = vmax.f32 %v560, 0.0
      %v593 = vmax.f32 %v561, 0.0
      %v594 = vmax.f32 %v562, 0.0
      %v595 = vmax.f32 %v563, 0.0
      %v596 = vmax.f32 %v564, 0.0
      %v597 = vmax.f32 %v565, 0.0
      %v598 = vmax.f32 %v566, 0.0
      %v599 = vmax.f32 %v567, 0.0
      %v600 = vmax.f32 %v568, 0.0
      %v601 = vmax.f32 %v569, 0.0
      %v602 = vmax.f32 %v570, 0.0
      %v603 = vmax.f32 %v571, 0.0
      %v604 = vmax.f32 %v572, 0.0
      %v605 = vmax.f32 %v573, 0.0
      %v606 = vmax.f32 %v574, 0.0
      %v607 = vmax.f32 %v575, 0.0
      %v608 = vmax.f32 %v576, 0.0
      %v609 = vmax.f32 %v577, 0.0
      %v610 = vmax.f32 %v578, 0.0
      %v611 = vmax.f32 %v579, 0.0
      %v612 = vmax.f32 %v580, 0.0
      %v613 = vmax.f32 %v581, 0.0
      %v614 = vmax.f32 %v582, 0.0
      %v615 = vmax.f32 %v583, 0.0
      %v616 = vmax.f32 %v584, 0.0
      %617 = vst.msk [vmem:[%s306] sm:$0xff] %vm520, %v585
      %618 = vst.msk [vmem:[%s306 + $0x8] sm:$0xff] %vm520, %v586
      %619 = vst.msk [vmem:[%s306 + $0x10] sm:$0xff] %vm520, %v587
      %620 = vst.msk [vmem:[%s306 + $0x18] sm:$0xff] %vm520, %v588
      %621 = vst.msk [vmem:[%s306 + $0x20] sm:$0xff] %vm520, %v589
      %622 = vst.msk [vmem:[%s306 + $0x28] sm:$0xff] %vm520, %v590
      %623 = vst.msk [vmem:[%s306 + $0x30] sm:$0xff] %vm520, %v591
      %624 = vst.msk [vmem:[%s306 + $0x38] sm:$0xff] %vm520, %v592
      %625 = vst.msk [vmem:[%s306 + $0x40] sm:$0xff] %vm520, %v593
      %626 = vst.msk [vmem:[%s306 + $0x48] sm:$0xff] %vm520, %v594
      %627 = vst.msk [vmem:[%s306 + $0x50] sm:$0xff] %vm520, %v595
      %628 = vst.msk [vmem:[%s306 + $0x58] sm:$0xff] %vm520, %v596
      %629 = vst.msk [vmem:[%s306 + $0x60] sm:$0xff] %vm520, %v597
      %630 = vst.msk [vmem:[%s306 + $0x68] sm:$0xff] %vm520, %v598
      %631 = vst.msk [vmem:[%s306 + $0x70] sm:$0xff] %vm520, %v599
      %632 = vst.msk [vmem:[%s306 + $0x78] sm:$0xff] %vm520, %v600
      %633 = vst.msk [vmem:[%s306 + $0x80] sm:$0xff] %vm520, %v601
      %634 = vst.msk [vmem:[%s306 + $0x88] sm:$0xff] %vm520, %v602
      %635 = vst.msk [vmem:[%s306 + $0x90] sm:$0xff] %vm520, %v603
      %636 = vst.msk [vmem:[%s306 + $0x98] sm:$0xff] %vm520, %v604
      %637 = vst.msk [vmem:[%s306 + $0xa0] sm:$0xff] %vm520, %v605
      %638 = vst.msk [vmem:[%s306 + $0xa8] sm:$0xff] %vm520, %v606
      %639 = vst.msk [vmem:[%s306 + $0xb0] sm:$0xff] %vm520, %v607
      %640 = vst.msk [vmem:[%s306 + $0xb8] sm:$0xff] %vm520, %v608
      %641 = vst.msk [vmem:[%s306 + $0xc0] sm:$0xff] %vm520, %v609
      %642 = vst.msk [vmem:[%s306 + $0xc8] sm:$0xff] %vm520, %v610
      %643 = vst.msk [vmem:[%s306 + $0xd0] sm:$0xff] %vm520, %v611
      %644 = vst.msk [vmem:[%s306 + $0xd8] sm:$0xff] %vm520, %v612
      %645 = vst.msk [vmem:[%s306 + $0xe0] sm:$0xff] %vm520, %v613
      %646 = vst.msk [vmem:[%s306 + $0xe8] sm:$0xff] %vm520, %v614
      %647 = vst.msk [vmem:[%s306 + $0xf0] sm:$0xff] %vm520, %v615
      %648 = vst.msk [vmem:[%s306 + $0xf8] sm:$0xff] %vm520, %v616
      %p649 = scmp.lt.s32.totalorder %s19, 1
      %s650 = scalar_select %p649, %s19, 1
      %s651 = smul.addr %s650, 32
      %s652 = smul.addr %s651, 8
      %s653 = scalar_lea.vmem %s6, %s652
      %p654 = scmp.lt.s32.totalorder %s19, 1
      %s655 = scalar_select %p654, %s19, 1
      %s656 = smul.addr %s655, 32
      %s657 = smul.addr %s656, 8
      %s658 = scalar_lea.vmem %s7, %s657
      // Predicated region
      $region45: #{basic_block_forward.5} parent=43 // pred_check
        %p659 = pneg %p173
      $region46: #{basic_block_forward.5} parent=43 // pred_check_branch
        %661 = sbr.rel (%p659) target = $region48
      $region47: #{basic_block_forward.5} parent=43 // pred_region
        _
      $region48: #{basic_block_forward.5} parent=43 // pred_fallthru
        _
      // Predicated region
      $region49: #{basic_block_forward.5} parent=43 // pred_check
        %p662 = pneg %p199
      $region50: #{basic_block_forward.5} parent=43 // pred_check_branch
        %664 = sbr.rel (%p662) target = $region52
      $region51: #{basic_block_forward.5} parent=43 // pred_region
        _
      $region52: #{basic_block_forward.5} parent=43 // pred_fallthru
        _
    $region44: #{basic_block_forward.5} parent=5 // pred_fallthru
      _
    %p665 = scmp.le.s32.totalorder 2, %s14
    // Predicated region
    $region53: #{basic_block_forward.5} parent=5 // pred_check
      %p666 = pneg %p665
    $region54: #{basic_block_forward.5} parent=5 // pred_check_branch
      %668 = sbr.rel (%p666) target = $region56
    $region55: #{basic_block_forward.5} parent=5 // pred_region
      %s669 = ssub.s32 %s14, 2
      // Predicated region
      $region57: #{basic_block_forward.5} parent=55 // pred_check
        %p670 = pneg %p179
      $region58: #{basic_block_forward.5} parent=55 // pred_check_branch
        %672 = sbr.rel (%p670) target = $region60
      $region59: #{basic_block_forward.5} parent=55 // pred_region
        %p673 = scmp.lt.s32.totalorder %s20, 1
        %s674 = scalar_select %p673, %s20, 1
        %s675 = smul.addr %s674, 32
        %s676 = smul.addr %s675, 8
        %s677 = scalar_lea.vmem %s6, %s676
      $region60: #{basic_block_forward.5} parent=55 // pred_fallthru
        _
      // Predicated region
      $region61: #{basic_block_forward.5} parent=55 // pred_check
        %p678 = pneg %p205
      $region62: #{basic_block_forward.5} parent=55 // pred_check_branch
        %680 = sbr.rel (%p678) target = $region64
      $region63: #{basic_block_forward.5} parent=55 // pred_region
        %p681 = scmp.lt.s32.totalorder %s20, 1
        %s682 = scalar_select %p681, %s20, 1
        %s683 = smul.addr %s682, 32
        %s684 = smul.addr %s683, 8
        %s685 = scalar_lea.vmem %s7, %s684
      $region64: #{basic_block_forward.5} parent=55 // pred_fallthru
        _
    $region56: #{basic_block_forward.5} parent=5 // pred_fallthru
      _
  $region6: #{basic_block_forward.5} parent=0 // loop_footer
    %s18 = sadd.s32 1, %s14
  $region7: #{basic_block_forward.5} parent=0 // loop_footer_branch
    %13 = sbr.rel target = $region3
  $region8: #{basic_block_forward.5} parent=0 // loop_exit
    _

// kernel: basic_block_forward.4
$region0: #{basic_block_forward.4}
  #allocation0 [shape = 'u32[]', space=smem, size = 0x4, offset = 0x4, fixed_abs, tag = 'smem constant byte address 0x4 - core index']
  #allocation1 [shape = 'u32[72,128]{1,0:T(1,128)}', space=vmem, size = 0x9000, scoped, tag = 'internal scratch']
  #allocation2 [shape = 'f32[18,18,8]{2,1,0:T(8,128)}', space=vmem, size = 0x36000, scoped, tag = 'scratch operand']
  #allocation3 [shape = 'f32[256,72]{1,0:T(8,128)}', space=vmem, size = 0x20000, scoped, tag = 'scratch operand']
  %s0 = inlined_call_operand.vmem [shape: f32[2,256,8], index: 0, kind: input, shape index: {}]
  %s1 = inlined_call_operand.vmem [shape: f32[1,8], index: 1, kind: input, shape index: {}]
  %s2 = inlined_call_operand.vmem [shape: f32[1,8], index: 2, kind: input, shape index: {}]
  %s3 = inlined_call_operand.vmem [shape: f32[72,8], index: 3, kind: input, shape index: {}]
  %s4 = inlined_call_operand.vmem [shape: f32[2,256,8], index: 4, kind: output, shape index: {0}]
  %s5 = inlined_call_operand.vmem [shape: f32[2,256,8], index: 5, kind: output, shape index: {1}]
  %s6 = inlined_call_operand.vmem [shape: f32[2,1,8], index: 6, kind: output, shape index: {2}]
  %s7 = inlined_call_operand.vmem [shape: f32[2,1,8], index: 7, kind: output, shape index: {3}]
  %8 = xla_tuple %s4, %s5, %s6, %s7
  %s9 = sld [smem:[#allocation0]]
  $region73: #{basic_block_forward.4} parent=0
    _
  %s11 = ssub.s32 1, %s9
  %s12 = scalar_select 0, %s11, %s9
  loop: start=0, step=1, limit=4
  $region2: #{basic_block_forward.4} parent=0 // loop_pre_header
    _
  $region3: #{basic_block_forward.4} parent=0 // loop_header
    %s14 = sphi 0, %s18
    %p15 = scmp.ge.s32.totalorder %s14, 4
    %s24 = sphi 0, %s26
    %s27 = sphi 0, %s24
    %s28 = sphi 0, %s27
    %s44 = sphi 0, %s28
    %s48 = sphi 0, %s48
    %s50 = sphi 0, %s48
    %s51 = sphi 0, %s50
    %s65 = sphi 0, %s51
    %s69 = sphi 0, %s69
    %s71 = sphi 0, %s69
    %s72 = sphi 0, %s71
    %s86 = sphi 0, %s72
    %s90 = sphi 0, %s90
    %s92 = sphi 0, %s90
    %s93 = sphi 0, %s92
    %s107 = sphi 0, %s93
    %s113 = sphi 0, %s115
    %s116 = sphi 0, %s113
    %s117 = sphi 0, %s116
    %s133 = sphi 0, %s117
    %s139 = sphi 0, %s141
    %s142 = sphi 0, %s139
    %s143 = sphi 0, %s142
    %s159 = sphi 0, %s143
    %s165 = sphi 0, %s167
    %s168 = sphi 0, %s165
    %s169 = sphi 0, %s168
    %s185 = sphi 0, %s169
    %s191 = sphi 0, %s193
    %s194 = sphi 0, %s191
    %s195 = sphi 0, %s194
    %s211 = sphi 0, %s195
  $region4: #{basic_block_forward.4} parent=0 // loop_header_branch
    %17 = sbr.rel (%p15) target = $region8
  $region5: #{basic_block_forward.4} parent=0 // loop_body
    %s19 = ssub.s32 %s14, 1
    %s20 = ssub.s32 %s14, 2
    %s21 = sadd.s32 %s14, 1
    %s22 = ssub.s32 %s14, %s21
    %p23 = scmp.eq.s32.totalorder %s22, 0
    %s25 = sadd.s32 %s24, 1
    %s26 = scalar_select %p23, %s24, %s25
    %p29 = pneg %p23
    %p30 = scmp.eq.s32.totalorder %s14, 1
    %p31 = por %p29, %p30
    %p32 = scmp.ne.s32.totalorder %s24, %s27
    %p33 = scmp.eq.s32.totalorder %s14, 0
    %p34 = por %p32, %p33
    %p35 = scmp.ne.s32.totalorder %s24, %s27
    %p36 = scmp.eq.s32.totalorder %s19, 1
    %p37 = por %p35, %p36
    %p38 = scmp.ne.s32.totalorder %s27, %s28
    %p39 = scmp.eq.s32.totalorder %s19, 0
    %p40 = por %p38, %p39
    %p41 = scmp.ne.s32.totalorder %s27, %s28
    %p42 = scmp.eq.s32.totalorder %s20, 1
    %p43 = por %p41, %p42
    %p45 = scmp.ne.s32.totalorder %s28, %s44
    %p46 = scmp.eq.s32.totalorder %s20, 0
    %p47 = por %p45, %p46
    %s49 = sadd.s32 %s48, 1
    %p52 = scmp.eq.s32.totalorder %s14, 1
    %p53 = scmp.ne.s32.totalorder %s48, %s50
    %p54 = scmp.eq.s32.totalorder %s14, 0
    %p55 = por %p53, %p54
    %p56 = scmp.ne.s32.totalorder %s48, %s50
    %p57 = scmp.eq.s32.totalorder %s19, 1
    %p58 = por %p56, %p57
    %p59 = scmp.ne.s32.totalorder %s50, %s51
    %p60 = scmp.eq.s32.totalorder %s19, 0
    %p61 = por %p59, %p60
    %p62 = scmp.ne.s32.totalorder %s50, %s51
    %p63 = scmp.eq.s32.totalorder %s20, 1
    %p64 = por %p62, %p63
    %p66 = scmp.ne.s32.totalorder %s51, %s65
    %p67 = scmp.eq.s32.totalorder %s20, 0
    %p68 = por %p66, %p67
    %s70 = sadd.s32 %s69, 1
    %p73 = scmp.eq.s32.totalorder %s14, 1
    %p74 = scmp.ne.s32.totalorder %s69, %s71
    %p75 = scmp.eq.s32.totalorder %s14, 0
    %p76 = por %p74, %p75
    %p77 = scmp.ne.s32.totalorder %s69, %s71
    %p78 = scmp.eq.s32.totalorder %s19, 1
    %p79 = por %p77, %p78
    %p80 = scmp.ne.s32.totalorder %s71, %s72
    %p81 = scmp.eq.s32.totalorder %s19, 0
    %p82 = por %p80, %p81
    %p83 = scmp.ne.s32.totalorder %s71, %s72
    %p84 = scmp.eq.s32.totalorder %s20, 1
    %p85 = por %p83, %p84
    %p87 = scmp.ne.s32.totalorder %s72, %s86
    %p88 = scmp.eq.s32.totalorder %s20, 0
    %p89 = por %p87, %p88
    %s91 = sadd.s32 %s90, 1
    %p94 = scmp.eq.s32.totalorder %s14, 1
    %p95 = scmp.ne.s32.totalorder %s90, %s92
    %p96 = scmp.eq.s32.totalorder %s14, 0
    %p97 = por %p95, %p96
    %p98 = scmp.ne.s32.totalorder %s90, %s92
    %p99 = scmp.eq.s32.totalorder %s19, 1
    %p100 = por %p98, %p99
    %p101 = scmp.ne.s32.totalorder %s92, %s93
    %p102 = scmp.eq.s32.totalorder %s19, 0
    %p103 = por %p101, %p102
    %p104 = scmp.ne.s32.totalorder %s92, %s93
    %p105 = scmp.eq.s32.totalorder %s20, 1
    %p106 = por %p104, %p105
    %p108 = scmp.ne.s32.totalorder %s93, %s107
    %p109 = scmp.eq.s32.totalorder %s20, 0
    %p110 = por %p108, %p109
    %s111 = ssub.s32 %s14, %s21
    %p112 = scmp.eq.s32.totalorder %s111, 0
    %s114 = sadd.s32 %s113, 1
    %s115 = scalar_select %p112, %s113, %s114
    %p118 = pneg %p112
    %p119 = scmp.eq.s32.totalorder %s14, 1
    %p120 = por %p118, %p119
    %p121 = scmp.ne.s32.totalorder %s113, %s116
    %p122 = scmp.eq.s32.totalorder %s14, 0
    %p123 = por %p121, %p122
    %p124 = scmp.ne.s32.totalorder %s113, %s116
    %p125 = scmp.eq.s32.totalorder %s19, 1
    %p126 = por %p124, %p125
    %p127 = scmp.ne.s32.totalorder %s116, %s117
    %p128 = scmp.eq.s32.totalorder %s19, 0
    %p129 = por %p127, %p128
    %p130 = scmp.ne.s32.totalorder %s116, %s117
    %p131 = scmp.eq.s32.totalorder %s20, 1
    %p132 = por %p130, %p131
    %p134 = scmp.ne.s32.totalorder %s117, %s133
    %p135 = scmp.eq.s32.totalorder %s20, 0
    %p136 = por %p134, %p135
    %s137 = ssub.s32 %s14, %s21
    %p138 = scmp.eq.s32.totalorder %s137, 0
    %s140 = sadd.s32 %s139, 1
    %s141 = scalar_select %p138, %s139, %s140
    %p144 = pneg %p138
    %p145 = scmp.eq.s32.totalorder %s14, 1
    %p146 = por %p144, %p145
    %p147 = scmp.ne.s32.totalorder %s139, %s142
    %p148 = scmp.eq.s32.totalorder %s14, 0
    %p149 = por %p147, %p148
    %p150 = scmp.ne.s32.totalorder %s139, %s142
    %p151 = scmp.eq.s32.totalorder %s19, 1
    %p152 = por %p150, %p151
    %p153 = scmp.ne.s32.totalorder %s142, %s143
    %p154 = scmp.eq.s32.totalorder %s19, 0
    %p155 = por %p153, %p154
    %p156 = scmp.ne.s32.totalorder %s142, %s143
    %p157 = scmp.eq.s32.totalorder %s20, 1
    %p158 = por %p156, %p157
    %p160 = scmp.ne.s32.totalorder %s143, %s159
    %p161 = scmp.eq.s32.totalorder %s20, 0
    %p162 = por %p160, %p161
    %s163 = ssub.s32 %s14, %s21
    %p164 = scmp.eq.s32.totalorder %s163, 0
    %s166 = sadd.s32 %s165, 1
    %s167 = scalar_select %p164, %s165, %s166
    %p170 = pneg %p164
    %p171 = scmp.eq.s32.totalorder %s14, 1
    %p172 = por %p170, %p171
    %p173 = scmp.ne.s32.totalorder %s165, %s168
    %p174 = scmp.eq.s32.totalorder %s14, 0
    %p175 = por %p173, %p174
    %p176 = scmp.ne.s32.totalorder %s165, %s168
    %p177 = scmp.eq.s32.totalorder %s19, 1
    %p178 = por %p176, %p177
    %p179 = scmp.ne.s32.totalorder %s168, %s169
    %p180 = scmp.eq.s32.totalorder %s19, 0
    %p181 = por %p179, %p180
    %p182 = scmp.ne.s32.totalorder %s168, %s169
    %p183 = scmp.eq.s32.totalorder %s20, 1
    %p184 = por %p182, %p183
    %p186 = scmp.ne.s32.totalorder %s169, %s185
    %p187 = scmp.eq.s32.totalorder %s20, 0
    %p188 = por %p186, %p187
    %s189 = ssub.s32 %s14, %s21
    %p190 = scmp.eq.s32.totalorder %s189, 0
    %s192 = sadd.s32 %s191, 1
    %s193 = scalar_select %p190, %s191, %s192
    %p196 = pneg %p190
    %p197 = scmp.eq.s32.totalorder %s14, 1
    %p198 = por %p196, %p197
    %p199 = scmp.ne.s32.totalorder %s191, %s194
    %p200 = scmp.eq.s32.totalorder %s14, 0
    %p201 = por %p199, %p200
    %p202 = scmp.ne.s32.totalorder %s191, %s194
    %p203 = scmp.eq.s32.totalorder %s19, 1
    %p204 = por %p202, %p203
    %p205 = scmp.ne.s32.totalorder %s194, %s195
    %p206 = scmp.eq.s32.totalorder %s19, 0
    %p207 = por %p205, %p206
    %p208 = scmp.ne.s32.totalorder %s194, %s195
    %p209 = scmp.eq.s32.totalorder %s20, 1
    %p210 = por %p208, %p209
    %p212 = scmp.ne.s32.totalorder %s195, %s211
    %p213 = scmp.eq.s32.totalorder %s20, 0
    %p214 = por %p212, %p213
    %p215 = scmp.le.s32.totalorder 1, %s14
    %p216 = scmp.lt.s32.totalorder %s14, 3
    %p217 = pnand %p215, %p216
    %p218 = pneg %p217
    // Predicated region
    $region9: #{basic_block_forward.4} parent=5 // pred_check
      _
    $region10: #{basic_block_forward.4} parent=5 // pred_check_branch
      %220 = sbr.rel (%p217) target = $region12
    $region11: #{basic_block_forward.4} parent=5 // pred_region
      %s221 = ssub.s32 %s14, 1
      // Predicated region
      $region13: #{basic_block_forward.4} parent=11 // pred_check
        %p222 = pneg %p61
      $region14: #{basic_block_forward.4} parent=11 // pred_check_branch
        %224 = sbr.rel (%p222) target = $region16
      $region15: #{basic_block_forward.4} parent=11 // pred_region
        _
      $region16: #{basic_block_forward.4} parent=11 // pred_fallthru
        _
      // Predicated region
      $region17: #{basic_block_forward.4} parent=11 // pred_check
        %p225 = pneg %p82
      $region18: #{basic_block_forward.4} parent=11 // pred_check_branch
        %227 = sbr.rel (%p225) target = $region20
      $region19: #{basic_block_forward.4} parent=11 // pred_region
        _
      $region20: #{basic_block_forward.4} parent=11 // pred_fallthru
        _
      // Predicated region
      $region21: #{basic_block_forward.4} parent=11 // pred_check
        %p228 = pneg %p103
      $region22: #{basic_block_forward.4} parent=11 // pred_check_branch
        %230 = sbr.rel (%p228) target = $region24
      $region23: #{basic_block_forward.4} parent=11 // pred_region
        _
      $region24: #{basic_block_forward.4} parent=11 // pred_fallthru
        _
    $region12: #{basic_block_forward.4} parent=5 // pred_fallthru
      _
    %p231 = scmp.lt.s32.totalorder %s14, 2
    // Predicated region
    $region25: #{basic_block_forward.4} parent=5 // pred_check
      %p232 = pneg %p231
    $region26: #{basic_block_forward.4} parent=5 // pred_check_branch
      %234 = sbr.rel (%p232) target = $region28
    $region27: #{basic_block_forward.4} parent=5 // pred_region
      // Predicated region
      $region29: #{basic_block_forward.4} parent=27 // pred_check
        %p235 = pneg %p34
      $region30: #{basic_block_forward.4} parent=27 // pred_check_branch
        %237 = sbr.rel (%p235) target = $region32
      $region31: #{basic_block_forward.4} parent=27 // pred_region
        %p238 = scmp.lt.s32.totalorder %s14, 1
        %s239 = scalar_select %p238, %s14, 1
        %s240 = smul.addr %s239, 32
        %s241 = smul.addr %s240, 8
        %s242 = scalar_lea.vmem %s0, %s241
      $region32: #{basic_block_forward.4} parent=27 // pred_fallthru
        _
    $region28: #{basic_block_forward.4} parent=5 // pred_fallthru
      _
    %p243 = scmp.le.s32.totalorder 1, %s14
    %p244 = scmp.lt.s32.totalorder %s14, 3
    %p245 = pnand %p243, %p244
    %p246 = pneg %p245
    // Predicated region
    $region33: #{basic_block_forward.4} parent=5 // pred_check
      _
    $region34: #{basic_block_forward.4} parent=5 // pred_check_branch
      %248 = sbr.rel (%p245) target = $region36
    $region35: #{basic_block_forward.4} parent=5 // pred_region
      %s249 = ssub.s32 %s14, 1
      %p250 = scmp.lt.s32.totalorder %s19, 1
      %s251 = scalar_select %p250, %s19, 1
      %s252 = smul.addr %s251, 32
      %s253 = smul.addr %s252, 8
      %s254 = scalar_lea.vmem %s0, %s253
      %p255 = pneg %p40
      %p256 = pneg %p37
      %p257 = pneg %p61
      %p258 = pneg %p58
      %p259 = pneg %p82
      %p260 = pneg %p79
      %p261 = pneg %p103
      %p262 = pneg %p100
      %p263 = pneg %p129
      %p264 = pneg %p126
      %p265 = scmp.lt.s32.totalorder %s19, 1
      %s266 = scalar_select %p265, %s19, 1
      %s267 = smul.addr %s266, 32
      %s268 = smul.addr %s267, 8
      %s269 = scalar_lea.vmem %s4, %s268
      %p270 = pneg %p155
      %p271 = pneg %p152
      %p272 = scmp.lt.s32.totalorder %s19, 1
      %s273 = scalar_select %p272, %s19, 1
      %s274 = smul.addr %s273, 32
      %s275 = smul.addr %s274, 8
      %s276 = scalar_lea.vmem %s5, %s275
      %p277 = pneg %p181
      %p278 = pneg %p178
      %p279 = scmp.lt.s32.totalorder %s19, 1
      %s280 = scalar_select %p279, %s19, 1
      %s281 = scalar_lea.vmem %s6, %s280
      %p282 = pneg %p207
      %p283 = pneg %p204
      %p284 = scmp.lt.s32.totalorder %s19, 1
      %s285 = scalar_select %p284, %s19, 1
      %s286 = scalar_lea.vmem %s7, %s285
      %p287 = scmp.lt.s32.totalorder %s19, 1
      %s288 = scalar_select %p287, %s19, 1
      %s289 = smul.addr %s288, 32
      %s290 = smul.addr %s289, 8
      %s291 = scalar_lea.vmem %s0, %s290
      %p292 = scmp.lt.s32.totalorder %s19, 1
      %s293 = scalar_select %p292, %s19, 1
      %s294 = smul.addr %s293, 32
      %s295 = smul.addr %s294, 8
      %s296 = scalar_lea.vmem %s4, %s295
      %p297 = scmp.lt.s32.totalorder %s19, 1
      %s298 = scalar_select %p297, %s19, 1
      %s299 = smul.addr %s298, 32
      %s300 = smul.addr %s299, 8
      %s301 = scalar_lea.vmem %s5, %s300
      %p302 = scmp.lt.s32.totalorder %s19, 1
      %s303 = scalar_select %p302, %s19, 1
      %s304 = scalar_lea.vmem %s6, %s303
      %p305 = scmp.lt.s32.totalorder %s19, 1
      %s306 = scalar_select %p305, %s19, 1
      %s307 = scalar_lea.vmem %s7, %s306
      %v308 = vld [vmem:[%s291] sm:$0xff]
      %v309 = vld [vmem:[%s291 + $0x8] sm:$0xff]
      %v310 = vld [vmem:[%s291 + $0x10] sm:$0xff]
      %v311 = vld [vmem:[%s291 + $0x18] sm:$0xff]
      %v312 = vld [vmem:[%s291 + $0x20] sm:$0xff]
      %v313 = vld [vmem:[%s291 + $0x28] sm:$0xff]
      %v314 = vld [vmem:[%s291 + $0x30] sm:$0xff]
      %v315 = vld [vmem:[%s291 + $0x38] sm:$0xff]
      %v316 = vld [vmem:[%s291 + $0x40] sm:$0xff]
      %v317 = vld [vmem:[%s291 + $0x48] sm:$0xff]
      %v318 = vld [vmem:[%s291 + $0x50] sm:$0xff]
      %v319 = vld [vmem:[%s291 + $0x58] sm:$0xff]
      %v320 = vld [vmem:[%s291 + $0x60] sm:$0xff]
      %v321 = vld [vmem:[%s291 + $0x68] sm:$0xff]
      %v322 = vld [vmem:[%s291 + $0x70] sm:$0xff]
      %v323 = vld [vmem:[%s291 + $0x78] sm:$0xff]
      %v324 = vld [vmem:[%s291 + $0x80] sm:$0xff]
      %v325 = vld [vmem:[%s291 + $0x88] sm:$0xff]
      %v326 = vld [vmem:[%s291 + $0x90] sm:$0xff]
      %v327 = vld [vmem:[%s291 + $0x98] sm:$0xff]
      %v328 = vld [vmem:[%s291 + $0xa0] sm:$0xff]
      %v329 = vld [vmem:[%s291 + $0xa8] sm:$0xff]
      %v330 = vld [vmem:[%s291 + $0xb0] sm:$0xff]
      %v331 = vld [vmem:[%s291 + $0xb8] sm:$0xff]
      %v332 = vld [vmem:[%s291 + $0xc0] sm:$0xff]
      %v333 = vld [vmem:[%s291 + $0xc8] sm:$0xff]
      %v334 = vld [vmem:[%s291 + $0xd0] sm:$0xff]
      %v335 = vld [vmem:[%s291 + $0xd8] sm:$0xff]
      %v336 = vld [vmem:[%s291 + $0xe0] sm:$0xff]
      %v337 = vld [vmem:[%s291 + $0xe8] sm:$0xff]
      %v338 = vld [vmem:[%s291 + $0xf0] sm:$0xff]
      %v339 = vld [vmem:[%s291 + $0xf8] sm:$0xff]
      %v340 = vld [vmem:[%s1] sm:$0x1]
      %v342 = vperm.slane %v340, 0
      %v344 = vmul.f32 %v308, %v342
      %v345 = vmul.f32 %v309, %v342
      %v346 = vmul.f32 %v310, %v342
      %v347 = vmul.f32 %v311, %v342
      %v348 = vmul.f32 %v312, %v342
      %v349 = vmul.f32 %v313, %v342
      %v350 = vmul.f32 %v314, %v342
      %v351 = vmul.f32 %v315, %v342
      %v352 = vmul.f32 %v316, %v342
      %v353 = vmul.f32 %v317, %v342
      %v354 = vmul.f32 %v318, %v342
      %v355 = vmul.f32 %v319, %v342
      %v356 = vmul.f32 %v320, %v342
      %v357 = vmul.f32 %v321, %v342
      %v358 = vmul.f32 %v322, %v342
      %v359 = vmul.f32 %v323, %v342
      %v360 = vmul.f32 %v324, %v342
      %v361 = vmul.f32 %v325, %v342
      %v362 = vmul.f32 %v326, %v342
      %v363 = vmul.f32 %v327, %v342
      %v364 = vmul.f32 %v328, %v342
      %v365 = vmul.f32 %v329, %v342
      %v366 = vmul.f32 %v330, %v342
      %v367 = vmul.f32 %v331, %v342
      %v368 = vmul.f32 %v332, %v342
      %v369 = vmul.f32 %v333, %v342
      %v370 = vmul.f32 %v334, %v342
      %v371 = vmul.f32 %v335, %v342
      %v372 = vmul.f32 %v336, %v342
      %v373 = vmul.f32 %v337, %v342
      %v374 = vmul.f32 %v338, %v342
      %v375 = vmul.f32 %v339, %v342
      %v376 = vld [vmem:[%s2] sm:$0x1]
      %v378 = vperm.slane %v376, 0
      %v380 = vadd.f32 %v344, %v378
      %v381 = vadd.f32 %v345, %v378
      %v382 = vadd.f32 %v346, %v378
      %v383 = vadd.f32 %v347, %v378
      %v384 = vadd.f32 %v348, %v378
      %v385 = vadd.f32 %v349, %v378
      %v386 = vadd.f32 %v350, %v378
      %v387 = vadd.f32 %v351, %v378
      %v388 = vadd.f32 %v352, %v378
      %v389 = vadd.f32 %v353, %v378
      %v390 = vadd.f32 %v354, %v378
      %v391 = vadd.f32 %v355, %v378
      %v392 = vadd.f32 %v356, %v378
      %v393 = vadd.f32 %v357, %v378
      %v394 = vadd.f32 %v358, %v378
      %v395 = vadd.f32 %v359, %v378
      %v396 = vadd.f32 %v360, %v378
      %v397 = vadd.f32 %v361, %v378
      %v398 = vadd.f32 %v362, %v378
      %v399 = vadd.f32 %v363, %v378
      %v400 = vadd.f32 %v364, %v378
      %v401 = vadd.f32 %v365, %v378
      %v402 = vadd.f32 %v366, %v378
      %v403 = vadd.f32 %v367, %v378
      %v404 = vadd.f32 %v368, %v378
      %v405 = vadd.f32 %v369, %v378
      %v406 = vadd.f32 %v370, %v378
      %v407 = vadd.f32 %v371, %v378
      %v408 = vadd.f32 %v372, %v378
      %v409 = vadd.f32 %v373, %v378
      %v410 = vadd.f32 %v374, %v378
      %v411 = vadd.f32 %v375, %v378
      %v412 = vmax.f32 %v380, 0.0
      %v413 = vmax.f32 %v381, 0.0
      %v414 = vmax.f32 %v382, 0.0
      %v415 = vmax.f32 %v383, 0.0
      %v416 = vmax.f32 %v384, 0.0
      %v417 = vmax.f32 %v385, 0.0
      %v418 = vmax.f32 %v386, 0.0
      %v419 = vmax.f32 %v387, 0.0
      %v420 = vmax.f32 %v388, 0.0
      %v421 = vmax.f32 %v389, 0.0
      %v422 = vmax.f32 %v390, 0.0
      %v423 = vmax.f32 %v391, 0.0
      %v424 = vmax.f32 %v392, 0.0
      %v425 = vmax.f32 %v393, 0.0
      %v426 = vmax.f32 %v394, 0.0
      %v427 = vmax.f32 %v395, 0.0
      %v428 = vmax.f32 %v396, 0.0
      %v429 = vmax.f32 %v397, 0.0
      %v430 = vmax.f32 %v398, 0.0
      %v431 = vmax.f32 %v399, 0.0
      %v432 = vmax.f32 %v400, 0.0
      %v433 = vmax.f32 %v401, 0.0
      %v434 = vmax.f32 %v402, 0.0
      %v435 = vmax.f32 %v403, 0.0
      %v436 = vmax.f32 %v404, 0.0
      %v437 = vmax.f32 %v405, 0.0
      %v438 = vmax.f32 %v406, 0.0
      %v439 = vmax.f32 %v407, 0.0
      %v440 = vmax.f32 %v408, 0.0
      %v441 = vmax.f32 %v409, 0.0
      %v442 = vmax.f32 %v410, 0.0
      %v443 = vmax.f32 %v411, 0.0
      %vm444 = vcmask 64512
      %445 = vst.msk [vmem:[%s296] sm:$0xff] %vm444, %v412
      %446 = vst.msk [vmem:[%s296 + $0x8] sm:$0xff] %vm444, %v413
      %447 = vst.msk [vmem:[%s296 + $0x10] sm:$0xff] %vm444, %v414
      %448 = vst.msk [vmem:[%s296 + $0x18] sm:$0xff] %vm444, %v415
      %449 = vst.msk [vmem:[%s296 + $0x20] sm:$0xff] %vm444, %v416
      %450 = vst.msk [vmem:[%s296 + $0x28] sm:$0xff] %vm444, %v417
      %451 = vst.msk [vmem:[%s296 + $0x30] sm:$0xff] %vm444, %v418
      %452 = vst.msk [vmem:[%s296 + $0x38] sm:$0xff] %vm444, %v419
      %453 = vst.msk [vmem:[%s296 + $0x40] sm:$0xff] %vm444, %v420
      %454 = vst.msk [vmem:[%s296 + $0x48] sm:$0xff] %vm444, %v421
      %455 = vst.msk [vmem:[%s296 + $0x50] sm:$0xff] %vm444, %v422
      %456 = vst.msk [vmem:[%s296 + $0x58] sm:$0xff] %vm444, %v423
      %457 = vst.msk [vmem:[%s296 + $0x60] sm:$0xff] %vm444, %v424
      %458 = vst.msk [vmem:[%s296 + $0x68] sm:$0xff] %vm444, %v425
      %459 = vst.msk [vmem:[%s296 + $0x70] sm:$0xff] %vm444, %v426
      %460 = vst.msk [vmem:[%s296 + $0x78] sm:$0xff] %vm444, %v427
      %461 = vst.msk [vmem:[%s296 + $0x80] sm:$0xff] %vm444, %v428
      %462 = vst.msk [vmem:[%s296 + $0x88] sm:$0xff] %vm444, %v429
      %463 = vst.msk [vmem:[%s296 + $0x90] sm:$0xff] %vm444, %v430
      %464 = vst.msk [vmem:[%s296 + $0x98] sm:$0xff] %vm444, %v431
      %465 = vst.msk [vmem:[%s296 + $0xa0] sm:$0xff] %vm444, %v432
      %466 = vst.msk [vmem:[%s296 + $0xa8] sm:$0xff] %vm444, %v433
      %467 = vst.msk [vmem:[%s296 + $0xb0] sm:$0xff] %vm444, %v434
      %468 = vst.msk [vmem:[%s296 + $0xb8] sm:$0xff] %vm444, %v435
      %469 = vst.msk [vmem:[%s296 + $0xc0] sm:$0xff] %vm444, %v436
      %470 = vst.msk [vmem:[%s296 + $0xc8] sm:$0xff] %vm444, %v437
      %471 = vst.msk [vmem:[%s296 + $0xd0] sm:$0xff] %vm444, %v438
      %472 = vst.msk [vmem:[%s296 + $0xd8] sm:$0xff] %vm444, %v439
      %473 = vst.msk [vmem:[%s296 + $0xe0] sm:$0xff] %vm444, %v440
      %474 = vst.msk [vmem:[%s296 + $0xe8] sm:$0xff] %vm444, %v441
      %475 = vst.msk [vmem:[%s296 + $0xf0] sm:$0xff] %vm444, %v442
      %476 = vst.msk [vmem:[%s296 + $0xf8] sm:$0xff] %vm444, %v443
      %477 = vst.msk [vmem:[#allocation2] sm:$0xff] %vm444, 0.0
      %478 = vst.msk [vmem:[#allocation2 + $0x8] sm:$0xff] %vm444, 0.0
      %vm479 = vcmask 58368
      %480 = vst.msk [vmem:[#allocation2 + $0x10] sm:$0x3] %vm479, 0.0
      %s481 = scalar_lea.vmem [#allocation2], 408
      %482 = vst.msk [vmem:[%s481] sm:$0xff] %vm444, 0.0
      %483 = vst.msk [vmem:[%s481 + $0x8] sm:$0xff] %vm444, 0.0
      %484 = vst.msk [vmem:[%s481 + $0x10] sm:$0x3] %vm479, 0.0
      %vm485 = vcmask 57344
      %486 = vst.msk [vmem:[#allocation2] sm:$0x1] %vm485, 0.0
      %487 = vst.msk [vmem:[#allocation2 + $0x18] sm:$0x1] %vm485, 0.0
      %488 = vst.msk [vmem:[#allocation2 + $0x30] sm:$0x1] %vm485, 0.0
      %489 = vst.msk [vmem:[#allocation2 + $0x48] sm:$0x1] %vm485, 0.0
      %490 = vst.msk [vmem:[#allocation2 + $0x60] sm:$0x1] %vm485, 0.0
      %491 = vst.msk [vmem:[#allocation2 + $0x78] sm:$0x1] %vm485, 0.0
      %492 = vst.msk [vmem:[#allocation2 + $0x90] sm:$0x1] %vm485, 0.0
      %493 = vst.msk [vmem:[#allocation2 + $0xa8] sm:$0x1] %vm485, 0.0
      %494 = vst.msk [vmem:[#allocation2 + $0xc0] sm:$0x1] %vm485, 0.0
      %495 = vst.msk [vmem:[#allocation2 + $0xd8] sm:$0x1] %vm485, 0.0
      %496 = vst.msk [vmem:[#allocation2 + $0xf0] sm:$0x1] %vm485, 0.0
      %497 = vst.msk [vmem:[#allocation2 + $0x108] sm:$0x1] %vm485, 0.0
      %498 = vst.msk [vmem:[#allocation2 + $0x120] sm:$0x1] %vm485, 0.0
      %499 = vst.msk [vmem:[#allocation2 + $0x138] sm:$0x1] %vm485, 0.0
      %500 = vst.msk [vmem:[#allocation2 + $0x150] sm:$0x1] %vm485, 0.0
      %501 = vst.msk [vmem:[#allocation2 + $0x168] sm:$0x1] %vm485, 0.0
      %502 = vst.msk [vmem:[#allocation2 + $0x180] sm:$0x1] %vm485, 0.0
      %503 = vst.msk [vmem:[#allocation2 + $0x198] sm:$0x1] %vm485, 0.0
      %504 = vst.msk [vmem:[#allocation2 + $0x11] sm:$0x1] %vm485, 0.0
      %505 = vst.msk [vmem:[#allocation2 + $0x29] sm:$0x1] %vm485, 0.0
      %506 = vst.msk [vmem:[#allocation2 + $0x41] sm:$0x1] %vm485, 0.0
      %507 = vst.msk [vmem:[#allocation2 + $0x59] sm:$0x1] %vm485, 0.0
      %508 = vst.msk [vmem:[#allocation2 + $0x71] sm:$0x1] %vm485, 0.0
      %509 = vst.msk [vmem:[#allocation2 + $0x89] sm:$0x1] %vm485, 0.0
      %510 = vst.msk [vmem:[#allocation2 + $0xa1] sm:$0x1] %vm485, 0.0
      %511 = vst.msk [vmem:[#allocation2 + $0xb9] sm:$0x1] %vm485, 0.0
      %512 = vst.msk [vmem:[#allocation2 + $0xd1] sm:$0x1] %vm485, 0.0
      %513 = vst.msk [vmem:[#allocation2 + $0xe9] sm:$0x1] %vm485, 0.0
      %514 = vst.msk [vmem:[#allocation2 + $0x101] sm:$0x1] %vm485, 0.0
      %515 = vst.msk [vmem:[#allocation2 + $0x119] sm:$0x1] %vm485, 0.0
      %516 = vst.msk [vmem:[#allocation2 + $0x131] sm:$0x1] %vm485, 0.0
      %517 = vst.msk [vmem:[#allocation2 + $0x149] sm:$0x1] %vm485, 0.0
      %518 = vst.msk [vmem:[#allocation2 + $0x161] sm:$0x1] %vm485, 0.0
      %519 = vst.msk [vmem:[#allocation2 + $0x179] sm:$0x1] %vm485, 0.0
      %520 = vst.msk [vmem:[#allocation2 + $0x191] sm:$0x1] %vm485, 0.0
      %521 = vst.msk [vmem:[#allocation2 + $0x1a9] sm:$0x1] %vm485, 0.0
      %s522 = scalar_lea.vmem [#allocation2], 24
      %523 = vst.msk [vmem:[%s522 + $0x1] sm:$0xff] %vm444, %v412
      %524 = vst.msk [vmem:[%s522 + $0x9] sm:$0xff] %vm444, %v413
      %525 = vst.msk [vmem:[%s522 + $0x19] sm:$0xff] %vm444, %v414
      %526 = vst.msk [vmem:[%s522 + $0x21] sm:$0xff] %vm444, %v415
      %527 = vst.msk [vmem:[%s522 + $0x31] sm:$0xff] %vm444, %v416
      %528 = vst.msk [vmem:[%s522 + $0x39] sm:$0xff] %vm444, %v417
      %529 = vst.msk [vmem:[%s522 + $0x49] sm:$0xff] %vm444, %v418
      %530 = vst.msk [vmem:[%s522 + $0x51] sm:$0xff] %vm444, %v419
      %531 = vst.msk [vmem:[%s522 + $0x61] sm:$0xff] %vm444, %v420
      %532 = vst.msk [vmem:[%s522 + $0x69] sm:$0xff] %vm444, %v421
      %533 = vst.msk [vmem:[%s522 + $0x79] sm:$0xff] %vm444, %v422
      %534 = vst.msk [vmem:[%s522 + $0x81] sm:$0xff] %vm444, %v423
      %535 = vst.msk [vmem:[%s522 + $0x91] sm:$0xff] %vm444, %v424
      %536 = vst.msk [vmem:[%s522 + $0x99] sm:$0xff] %vm444, %v425
      %537 = vst.msk [vmem:[%s522 + $0xa9] sm:$0xff] %vm444, %v426
      %538 = vst.msk [vmem:[%s522 + $0xb1] sm:$0xff] %vm444, %v427
      %539 = vst.msk [vmem:[%s522 + $0xc1] sm:$0xff] %vm444, %v428
      %540 = vst.msk [vmem:[%s522 + $0xc9] sm:$0xff] %vm444, %v429
      %541 = vst.msk [vmem:[%s522 + $0xd9] sm:$0xff] %vm444, %v430
      %542 = vst.msk [vmem:[%s522 + $0xe1] sm:$0xff] %vm444, %v431
      %543 = vst.msk [vmem:[%s522 + $0xf1] sm:$0xff] %vm444, %v432
      %544 = vst.msk [vmem:[%s522 + $0xf9] sm:$0xff] %vm444, %v433
      %545 = vst.msk [vmem:[%s522 + $0x109] sm:$0xff] %vm444, %v434
      %546 = vst.msk [vmem:[%s522 + $0x111] sm:$0xff] %vm444, %v435
      %547 = vst.msk [vmem:[%s522 + $0x121] sm:$0xff] %vm444, %v436
      %548 = vst.msk [vmem:[%s522 + $0x129] sm:$0xff] %vm444, %v437
      %549 = vst.msk [vmem:[%s522 + $0x139] sm:$0xff] %vm444, %v438
      %550 = vst.msk [vmem:[%s522 + $0x141] sm:$0xff] %vm444, %v439
      %551 = vst.msk [vmem:[%s522 + $0x151] sm:$0xff] %vm444, %v440
      %552 = vst.msk [vmem:[%s522 + $0x159] sm:$0xff] %vm444, %v441
      %553 = vst.msk [vmem:[%s522 + $0x169] sm:$0xff] %vm444, %v442
      %554 = vst.msk [vmem:[%s522 + $0x171] sm:$0xff] %vm444, %v443
      %v555 = vld [vmem:[#allocation2] sm:$0xff]
      %v556 = vld [vmem:[#allocation2 + $0x8] sm:$0xff]
      %v557 = vld [vmem:[#allocation2 + $0x10] sm:$0x3]
      %v558 = vld [vmem:[#allocation2 + $0x18] sm:$0xff]
      %v559 = vld [vmem:[#allocation2 + $0x20] sm:$0xff]
      %v560 = vld [vmem:[#allocation2 + $0x28] sm:$0x3]
      %v561 = vld [vmem:[#allocation2 + $0x30] sm:$0xff]
      %v562 = vld [vmem:[#allocation2 + $0x38] sm:$0xff]
      %v563 = vld [vmem:[#allocation2 + $0x40] sm:$0x3]
      %v564 = vld [vmem:[#allocation2 + $0x48] sm:$0xff]
      %v565 = vld [vmem:[#allocation2 + $0x50] sm:$0xff]
      %v566 = vld [vmem:[#allocation2 + $0x58] sm:$0x3]
      %v567 = vld [vmem:[#allocation2 + $0x60] sm:$0xff]
      %v568 = vld [vmem:[#allocation2 + $0x68] sm:$0xff]
      %v569 = vld [vmem:[#allocation2 + $0x70] sm:$0x3]
      %v570 = vld [vmem:[#allocation2 + $0x78] sm:$0xff]
      %v571 = vld [vmem:[#allocation2 + $0x80] sm:$0xff]
      %v572 = vld [vmem:[#allocation2 + $0x88] sm:$0x3]
      %v573 = vld [vmem:[#allocation2 + $0x90] sm:$0xff]
      %v574 = vld [vmem:[#allocation2 + $0x98] sm:$0xff]
      %v575 = vld [vmem:[#allocation2 + $0xa0] sm:$0x3]
      %v576 = vld [vmem:[#allocation2 + $0xa8] sm:$0xff]
      %v577 = vld [vmem:[#allocation2 + $0xb0] sm:$0xff]
      %v578 = vld [vmem:[#allocation2 + $0xb8] sm:$0x3]
      %v579 = vld [vmem:[#allocation2 + $0xc0] sm:$0xff]
      %v580 = vld [vmem:[#allocation2 + $0xc8] sm:$0xff]
      %v581 = vld [vmem:[#allocation2 + $0xd0] sm:$0x3]
      %v582 = vld [vmem:[#allocation2 + $0xd8] sm:$0xff]
      %v583 = vld [vmem:[#allocation2 + $0xe0] sm:$0xff]
      %v584 = vld [vmem:[#allocation2 + $0xe8] sm:$0x3]
      %v585 = vld [vmem:[#allocation2 + $0xf0] sm:$0xff]
      %v586 = vld [vmem:[#allocation2 + $0xf8] sm:$0xff]
      %v587 = vld [vmem:[#allocation2 + $0x100] sm:$0x3]
      %v588 = vld [vmem:[#allocation2 + $0x108] sm:$0xff]
      %v589 = vld [vmem:[#allocation2 + $0x110] sm:$0xff]
      %v590 = vld [vmem:[#allocation2 + $0x118] sm:$0x3]
      %v591 = vld [vmem:[#allocation2 + $0x120] sm:$0xff]
      %v592 = vld [vmem:[#allocation2 + $0x128] sm:$0xff]
      %v593 = vld [vmem:[#allocation2 + $0x130] sm:$0x3]
      %v594 = vld [vmem:[#allocation2 + $0x138] sm:$0xff]
      %v595 = vld [vmem:[#allocation2 + $0x140] sm:$0xff]
      %v596 = vld [vmem:[#allocation2 + $0x148] sm:$0x3]
      %v597 = vld [vmem:[#allocation2 + $0x150] sm:$0xff]
      %v598 = vld [vmem:[#allocation2 + $0x158] sm:$0xff]
      %v599 = vld [vmem:[#allocation2 + $0x160] sm:$0x3]
      %v600 = vld [vmem:[#allocation2 + $0x168] sm:$0xff]
      %v601 = vld [vmem:[#allocation2 + $0x170] sm:$0xff]
      %v602 = vld [vmem:[#allocation2 + $0x178] sm:$0x3]
      %v603 = vld [vmem:[#allocation2 + $0x180] sm:$0xff]
      %v604 = vld [vmem:[#allocation2 + $0x188] sm:$0xff]
      %v605 = vld [vmem:[#allocation2 + $0x190] sm:$0x3]
      %v606 = vld [vmem:[#allocation2 + $0x198] sm:$0xff]
      %v607 = vld [vmem:[#allocation2 + $0x1a0] sm:$0xff]
      %v608 = vld [vmem:[#allocation2 + $0x1a8] sm:$0x3]
      %609 = vst.msk [vmem:[#allocation3] sm:$0xff] %vm444, %v555
      %610 = vst.msk [vmem:[#allocation3 + $0x8] sm:$0xff] %vm444, %v556
      %611 = vst.msk [vmem:[#allocation3 + $0x10] sm:$0xff] %vm444, %v558
      %612 = vst.msk [vmem:[#allocation3 + $0x18] sm:$0xff] %vm444, %v559
      %613 = vst.msk [vmem:[#allocation3 + $0x20] sm:$0xff] %vm444, %v561
      %614 = vst.msk [vmem:[#allocation3 + $0x28] sm:$0xff] %vm444, %v562
      %615 = vst.msk [vmem:[#allocation3 + $0x30] sm:$0xff] %vm444, %v564
      %616 = vst.msk [vmem:[#allocation3 + $0x38] sm:$0xff] %vm444, %v565
      %617 = vst.msk [vmem:[#allocation3 + $0x40] sm:$0xff] %vm444, %v567
      %618 = vst.msk [vmem:[#allocation3 + $0x48] sm:$0xff] %vm444, %v568
      %619 = vst.msk [vmem:[#allocation3 + $0x50] sm:$0xff] %vm444, %v570
      %620 = vst.msk [vmem:[#allocation3 + $0x58] sm:$0xff] %vm444, %v571
      %621 = vst.msk [vmem:[#allocation3 + $0x60] sm:$0xff] %vm444, %v573
      %622 = vst.msk [vmem:[#allocation3 + $0x68] sm:$0xff] %vm444, %v574
      %623 = vst.msk [vmem:[#allocation3 + $0x70] sm:$0xff] %vm444, %v576
      %624 = vst.msk [vmem:[#allocation3 + $0x78] sm:$0xff] %vm444, %v577
      %625 = vst.msk [vmem:[#allocation3 + $0x80] sm:$0xff] %vm444, %v579
      %626 = vst.msk [vmem:[#allocation3 + $0x88] sm:$0xff] %vm444, %v580
      %627 = vst.msk [vmem:[#allocation3 + $0x90] sm:$0xff] %vm444, %v582
      %628 = vst.msk [vmem:[#allocation3 + $0x98] sm:$0xff] %vm444, %v583
      %629 = vst.msk [vmem:[#allocation3 + $0xa0] sm:$0xff] %vm444, %v585
      %630 = vst.msk [vmem:[#allocation3 + $0xa8] sm:$0xff] %vm444, %v586
      %631 = vst.msk [vmem:[#allocation3 + $0xb0] sm:$0xff] %vm444, %v588
      %632 = vst.msk [vmem:[#allocation3 + $0xb8] sm:$0xff] %vm444, %v589
      %633 = vst.msk [vmem:[#allocation3 + $0xc0] sm:$0xff] %vm444, %v591
      %634 = vst.msk [vmem:[#allocation3 + $0xc8] sm:$0xff] %vm444, %v592
      %635 = vst.msk [vmem:[#allocation3 + $0xd0] sm:$0xff] %vm444, %v594
      %636 = vst.msk [vmem:[#allocation3 + $0xd8] sm:$0xff] %vm444, %v595
      %637 = vst.msk [vmem:[#allocation3 + $0xe0] sm:$0xff] %vm444, %v597
      %638 = vst.msk [vmem:[#allocation3 + $0xe8] sm:$0xff] %vm444, %v598
      %639 = vst.msk [vmem:[#allocation3 + $0xf0] sm:$0xff] %vm444, %v600
      %640 = vst.msk [vmem:[#allocation3 + $0xf8] sm:$0xff] %vm444, %v601
      %vm689 = vcmask 1046528
      %v690 = vrot.slane %v555, 1
      %v691 = vrot.slane %v556, 1
      %v692 = vsel %vm689, %v690, %v691
      %v693 = vrot.slane %v557, 1
      %v694 = vsel %vm689, %v691, %v693
      %v695 = vrot.slane %v558, 1
      %v696 = vrot.slane %v559, 1
      %v697 = vsel %vm689, %v695, %v696
      %v698 = vrot.slane %v560, 1
      %v699 = vsel %vm689, %v696, %v698
      %v700 = vrot.slane %v561, 1
      %v701 = vrot.slane %v562, 1
      %v702 = vsel %vm689, %v700, %v701
      %v703 = vrot.slane %v563, 1
      %v704 = vsel %vm689, %v701, %v703
      %v705 = vrot.slane %v564, 1
      %v706 = vrot.slane %v565, 1
      %v707 = vsel %vm689, %v705, %v706
      %v708 = vrot.slane %v566, 1
      %v709 = vsel %vm689, %v706, %v708
      %v710 = vrot.slane %v567, 1
      %v711 = vrot.slane %v568, 1
      %v712 = vsel %vm689, %v710, %v711
      %v713 = vrot.slane %v569, 1
      %v714 = vsel %vm689, %v711, %v713
      %v715 = vrot.slane %v570, 1
      %v716 = vrot.slane %v571, 1
      %v717 = vsel %vm689, %v715, %v716
      %v718 = vrot.slane %v572, 1
      %v719 = vsel %vm689, %v716, %v718
      %v720 = vrot.slane %v573, 1
      %v721 = vrot.slane %v574, 1
      %v722 = vsel %vm689, %v720, %v721
      %v723 = vrot.slane %v575, 1
      %v724 = vsel %vm689, %v721, %v723
      %v725 = vrot.slane %v576, 1
      %v726 = vrot.slane %v577, 1
      %v727 = vsel %vm689, %v725, %v726
      %v728 = vrot.slane %v578, 1
      %v729 = vsel %vm689, %v726, %v728
      %v730 = vrot.slane %v579, 1
      %v731 = vrot.slane %v580, 1
      %v732 = vsel %vm689, %v730, %v731
      %v733 = vrot.slane %v581, 1
      %v734 = vsel %vm689, %v731, %v733
      %v735 = vrot.slane %v582, 1
      %v736 = vrot.slane %v583, 1
      %v737 = vsel %vm689, %v735, %v736
      %v738 = vrot.slane %v584, 1
      %v739 = vsel %vm689, %v736, %v738
      %v740 = vrot.slane %v585, 1
      %v741 = vrot.slane %v586, 1
      %v742 = vsel %vm689, %v740, %v741
      %v743 = vrot.slane %v587, 1
      %v744 = vsel %vm689, %v741, %v743
      %v745 = vrot.slane %v588, 1
      %v746 = vrot.slane %v589, 1
      %v747 = vsel %vm689, %v745, %v746
      %v748 = vrot.slane %v590, 1
      %v749 = vsel %vm689, %v746, %v748
      %v750 = vrot.slane %v591, 1
      %v751 = vrot.slane %v592, 1
      %v752 = vsel %vm689, %v750, %v751
      %v753 = vrot.slane %v593, 1
      %v754 = vsel %vm689, %v751, %v753
      %v755 = vrot.slane %v594, 1
      %v756 = vrot.slane %v595, 1
      %v757 = vsel %vm689, %v755, %v756
      %v758 = vrot.slane %v596, 1
      %v759 = vsel %vm689, %v756, %v758
      %v760 = vrot.slane %v597, 1
      %v761 = vrot.slane %v598, 1
      %v762 = vsel %vm689, %v760, %v761
      %v763 = vrot.slane %v599, 1
      %v764 = vsel %vm689, %v761, %v763
      %v765 = vrot.slane %v600, 1
      %v766 = vrot.slane %v601, 1
      %v767 = vsel %vm689, %v765, %v766
      %v768 = vrot.slane %v602, 1
      %v769 = vsel %vm689, %v766, %v768
      %770 = vrot.lane.b32.xlu0 %v692, 8
      %v771 = vpop.permute.xlu0 %770
      %772 = vrot.lane.b32.xlu0 %v694, 8
      %v773 = vpop.permute.xlu0 %772
      %774 = vrot.lane.b32.xlu0 %v697, 8
      %v775 = vpop.permute.xlu0 %774
      %776 = vrot.lane.b32.xlu0 %v699, 8
      %v777 = vpop.permute.xlu0 %776
      %778 = vrot.lane.b32.xlu0 %v702, 8
      %v779 = vpop.permute.xlu0 %778
      %780 = vrot.lane.b32.xlu0 %v704, 8
      %v781 = vpop.permute.xlu0 %780
      %782 = vrot.lane.b32.xlu0 %v707, 8
      %v783 = vpop.permute.xlu0 %782
      %784 = vrot.lane.b32.xlu0 %v709, 8
      %v785 = vpop.permute.xlu0 %784
      %786 = vrot.lane.b32.xlu0 %v712, 8
      %v787 = vpop.permute.xlu0 %786
      %788 = vrot.lane.b32.xlu0 %v714, 8
      %v789 = vpop.permute.xlu0 %788
      %790 = vrot.lane.b32.xlu0 %v717, 8
      %v791 = vpop.permute.xlu0 %790
      %792 = vrot.lane.b32.xlu0 %v719, 8
      %v793 = vpop.permute.xlu0 %792
      %794 = vrot.lane.b32.xlu0 %v722, 8
      %v795 = vpop.permute.xlu0 %794
      %796 = vrot.lane.b32.xlu0 %v724, 8
      %v797 = vpop.permute.xlu0 %796
      %798 = vrot.lane.b32.xlu0 %v727, 8
      %v799 = vpop.permute.xlu0 %798
      %800 = vrot.lane.b32.xlu0 %v729, 8
      %v801 = vpop.permute.xlu0 %800
      %802 = vrot.lane.b32.xlu0 %v732, 8
      %v803 = vpop.permute.xlu0 %802
      %804 = vrot.lane.b32.xlu0 %v734, 8
      %v805 = vpop.permute.xlu0 %804
      %806 = vrot.lane.b32.xlu0 %v737, 8
      %v807 = vpop.permute.xlu0 %806
      %808 = vrot.lane.b32.xlu0 %v739, 8
      %v809 = vpop.permute.xlu0 %808
      %810 = vrot.lane.b32.xlu0 %v742, 8
      %v811 = vpop.permute.xlu0 %810
      %812 = vrot.lane.b32.xlu0 %v744, 8
      %v813 = vpop.permute.xlu0 %812
      %814 = vrot.lane.b32.xlu0 %v747, 8
      %v815 = vpop.permute.xlu0 %814
      %816 = vrot.lane.b32.xlu0 %v749, 8
      %v817 = vpop.permute.xlu0 %816
      %818 = vrot.lane.b32.xlu0 %v752, 8
      %v819 = vpop.permute.xlu0 %818
      %820 = vrot.lane.b32.xlu0 %v754, 8
      %v821 = vpop.permute.xlu0 %820
      %822 = vrot.lane.b32.xlu0 %v757, 8
      %v823 = vpop.permute.xlu0 %822
      %824 = vrot.lane.b32.xlu0 %v759, 8
      %v825 = vpop.permute.xlu0 %824
      %826 = vrot.lane.b32.xlu0 %v762, 8
      %v827 = vpop.permute.xlu0 %826
      %828 = vrot.lane.b32.xlu0 %v764, 8
      %v829 = vpop.permute.xlu0 %828
      %830 = vrot.lane.b32.xlu0 %v767, 8
      %v831 = vpop.permute.xlu0 %830
      %832 = vrot.lane.b32.xlu0 %v769, 8
      %v833 = vpop.permute.xlu0 %832
      %vm866 = vcmask 130112
      %867 = vst.msk [vmem:[#allocation3] sm:$0xff] %vm866, %v771
      %868 = vst.msk [vmem:[#allocation3 + $0x8] sm:$0xff] %vm866, %v773
      %869 = vst.msk [vmem:[#allocation3 + $0x10] sm:$0xff] %vm866, %v775
      %870 = vst.msk [vmem:[#allocation3 + $0x18] sm:$0xff] %vm866, %v777
      %871 = vst.msk [vmem:[#allocation3 + $0x20] sm:$0xff] %vm866, %v779
      %872 = vst.msk [vmem:[#allocation3 + $0x28] sm:$0xff] %vm866, %v781
      %873 = vst.msk [vmem:[#allocation3 + $0x30] sm:$0xff] %vm866, %v783
      %874 = vst.msk [vmem:[#allocation3 + $0x38] sm:$0xff] %vm866, %v785
      %875 = vst.msk [vmem:[#allocation3 + $0x40] sm:$0xff] %vm866, %v787
      %876 = vst.msk [vmem:[#allocation3 + $0x48] sm:$0xff] %vm866, %v789
      %877 = vst.msk [vmem:[#allocation3 + $0x50] sm:$0xff] %vm866, %v791
      %878 = vst.msk [vmem:[#allocation3 + $0x58] sm:$0xff] %vm866, %v793
      %879 = vst.msk [vmem:[#allocation3 + $0x60] sm:$0xff] %vm866, %v795
      %880 = vst.msk [vmem:[#allocation3 + $0x68] sm:$0xff] %vm866, %v797
      %881 = vst.msk [vmem:[#allocation3 + $0x70] sm:$0xff] %vm866, %v799
      %882 = vst.msk [vmem:[#allocation3 + $0x78] sm:$0xff] %vm866, %v801
      %883 = vst.msk [vmem:[#allocation3 + $0x80] sm:$0xff] %vm866, %v803
      %884 = vst.msk [vmem:[#allocation3 + $0x88] sm:$0xff] %vm866, %v805
      %885 = vst.msk [vmem:[#allocation3 + $0x90] sm:$0xff] %vm866, %v807
      %886 = vst.msk [vmem:[#allocation3 + $0x98] sm:$0xff] %vm866, %v809
      %887 = vst.msk [vmem:[#allocation3 + $0xa0] sm:$0xff] %vm866, %v811
      %888 = vst.msk [vmem:[#allocation3 + $0xa8] sm:$0xff] %vm866, %v813
      %889 = vst.msk [vmem:[#allocation3 + $0xb0] sm:$0xff] %vm866, %v815
      %890 = vst.msk [vmem:[#allocation3 + $0xb8] sm:$0xff] %vm866, %v817
      %891 = vst.msk [vmem:[#allocation3 + $0xc0] sm:$0xff] %vm866, %v819
      %892 = vst.msk [vmem:[#allocation3 + $0xc8] sm:$0xff] %vm866, %v821
      %893 = vst.msk [vmem:[#allocation3 + $0xd0] sm:$0xff] %vm866, %v823
      %894 = vst.msk [vmem:[#allocation3 + $0xd8] sm:$0xff] %vm866, %v825
      %895 = vst.msk [vmem:[#allocation3 + $0xe0] sm:$0xff] %vm866, %v827
      %896 = vst.msk [vmem:[#allocation3 + $0xe8] sm:$0xff] %vm866, %v829
      %897 = vst.msk [vmem:[#allocation3 + $0xf0] sm:$0xff] %vm866, %v831
      %898 = vst.msk [vmem:[#allocation3 + $0xf8] sm:$0xff] %vm866, %v833
      %vm899 = vcmask 1045504
      %v900 = vrot.slane %v555, 2
      %v901 = vrot.slane %v556, 2
      %v902 = vsel %vm899, %v900, %v901
      %v903 = vrot.slane %v557, 2
      %v904 = vsel %vm899, %v901, %v903
      %v905 = vrot.slane %v558, 2
      %v906 = vrot.slane %v559, 2
      %v907 = vsel %vm899, %v905, %v906
      %v908 = vrot.slane %v560, 2
      %v909 = vsel %vm899, %v906, %v908
      %v910 = vrot.slane %v561, 2
      %v911 = vrot.slane %v562, 2
      %v912 = vsel %vm899, %v910, %v911
      %v913 = vrot.slane %v563, 2
      %v914 = vsel %vm899, %v911, %v913
      %v915 = vrot.slane %v564, 2
      %v916 = vrot.slane %v565, 2
      %v917 = vsel %vm899, %v915, %v916
      %v918 = vrot.slane %v566, 2
      %v919 = vsel %vm899, %v916, %v918
      %v920 = vrot.slane %v567, 2
      %v921 = vrot.slane %v568, 2
      %v922 = vsel %vm899, %v920, %v921
      %v923 = vrot.slane %v569, 2
      %v924 = vsel %vm899, %v921, %v923
      %v925 = vrot.slane %v570, 2
      %v926 = vrot.slane %v571, 2
      %v927 = vsel %vm899, %v925, %v926
      %v928 = vrot.slane %v572, 2
      %v929 = vsel %vm899, %v926, %v928
      %v930 = vrot.slane %v573, 2
      %v931 = vrot.slane %v574, 2
      %v932 = vsel %vm899, %v930, %v931
      %v933 = vrot.slane %v575, 2
      %v934 = vsel %vm899, %v931, %v933
      %v935 = vrot.slane %v576, 2
      %v936 = vrot.slane %v577, 2
      %v937 = vsel %vm899, %v935, %v936
      %v938 = vrot.slane %v578, 2
      %v939 = vsel %vm899, %v936, %v938
      %v940 = vrot.slane %v579, 2
      %v941 = vrot.slane %v580, 2
      %v942 = vsel %vm899, %v940, %v941
      %v943 = vrot.slane %v581, 2
      %v944 = vsel %vm899, %v941, %v943
      %v945 = vrot.slane %v582, 2
      %v946 = vrot.slane %v583, 2
      %v947 = vsel %vm899, %v945, %v946
      %v948 = vrot.slane %v584, 2
      %v949 = vsel %vm899, %v946, %v948
      %v950 = vrot.slane %v585, 2
      %v951 = vrot.slane %v586, 2
      %v952 = vsel %vm899, %v950, %v951
      %v953 = vrot.slane %v587, 2
      %v954 = vsel %vm899, %v951, %v953
      %v955 = vrot.slane %v588, 2
      %v956 = vrot.slane %v589, 2
      %v957 = vsel %vm899, %v955, %v956
      %v958 = vrot.slane %v590, 2
      %v959 = vsel %vm899, %v956, %v958
      %v960 = vrot.slane %v591, 2
      %v961 = vrot.slane %v592, 2
      %v962 = vsel %vm899, %v960, %v961
      %v963 = vrot.slane %v593, 2
      %v964 = vsel %vm899, %v961, %v963
      %v965 = vrot.slane %v594, 2
      %v966 = vrot.slane %v595, 2
      %v967 = vsel %vm899, %v965, %v966
      %v968 = vrot.slane %v596, 2
      %v969 = vsel %vm899, %v966, %v968
      %v970 = vrot.slane %v597, 2
      %v971 = vrot.slane %v598, 2
      %v972 = vsel %vm899, %v970, %v971
      %v973 = vrot.slane %v599, 2
      %v974 = vsel %vm899, %v971, %v973
      %v975 = vrot.slane %v600, 2
      %v976 = vrot.slane %v601, 2
      %v977 = vsel %vm899, %v975, %v976
      %v978 = vrot.slane %v602, 2
      %v979 = vsel %vm899, %v976, %v978
      %980 = vrot.lane.b32.xlu0 %v902, 16
      %v981 = vpop.permute.xlu0 %980
      %982 = vrot.lane.b32.xlu0 %v904, 16
      %v983 = vpop.permute.xlu0 %982
      %984 = vrot.lane.b32.xlu0 %v907, 16
      %v985 = vpop.permute.xlu0 %984
      %986 = vrot.lane.b32.xlu0 %v909, 16
      %v987 = vpop.permute.xlu0 %986
      %988 = vrot.lane.b32.xlu0 %v912, 16
      %v989 = vpop.permute.xlu0 %988
      %990 = vrot.lane.b32.xlu0 %v914, 16
      %v991 = vpop.permute.xlu0 %990
      %992 = vrot.lane.b32.xlu0 %v917, 16
      %v993 = vpop.permute.xlu0 %992
      %994 = vrot.lane.b32.xlu0 %v919, 16
      %v995 = vpop.permute.xlu0 %994
      %996 = vrot.lane.b32.xlu0 %v922, 16
      %v997 = vpop.permute.xlu0 %996
      %998 = vrot.lane.b32.xlu0 %v924, 16
      %v999 = vpop.permute.xlu0 %998
      %1000 = vrot.lane.b32.xlu0 %v927, 16
      %v1001 = vpop.permute.xlu0 %1000
      %1002 = vrot.lane.b32.xlu0 %v929, 16
      %v1003 = vpop.permute.xlu0 %1002
      %1004 = vrot.lane.b32.xlu0 %v932, 16
      %v1005 = vpop.permute.xlu0 %1004
      %1006 = vrot.lane.b32.xlu0 %v934, 16
      %v1007 = vpop.permute.xlu0 %1006
      %1008 = vrot.lane.b32.xlu0 %v937, 16
      %v1009 = vpop.permute.xlu0 %1008
      %1010 = vrot.lane.b32.xlu0 %v939, 16
      %v1011 = vpop.permute.xlu0 %1010
      %1012 = vrot.lane.b32.xlu0 %v942, 16
      %v1013 = vpop.permute.xlu0 %1012
      %1014 = vrot.lane.b32.xlu0 %v944, 16
      %v1015 = vpop.permute.xlu0 %1014
      %1016 = vrot.lane.b32.xlu0 %v947, 16
      %v1017 = vpop.permute.xlu0 %1016
      %1018 = vrot.lane.b32.xlu0 %v949, 16
      %v1019 = vpop.permute.xlu0 %1018
      %1020 = vrot.lane.b32.xlu0 %v952, 16
      %v1021 = vpop.permute.xlu0 %1020
      %1022 = vrot.lane.b32.xlu0 %v954, 16
      %v1023 = vpop.permute.xlu0 %1022
      %1024 = vrot.lane.b32.xlu0 %v957, 16
      %v1025 = vpop.permute.xlu0 %1024
      %1026 = vrot.lane.b32.xlu0 %v959, 16
      %v1027 = vpop.permute.xlu0 %1026
      %1028 = vrot.lane.b32.xlu0 %v962, 16
      %v1029 = vpop.permute.xlu0 %1028
      %1030 = vrot.lane.b32.xlu0 %v964, 16
      %v1031 = vpop.permute.xlu0 %1030
      %1032 = vrot.lane.b32.xlu0 %v967, 16
      %v1033 = vpop.permute.xlu0 %1032
      %1034 = vrot.lane.b32.xlu0 %v969, 16
      %v1035 = vpop.permute.xlu0 %1034
      %1036 = vrot.lane.b32.xlu0 %v972, 16
      %v1037 = vpop.permute.xlu0 %1036
      %1038 = vrot.lane.b32.xlu0 %v974, 16
      %v1039 = vpop.permute.xlu0 %1038
      %1040 = vrot.lane.b32.xlu0 %v977, 16
      %v1041 = vpop.permute.xlu0 %1040
      %1042 = vrot.lane.b32.xlu0 %v979, 16
      %v1043 = vpop.permute.xlu0 %1042
      %vm1076 = vcmask 195712
      %1077 = vst.msk [vmem:[#allocation3] sm:$0xff] %vm1076, %v981
      %1078 = vst.msk [vmem:[#allocation3 + $0x8] sm:$0xff] %vm1076, %v983
      %1079 = vst.msk [vmem:[#allocation3 + $0x10] sm:$0xff] %vm1076, %v985
      %1080 = vst.msk [vmem:[#allocation3 + $0x18] sm:$0xff] %vm1076, %v987
      %1081 = vst.msk [vmem:[#allocation3 + $0x20] sm:$0xff] %vm1076, %v989
      %1082 = vst.msk [vmem:[#allocation3 + $0x28] sm:$0xff] %vm1076, %v991
      %1083 = vst.msk [vmem:[#allocation3 + $0x30] sm:$0xff] %vm1076, %v993
      %1084 = vst.msk [vmem:[#allocation3 + $0x38] sm:$0xff] %vm1076, %v995
      %1085 = vst.msk [vmem:[#allocation3 + $0x40] sm:$0xff] %vm1076, %v997
      %1086 = vst.msk [vmem:[#allocation3 + $0x48] sm:$0xff] %vm1076, %v999
      %1087 = vst.msk [vmem:[#allocation3 + $0x50] sm:$0xff] %vm1076, %v1001
      %1088 = vst.msk [vmem:[#allocation3 + $0x58] sm:$0xff] %vm1076, %v1003
      %1089 = vst.msk [vmem:[#allocation3 + $0x60] sm:$0xff] %vm1076, %v1005
      %1090 = vst.msk [vmem:[#allocation3 + $0x68] sm:$0xff] %vm1076, %v1007
      %1091 = vst.msk [vmem:[#allocation3 + $0x70] sm:$0xff] %vm1076, %v1009
      %1092 = vst.msk [vmem:[#allocation3 + $0x78] sm:$0xff] %vm1076, %v1011
      %1093 = vst.msk [vmem:[#allocation3 + $0x80] sm:$0xff] %vm1076, %v1013
      %1094 = vst.msk [vmem:[#allocation3 + $0x88] sm:$0xff] %vm1076, %v1015
      %1095 = vst.msk [vmem:[#allocation3 + $0x90] sm:$0xff] %vm1076, %v1017
      %1096 = vst.msk [vmem:[#allocation3 + $0x98] sm:$0xff] %vm1076, %v1019
      %1097 = vst.msk [vmem:[#allocation3 + $0xa0] sm:$0xff] %vm1076, %v1021
      %1098 = vst.msk [vmem:[#allocation3 + $0xa8] sm:$0xff] %vm1076, %v1023
      %1099 = vst.msk [vmem:[#allocation3 + $0xb0] sm:$0xff] %vm1076, %v1025
      %1100 = vst.msk [vmem:[#allocation3 + $0xb8] sm:$0xff] %vm1076, %v1027
      %1101 = vst.msk [vmem:[#allocation3 + $0xc0] sm:$0xff] %vm1076, %v1029
      %1102 = vst.msk [vmem:[#allocation3 + $0xc8] sm:$0xff] %vm1076, %v1031
      %1103 = vst.msk [vmem:[#allocation3 + $0xd0] sm:$0xff] %vm1076, %v1033
      %1104 = vst.msk [vmem:[#allocation3 + $0xd8] sm:$0xff] %vm1076, %v1035
      %1105 = vst.msk [vmem:[#allocation3 + $0xe0] sm:$0xff] %vm1076, %v1037
      %1106 = vst.msk [vmem:[#allocation3 + $0xe8] sm:$0xff] %vm1076, %v1039
      %1107 = vst.msk [vmem:[#allocation3 + $0xf0] sm:$0xff] %vm1076, %v1041
      %1108 = vst.msk [vmem:[#allocation3 + $0xf8] sm:$0xff] %vm1076, %v1043
      %1111 = vrot.lane.b32.xlu0 %v558, 24
      %v1112 = vpop.permute.xlu0 %1111
      %1113 = vrot.lane.b32.xlu0 %v559, 24
      %v1114 = vpop.permute.xlu0 %1113
      %1115 = vrot.lane.b32.xlu0 %v561, 24
      %v1116 = vpop.permute.xlu0 %1115
      %1117 = vrot.lane.b32.xlu0 %v562, 24
      %v1118 = vpop.permute.xlu0 %1117
      %1119 = vrot.lane.b32.xlu0 %v564, 24
      %v1120 = vpop.permute.xlu0 %1119
      %1121 = vrot.lane.b32.xlu0 %v565, 24
      %v1122 = vpop.permute.xlu0 %1121
      %1123 = vrot.lane.b32.xlu0 %v567, 24
      %v1124 = vpop.permute.xlu0 %1123
      %1125 = vrot.lane.b32.xlu0 %v568, 24
      %v1126 = vpop.permute.xlu0 %1125
      %1127 = vrot.lane.b32.xlu0 %v570, 24
      %v1128 = vpop.permute.xlu0 %1127
      %1129 = vrot.lane.b32.xlu0 %v571, 24
      %v1130 = vpop.permute.xlu0 %1129
      %1131 = vrot.lane.b32.xlu0 %v573, 24
      %v1132 = vpop.permute.xlu0 %1131
      %1133 = vrot.lane.b32.xlu0 %v574, 24
      %v1134 = vpop.permute.xlu0 %1133
      %1135 = vrot.lane.b32.xlu0 %v576, 24
      %v1136 = vpop.permute.xlu0 %1135
      %1137 = vrot.lane.b32.xlu0 %v577, 24
      %v1138 = vpop.permute.xlu0 %1137
      %1139 = vrot.lane.b32.xlu0 %v579, 24
      %v1140 = vpop.permute.xlu0 %1139
      %1141 = vrot.lane.b32.xlu0 %v580, 24
      %v1142 = vpop.permute.xlu0 %1141
      %1143 = vrot.lane.b32.xlu0 %v582, 24
      %v1144 = vpop.permute.xlu0 %1143
      %1145 = vrot.lane.b32.xlu0 %v583, 24
      %v1146 = vpop.permute.xlu0 %1145
      %1147 = vrot.lane.b32.xlu0 %v585, 24
      %v1148 = vpop.permute.xlu0 %1147
      %1149 = vrot.lane.b32.xlu0 %v586, 24
      %v1150 = vpop.permute.xlu0 %1149
      %1151 = vrot.lane.b32.xlu0 %v588, 24
      %v1152 = vpop.permute.xlu0 %1151
      %1153 = vrot.lane.b32.xlu0 %v589, 24
      %v1154 = vpop.permute.xlu0 %1153
      %1155 = vrot.lane.b32.xlu0 %v591, 24
      %v1156 = vpop.permute.xlu0 %1155
      %1157 = vrot.lane.b32.xlu0 %v592, 24
      %v1158 = vpop.permute.xlu0 %1157
      %1159 = vrot.lane.b32.xlu0 %v594, 24
      %v1160 = vpop.permute.xlu0 %1159
      %1161 = vrot.lane.b32.xlu0 %v595, 24
      %v1162 = vpop.permute.xlu0 %1161
      %1163 = vrot.lane.b32.xlu0 %v597, 24
      %v1164 = vpop.permute.xlu0 %1163
      %1165 = vrot.lane.b32.xlu0 %v598, 24
      %v1166 = vpop.permute.xlu0 %1165
      %1167 = vrot.lane.b32.xlu0 %v600, 24
      %v1168 = vpop.permute.xlu0 %1167
      %1169 = vrot.lane.b32.xlu0 %v601, 24
      %v1170 = vpop.permute.xlu0 %1169
      %1171 = vrot.lane.b32.xlu0 %v603, 24
      %v1172 = vpop.permute.xlu0 %1171
      %1173 = vrot.lane.b32.xlu0 %v604, 24
      %v1174 = vpop.permute.xlu0 %1173
      %vm1207 = vcmask 261312
      %1208 = vst.msk [vmem:[#allocation3] sm:$0xff] %vm1207, %v1112
      %1209 = vst.msk [vmem:[#allocation3 + $0x8] sm:$0xff] %vm1207, %v1114
      %1210 = vst.msk [vmem:[#allocation3 + $0x10] sm:$0xff] %vm1207, %v1116
      %1211 = vst.msk [vmem:[#allocation3 + $0x18] sm:$0xff] %vm1207, %v1118
      %1212 = vst.msk [vmem:[#allocation3 + $0x20] sm:$0xff] %vm1207, %v1120
      %1213 = vst.msk [vmem:[#allocation3 + $0x28] sm:$0xff] %vm1207, %v1122
      %1214 = vst.msk [vmem:[#allocation3 + $0x30] sm:$0xff] %vm1207, %v1124
      %1215 = vst.msk [vmem:[#allocation3 + $0x38] sm:$0xff] %vm1207, %v1126
      %1216 = vst.msk [vmem:[#allocation3 + $0x40] sm:$0xff] %vm1207, %v1128
      %1217 = vst.msk [vmem:[#allocation3 + $0x48] sm:$0xff] %vm1207, %v1130
      %1218 = vst.msk [vmem:[#allocation3 + $0x50] sm:$0xff] %vm1207, %v1132
      %1219 = vst.msk [vmem:[#allocation3 + $0x58] sm:$0xff] %vm1207, %v1134
      %1220 = vst.msk [vmem:[#allocation3 + $0x60] sm:$0xff] %vm1207, %v1136
      %1221 = vst.msk [vmem:[#allocation3 + $0x68] sm:$0xff] %vm1207, %v1138
      %1222 = vst.msk [vmem:[#allocation3 + $0x70] sm:$0xff] %vm1207, %v1140
      %1223 = vst.msk [vmem:[#allocation3 + $0x78] sm:$0xff] %vm1207, %v1142
      %1224 = vst.msk [vmem:[#allocation3 + $0x80] sm:$0xff] %vm1207, %v1144
      %1225 = vst.msk [vmem:[#allocation3 + $0x88] sm:$0xff] %vm1207, %v1146
      %1226 = vst.msk [vmem:[#allocation3 + $0x90] sm:$0xff] %vm1207, %v1148
      %1227 = vst.msk [vmem:[#allocation3 + $0x98] sm:$0xff] %vm1207, %v1150
      %1228 = vst.msk [vmem:[#allocation3 + $0xa0] sm:$0xff] %vm1207, %v1152
      %1229 = vst.msk [vmem:[#allocation3 + $0xa8] sm:$0xff] %vm1207, %v1154
      %1230 = vst.msk [vmem:[#allocation3 + $0xb0] sm:$0xff] %vm1207, %v1156
      %1231 = vst.msk [vmem:[#allocation3 + $0xb8] sm:$0xff] %vm1207, %v1158
      %1232 = vst.msk [vmem:[#allocation3 + $0xc0] sm:$0xff] %vm1207, %v1160
      %1233 = vst.msk [vmem:[#allocation3 + $0xc8] sm:$0xff] %vm1207, %v1162
      %1234 = vst.msk [vmem:[#allocation3 + $0xd0] sm:$0xff] %vm1207, %v1164
      %1235 = vst.msk [vmem:[#allocation3 + $0xd8] sm:$0xff] %vm1207, %v1166
      %1236 = vst.msk [vmem:[#allocation3 + $0xe0] sm:$0xff] %vm1207, %v1168
      %1237 = vst.msk [vmem:[#allocation3 + $0xe8] sm:$0xff] %vm1207, %v1170
      %1238 = vst.msk [vmem:[#allocation3 + $0xf0] sm:$0xff] %vm1207, %v1172
      %1239 = vst.msk [vmem:[#allocation3 + $0xf8] sm:$0xff] %vm1207, %v1174
      %v1241 = vrot.slane %v603, 1
      %v1242 = vrot.slane %v604, 1
      %v1243 = vsel %vm689, %v1241, %v1242
      %v1244 = vrot.slane %v605, 1
      %v1245 = vsel %vm689, %v1242, %v1244
      %1246 = vrot.lane.b32.xlu0 %v697, 32
      %v1247 = vpop.permute.xlu0 %1246
      %1248 = vrot.lane.b32.xlu0 %v699, 32
      %v1249 = vpop.permute.xlu0 %1248
      %1250 = vrot.lane.b32.xlu0 %v702, 32
      %v1251 = vpop.permute.xlu0 %1250
      %1252 = vrot.lane.b32.xlu0 %v704, 32
      %v1253 = vpop.permute.xlu0 %1252
      %1254 = vrot.lane.b32.xlu0 %v707, 32
      %v1255 = vpop.permute.xlu0 %1254
      %1256 = vrot.lane.b32.xlu0 %v709, 32
      %v1257 = vpop.permute.xlu0 %1256
      %1258 = vrot.lane.b32.xlu0 %v712, 32
      %v1259 = vpop.permute.xlu0 %1258
      %1260 = vrot.lane.b32.xlu0 %v714, 32
      %v1261 = vpop.permute.xlu0 %1260
      %1262 = vrot.lane.b32.xlu0 %v717, 32
      %v1263 = vpop.permute.xlu0 %1262
      %1264 = vrot.lane.b32.xlu0 %v719, 32
      %v1265 = vpop.permute.xlu0 %1264
      %1266 = vrot.lane.b32.xlu0 %v722, 32
      %v1267 = vpop.permute.xlu0 %1266
      %1268 = vrot.lane.b32.xlu0 %v724, 32
      %v1269 = vpop.permute.xlu0 %1268
      %1270 = vrot.lane.b32.xlu0 %v727, 32
      %v1271 = vpop.permute.xlu0 %1270
      %1272 = vrot.lane.b32.xlu0 %v729, 32
      %v1273 = vpop.permute.xlu0 %1272
      %1274 = vrot.lane.b32.xlu0 %v732, 32
      %v1275 = vpop.permute.xlu0 %1274
      %1276 = vrot.lane.b32.xlu0 %v734, 32
      %v1277 = vpop.permute.xlu0 %1276
      %1278 = vrot.lane.b32.xlu0 %v737, 32
      %v1279 = vpop.permute.xlu0 %1278
      %1280 = vrot.lane.b32.xlu0 %v739, 32
      %v1281 = vpop.permute.xlu0 %1280
      %1282 = vrot.lane.b32.xlu0 %v742, 32
      %v1283 = vpop.permute.xlu0 %1282
      %1284 = vrot.lane.b32.xlu0 %v744, 32
      %v1285 = vpop.permute.xlu0 %1284
      %1286 = vrot.lane.b32.xlu0 %v747, 32
      %v1287 = vpop.permute.xlu0 %1286
      %1288 = vrot.lane.b32.xlu0 %v749, 32
      %v1289 = vpop.permute.xlu0 %1288
      %1290 = vrot.lane.b32.xlu0 %v752, 32
      %v1291 = vpop.permute.xlu0 %1290
      %1292 = vrot.lane.b32.xlu0 %v754, 32
      %v1293 = vpop.permute.xlu0 %1292
      %1294 = vrot.lane.b32.xlu0 %v757, 32
      %v1295 = vpop.permute.xlu0 %1294
      %1296 = vrot.lane.b32.xlu0 %v759, 32
      %v1297 = vpop.permute.xlu0 %1296
      %1298 = vrot.lane.b32.xlu0 %v762, 32
      %v1299 = vpop.permute.xlu0 %1298
      %1300 = vrot.lane.b32.xlu0 %v764, 32
      %v1301 = vpop.permute.xlu0 %1300
      %1302 = vrot.lane.b32.xlu0 %v767, 32
      %v1303 = vpop.permute.xlu0 %1302
      %1304 = vrot.lane.b32.xlu0 %v769, 32
      %v1305 = vpop.permute.xlu0 %1304
      %1306 = vrot.lane.b32.xlu0 %v1243, 32
      %v1307 = vpop.permute.xlu0 %1306
      %1308 = vrot.lane.b32.xlu0 %v1245, 32
      %v1309 = vpop.permute.xlu0 %1308
      %vm1342 = vcmask 326912
      %1343 = vst.msk [vmem:[#allocation3] sm:$0xff] %vm1342, %v1247
      %1344 = vst.msk [vmem:[#allocation3 + $0x8] sm:$0xff] %vm1342, %v1249
      %1345 = vst.msk [vmem:[#allocation3 + $0x10] sm:$0xff] %vm1342, %v1251
      %1346 = vst.msk [vmem:[#allocation3 + $0x18] sm:$0xff] %vm1342, %v1253
      %1347 = vst.msk [vmem:[#allocation3 + $0x20] sm:$0xff] %vm1342, %v1255
      %1348 = vst.msk [vmem:[#allocation3 + $0x28] sm:$0xff] %vm1342, %v1257
      %1349 = vst.msk [vmem:[#allocation3 + $0x30] sm:$0xff] %vm1342, %v1259
      %1350 = vst.msk [vmem:[#allocation3 + $0x38] sm:$0xff] %vm1342, %v1261
      %1351 = vst.msk [vmem:[#allocation3 + $0x40] sm:$0xff] %vm1342, %v1263
      %1352 = vst.msk [vmem:[#allocation3 + $0x48] sm:$0xff] %vm1342, %v1265
      %1353 = vst.msk [vmem:[#allocation3 + $0x50] sm:$0xff] %vm1342, %v1267
      %1354 = vst.msk [vmem:[#allocation3 + $0x58] sm:$0xff] %vm1342, %v1269
      %1355 = vst.msk [vmem:[#allocation3 + $0x60] sm:$0xff] %vm1342, %v1271
      %1356 = vst.msk [vmem:[#allocation3 + $0x68] sm:$0xff] %vm1342, %v1273
      %1357 = vst.msk [vmem:[#allocation3 + $0x70] sm:$0xff] %vm1342, %v1275
      %1358 = vst.msk [vmem:[#allocation3 + $0x78] sm:$0xff] %vm1342, %v1277
      %1359 = vst.msk [vmem:[#allocation3 + $0x80] sm:$0xff] %vm1342, %v1279
      %1360 = vst.msk [vmem:[#allocation3 + $0x88] sm:$0xff] %vm1342, %v1281
      %1361 = vst.msk [vmem:[#allocation3 + $0x90] sm:$0xff] %vm1342, %v1283
      %1362 = vst.msk [vmem:[#allocation3 + $0x98] sm:$0xff] %vm1342, %v1285
      %1363 = vst.msk [vmem:[#allocation3 + $0xa0] sm:$0xff] %vm1342, %v1287
      %1364 = vst.msk [vmem:[#allocation3 + $0xa8] sm:$0xff] %vm1342, %v1289
      %1365 = vst.msk [vmem:[#allocation3 + $0xb0] sm:$0xff] %vm1342, %v1291
      %1366 = vst.msk [vmem:[#allocation3 + $0xb8] sm:$0xff] %vm1342, %v1293
      %1367 = vst.msk [vmem:[#allocation3 + $0xc0] sm:$0xff] %vm1342, %v1295
      %1368 = vst.msk [vmem:[#allocation3 + $0xc8] sm:$0xff] %vm1342, %v1297
      %1369 = vst.msk [vmem:[#allocation3 + $0xd0] sm:$0xff] %vm1342, %v1299
      %1370 = vst.msk [vmem:[#allocation3 + $0xd8] sm:$0xff] %vm1342, %v1301
      %1371 = vst.msk [vmem:[#allocation3 + $0xe0] sm:$0xff] %vm1342, %v1303
      %1372 = vst.msk [vmem:[#allocation3 + $0xe8] sm:$0xff] %vm1342, %v1305
      %1373 = vst.msk [vmem:[#allocation3 + $0xf0] sm:$0xff] %vm1342, %v1307
      %1374 = vst.msk [vmem:[#allocation3 + $0xf8] sm:$0xff] %vm1342, %v1309
      %v1375 = vrot.slane %v603, 2
      %v1376 = vrot.slane %v604, 2
      %v1377 = vsel %vm899, %v1375, %v1376
      %v1378 = vrot.slane %v605, 2
      %v1379 = vsel %vm899, %v1376, %v1378
      %1380 = vrot.lane.b32.xlu0 %v907, 40
      %v1381 = vpop.permute.xlu0 %1380
      %1382 = vrot.lane.b32.xlu0 %v909, 40
      %v1383 = vpop.permute.xlu0 %1382
      %1384 = vrot.lane.b32.xlu0 %v912, 40
      %v1385 = vpop.permute.xlu0 %1384
      %1386 = vrot.lane.b32.xlu0 %v914, 40
      %v1387 = vpop.permute.xlu0 %1386
      %1388 = vrot.lane.b32.xlu0 %v917, 40
      %v1389 = vpop.permute.xlu0 %1388
      %1390 = vrot.lane.b32.xlu0 %v919, 40
      %v1391 = vpop.permute.xlu0 %1390
      %1392 = vrot.lane.b32.xlu0 %v922, 40
      %v1393 = vpop.permute.xlu0 %1392
      %1394 = vrot.lane.b32.xlu0 %v924, 40
      %v1395 = vpop.permute.xlu0 %1394
      %1396 = vrot.lane.b32.xlu0 %v927, 40
      %v1397 = vpop.permute.xlu0 %1396
      %1398 = vrot.lane.b32.xlu0 %v929, 40
      %v1399 = vpop.permute.xlu0 %1398
      %1400 = vrot.lane.b32.xlu0 %v932, 40
      %v1401 = vpop.permute.xlu0 %1400
      %1402 = vrot.lane.b32.xlu0 %v934, 40
      %v1403 = vpop.permute.xlu0 %1402
      %1404 = vrot.lane.b32.xlu0 %v937, 40
      %v1405 = vpop.permute.xlu0 %1404
      %1406 = vrot.lane.b32.xlu0 %v939, 40
      %v1407 = vpop.permute.xlu0 %1406
      %1408 = vrot.lane.b32.xlu0 %v942, 40
      %v1409 = vpop.permute.xlu0 %1408
      %1410 = vrot.lane.b32.xlu0 %v944, 40
      %v1411 = vpop.permute.xlu0 %1410
      %1412 = vrot.lane.b32.xlu0 %v947, 40
      %v1413 = vpop.permute.xlu0 %1412
      %1414 = vrot.lane.b32.xlu0 %v949, 40
      %v1415 = vpop.permute.xlu0 %1414
      %1416 = vrot.lane.b32.xlu0 %v952, 40
      %v1417 = vpop.permute.xlu0 %1416
      %1418 = vrot.lane.b32.xlu0 %v954, 40
      %v1419 = vpop.permute.xlu0 %1418
      %1420 = vrot.lane.b32.xlu0 %v957, 40
      %v1421 = vpop.permute.xlu0 %1420
      %1422 = vrot.lane.b32.xlu0 %v959, 40
      %v1423 = vpop.permute.xlu0 %1422
      %1424 = vrot.lane.b32.xlu0 %v962, 40
      %v1425 = vpop.permute.xlu0 %1424
      %1426 = vrot.lane.b32.xlu0 %v964, 40
      %v1427 = vpop.permute.xlu0 %1426
      %1428 = vrot.lane.b32.xlu0 %v967, 40
      %v1429 = vpop.permute.xlu0 %1428
      %1430 = vrot.lane.b32.xlu0 %v969, 40
      %v1431 = vpop.permute.xlu0 %1430
      %1432 = vrot.lane.b32.xlu0 %v972, 40
      %v1433 = vpop.permute.xlu0 %1432
      %1434 = vrot.lane.b32.xlu0 %v974, 40
      %v1435 = vpop.permute.xlu0 %1434
      %1436 = vrot.lane.b32.xlu0 %v977, 40
      %v1437 = vpop.permute.xlu0 %1436
      %1438 = vrot.lane.b32.xlu0 %v979, 40
      %v1439 = vpop.permute.xlu0 %1438
      %1440 = vrot.lane.b32.xlu0 %v1377, 40
      %v1441 = vpop.permute.xlu0 %1440
      %1442 = vrot.lane.b32.xlu0 %v1379, 40
      %v1443 = vpop.permute.xlu0 %1442
      %vm1476 = vcmask 392512
      %1477 = vst.msk [vmem:[#allocation3] sm:$0xff] %vm1476, %v1381
      %1478 = vst.msk [vmem:[#allocation3 + $0x8] sm:$0xff] %vm1476, %v1383
      %1479 = vst.msk [vmem:[#allocation3 + $0x10] sm:$0xff] %vm1476, %v1385
      %1480 = vst.msk [vmem:[#allocation3 + $0x18] sm:$0xff] %vm1476, %v1387
      %1481 = vst.msk [vmem:[#allocation3 + $0x20] sm:$0xff] %vm1476, %v1389
      %1482 = vst.msk [vmem:[#allocation3 + $0x28] sm:$0xff] %vm1476, %v1391
      %1483 = vst.msk [vmem:[#allocation3 + $0x30] sm:$0xff] %vm1476, %v1393
      %1484 = vst.msk [vmem:[#allocation3 + $0x38] sm:$0xff] %vm1476, %v1395
      %1485 = vst.msk [vmem:[#allocation3 + $0x40] sm:$0xff] %vm1476, %v1397
      %1486 = vst.msk [vmem:[#allocation3 + $0x48] sm:$0xff] %vm1476, %v1399
      %1487 = vst.msk [vmem:[#allocation3 + $0x50] sm:$0xff] %vm1476, %v1401
      %1488 = vst.msk [vmem:[#allocation3 + $0x58] sm:$0xff] %vm1476, %v1403
      %1489 = vst.msk [vmem:[#allocation3 + $0x60] sm:$0xff] %vm1476, %v1405
      %1490 = vst.msk [vmem:[#allocation3 + $0x68] sm:$0xff] %vm1476, %v1407
      %1491 = vst.msk [vmem:[#allocation3 + $0x70] sm:$0xff] %vm1476, %v1409
      %1492 = vst.msk [vmem:[#allocation3 + $0x78] sm:$0xff] %vm1476, %v1411
      %1493 = vst.msk [vmem:[#allocation3 + $0x80] sm:$0xff] %vm1476, %v1413
      %1494 = vst.msk [vmem:[#allocation3 + $0x88] sm:$0xff] %vm1476, %v1415
      %1495 = vst.msk [vmem:[#allocation3 + $0x90] sm:$0xff] %vm1476, %v1417
      %1496 = vst.msk [vmem:[#allocation3 + $0x98] sm:$0xff] %vm1476, %v1419
      %1497 = vst.msk [vmem:[#allocation3 + $0xa0] sm:$0xff] %vm1476, %v1421
      %1498 = vst.msk [vmem:[#allocation3 + $0xa8] sm:$0xff] %vm1476, %v1423
      %1499 = vst.msk [vmem:[#allocation3 + $0xb0] sm:$0xff] %vm1476, %v1425
      %1500 = vst.msk [vmem:[#allocation3 + $0xb8] sm:$0xff] %vm1476, %v1427
      %1501 = vst.msk [vmem:[#allocation3 + $0xc0] sm:$0xff] %vm1476, %v1429
      %1502 = vst.msk [vmem:[#allocation3 + $0xc8] sm:$0xff] %vm1476, %v1431
      %1503 = vst.msk [vmem:[#allocation3 + $0xd0] sm:$0xff] %vm1476, %v1433
      %1504 = vst.msk [vmem:[#allocation3 + $0xd8] sm:$0xff] %vm1476, %v1435
      %1505 = vst.msk [vmem:[#allocation3 + $0xe0] sm:$0xff] %vm1476, %v1437
      %1506 = vst.msk [vmem:[#allocation3 + $0xe8] sm:$0xff] %vm1476, %v1439
      %1507 = vst.msk [vmem:[#allocation3 + $0xf0] sm:$0xff] %vm1476, %v1441
      %1508 = vst.msk [vmem:[#allocation3 + $0xf8] sm:$0xff] %vm1476, %v1443
      %1511 = vrot.lane.b32.xlu0 %v561, 48
      %v1512 = vpop.permute.xlu0 %1511
      %1513 = vrot.lane.b32.xlu0 %v562, 48
      %v1514 = vpop.permute.xlu0 %1513
      %1515 = vrot.lane.b32.xlu0 %v564, 48
      %v1516 = vpop.permute.xlu0 %1515
      %1517 = vrot.lane.b32.xlu0 %v565, 48
      %v1518 = vpop.permute.xlu0 %1517
      %1519 = vrot.lane.b32.xlu0 %v567, 48
      %v1520 = vpop.permute.xlu0 %1519
      %1521 = vrot.lane.b32.xlu0 %v568, 48
      %v1522 = vpop.permute.xlu0 %1521
      %1523 = vrot.lane.b32.xlu0 %v570, 48
      %v1524 = vpop.permute.xlu0 %1523
      %1525 = vrot.lane.b32.xlu0 %v571, 48
      %v1526 = vpop.permute.xlu0 %1525
      %1527 = vrot.lane.b32.xlu0 %v573, 48
      %v1528 = vpop.permute.xlu0 %1527
      %1529 = vrot.lane.b32.xlu0 %v574, 48
      %v1530 = vpop.permute.xlu0 %1529
      %1531 = vrot.lane.b32.xlu0 %v576, 48
      %v1532 = vpop.permute.xlu0 %1531
      %1533 = vrot.lane.b32.xlu0 %v577, 48
      %v1534 = vpop.permute.xlu0 %1533
      %1535 = vrot.lane.b32.xlu0 %v579, 48
      %v1536 = vpop.permute.xlu0 %1535
      %1537 = vrot.lane.b32.xlu0 %v580, 48
      %v1538 = vpop.permute.xlu0 %1537
      %1539 = vrot.lane.b32.xlu0 %v582, 48
      %v1540 = vpop.permute.xlu0 %1539
      %1541 = vrot.lane.b32.xlu0 %v583, 48
      %v1542 = vpop.permute.xlu0 %1541
      %1543 = vrot.lane.b32.xlu0 %v585, 48
      %v1544 = vpop.permute.xlu0 %1543
      %1545 = vrot.lane.b32.xlu0 %v586, 48
      %v1546 = vpop.permute.xlu0 %1545
      %1547 = vrot.lane.b32.xlu0 %v588, 48
      %v1548 = vpop.permute.xlu0 %1547
      %1549 = vrot.lane.b32.xlu0 %v589, 48
      %v1550 = vpop.permute.xlu0 %1549
      %1551 = vrot.lane.b32.xlu0 %v591, 48
      %v1552 = vpop.permute.xlu0 %1551
      %1553 = vrot.lane.b32.xlu0 %v592, 48
      %v1554 = vpop.permute.xlu0 %1553
      %1555 = vrot.lane.b32.xlu0 %v594, 48
      %v1556 = vpop.permute.xlu0 %1555
      %1557 = vrot.lane.b32.xlu0 %v595, 48
      %v1558 = vpop.permute.xlu0 %1557
      %1559 = vrot.lane.b32.xlu0 %v597, 48
      %v1560 = vpop.permute.xlu0 %1559
      %1561 = vrot.lane.b32.xlu0 %v598, 48
      %v1562 = vpop.permute.xlu0 %1561
      %1563 = vrot.lane.b32.xlu0 %v600, 48
      %v1564 = vpop.permute.xlu0 %1563
      %1565 = vrot.lane.b32.xlu0 %v601, 48
      %v1566 = vpop.permute.xlu0 %1565
      %1567 = vrot.lane.b32.xlu0 %v603, 48
      %v1568 = vpop.permute.xlu0 %1567
      %1569 = vrot.lane.b32.xlu0 %v604, 48
      %v1570 = vpop.permute.xlu0 %1569
      %1571 = vrot.lane.b32.xlu0 %v606, 48
      %v1572 = vpop.permute.xlu0 %1571
      %1573 = vrot.lane.b32.xlu0 %v607, 48
      %v1574 = vpop.permute.xlu0 %1573
      %vm1607 = vcmask 458112
      %1608 = vst.msk [vmem:[#allocation3] sm:$0xff] %vm1607, %v1512
      %1609 = vst.msk [vmem:[#allocation3 + $0x8] sm:$0xff] %vm1607, %v1514
      %1610 = vst.msk [vmem:[#allocation3 + $0x10] sm:$0xff] %vm1607, %v1516
      %1611 = vst.msk [vmem:[#allocation3 + $0x18] sm:$0xff] %vm1607, %v1518
      %1612 = vst.msk [vmem:[#allocation3 + $0x20] sm:$0xff] %vm1607, %v1520
      %1613 = vst.msk [vmem:[#allocation3 + $0x28] sm:$0xff] %vm1607, %v1522
      %1614 = vst.msk [vmem:[#allocation3 + $0x30] sm:$0xff] %vm1607, %v1524
      %1615 = vst.msk [vmem:[#allocation3 + $0x38] sm:$0xff] %vm1607, %v1526
      %1616 = vst.msk [vmem:[#allocation3 + $0x40] sm:$0xff] %vm1607, %v1528
      %1617 = vst.msk [vmem:[#allocation3 + $0x48] sm:$0xff] %vm1607, %v1530
      %1618 = vst.msk [vmem:[#allocation3 + $0x50] sm:$0xff] %vm1607, %v1532
      %1619 = vst.msk [vmem:[#allocation3 + $0x58] sm:$0xff] %vm1607, %v1534
      %1620 = vst.msk [vmem:[#allocation3 + $0x60] sm:$0xff] %vm1607, %v1536
      %1621 = vst.msk [vmem:[#allocation3 + $0x68] sm:$0xff] %vm1607, %v1538
      %1622 = vst.msk [vmem:[#allocation3 + $0x70] sm:$0xff] %vm1607, %v1540
      %1623 = vst.msk [vmem:[#allocation3 + $0x78] sm:$0xff] %vm1607, %v1542
      %1624 = vst.msk [vmem:[#allocation3 + $0x80] sm:$0xff] %vm1607, %v1544
      %1625 = vst.msk [vmem:[#allocation3 + $0x88] sm:$0xff] %vm1607, %v1546
      %1626 = vst.msk [vmem:[#allocation3 + $0x90] sm:$0xff] %vm1607, %v1548
      %1627 = vst.msk [vmem:[#allocation3 + $0x98] sm:$0xff] %vm1607, %v1550
      %1628 = vst.msk [vmem:[#allocation3 + $0xa0] sm:$0xff] %vm1607, %v1552
      %1629 = vst.msk [vmem:[#allocation3 + $0xa8] sm:$0xff] %vm1607, %v1554
      %1630 = vst.msk [vmem:[#allocation3 + $0xb0] sm:$0xff] %vm1607, %v1556
      %1631 = vst.msk [vmem:[#allocation3 + $0xb8] sm:$0xff] %vm1607, %v1558
      %1632 = vst.msk [vmem:[#allocation3 + $0xc0] sm:$0xff] %vm1607, %v1560
      %1633 = vst.msk [vmem:[#allocation3 + $0xc8] sm:$0xff] %vm1607, %v1562
      %1634 = vst.msk [vmem:[#allocation3 + $0xd0] sm:$0xff] %vm1607, %v1564
      %1635 = vst.msk [vmem:[#allocation3 + $0xd8] sm:$0xff] %vm1607, %v1566
      %1636 = vst.msk [vmem:[#allocation3 + $0xe0] sm:$0xff] %vm1607, %v1568
      %1637 = vst.msk [vmem:[#allocation3 + $0xe8] sm:$0xff] %vm1607, %v1570
      %1638 = vst.msk [vmem:[#allocation3 + $0xf0] sm:$0xff] %vm1607, %v1572
      %1639 = vst.msk [vmem:[#allocation3 + $0xf8] sm:$0xff] %vm1607, %v1574
      %v1641 = vrot.slane %v606, 1
      %v1642 = vrot.slane %v607, 1
      %v1643 = vsel %vm689, %v1641, %v1642
      %v1644 = vrot.slane %v608, 1
      %v1645 = vsel %vm689, %v1642, %v1644
      %1646 = vrot.lane.b32.xlu0 %v702, 56
      %v1647 = vpop.permute.xlu0 %1646
      %1648 = vrot.lane.b32.xlu0 %v704, 56
      %v1649 = vpop.permute.xlu0 %1648
      %1650 = vrot.lane.b32.xlu0 %v707, 56
      %v1651 = vpop.permute.xlu0 %1650
      %1652 = vrot.lane.b32.xlu0 %v709, 56
      %v1653 = vpop.permute.xlu0 %1652
      %1654 = vrot.lane.b32.xlu0 %v712, 56
      %v1655 = vpop.permute.xlu0 %1654
      %1656 = vrot.lane.b32.xlu0 %v714, 56
      %v1657 = vpop.permute.xlu0 %1656
      %1658 = vrot.lane.b32.xlu0 %v717, 56
      %v1659 = vpop.permute.xlu0 %1658
      %1660 = vrot.lane.b32.xlu0 %v719, 56
      %v1661 = vpop.permute.xlu0 %1660
      %1662 = vrot.lane.b32.xlu0 %v722, 56
      %v1663 = vpop.permute.xlu0 %1662
      %1664 = vrot.lane.b32.xlu0 %v724, 56
      %v1665 = vpop.permute.xlu0 %1664
      %1666 = vrot.lane.b32.xlu0 %v727, 56
      %v1667 = vpop.permute.xlu0 %1666
      %1668 = vrot.lane.b32.xlu0 %v729, 56
      %v1669 = vpop.permute.xlu0 %1668
      %1670 = vrot.lane.b32.xlu0 %v732, 56
      %v1671 = vpop.permute.xlu0 %1670
      %1672 = vrot.lane.b32.xlu0 %v734, 56
      %v1673 = vpop.permute.xlu0 %1672
      %1674 = vrot.lane.b32.xlu0 %v737, 56
      %v1675 = vpop.permute.xlu0 %1674
      %1676 = vrot.lane.b32.xlu0 %v739, 56
      %v1677 = vpop.permute.xlu0 %1676
      %1678 = vrot.lane.b32.xlu0 %v742, 56
      %v1679 = vpop.permute.xlu0 %1678
      %1680 = vrot.lane.b32.xlu0 %v744, 56
      %v1681 = vpop.permute.xlu0 %1680
      %1682 = vrot.lane.b32.xlu0 %v747, 56
      %v1683 = vpop.permute.xlu0 %1682
      %1684 = vrot.lane.b32.xlu0 %v749, 56
      %v1685 = vpop.permute.xlu0 %1684
      %1686 = vrot.lane.b32.xlu0 %v752, 56
      %v1687 = vpop.permute.xlu0 %1686
      %1688 = vrot.lane.b32.xlu0 %v754, 56
      %v1689 = vpop.permute.xlu0 %1688
      %1690 = vrot.lane.b32.xlu0 %v757, 56
      %v1691 = vpop.permute.xlu0 %1690
      %1692 = vrot.lane.b32.xlu0 %v759, 56
      %v1693 = vpop.permute.xlu0 %1692
      %1694 = vrot.lane.b32.xlu0 %v762, 56
      %v1695 = vpop.permute.xlu0 %1694
      %1696 = vrot.lane.b32.xlu0 %v764, 56
      %v1697 = vpop.permute.xlu0 %1696
      %1698 = vrot.lane.b32.xlu0 %v767, 56
      %v1699 = vpop.permute.xlu0 %1698
      %1700 = vrot.lane.b32.xlu0 %v769, 56
      %v1701 = vpop.permute.xlu0 %1700
      %1702 = vrot.lane.b32.xlu0 %v1243, 56
      %v1703 = vpop.permute.xlu0 %1702
      %1704 = vrot.lane.b32.xlu0 %v1245, 56
      %v1705 = vpop.permute.xlu0 %1704
      %1706 = vrot.lane.b32.xlu0 %v1643, 56
      %v1707 = vpop.permute.xlu0 %1706
      %1708 = vrot.lane.b32.xlu0 %v1645, 56
      %v1709 = vpop.permute.xlu0 %1708
      %vm1742 = vcmask 523712
      %1743 = vst.msk [vmem:[#allocation3] sm:$0xff] %vm1742, %v1647
      %1744 = vst.msk [vmem:[#allocation3 + $0x8] sm:$0xff] %vm1742, %v1649
      %1745 = vst.msk [vmem:[#allocation3 + $0x10] sm:$0xff] %vm1742, %v1651
      %1746 = vst.msk [vmem:[#allocation3 + $0x18] sm:$0xff] %vm1742, %v1653
      %1747 = vst.msk [vmem:[#allocation3 + $0x20] sm:$0xff] %vm1742, %v1655
      %1748 = vst.msk [vmem:[#allocation3 + $0x28] sm:$0xff] %vm1742, %v1657
      %1749 = vst.msk [vmem:[#allocation3 + $0x30] sm:$0xff] %vm1742, %v1659
      %1750 = vst.msk [vmem:[#allocation3 + $0x38] sm:$0xff] %vm1742, %v1661
      %1751 = vst.msk [vmem:[#allocation3 + $0x40] sm:$0xff] %vm1742, %v1663
      %1752 = vst.msk [vmem:[#allocation3 + $0x48] sm:$0xff] %vm1742, %v1665
      %1753 = vst.msk [vmem:[#allocation3 + $0x50] sm:$0xff] %vm1742, %v1667
      %1754 = vst.msk [vmem:[#allocation3 + $0x58] sm:$0xff] %vm1742, %v1669
      %1755 = vst.msk [vmem:[#allocation3 + $0x60] sm:$0xff] %vm1742, %v1671
      %1756 = vst.msk [vmem:[#allocation3 + $0x68] sm:$0xff] %vm1742, %v1673
      %1757 = vst.msk [vmem:[#allocation3 + $0x70] sm:$0xff] %vm1742, %v1675
      %1758 = vst.msk [vmem:[#allocation3 + $0x78] sm:$0xff] %vm1742, %v1677
      %1759 = vst.msk [vmem:[#allocation3 + $0x80] sm:$0xff] %vm1742, %v1679
      %1760 = vst.msk [vmem:[#allocation3 + $0x88] sm:$0xff] %vm1742, %v1681
      %1761 = vst.msk [vmem:[#allocation3 + $0x90] sm:$0xff] %vm1742, %v1683
      %1762 = vst.msk [vmem:[#allocation3 + $0x98] sm:$0xff] %vm1742, %v1685
      %1763 = vst.msk [vmem:[#allocation3 + $0xa0] sm:$0xff] %vm1742, %v1687
      %1764 = vst.msk [vmem:[#allocation3 + $0xa8] sm:$0xff] %vm1742, %v1689
      %1765 = vst.msk [vmem:[#allocation3 + $0xb0] sm:$0xff] %vm1742, %v1691
      %1766 = vst.msk [vmem:[#allocation3 + $0xb8] sm:$0xff] %vm1742, %v1693
      %1767 = vst.msk [vmem:[#allocation3 + $0xc0] sm:$0xff] %vm1742, %v1695
      %1768 = vst.msk [vmem:[#allocation3 + $0xc8] sm:$0xff] %vm1742, %v1697
      %1769 = vst.msk [vmem:[#allocation3 + $0xd0] sm:$0xff] %vm1742, %v1699
      %1770 = vst.msk [vmem:[#allocation3 + $0xd8] sm:$0xff] %vm1742, %v1701
      %1771 = vst.msk [vmem:[#allocation3 + $0xe0] sm:$0xff] %vm1742, %v1703
      %1772 = vst.msk [vmem:[#allocation3 + $0xe8] sm:$0xff] %vm1742, %v1705
      %1773 = vst.msk [vmem:[#allocation3 + $0xf0] sm:$0xff] %vm1742, %v1707
      %1774 = vst.msk [vmem:[#allocation3 + $0xf8] sm:$0xff] %vm1742, %v1709
      %v1775 = vrot.slane %v606, 2
      %v1776 = vrot.slane %v607, 2
      %v1777 = vsel %vm899, %v1775, %v1776
      %v1778 = vrot.slane %v608, 2
      %v1779 = vsel %vm899, %v1776, %v1778
      %1780 = vrot.lane.b32.xlu0 %v912, 64
      %v1781 = vpop.permute.xlu0 %1780
      %1782 = vrot.lane.b32.xlu0 %v914, 64
      %v1783 = vpop.permute.xlu0 %1782
      %1784 = vrot.lane.b32.xlu0 %v917, 64
      %v1785 = vpop.permute.xlu0 %1784
      %1786 = vrot.lane.b32.xlu0 %v919, 64
      %v1787 = vpop.permute.xlu0 %1786
      %1788 = vrot.lane.b32.xlu0 %v922, 64
      %v1789 = vpop.permute.xlu0 %1788
      %1790 = vrot.lane.b32.xlu0 %v924, 64
      %v1791 = vpop.permute.xlu0 %1790
      %1792 = vrot.lane.b32.xlu0 %v927, 64
      %v1793 = vpop.permute.xlu0 %1792
      %1794 = vrot.lane.b32.xlu0 %v929, 64
      %v1795 = vpop.permute.xlu0 %1794
      %1796 = vrot.lane.b32.xlu0 %v932, 64
      %v1797 = vpop.permute.xlu0 %1796
      %1798 = vrot.lane.b32.xlu0 %v934, 64
      %v1799 = vpop.permute.xlu0 %1798
      %1800 = vrot.lane.b32.xlu0 %v937, 64
      %v1801 = vpop.permute.xlu0 %1800
      %1802 = vrot.lane.b32.xlu0 %v939, 64
      %v1803 = vpop.permute.xlu0 %1802
      %1804 = vrot.lane.b32.xlu0 %v942, 64
      %v1805 = vpop.permute.xlu0 %1804
      %1806 = vrot.lane.b32.xlu0 %v944, 64
      %v1807 = vpop.permute.xlu0 %1806
      %1808 = vrot.lane.b32.xlu0 %v947, 64
      %v1809 = vpop.permute.xlu0 %1808
      %1810 = vrot.lane.b32.xlu0 %v949, 64
      %v1811 = vpop.permute.xlu0 %1810
      %1812 = vrot.lane.b32.xlu0 %v952, 64
      %v1813 = vpop.permute.xlu0 %1812
      %1814 = vrot.lane.b32.xlu0 %v954, 64
      %v1815 = vpop.permute.xlu0 %1814
      %1816 = vrot.lane.b32.xlu0 %v957, 64
      %v1817 = vpop.permute.xlu0 %1816
      %1818 = vrot.lane.b32.xlu0 %v959, 64
      %v1819 = vpop.permute.xlu0 %1818
      %1820 = vrot.lane.b32.xlu0 %v962, 64
      %v1821 = vpop.permute.xlu0 %1820
      %1822 = vrot.lane.b32.xlu0 %v964, 64
      %v1823 = vpop.permute.xlu0 %1822
      %1824 = vrot.lane.b32.xlu0 %v967, 64
      %v1825 = vpop.permute.xlu0 %1824
      %1826 = vrot.lane.b32.xlu0 %v969, 64
      %v1827 = vpop.permute.xlu0 %1826
      %1828 = vrot.lane.b32.xlu0 %v972, 64
      %v1829 = vpop.permute.xlu0 %1828
      %1830 = vrot.lane.b32.xlu0 %v974, 64
      %v1831 = vpop.permute.xlu0 %1830
      %1832 = vrot.lane.b32.xlu0 %v977, 64
      %v1833 = vpop.permute.xlu0 %1832
      %1834 = vrot.lane.b32.xlu0 %v979, 64
      %v1835 = vpop.permute.xlu0 %1834
      %1836 = vrot.lane.b32.xlu0 %v1377, 64
      %v1837 = vpop.permute.xlu0 %1836
      %1838 = vrot.lane.b32.xlu0 %v1379, 64
      %v1839 = vpop.permute.xlu0 %1838
      %1840 = vrot.lane.b32.xlu0 %v1777, 64
      %v1841 = vpop.permute.xlu0 %1840
      %1842 = vrot.lane.b32.xlu0 %v1779, 64
      %v1843 = vpop.permute.xlu0 %1842
      %vm1876 = vcmask 589312
      %1877 = vst.msk [vmem:[#allocation3] sm:$0xff] %vm1876, %v1781
      %1878 = vst.msk [vmem:[#allocation3 + $0x8] sm:$0xff] %vm1876, %v1783
      %1879 = vst.msk [vmem:[#allocation3 + $0x10] sm:$0xff] %vm1876, %v1785
      %1880 = vst.msk [vmem:[#allocation3 + $0x18] sm:$0xff] %vm1876, %v1787
      %1881 = vst.msk [vmem:[#allocation3 + $0x20] sm:$0xff] %vm1876, %v1789
      %1882 = vst.msk [vmem:[#allocation3 + $0x28] sm:$0xff] %vm1876, %v1791
      %1883 = vst.msk [vmem:[#allocation3 + $0x30] sm:$0xff] %vm1876, %v1793
      %1884 = vst.msk [vmem:[#allocation3 + $0x38] sm:$0xff] %vm1876, %v1795
      %1885 = vst.msk [vmem:[#allocation3 + $0x40] sm:$0xff] %vm1876, %v1797
      %1886 = vst.msk [vmem:[#allocation3 + $0x48] sm:$0xff] %vm1876, %v1799
      %1887 = vst.msk [vmem:[#allocation3 + $0x50] sm:$0xff] %vm1876, %v1801
      %1888 = vst.msk [vmem:[#allocation3 + $0x58] sm:$0xff] %vm1876, %v1803
      %1889 = vst.msk [vmem:[#allocation3 + $0x60] sm:$0xff] %vm1876, %v1805
      %1890 = vst.msk [vmem:[#allocation3 + $0x68] sm:$0xff] %vm1876, %v1807
      %1891 = vst.msk [vmem:[#allocation3 + $0x70] sm:$0xff] %vm1876, %v1809
      %1892 = vst.msk [vmem:[#allocation3 + $0x78] sm:$0xff] %vm1876, %v1811
      %1893 = vst.msk [vmem:[#allocation3 + $0x80] sm:$0xff] %vm1876, %v1813
      %1894 = vst.msk [vmem:[#allocation3 + $0x88] sm:$0xff] %vm1876, %v1815
      %1895 = vst.msk [vmem:[#allocation3 + $0x90] sm:$0xff] %vm1876, %v1817
      %1896 = vst.msk [vmem:[#allocation3 + $0x98] sm:$0xff] %vm1876, %v1819
      %1897 = vst.msk [vmem:[#allocation3 + $0xa0] sm:$0xff] %vm1876, %v1821
      %1898 = vst.msk [vmem:[#allocation3 + $0xa8] sm:$0xff] %vm1876, %v1823
      %1899 = vst.msk [vmem:[#allocation3 + $0xb0] sm:$0xff] %vm1876, %v1825
      %1900 = vst.msk [vmem:[#allocation3 + $0xb8] sm:$0xff] %vm1876, %v1827
      %1901 = vst.msk [vmem:[#allocation3 + $0xc0] sm:$0xff] %vm1876, %v1829
      %1902 = vst.msk [vmem:[#allocation3 + $0xc8] sm:$0xff] %vm1876, %v1831
      %1903 = vst.msk [vmem:[#allocation3 + $0xd0] sm:$0xff] %vm1876, %v1833
      %1904 = vst.msk [vmem:[#allocation3 + $0xd8] sm:$0xff] %vm1876, %v1835
      %1905 = vst.msk [vmem:[#allocation3 + $0xe0] sm:$0xff] %vm1876, %v1837
      %1906 = vst.msk [vmem:[#allocation3 + $0xe8] sm:$0xff] %vm1876, %v1839
      %1907 = vst.msk [vmem:[#allocation3 + $0xf0] sm:$0xff] %vm1876, %v1841
      %1908 = vst.msk [vmem:[#allocation3 + $0xf8] sm:$0xff] %vm1876, %v1843
      %v1909 = vld [vmem:[#allocation3] sm:$0xff]
      %v1910 = vld [vmem:[#allocation3 + $0x8] sm:$0xff]
      %v1911 = vld [vmem:[#allocation3 + $0x10] sm:$0xff]
      %v1912 = vld [vmem:[#allocation3 + $0x18] sm:$0xff]
      %v1913 = vld [vmem:[#allocation3 + $0x20] sm:$0xff]
      %v1914 = vld [vmem:[#allocation3 + $0x28] sm:$0xff]
      %v1915 = vld [vmem:[#allocation3 + $0x30] sm:$0xff]
      %v1916 = vld [vmem:[#allocation3 + $0x38] sm:$0xff]
      %v1917 = vld [vmem:[#allocation3 + $0x40] sm:$0xff]
      %v1918 = vld [vmem:[#allocation3 + $0x48] sm:$0xff]
      %v1919 = vld [vmem:[#allocation3 + $0x50] sm:$0xff]
      %v1920 = vld [vmem:[#allocation3 + $0x58] sm:$0xff]
      %v1921 = vld [vmem:[#allocation3 + $0x60] sm:$0xff]
      %v1922 = vld [vmem:[#allocation3 + $0x68] sm:$0xff]
      %v1923 = vld [vmem:[#allocation3 + $0x70] sm:$0xff]
      %v1924 = vld [vmem:[#allocation3 + $0x78] sm:$0xff]
      %v1925 = vld [vmem:[#allocation3 + $0x80] sm:$0xff]
      %v1926 = vld [vmem:[#allocation3 + $0x88] sm:$0xff]
      %v1927 = vld [vmem:[#allocation3 + $0x90] sm:$0xff]
      %v1928 = vld [vmem:[#allocation3 + $0x98] sm:$0xff]
      %v1929 = vld [vmem:[#allocation3 + $0xa0] sm:$0xff]
      %v1930 = vld [vmem:[#allocation3 + $0xa8] sm:$0xff]
      %v1931 = vld [vmem:[#allocation3 + $0xb0] sm:$0xff]
      %v1932 = vld [vmem:[#allocation3 + $0xb8] sm:$0xff]
      %v1933 = vld [vmem:[#allocation3 + $0xc0] sm:$0xff]
      %v1934 = vld [vmem:[#allocation3 + $0xc8] sm:$0xff]
      %v1935 = vld [vmem:[#allocation3 + $0xd0] sm:$0xff]
      %v1936 = vld [vmem:[#allocation3 + $0xd8] sm:$0xff]
      %v1937 = vld [vmem:[#allocation3 + $0xe0] sm:$0xff]
      %v1938 = vld [vmem:[#allocation3 + $0xe8] sm:$0xff]
      %v1939 = vld [vmem:[#allocation3 + $0xf0] sm:$0xff]
      %v1940 = vld [vmem:[#allocation3 + $0xf8] sm:$0xff]
      %v1941 = vld [vmem:[%s3] sm:$0xff]
      %v1942 = vld [vmem:[%s3 + $0x8] sm:$0xff]
      %v1943 = vld [vmem:[%s3 + $0x10] sm:$0xff]
      %v1944 = vld [vmem:[%s3 + $0x18] sm:$0xff]
      %v1945 = vld [vmem:[%s3 + $0x20] sm:$0xff]
      %v1946 = vld [vmem:[%s3 + $0x28] sm:$0xff]
      %v1947 = vld [vmem:[%s3 + $0x30] sm:$0xff]
      %v1948 = vld [vmem:[%s3 + $0x38] sm:$0xff]
      %v1949 = vld [vmem:[%s3 + $0x40] sm:$0xff]
      %vm1950 = vcmask 588800
      %v1952 = vsel %vm1950, %v1909, 0
      %v1955 = vsel %vm1950, %v1910, 0
      %v1958 = vsel %vm1950, %v1911, 0
      %v1961 = vsel %vm1950, %v1912, 0
      %v1964 = vsel %vm1950, %v1913, 0
      %v1967 = vsel %vm1950, %v1914, 0
      %v1970 = vsel %vm1950, %v1915, 0
      %v1973 = vsel %vm1950, %v1916, 0
      %v1976 = vsel %vm1950, %v1917, 0
      %v1979 = vsel %vm1950, %v1918, 0
      %v1982 = vsel %vm1950, %v1919, 0
      %v1985 = vsel %vm1950, %v1920, 0
      %v1988 = vsel %vm1950, %v1921, 0
      %v1991 = vsel %vm1950, %v1922, 0
      %v1994 = vsel %vm1950, %v1923, 0
      %v1997 = vsel %vm1950, %v1924, 0
      %v2000 = vsel %vm1950, %v1925, 0
      %v2003 = vsel %vm1950, %v1926, 0
      %v2006 = vsel %vm1950, %v1927, 0
      %v2009 = vsel %vm1950, %v1928, 0
      %v2012 = vsel %vm1950, %v1929, 0
      %v2015 = vsel %vm1950, %v1930, 0
      %v2018 = vsel %vm1950, %v1931, 0
      %v2021 = vsel %vm1950, %v1932, 0
      %v2024 = vsel %vm1950, %v1933, 0
      %v2027 = vsel %vm1950, %v1934, 0
      %v2030 = vsel %vm1950, %v1935, 0
      %v2033 = vsel %vm1950, %v1936, 0
      %v2036 = vsel %vm1950, %v1937, 0
      %v2039 = vsel %vm1950, %v1938, 0
      %v2042 = vsel %vm1950, %v1939, 0
      %v2045 = vsel %vm1950, %v1940, 0
      %2047 = vmatpush.msra.mxu0 0.0
      %2048 = vmatpush.msra.mxu0 0.0
      %2049 = vmatpush.msra.mxu0 0.0
      %2050 = vmatpush.msra.mxu0 0.0
      %2051 = vmatpush.msra.mxu0 0.0
      %2052 = vmatpush.msra.mxu0 0.0
      %2053 = vmatpush.msra.mxu0 0.0
      %2054 = vmatpush.msra.mxu0 %v1949
      %2055 = vmatpush.msra.mxu0 %v1948
      %2056 = vmatpush.msra.mxu0 %v1947
      %2057 = vmatpush.msra.mxu0 %v1946
      %2058 = vmatpush.msra.mxu0 %v1945
      %2059 = vmatpush.msra.mxu0 %v1944
      %2060 = vmatpush.msra.mxu0 %v1943
      %2061 = vmatpush.msra.mxu0 %v1942
      %2062 = vmatpush.msra.mxu0 %v1941
      %2063 = vmatmul.f32.gmra.mxu0 %v1952
      %v2064 = vpop.f32.mrf.mxu0
      %v2065 = vadd.f32 0.0, %v2064
      %2066 = vmatmul.f32.gmra.mxu0 %v1955
      %v2067 = vpop.f32.mrf.mxu0
      %v2068 = vadd.f32 0.0, %v2067
      %2069 = vmatmul.f32.gmra.mxu0 %v1958
      %v2070 = vpop.f32.mrf.mxu0
      %v2071 = vadd.f32 0.0, %v2070
      %2072 = vmatmul.f32.gmra.mxu0 %v1961
      %v2073 = vpop.f32.mrf.mxu0
      %v2074 = vadd.f32 0.0, %v2073
      %2075 = vmatmul.f32.gmra.mxu0 %v1964
      %v2076 = vpop.f32.mrf.mxu0
      %v2077 = vadd.f32 0.0, %v2076
      %2078 = vmatmul.f32.gmra.mxu0 %v1967
      %v2079 = vpop.f32.mrf.mxu0
      %v2080 = vadd.f32 0.0, %v2079
      %2081 = vmatmul.f32.gmra.mxu0 %v1970
      %v2082 = vpop.f32.mrf.mxu0
      %v2083 = vadd.f32 0.0, %v2082
      %2084 = vmatmul.f32.gmra.mxu0 %v1973
      %v2085 = vpop.f32.mrf.mxu0
      %v2086 = vadd.f32 0.0, %v2085
      %2087 = vmatmul.f32.gmra.mxu0 %v1976
      %v2088 = vpop.f32.mrf.mxu0
      %v2089 = vadd.f32 0.0, %v2088
      %2090 = vmatmul.f32.gmra.mxu0 %v1979
      %v2091 = vpop.f32.mrf.mxu0
      %v2092 = vadd.f32 0.0, %v2091
      %2093 = vmatmul.f32.gmra.mxu0 %v1982
      %v2094 = vpop.f32.mrf.mxu0
      %v2095 = vadd.f32 0.0, %v2094
      %2096 = vmatmul.f32.gmra.mxu0 %v1985
      %v2097 = vpop.f32.mrf.mxu0
      %v2098 = vadd.f32 0.0, %v2097
      %2099 = vmatmul.f32.gmra.mxu0 %v1988
      %v2100 = vpop.f32.mrf.mxu0
      %v2101 = vadd.f32 0.0, %v2100
      %2102 = vmatmul.f32.gmra.mxu0 %v1991
      %v2103 = vpop.f32.mrf.mxu0
      %v2104 = vadd.f32 0.0, %v2103
      %2105 = vmatmul.f32.gmra.mxu0 %v1994
      %v2106 = vpop.f32.mrf.mxu0
      %v2107 = vadd.f32 0.0, %v2106
      %2108 = vmatmul.f32.gmra.mxu0 %v1997
      %v2109 = vpop.f32.mrf.mxu0
      %v2110 = vadd.f32 0.0, %v2109
      %2111 = vmatmul.f32.gmra.mxu0 %v2000
      %v2112 = vpop.f32.mrf.mxu0
      %v2113 = vadd.f32 0.0, %v2112
      %2114 = vmatmul.f32.gmra.mxu0 %v2003
      %v2115 = vpop.f32.mrf.mxu0
      %v2116 = vadd.f32 0.0, %v2115
      %2117 = vmatmul.f32.gmra.mxu0 %v2006
      %v2118 = vpop.f32.mrf.mxu0
      %v2119 = vadd.f32 0.0, %v2118
      %2120 = vmatmul.f32.gmra.mxu0 %v2009
      %v2121 = vpop.f32.mrf.mxu0
      %v2122 = vadd.f32 0.0, %v2121
      %2123 = vmatmul.f32.gmra.mxu0 %v2012
      %v2124 = vpop.f32.mrf.mxu0
      %v2125 = vadd.f32 0.0, %v2124
      %2126 = vmatmul.f32.gmra.mxu0 %v2015
      %v2127 = vpop.f32.mrf.mxu0
      %v2128 = vadd.f32 0.0, %v2127
      %2129 = vmatmul.f32.gmra.mxu0 %v2018
      %v2130 = vpop.f32.mrf.mxu0
      %v2131 = vadd.f32 0.0, %v2130
      %2132 = vmatmul.f32.gmra.mxu0 %v2021
      %v2133 = vpop.f32.mrf.mxu0
      %v2134 = vadd.f32 0.0, %v2133
      %2135 = vmatmul.f32.gmra.mxu0 %v2024
      %v2136 = vpop.f32.mrf.mxu0
      %v2137 = vadd.f32 0.0, %v2136
      %2138 = vmatmul.f32.gmra.mxu0 %v2027
      %v2139 = vpop.f32.mrf.mxu0
      %v2140 = vadd.f32 0.0, %v2139
      %2141 = vmatmul.f32.gmra.mxu0 %v2030
      %v2142 = vpop.f32.mrf.mxu0
      %v2143 = vadd.f32 0.0, %v2142
      %2144 = vmatmul.f32.gmra.mxu0 %v2033
      %v2145 = vpop.f32.mrf.mxu0
      %v2146 = vadd.f32 0.0, %v2145
      %2147 = vmatmul.f32.gmra.mxu0 %v2036
      %v2148 = vpop.f32.mrf.mxu0
      %v2149 = vadd.f32 0.0, %v2148
      %2150 = vmatmul.f32.gmra.mxu0 %v2039
      %v2151 = vpop.f32.mrf.mxu0
      %v2152 = vadd.f32 0.0, %v2151
      %2153 = vmatmul.f32.gmra.mxu0 %v2042
      %v2154 = vpop.f32.mrf.mxu0
      %v2155 = vadd.f32 0.0, %v2154
      %2156 = vmatmul.f32.gmra.mxu0 %v2045
      %v2157 = vpop.f32.mrf.mxu0
      %v2158 = vadd.f32 0.0, %v2157
      %2159 = vdwg.mxu0
      %2160 = vst.msk [vmem:[%s301] sm:$0xff] %vm444, %v2065
      %2161 = vst.msk [vmem:[%s301 + $0x8] sm:$0xff] %vm444, %v2068
      %2162 = vst.msk [vmem:[%s301 + $0x10] sm:$0xff] %vm444, %v2071
      %2163 = vst.msk [vmem:[%s301 + $0x18] sm:$0xff] %vm444, %v2074
      %2164 = vst.msk [vmem:[%s301 + $0x20] sm:$0xff] %vm444, %v2077
      %2165 = vst.msk [vmem:[%s301 + $0x28] sm:$0xff] %vm444, %v2080
      %2166 = vst.msk [vmem:[%s301 + $0x30] sm:$0xff] %vm444, %v2083
      %2167 = vst.msk [vmem:[%s301 + $0x38] sm:$0xff] %vm444, %v2086
      %2168 = vst.msk [vmem:[%s301 + $0x40] sm:$0xff] %vm444, %v2089
      %2169 = vst.msk [vmem:[%s301 + $0x48] sm:$0xff] %vm444, %v2092
      %2170 = vst.msk [vmem:[%s301 + $0x50] sm:$0xff] %vm444, %v2095
      %2171 = vst.msk [vmem:[%s301 + $0x58] sm:$0xff] %vm444, %v2098
      %2172 = vst.msk [vmem:[%s301 + $0x60] sm:$0xff] %vm444, %v2101
      %2173 = vst.msk [vmem:[%s301 + $0x68] sm:$0xff] %vm444, %v2104
      %2174 = vst.msk [vmem:[%s301 + $0x70] sm:$0xff] %vm444, %v2107
      %2175 = vst.msk [vmem:[%s301 + $0x78] sm:$0xff] %vm444, %v2110
      %2176 = vst.msk [vmem:[%s301 + $0x80] sm:$0xff] %vm444, %v2113
      %2177 = vst.msk [vmem:[%s301 + $0x88] sm:$0xff] %vm444, %v2116
      %2178 = vst.msk [vmem:[%s301 + $0x90] sm:$0xff] %vm444, %v2119
      %2179 = vst.msk [vmem:[%s301 + $0x98] sm:$0xff] %vm444, %v2122
      %2180 = vst.msk [vmem:[%s301 + $0xa0] sm:$0xff] %vm444, %v2125
      %2181 = vst.msk [vmem:[%s301 + $0xa8] sm:$0xff] %vm444, %v2128
      %2182 = vst.msk [vmem:[%s301 + $0xb0] sm:$0xff] %vm444, %v2131
      %2183 = vst.msk [vmem:[%s301 + $0xb8] sm:$0xff] %vm444, %v2134
      %2184 = vst.msk [vmem:[%s301 + $0xc0] sm:$0xff] %vm444, %v2137
      %2185 = vst.msk [vmem:[%s301 + $0xc8] sm:$0xff] %vm444, %v2140
      %2186 = vst.msk [vmem:[%s301 + $0xd0] sm:$0xff] %vm444, %v2143
      %2187 = vst.msk [vmem:[%s301 + $0xd8] sm:$0xff] %vm444, %v2146
      %2188 = vst.msk [vmem:[%s301 + $0xe0] sm:$0xff] %vm444, %v2149
      %2189 = vst.msk [vmem:[%s301 + $0xe8] sm:$0xff] %vm444, %v2152
      %2190 = vst.msk [vmem:[%s301 + $0xf0] sm:$0xff] %vm444, %v2155
      %2191 = vst.msk [vmem:[%s301 + $0xf8] sm:$0xff] %vm444, %v2158
      %v2192 = vsel %vm444, %v2065, 0.0
      %v2193 = vsel %vm444, %v2068, 0.0
      %v2194 = vadd.f32 %v2192, %v2193
      %v2195 = vsel %vm444, %v2071, 0.0
      %v2196 = vadd.f32 %v2194, %v2195
      %v2197 = vsel %vm444, %v2074, 0.0
      %v2198 = vadd.f32 %v2196, %v2197
      %v2199 = vsel %vm444, %v2077, 0.0
      %v2200 = vadd.f32 %v2198, %v2199
      %v2201 = vsel %vm444, %v2080, 0.0
      %v2202 = vadd.f32 %v2200, %v2201
      %v2203 = vsel %vm444, %v2083, 0.0
      %v2204 = vadd.f32 %v2202, %v2203
      %v2205 = vsel %vm444, %v2086, 0.0
      %v2206 = vadd.f32 %v2204, %v2205
      %v2207 = vsel %vm444, %v2089, 0.0
      %v2208 = vadd.f32 %v2206, %v2207
      %v2209 = vsel %vm444, %v2092, 0.0
      %v2210 = vadd.f32 %v2208, %v2209
      %v2211 = vsel %vm444, %v2095, 0.0
      %v2212 = vadd.f32 %v2210, %v2211
      %v2213 = vsel %vm444, %v2098, 0.0
      %v2214 = vadd.f32 %v2212, %v2213
      %v2215 = vsel %vm444, %v2101, 0.0
      %v2216 = vadd.f32 %v2214, %v2215
      %v2217 = vsel %vm444, %v2104, 0.0
      %v2218 = vadd.f32 %v2216, %v2217
      %v2219 = vsel %vm444, %v2107, 0.0
      %v2220 = vadd.f32 %v2218, %v2219
      %v2221 = vsel %vm444, %v2110, 0.0
      %v2222 = vadd.f32 %v2220, %v2221
      %v2223 = vsel %vm444, %v2113, 0.0
      %v2224 = vadd.f32 %v2222, %v2223
      %v2225 = vsel %vm444, %v2116, 0.0
      %v2226 = vadd.f32 %v2224, %v2225
      %v2227 = vsel %vm444, %v2119, 0.0
      %v2228 = vadd.f32 %v2226, %v2227
      %v2229 = vsel %vm444, %v2122, 0.0
      %v2230 = vadd.f32 %v2228, %v2229
      %v2231 = vsel %vm444, %v2125, 0.0
      %v2232 = vadd.f32 %v2230, %v2231
      %v2233 = vsel %vm444, %v2128, 0.0
      %v2234 = vadd.f32 %v2232, %v2233
      %v2235 = vsel %vm444, %v2131, 0.0
      %v2236 = vadd.f32 %v2234, %v2235
      %v2237 = vsel %vm444, %v2134, 0.0
      %v2238 = vadd.f32 %v2236, %v2237
      %v2239 = vsel %vm444, %v2137, 0.0
      %v2240 = vadd.f32 %v2238, %v2239
      %v2241 = vsel %vm444, %v2140, 0.0
      %v2242 = vadd.f32 %v2240, %v2241
      %v2243 = vsel %vm444, %v2143, 0.0
      %v2244 = vadd.f32 %v2242, %v2243
      %v2245 = vsel %vm444, %v2146, 0.0
      %v2246 = vadd.f32 %v2244, %v2245
      %v2247 = vsel %vm444, %v2149, 0.0
      %v2248 = vadd.f32 %v2246, %v2247
      %v2249 = vsel %vm444, %v2152, 0.0
      %v2250 = vadd.f32 %v2248, %v2249
      %v2251 = vsel %vm444, %v2155, 0.0
      %v2252 = vadd.f32 %v2250, %v2251
      %v2253 = vsel %vm444, %v2158, 0.0
      %v2254 = vadd.f32 %v2252, %v2253
      %v2255 = vrot.slane %v2254, 4
      %v2256 = vadd.f32 %v2254, %v2255
      %v2257 = vrot.slane %v2256, 2
      %v2258 = vadd.f32 %v2256, %v2257
      %v2259 = vrot.slane %v2258, 1
      %v2260 = vadd.f32 %v2258, %v2259
      %2261 = vst.msk [vmem:[%s304] sm:$0x1] %vm485, %v2260
      %v2262 = vmul.f32 %v2065, %v2065
      %v2263 = vmul.f32 %v2068, %v2068
      %v2264 = vmul.f32 %v2071, %v2071
      %v2265 = vmul.f32 %v2074, %v2074
      %v2266 = vmul.f32 %v2077, %v2077
      %v2267 = vmul.f32 %v2080, %v2080
      %v2268 = vmul.f32 %v2083, %v2083
      %v2269 = vmul.f32 %v2086, %v2086
      %v2270 = vmul.f32 %v2089, %v2089
      %v2271 = vmul.f32 %v2092, %v2092
      %v2272 = vmul.f32 %v2095, %v2095
      %v2273 = vmul.f32 %v2098, %v2098
      %v2274 = vmul.f32 %v2101, %v2101
      %v2275 = vmul.f32 %v2104, %v2104
      %v2276 = vmul.f32 %v2107, %v2107
      %v2277 = vmul.f32 %v2110, %v2110
      %v2278 = vmul.f32 %v2113, %v2113
      %v2279 = vmul.f32 %v2116, %v2116
      %v2280 = vmul.f32 %v2119, %v2119
      %v2281 = vmul.f32 %v2122, %v2122
      %v2282 = vmul.f32 %v2125, %v2125
      %v2283 = vmul.f32 %v2128, %v2128
      %v2284 = vmul.f32 %v2131, %v2131
      %v2285 = vmul.f32 %v2134, %v2134
      %v2286 = vmul.f32 %v2137, %v2137
      %v2287 = vmul.f32 %v2140, %v2140
      %v2288 = vmul.f32 %v2143, %v2143
      %v2289 = vmul.f32 %v2146, %v2146
      %v2290 = vmul.f32 %v2149, %v2149
      %v2291 = vmul.f32 %v2152, %v2152
      %v2292 = vmul.f32 %v2155, %v2155
      %v2293 = vmul.f32 %v2158, %v2158
      %v2294 = vsel %vm444, %v2262, 0.0
      %v2295 = vsel %vm444, %v2263, 0.0
      %v2296 = vadd.f32 %v2294, %v2295
      %v2297 = vsel %vm444, %v2264, 0.0
      %v2298 = vadd.f32 %v2296, %v2297
      %v2299 = vsel %vm444, %v2265, 0.0
      %v2300 = vadd.f32 %v2298, %v2299
      %v2301 = vsel %vm444, %v2266, 0.0
      %v2302 = vadd.f32 %v2300, %v2301
      %v2303 = vsel %vm444, %v2267, 0.0
      %v2304 = vadd.f32 %v2302, %v2303
      %v2305 = vsel %vm444, %v2268, 0.0
      %v2306 = vadd.f32 %v2304, %v2305
      %v2307 = vsel %vm444, %v2269, 0.0
      %v2308 = vadd.f32 %v2306, %v2307
      %v2309 = vsel %vm444, %v2270, 0.0
      %v2310 = vadd.f32 %v2308, %v2309
      %v2311 = vsel %vm444, %v2271, 0.0
      %v2312 = vadd.f32 %v2310, %v2311
      %v2313 = vsel %vm444, %v2272, 0.0
      %v2314 = vadd.f32 %v2312, %v2313
      %v2315 = vsel %vm444, %v2273, 0.0
      %v2316 = vadd.f32 %v2314, %v2315
      %v2317 = vsel %vm444, %v2274, 0.0
      %v2318 = vadd.f32 %v2316, %v2317
      %v2319 = vsel %vm444, %v2275, 0.0
      %v2320 = vadd.f32 %v2318, %v2319
      %v2321 = vsel %vm444, %v2276, 0.0
      %v2322 = vadd.f32 %v2320, %v2321
      %v2323 = vsel %vm444, %v2277, 0.0
      %v2324 = vadd.f32 %v2322, %v2323
      %v2325 = vsel %vm444, %v2278, 0.0
      %v2326 = vadd.f32 %v2324, %v2325
      %v2327 = vsel %vm444, %v2279, 0.0
      %v2328 = vadd.f32 %v2326, %v2327
      %v2329 = vsel %vm444, %v2280, 0.0
      %v2330 = vadd.f32 %v2328, %v2329
      %v2331 = vsel %vm444, %v2281, 0.0
      %v2332 = vadd.f32 %v2330, %v2331
      %v2333 = vsel %vm444, %v2282, 0.0
      %v2334 = vadd.f32 %v2332, %v2333
      %v2335 = vsel %vm444, %v2283, 0.0
      %v2336 = vadd.f32 %v2334, %v2335
      %v2337 = vsel %vm444, %v2284, 0.0
      %v2338 = vadd.f32 %v2336, %v2337
      %v2339 = vsel %vm444, %v2285, 0.0
      %v2340 = vadd.f32 %v2338, %v2339
      %v2341 = vsel %vm444, %v2286, 0.0
      %v2342 = vadd.f32 %v2340, %v2341
      %v2343 = vsel %vm444, %v2287, 0.0
      %v2344 = vadd.f32 %v2342, %v2343
      %v2345 = vsel %vm444, %v2288, 0.0
      %v2346 = vadd.f32 %v2344, %v2345
      %v2347 = vsel %vm444, %v2289, 0.0
      %v2348 = vadd.f32 %v2346, %v2347
      %v2349 = vsel %vm444, %v2290, 0.0
      %v2350 = vadd.f32 %v2348, %v2349
      %v2351 = vsel %vm444, %v2291, 0.0
      %v2352 = vadd.f32 %v2350, %v2351
      %v2353 = vsel %vm444, %v2292, 0.0
      %v2354 = vadd.f32 %v2352, %v2353
      %v2355 = vsel %vm444, %v2293, 0.0
      %v2356 = vadd.f32 %v2354, %v2355
      %v2357 = vrot.slane %v2356, 4
      %v2358 = vadd.f32 %v2356, %v2357
      %v2359 = vrot.slane %v2358, 2
      %v2360 = vadd.f32 %v2358, %v2359
      %v2361 = vrot.slane %v2360, 1
      %v2362 = vadd.f32 %v2360, %v2361
      %2363 = vst.msk [vmem:[%s307] sm:$0x1] %vm485, %v2362
      %p2364 = scmp.lt.s32.totalorder %s19, 1
      %s2365 = scalar_select %p2364, %s19, 1
      %s2366 = smul.addr %s2365, 32
      %s2367 = smul.addr %s2366, 8
      %s2368 = scalar_lea.vmem %s4, %s2367
      %p2369 = scmp.lt.s32.totalorder %s19, 1
      %s2370 = scalar_select %p2369, %s19, 1
      %s2371 = smul.addr %s2370, 32
      %s2372 = smul.addr %s2371, 8
      %s2373 = scalar_lea.vmem %s5, %s2372
      %p2374 = scmp.lt.s32.totalorder %s19, 1
      %s2375 = scalar_select %p2374, %s19, 1
      %s2376 = scalar_lea.vmem %s6, %s2375
      %p2377 = scmp.lt.s32.totalorder %s19, 1
      %s2378 = scalar_select %p2377, %s19, 1
      %s2379 = scalar_lea.vmem %s7, %s2378
      // Predicated region
      $region37: #{basic_block_forward.4} parent=35 // pred_check
        %p2380 = pneg %p126
      $region38: #{basic_block_forward.4} parent=35 // pred_check_branch
        %2382 = sbr.rel (%p2380) target = $region40
      $region39: #{basic_block_forward.4} parent=35 // pred_region
        _
      $region40: #{basic_block_forward.4} parent=35 // pred_fallthru
        _
      // Predicated region
      $region41: #{basic_block_forward.4} parent=35 // pred_check
        %p2383 = pneg %p152
      $region42: #{basic_block_forward.4} parent=35 // pred_check_branch
        %2385 = sbr.rel (%p2383) target = $region44
      $region43: #{basic_block_forward.4} parent=35 // pred_region
        _
      $region44: #{basic_block_forward.4} parent=35 // pred_fallthru
        _
      // Predicated region
      $region45: #{basic_block_forward.4} parent=35 // pred_check
        %p2386 = pneg %p178
      $region46: #{basic_block_forward.4} parent=35 // pred_check_branch
        %2388 = sbr.rel (%p2386) target = $region48
      $region47: #{basic_block_forward.4} parent=35 // pred_region
        _
      $region48: #{basic_block_forward.4} parent=35 // pred_fallthru
        _
      // Predicated region
      $region49: #{basic_block_forward.4} parent=35 // pred_check
        %p2389 = pneg %p204
      $region50: #{basic_block_forward.4} parent=35 // pred_check_branch
        %2391 = sbr.rel (%p2389) target = $region52
      $region51: #{basic_block_forward.4} parent=35 // pred_region
        _
      $region52: #{basic_block_forward.4} parent=35 // pred_fallthru
        _
    $region36: #{basic_block_forward.4} parent=5 // pred_fallthru
      _
    %p2392 = scmp.le.s32.totalorder 2, %s14
    // Predicated region
    $region53: #{basic_block_forward.4} parent=5 // pred_check
      %p2393 = pneg %p2392
    $region54: #{basic_block_forward.4} parent=5 // pred_check_branch
      %2395 = sbr.rel (%p2393) target = $region56
    $region55: #{basic_block_forward.4} parent=5 // pred_region
      %s2396 = ssub.s32 %s14, 2
      // Predicated region
      $region57: #{basic_block_forward.4} parent=55 // pred_check
        %p2397 = pneg %p132
      $region58: #{basic_block_forward.4} parent=55 // pred_check_branch
        %2399 = sbr.rel (%p2397) target = $region60
      $region59: #{basic_block_forward.4} parent=55 // pred_region
        %p2400 = scmp.lt.s32.totalorder %s20, 1
        %s2401 = scalar_select %p2400, %s20, 1
        %s2402 = smul.addr %s2401, 32
        %s2403 = smul.addr %s2402, 8
        %s2404 = scalar_lea.vmem %s4, %s2403
      $region60: #{basic_block_forward.4} parent=55 // pred_fallthru
        _
      // Predicated region
      $region61: #{basic_block_forward.4} parent=55 // pred_check
        %p2405 = pneg %p158
      $region62: #{basic_block_forward.4} parent=55 // pred_check_branch
        %2407 = sbr.rel (%p2405) target = $region64
      $region63: #{basic_block_forward.4} parent=55 // pred_region
        %p2408 = scmp.lt.s32.totalorder %s20, 1
        %s2409 = scalar_select %p2408, %s20, 1
        %s2410 = smul.addr %s2409, 32
        %s2411 = smul.addr %s2410, 8
        %s2412 = scalar_lea.vmem %s5, %s2411
      $region64: #{basic_block_forward.4} parent=55 // pred_fallthru
        _
      // Predicated region
      $region65: #{basic_block_forward.4} parent=55 // pred_check
        %p2413 = pneg %p184
      $region66: #{basic_block_forward.4} parent=55 // pred_check_branch
        %2415 = sbr.rel (%p2413) target = $region68
      $region67: #{basic_block_forward.4} parent=55 // pred_region
        %p2416 = scmp.lt.s32.totalorder %s20, 1
        %s2417 = scalar_select %p2416, %s20, 1
        %s2418 = scalar_lea.vmem %s6, %s2417
      $region68: #{basic_block_forward.4} parent=55 // pred_fallthru
        _
      // Predicated region
      $region69: #{basic_block_forward.4} parent=55 // pred_check
        %p2419 = pneg %p210
      $region70: #{basic_block_forward.4} parent=55 // pred_check_branch
        %2421 = sbr.rel (%p2419) target = $region72
      $region71: #{basic_block_forward.4} parent=55 // pred_region
        %p2422 = scmp.lt.s32.totalorder %s20, 1
        %s2423 = scalar_select %p2422, %s20, 1
        %s2424 = scalar_lea.vmem %s7, %s2423
      $region72: #{basic_block_forward.4} parent=55 // pred_fallthru
        _
    $region56: #{basic_block_forward.4} parent=5 // pred_fallthru
      _
  $region6: #{basic_block_forward.4} parent=0 // loop_footer
    %s18 = sadd.s32 1, %s14
  $region7: #{basic_block_forward.4} parent=0 // loop_footer_branch
    %13 = sbr.rel target = $region3
  $region8: #{basic_block_forward.4} parent=0 // loop_exit
    _

// kernel: basic_block_forward.3
$region0: #{basic_block_forward.3}
  #allocation0 [shape = 'u32[]', space=smem, size = 0x4, offset = 0x4, fixed_abs, tag = 'smem constant byte address 0x4 - core index']
  #allocation1 [shape = 'u32[72,128]{1,0:T(1,128)}', space=vmem, size = 0x9000, scoped, tag = 'internal scratch']
  #allocation2 [shape = 'f32[18,18,4]{2,1,0:T(8,128)}', space=vmem, size = 0x36000, scoped, tag = 'scratch operand']
  #allocation3 [shape = 'f32[256,36]{1,0:T(8,128)}', space=vmem, size = 0x20000, scoped, tag = 'scratch operand']
  %s0 = inlined_call_operand.vmem [shape: f32[2,16,16,4], index: 0, kind: input, shape index: {}]
  %s1 = inlined_call_operand.vmem [shape: f32[36,8], index: 1, kind: input, shape index: {}]
  %s2 = inlined_call_operand.vmem [shape: f32[4,8], index: 2, kind: input, shape index: {}]
  %s3 = inlined_call_operand.vmem [shape: f32[2,256,8], index: 3, kind: output, shape index: {0}]
  %s4 = inlined_call_operand.vmem [shape: f32[2,1,8], index: 4, kind: output, shape index: {1}]
  %s5 = inlined_call_operand.vmem [shape: f32[2,1,8], index: 5, kind: output, shape index: {2}]
  %s6 = inlined_call_operand.vmem [shape: f32[2,256,8], index: 6, kind: output, shape index: {3}]
  %s7 = inlined_call_operand.vmem [shape: f32[2,1,8], index: 7, kind: output, shape index: {4}]
  %s8 = inlined_call_operand.vmem [shape: f32[2,1,8], index: 8, kind: output, shape index: {5}]
  %9 = xla_tuple %s3, %s4, %s5, %s6, %s7, %s8
  %s10 = sld [smem:[#allocation0]]
  $region85: #{basic_block_forward.3} parent=0
    _
  %s12 = ssub.s32 1, %s10
  %s13 = scalar_select 0, %s12, %s10
  loop: start=0, step=1, limit=4
  $region2: #{basic_block_forward.3} parent=0 // loop_pre_header
    _
  $region3: #{basic_block_forward.3} parent=0 // loop_header
    %s15 = sphi 0, %s19
    %p16 = scmp.ge.s32.totalorder %s15, 4
    %s25 = sphi 0, %s27
    %s28 = sphi 0, %s25
    %s29 = sphi 0, %s28
    %s45 = sphi 0, %s29
    %s49 = sphi 0, %s49
    %s51 = sphi 0, %s49
    %s52 = sphi 0, %s51
    %s66 = sphi 0, %s52
    %s70 = sphi 0, %s70
    %s72 = sphi 0, %s70
    %s73 = sphi 0, %s72
    %s87 = sphi 0, %s73
    %s93 = sphi 0, %s95
    %s96 = sphi 0, %s93
    %s97 = sphi 0, %s96
    %s113 = sphi 0, %s97
    %s119 = sphi 0, %s121
    %s122 = sphi 0, %s119
    %s123 = sphi 0, %s122
    %s139 = sphi 0, %s123
    %s145 = sphi 0, %s147
    %s148 = sphi 0, %s145
    %s149 = sphi 0, %s148
    %s165 = sphi 0, %s149
    %s171 = sphi 0, %s173
    %s174 = sphi 0, %s171
    %s175 = sphi 0, %s174
    %s191 = sphi 0, %s175
    %s197 = sphi 0, %s199
    %s200 = sphi 0, %s197
    %s201 = sphi 0, %s200
    %s217 = sphi 0, %s201
    %s223 = sphi 0, %s225
    %s226 = sphi 0, %s223
    %s227 = sphi 0, %s226
    %s243 = sphi 0, %s227
  $region4: #{basic_block_forward.3} parent=0 // loop_header_branch
    %18 = sbr.rel (%p16) target = $region8
  $region5: #{basic_block_forward.3} parent=0 // loop_body
    %s20 = ssub.s32 %s15, 1
    %s21 = ssub.s32 %s15, 2
    %s22 = sadd.s32 %s15, 1
    %s23 = ssub.s32 %s15, %s22
    %p24 = scmp.eq.s32.totalorder %s23, 0
    %s26 = sadd.s32 %s25, 1
    %s27 = scalar_select %p24, %s25, %s26
    %p30 = pneg %p24
    %p31 = scmp.eq.s32.totalorder %s15, 1
    %p32 = por %p30, %p31
    %p33 = scmp.ne.s32.totalorder %s25, %s28
    %p34 = scmp.eq.s32.totalorder %s15, 0
    %p35 = por %p33, %p34
    %p36 = scmp.ne.s32.totalorder %s25, %s28
    %p37 = scmp.eq.s32.totalorder %s20, 1
    %p38 = por %p36, %p37
    %p39 = scmp.ne.s32.totalorder %s28, %s29
    %p40 = scmp.eq.s32.totalorder %s20, 0
    %p41 = por %p39, %p40
    %p42 = scmp.ne.s32.totalorder %s28, %s29
    %p43 = scmp.eq.s32.totalorder %s21, 1
    %p44 = por %p42, %p43
    %p46 = scmp.ne.s32.totalorder %s29, %s45
    %p47 = scmp.eq.s32.totalorder %s21, 0
    %p48 = por %p46, %p47
    %s50 = sadd.s32 %s49, 1
    %p53 = scmp.eq.s32.totalorder %s15, 1
    %p54 = scmp.ne.s32.totalorder %s49, %s51
    %p55 = scmp.eq.s32.totalorder %s15, 0
    %p56 = por %p54, %p55
    %p57 = scmp.ne.s32.totalorder %s49, %s51
    %p58 = scmp.eq.s32.totalorder %s20, 1
    %p59 = por %p57, %p58
    %p60 = scmp.ne.s32.totalorder %s51, %s52
    %p61 = scmp.eq.s32.totalorder %s20, 0
    %p62 = por %p60, %p61
    %p63 = scmp.ne.s32.totalorder %s51, %s52
    %p64 = scmp.eq.s32.totalorder %s21, 1
    %p65 = por %p63, %p64
    %p67 = scmp.ne.s32.totalorder %s52, %s66
    %p68 = scmp.eq.s32.totalorder %s21, 0
    %p69 = por %p67, %p68
    %s71 = sadd.s32 %s70, 1
    %p74 = scmp.eq.s32.totalorder %s15, 1
    %p75 = scmp.ne.s32.totalorder %s70, %s72
    %p76 = scmp.eq.s32.totalorder %s15, 0
    %p77 = por %p75, %p76
    %p78 = scmp.ne.s32.totalorder %s70, %s72
    %p79 = scmp.eq.s32.totalorder %s20, 1
    %p80 = por %p78, %p79
    %p81 = scmp.ne.s32.totalorder %s72, %s73
    %p82 = scmp.eq.s32.totalorder %s20, 0
    %p83 = por %p81, %p82
    %p84 = scmp.ne.s32.totalorder %s72, %s73
    %p85 = scmp.eq.s32.totalorder %s21, 1
    %p86 = por %p84, %p85
    %p88 = scmp.ne.s32.totalorder %s73, %s87
    %p89 = scmp.eq.s32.totalorder %s21, 0
    %p90 = por %p88, %p89
    %s91 = ssub.s32 %s15, %s22
    %p92 = scmp.eq.s32.totalorder %s91, 0
    %s94 = sadd.s32 %s93, 1
    %s95 = scalar_select %p92, %s93, %s94
    %p98 = pneg %p92
    %p99 = scmp.eq.s32.totalorder %s15, 1
    %p100 = por %p98, %p99
    %p101 = scmp.ne.s32.totalorder %s93, %s96
    %p102 = scmp.eq.s32.totalorder %s15, 0
    %p103 = por %p101, %p102
    %p104 = scmp.ne.s32.totalorder %s93, %s96
    %p105 = scmp.eq.s32.totalorder %s20, 1
    %p106 = por %p104, %p105
    %p107 = scmp.ne.s32.totalorder %s96, %s97
    %p108 = scmp.eq.s32.totalorder %s20, 0
    %p109 = por %p107, %p108
    %p110 = scmp.ne.s32.totalorder %s96, %s97
    %p111 = scmp.eq.s32.totalorder %s21, 1
    %p112 = por %p110, %p111
    %p114 = scmp.ne.s32.totalorder %s97, %s113
    %p115 = scmp.eq.s32.totalorder %s21, 0
    %p116 = por %p114, %p115
    %s117 = ssub.s32 %s15, %s22
    %p118 = scmp.eq.s32.totalorder %s117, 0
    %s120 = sadd.s32 %s119, 1
    %s121 = scalar_select %p118, %s119, %s120
    %p124 = pneg %p118
    %p125 = scmp.eq.s32.totalorder %s15, 1
    %p126 = por %p124, %p125
    %p127 = scmp.ne.s32.totalorder %s119, %s122
    %p128 = scmp.eq.s32.totalorder %s15, 0
    %p129 = por %p127, %p128
    %p130 = scmp.ne.s32.totalorder %s119, %s122
    %p131 = scmp.eq.s32.totalorder %s20, 1
    %p132 = por %p130, %p131
    %p133 = scmp.ne.s32.totalorder %s122, %s123
    %p134 = scmp.eq.s32.totalorder %s20, 0
    %p135 = por %p133, %p134
    %p136 = scmp.ne.s32.totalorder %s122, %s123
    %p137 = scmp.eq.s32.totalorder %s21, 1
    %p138 = por %p136, %p137
    %p140 = scmp.ne.s32.totalorder %s123, %s139
    %p141 = scmp.eq.s32.totalorder %s21, 0
    %p142 = por %p140, %p141
    %s143 = ssub.s32 %s15, %s22
    %p144 = scmp.eq.s32.totalorder %s143, 0
    %s146 = sadd.s32 %s145, 1
    %s147 = scalar_select %p144, %s145, %s146
    %p150 = pneg %p144
    %p151 = scmp.eq.s32.totalorder %s15, 1
    %p152 = por %p150, %p151
    %p153 = scmp.ne.s32.totalorder %s145, %s148
    %p154 = scmp.eq.s32.totalorder %s15, 0
    %p155 = por %p153, %p154
    %p156 = scmp.ne.s32.totalorder %s145, %s148
    %p157 = scmp.eq.s32.totalorder %s20, 1
    %p158 = por %p156, %p157
    %p159 = scmp.ne.s32.totalorder %s148, %s149
    %p160 = scmp.eq.s32.totalorder %s20, 0
    %p161 = por %p159, %p160
    %p162 = scmp.ne.s32.totalorder %s148, %s149
    %p163 = scmp.eq.s32.totalorder %s21, 1
    %p164 = por %p162, %p163
    %p166 = scmp.ne.s32.totalorder %s149, %s165
    %p167 = scmp.eq.s32.totalorder %s21, 0
    %p168 = por %p166, %p167
    %s169 = ssub.s32 %s15, %s22
    %p170 = scmp.eq.s32.totalorder %s169, 0
    %s172 = sadd.s32 %s171, 1
    %s173 = scalar_select %p170, %s171, %s172
    %p176 = pneg %p170
    %p177 = scmp.eq.s32.totalorder %s15, 1
    %p178 = por %p176, %p177
    %p179 = scmp.ne.s32.totalorder %s171, %s174
    %p180 = scmp.eq.s32.totalorder %s15, 0
    %p181 = por %p179, %p180
    %p182 = scmp.ne.s32.totalorder %s171, %s174
    %p183 = scmp.eq.s32.totalorder %s20, 1
    %p184 = por %p182, %p183
    %p185 = scmp.ne.s32.totalorder %s174, %s175
    %p186 = scmp.eq.s32.totalorder %s20, 0
    %p187 = por %p185, %p186
    %p188 = scmp.ne.s32.totalorder %s174, %s175
    %p189 = scmp.eq.s32.totalorder %s21, 1
    %p190 = por %p188, %p189
    %p192 = scmp.ne.s32.totalorder %s175, %s191
    %p193 = scmp.eq.s32.totalorder %s21, 0
    %p194 = por %p192, %p193
    %s195 = ssub.s32 %s15, %s22
    %p196 = scmp.eq.s32.totalorder %s195, 0
    %s198 = sadd.s32 %s197, 1
    %s199 = scalar_select %p196, %s197, %s198
    %p202 = pneg %p196
    %p203 = scmp.eq.s32.totalorder %s15, 1
    %p204 = por %p202, %p203
    %p205 = scmp.ne.s32.totalorder %s197, %s200
    %p206 = scmp.eq.s32.totalorder %s15, 0
    %p207 = por %p205, %p206
    %p208 = scmp.ne.s32.totalorder %s197, %s200
    %p209 = scmp.eq.s32.totalorder %s20, 1
    %p210 = por %p208, %p209
    %p211 = scmp.ne.s32.totalorder %s200, %s201
    %p212 = scmp.eq.s32.totalorder %s20, 0
    %p213 = por %p211, %p212
    %p214 = scmp.ne.s32.totalorder %s200, %s201
    %p215 = scmp.eq.s32.totalorder %s21, 1
    %p216 = por %p214, %p215
    %p218 = scmp.ne.s32.totalorder %s201, %s217
    %p219 = scmp.eq.s32.totalorder %s21, 0
    %p220 = por %p218, %p219
    %s221 = ssub.s32 %s15, %s22
    %p222 = scmp.eq.s32.totalorder %s221, 0
    %s224 = sadd.s32 %s223, 1
    %s225 = scalar_select %p222, %s223, %s224
    %p228 = pneg %p222
    %p229 = scmp.eq.s32.totalorder %s15, 1
    %p230 = por %p228, %p229
    %p231 = scmp.ne.s32.totalorder %s223, %s226
    %p232 = scmp.eq.s32.totalorder %s15, 0
    %p233 = por %p231, %p232
    %p234 = scmp.ne.s32.totalorder %s223, %s226
    %p235 = scmp.eq.s32.totalorder %s20, 1
    %p236 = por %p234, %p235
    %p237 = scmp.ne.s32.totalorder %s226, %s227
    %p238 = scmp.eq.s32.totalorder %s20, 0
    %p239 = por %p237, %p238
    %p240 = scmp.ne.s32.totalorder %s226, %s227
    %p241 = scmp.eq.s32.totalorder %s21, 1
    %p242 = por %p240, %p241
    %p244 = scmp.ne.s32.totalorder %s227, %s243
    %p245 = scmp.eq.s32.totalorder %s21, 0
    %p246 = por %p244, %p245
    %p247 = scmp.le.s32.totalorder 1, %s15
    %p248 = scmp.lt.s32.totalorder %s15, 3
    %p249 = pnand %p247, %p248
    %p250 = pneg %p249
    // Predicated region
    $region9: #{basic_block_forward.3} parent=5 // pred_check
      _
    $region10: #{basic_block_forward.3} parent=5 // pred_check_branch
      %252 = sbr.rel (%p249) target = $region12
    $region11: #{basic_block_forward.3} parent=5 // pred_region
      %s253 = ssub.s32 %s15, 1
      // Predicated region
      $region13: #{basic_block_forward.3} parent=11 // pred_check
        %p254 = pneg %p62
      $region14: #{basic_block_forward.3} parent=11 // pred_check_branch
        %256 = sbr.rel (%p254) target = $region16
      $region15: #{basic_block_forward.3} parent=11 // pred_region
        _
      $region16: #{basic_block_forward.3} parent=11 // pred_fallthru
        _
      // Predicated region
      $region17: #{basic_block_forward.3} parent=11 // pred_check
        %p257 = pneg %p83
      $region18: #{basic_block_forward.3} parent=11 // pred_check_branch
        %259 = sbr.rel (%p257) target = $region20
      $region19: #{basic_block_forward.3} parent=11 // pred_region
        _
      $region20: #{basic_block_forward.3} parent=11 // pred_fallthru
        _
    $region12: #{basic_block_forward.3} parent=5 // pred_fallthru
      _
    %p260 = scmp.lt.s32.totalorder %s15, 2
    // Predicated region
    $region21: #{basic_block_forward.3} parent=5 // pred_check
      %p261 = pneg %p260
    $region22: #{basic_block_forward.3} parent=5 // pred_check_branch
      %263 = sbr.rel (%p261) target = $region24
    $region23: #{basic_block_forward.3} parent=5 // pred_region
      // Predicated region
      $region25: #{basic_block_forward.3} parent=23 // pred_check
        %p264 = pneg %p35
      $region26: #{basic_block_forward.3} parent=23 // pred_check_branch
        %266 = sbr.rel (%p264) target = $region28
      $region27: #{basic_block_forward.3} parent=23 // pred_region
        %p267 = scmp.lt.s32.totalorder %s15, 1
        %s268 = scalar_select %p267, %s15, 1
        %s269 = smul.addr %s268, 32
        %s270 = smul.addr %s269, 8
        %s271 = scalar_lea.vmem %s0, %s270
      $region28: #{basic_block_forward.3} parent=23 // pred_fallthru
        _
    $region24: #{basic_block_forward.3} parent=5 // pred_fallthru
      _
    %p272 = scmp.le.s32.totalorder 1, %s15
    %p273 = scmp.lt.s32.totalorder %s15, 3
    %p274 = pnand %p272, %p273
    %p275 = pneg %p274
    // Predicated region
    $region29: #{basic_block_forward.3} parent=5 // pred_check
      _
    $region30: #{basic_block_forward.3} parent=5 // pred_check_branch
      %277 = sbr.rel (%p274) target = $region32
    $region31: #{basic_block_forward.3} parent=5 // pred_region
      %s278 = ssub.s32 %s15, 1
      %p279 = scmp.lt.s32.totalorder %s20, 1
      %s280 = scalar_select %p279, %s20, 1
      %s281 = smul.addr %s280, 32
      %s282 = smul.addr %s281, 8
      %s283 = scalar_lea.vmem %s0, %s282
      %p284 = pneg %p41
      %p285 = pneg %p38
      %p286 = pneg %p62
      %p287 = pneg %p59
      %p288 = pneg %p83
      %p289 = pneg %p80
      %p290 = pneg %p109
      %p291 = pneg %p106
      %p292 = scmp.lt.s32.totalorder %s20, 1
      %s293 = scalar_select %p292, %s20, 1
      %s294 = smul.addr %s293, 32
      %s295 = smul.addr %s294, 8
      %s296 = scalar_lea.vmem %s3, %s295
      %p297 = pneg %p135
      %p298 = pneg %p132
      %p299 = scmp.lt.s32.totalorder %s20, 1
      %s300 = scalar_select %p299, %s20, 1
      %s301 = scalar_lea.vmem %s4, %s300
      %p302 = pneg %p161
      %p303 = pneg %p158
      %p304 = scmp.lt.s32.totalorder %s20, 1
      %s305 = scalar_select %p304, %s20, 1
      %s306 = scalar_lea.vmem %s5, %s305
      %p307 = pneg %p187
      %p308 = pneg %p184
      %p309 = scmp.lt.s32.totalorder %s20, 1
      %s310 = scalar_select %p309, %s20, 1
      %s311 = smul.addr %s310, 32
      %s312 = smul.addr %s311, 8
      %s313 = scalar_lea.vmem %s6, %s312
      %p314 = pneg %p213
      %p315 = pneg %p210
      %p316 = scmp.lt.s32.totalorder %s20, 1
      %s317 = scalar_select %p316, %s20, 1
      %s318 = scalar_lea.vmem %s7, %s317
      %p319 = pneg %p239
      %p320 = pneg %p236
      %p321 = scmp.lt.s32.totalorder %s20, 1
      %s322 = scalar_select %p321, %s20, 1
      %s323 = scalar_lea.vmem %s8, %s322
      %p324 = scmp.lt.s32.totalorder %s20, 1
      %s325 = scalar_select %p324, %s20, 1
      %s326 = smul.addr %s325, 32
      %s327 = smul.addr %s326, 8
      %s328 = scalar_lea.vmem %s0, %s327
      %p329 = scmp.lt.s32.totalorder %s20, 1
      %s330 = scalar_select %p329, %s20, 1
      %s331 = smul.addr %s330, 32
      %s332 = smul.addr %s331, 8
      %s333 = scalar_lea.vmem %s3, %s332
      %p334 = scmp.lt.s32.totalorder %s20, 1
      %s335 = scalar_select %p334, %s20, 1
      %s336 = scalar_lea.vmem %s4, %s335
      %p337 = scmp.lt.s32.totalorder %s20, 1
      %s338 = scalar_select %p337, %s20, 1
      %s339 = scalar_lea.vmem %s5, %s338
      %p340 = scmp.lt.s32.totalorder %s20, 1
      %s341 = scalar_select %p340, %s20, 1
      %s342 = smul.addr %s341, 32
      %s343 = smul.addr %s342, 8
      %s344 = scalar_lea.vmem %s6, %s343
      %p345 = scmp.lt.s32.totalorder %s20, 1
      %s346 = scalar_select %p345, %s20, 1
      %s347 = scalar_lea.vmem %s7, %s346
      %p348 = scmp.lt.s32.totalorder %s20, 1
      %s349 = scalar_select %p348, %s20, 1
      %s350 = scalar_lea.vmem %s8, %s349
      %v351 = vld [vmem:[%s328] sm:$0xff]
      %v352 = vld [vmem:[%s328 + $0x8] sm:$0xff]
      %v353 = vld [vmem:[%s328 + $0x10] sm:$0xff]
      %v354 = vld [vmem:[%s328 + $0x18] sm:$0xff]
      %v355 = vld [vmem:[%s328 + $0x20] sm:$0xff]
      %v356 = vld [vmem:[%s328 + $0x28] sm:$0xff]
      %v357 = vld [vmem:[%s328 + $0x30] sm:$0xff]
      %v358 = vld [vmem:[%s328 + $0x38] sm:$0xff]
      %v359 = vld [vmem:[%s328 + $0x40] sm:$0xff]
      %v360 = vld [vmem:[%s328 + $0x48] sm:$0xff]
      %v361 = vld [vmem:[%s328 + $0x50] sm:$0xff]
      %v362 = vld [vmem:[%s328 + $0x58] sm:$0xff]
      %v363 = vld [vmem:[%s328 + $0x60] sm:$0xff]
      %v364 = vld [vmem:[%s328 + $0x68] sm:$0xff]
      %v365 = vld [vmem:[%s328 + $0x70] sm:$0xff]
      %v366 = vld [vmem:[%s328 + $0x78] sm:$0xff]
      %v367 = vld [vmem:[%s328 + $0x80] sm:$0xff]
      %v368 = vld [vmem:[%s328 + $0x88] sm:$0xff]
      %v369 = vld [vmem:[%s328 + $0x90] sm:$0xff]
      %v370 = vld [vmem:[%s328 + $0x98] sm:$0xff]
      %v371 = vld [vmem:[%s328 + $0xa0] sm:$0xff]
      %v372 = vld [vmem:[%s328 + $0xa8] sm:$0xff]
      %v373 = vld [vmem:[%s328 + $0xb0] sm:$0xff]
      %v374 = vld [vmem:[%s328 + $0xb8] sm:$0xff]
      %v375 = vld [vmem:[%s328 + $0xc0] sm:$0xff]
      %v376 = vld [vmem:[%s328 + $0xc8] sm:$0xff]
      %v377 = vld [vmem:[%s328 + $0xd0] sm:$0xff]
      %v378 = vld [vmem:[%s328 + $0xd8] sm:$0xff]
      %v379 = vld [vmem:[%s328 + $0xe0] sm:$0xff]
      %v380 = vld [vmem:[%s328 + $0xe8] sm:$0xff]
      %v381 = vld [vmem:[%s328 + $0xf0] sm:$0xff]
      %v382 = vld [vmem:[%s328 + $0xf8] sm:$0xff]
      %vm383 = vcmask 31744
      %384 = vst.msk [vmem:[#allocation2] sm:$0xff] %vm383, 0.0
      %385 = vst.msk [vmem:[#allocation2 + $0x8] sm:$0xff] %vm383, 0.0
      %vm386 = vcmask 25600
      %387 = vst.msk [vmem:[#allocation2 + $0x10] sm:$0x3] %vm386, 0.0
      %s388 = scalar_lea.vmem [#allocation2], 408
      %389 = vst.msk [vmem:[%s388] sm:$0xff] %vm383, 0.0
      %390 = vst.msk [vmem:[%s388 + $0x8] sm:$0xff] %vm383, 0.0
      %391 = vst.msk [vmem:[%s388 + $0x10] sm:$0x3] %vm386, 0.0
      %vm392 = vcmask 24576
      %393 = vst.msk [vmem:[#allocation2] sm:$0x1] %vm392, 0.0
      %394 = vst.msk [vmem:[#allocation2 + $0x18] sm:$0x1] %vm392, 0.0
      %395 = vst.msk [vmem:[#allocation2 + $0x30] sm:$0x1] %vm392, 0.0
      %396 = vst.msk [vmem:[#allocation2 + $0x48] sm:$0x1] %vm392, 0.0
      %397 = vst.msk [vmem:[#allocation2 + $0x60] sm:$0x1] %vm392, 0.0
      %398 = vst.msk [vmem:[#allocation2 + $0x78] sm:$0x1] %vm392, 0.0
      %399 = vst.msk [vmem:[#allocation2 + $0x90] sm:$0x1] %vm392, 0.0
      %400 = vst.msk [vmem:[#allocation2 + $0xa8] sm:$0x1] %vm392, 0.0
      %401 = vst.msk [vmem:[#allocation2 + $0xc0] sm:$0x1] %vm392, 0.0
      %402 = vst.msk [vmem:[#allocation2 + $0xd8] sm:$0x1] %vm392, 0.0
      %403 = vst.msk [vmem:[#allocation2 + $0xf0] sm:$0x1] %vm392, 0.0
      %404 = vst.msk [vmem:[#allocation2 + $0x108] sm:$0x1] %vm392, 0.0
      %405 = vst.msk [vmem:[#allocation2 + $0x120] sm:$0x1] %vm392, 0.0
      %406 = vst.msk [vmem:[#allocation2 + $0x138] sm:$0x1] %vm392, 0.0
      %407 = vst.msk [vmem:[#allocation2 + $0x150] sm:$0x1] %vm392, 0.0
      %408 = vst.msk [vmem:[#allocation2 + $0x168] sm:$0x1] %vm392, 0.0
      %409 = vst.msk [vmem:[#allocation2 + $0x180] sm:$0x1] %vm392, 0.0
      %410 = vst.msk [vmem:[#allocation2 + $0x198] sm:$0x1] %vm392, 0.0
      %411 = vst.msk [vmem:[#allocation2 + $0x11] sm:$0x1] %vm392, 0.0
      %412 = vst.msk [vmem:[#allocation2 + $0x29] sm:$0x1] %vm392, 0.0
      %413 = vst.msk [vmem:[#allocation2 + $0x41] sm:$0x1] %vm392, 0.0
      %414 = vst.msk [vmem:[#allocation2 + $0x59] sm:$0x1] %vm392, 0.0
      %415 = vst.msk [vmem:[#allocation2 + $0x71] sm:$0x1] %vm392, 0.0
      %416 = vst.msk [vmem:[#allocation2 + $0x89] sm:$0x1] %vm392, 0.0
      %417 = vst.msk [vmem:[#allocation2 + $0xa1] sm:$0x1] %vm392, 0.0
      %418 = vst.msk [vmem:[#allocation2 + $0xb9] sm:$0x1] %vm392, 0.0
      %419 = vst.msk [vmem:[#allocation2 + $0xd1] sm:$0x1] %vm392, 0.0
      %420 = vst.msk [vmem:[#allocation2 + $0xe9] sm:$0x1] %vm392, 0.0
      %421 = vst.msk [vmem:[#allocation2 + $0x101] sm:$0x1] %vm392, 0.0
      %422 = vst.msk [vmem:[#allocation2 + $0x119] sm:$0x1] %vm392, 0.0
      %423 = vst.msk [vmem:[#allocation2 + $0x131] sm:$0x1] %vm392, 0.0
      %424 = vst.msk [vmem:[#allocation2 + $0x149] sm:$0x1] %vm392, 0.0
      %425 = vst.msk [vmem:[#allocation2 + $0x161] sm:$0x1] %vm392, 0.0
      %426 = vst.msk [vmem:[#allocation2 + $0x179] sm:$0x1] %vm392, 0.0
      %427 = vst.msk [vmem:[#allocation2 + $0x191] sm:$0x1] %vm392, 0.0
      %428 = vst.msk [vmem:[#allocation2 + $0x1a9] sm:$0x1] %vm392, 0.0
      %s429 = scalar_lea.vmem [#allocation2], 24
      %430 = vst.msk [vmem:[%s429 + $0x1] sm:$0xff] %vm383, %v351
      %431 = vst.msk [vmem:[%s429 + $0x9] sm:$0xff] %vm383, %v352
      %432 = vst.msk [vmem:[%s429 + $0x19] sm:$0xff] %vm383, %v353
      %433 = vst.msk [vmem:[%s429 + $0x21] sm:$0xff] %vm383, %v354
      %434 = vst.msk [vmem:[%s429 + $0x31] sm:$0xff] %vm383, %v355
      %435 = vst.msk [vmem:[%s429 + $0x39] sm:$0xff] %vm383, %v356
      %436 = vst.msk [vmem:[%s429 + $0x49] sm:$0xff] %vm383, %v357
      %437 = vst.msk [vmem:[%s429 + $0x51] sm:$0xff] %vm383, %v358
      %438 = vst.msk [vmem:[%s429 + $0x61] sm:$0xff] %vm383, %v359
      %439 = vst.msk [vmem:[%s429 + $0x69] sm:$0xff] %vm383, %v360
      %440 = vst.msk [vmem:[%s429 + $0x79] sm:$0xff] %vm383, %v361
      %441 = vst.msk [vmem:[%s429 + $0x81] sm:$0xff] %vm383, %v362
      %442 = vst.msk [vmem:[%s429 + $0x91] sm:$0xff] %vm383, %v363
      %443 = vst.msk [vmem:[%s429 + $0x99] sm:$0xff] %vm383, %v364
      %444 = vst.msk [vmem:[%s429 + $0xa9] sm:$0xff] %vm383, %v365
      %445 = vst.msk [vmem:[%s429 + $0xb1] sm:$0xff] %vm383, %v366
      %446 = vst.msk [vmem:[%s429 + $0xc1] sm:$0xff] %vm383, %v367
      %447 = vst.msk [vmem:[%s429 + $0xc9] sm:$0xff] %vm383, %v368
      %448 = vst.msk [vmem:[%s429 + $0xd9] sm:$0xff] %vm383, %v369
      %449 = vst.msk [vmem:[%s429 + $0xe1] sm:$0xff] %vm383, %v370
      %450 = vst.msk [vmem:[%s429 + $0xf1] sm:$0xff] %vm383, %v371
      %451 = vst.msk [vmem:[%s429 + $0xf9] sm:$0xff] %vm383, %v372
      %452 = vst.msk [vmem:[%s429 + $0x109] sm:$0xff] %vm383, %v373
      %453 = vst.msk [vmem:[%s429 + $0x111] sm:$0xff] %vm383, %v374
      %454 = vst.msk [vmem:[%s429 + $0x121] sm:$0xff] %vm383, %v375
      %455 = vst.msk [vmem:[%s429 + $0x129] sm:$0xff] %vm383, %v376
      %456 = vst.msk [vmem:[%s429 + $0x139] sm:$0xff] %vm383, %v377
      %457 = vst.msk [vmem:[%s429 + $0x141] sm:$0xff] %vm383, %v378
      %458 = vst.msk [vmem:[%s429 + $0x151] sm:$0xff] %vm383, %v379
      %459 = vst.msk [vmem:[%s429 + $0x159] sm:$0xff] %vm383, %v380
      %460 = vst.msk [vmem:[%s429 + $0x169] sm:$0xff] %vm383, %v381
      %461 = vst.msk [vmem:[%s429 + $0x171] sm:$0xff] %vm383, %v382
      %v462 = vld [vmem:[#allocation2] sm:$0xff]
      %v463 = vld [vmem:[#allocation2 + $0x8] sm:$0xff]
      %v464 = vld [vmem:[#allocation2 + $0x10] sm:$0x3]
      %v465 = vld [vmem:[#allocation2 + $0x18] sm:$0xff]
      %v466 = vld [vmem:[#allocation2 + $0x20] sm:$0xff]
      %v467 = vld [vmem:[#allocation2 + $0x28] sm:$0x3]
      %v468 = vld [vmem:[#allocation2 + $0x30] sm:$0xff]
      %v469 = vld [vmem:[#allocation2 + $0x38] sm:$0xff]
      %v470 = vld [vmem:[#allocation2 + $0x40] sm:$0x3]
      %v471 = vld [vmem:[#allocation2 + $0x48] sm:$0xff]
      %v472 = vld [vmem:[#allocation2 + $0x50] sm:$0xff]
      %v473 = vld [vmem:[#allocation2 + $0x58] sm:$0x3]
      %v474 = vld [vmem:[#allocation2 + $0x60] sm:$0xff]
      %v475 = vld [vmem:[#allocation2 + $0x68] sm:$0xff]
      %v476 = vld [vmem:[#allocation2 + $0x70] sm:$0x3]
      %v477 = vld [vmem:[#allocation2 + $0x78] sm:$0xff]
      %v478 = vld [vmem:[#allocation2 + $0x80] sm:$0xff]
      %v479 = vld [vmem:[#allocation2 + $0x88] sm:$0x3]
      %v480 = vld [vmem:[#allocation2 + $0x90] sm:$0xff]
      %v481 = vld [vmem:[#allocation2 + $0x98] sm:$0xff]
      %v482 = vld [vmem:[#allocation2 + $0xa0] sm:$0x3]
      %v483 = vld [vmem:[#allocation2 + $0xa8] sm:$0xff]
      %v484 = vld [vmem:[#allocation2 + $0xb0] sm:$0xff]
      %v485 = vld [vmem:[#allocation2 + $0xb8] sm:$0x3]
      %v486 = vld [vmem:[#allocation2 + $0xc0] sm:$0xff]
      %v487 = vld [vmem:[#allocation2 + $0xc8] sm:$0xff]
      %v488 = vld [vmem:[#allocation2 + $0xd0] sm:$0x3]
      %v489 = vld [vmem:[#allocation2 + $0xd8] sm:$0xff]
      %v490 = vld [vmem:[#allocation2 + $0xe0] sm:$0xff]
      %v491 = vld [vmem:[#allocation2 + $0xe8] sm:$0x3]
      %v492 = vld [vmem:[#allocation2 + $0xf0] sm:$0xff]
      %v493 = vld [vmem:[#allocation2 + $0xf8] sm:$0xff]
      %v494 = vld [vmem:[#allocation2 + $0x100] sm:$0x3]
      %v495 = vld [vmem:[#allocation2 + $0x108] sm:$0xff]
      %v496 = vld [vmem:[#allocation2 + $0x110] sm:$0xff]
      %v497 = vld [vmem:[#allocation2 + $0x118] sm:$0x3]
      %v498 = vld [vmem:[#allocation2 + $0x120] sm:$0xff]
      %v499 = vld [vmem:[#allocation2 + $0x128] sm:$0xff]
      %v500 = vld [vmem:[#allocation2 + $0x130] sm:$0x3]
      %v501 = vld [vmem:[#allocation2 + $0x138] sm:$0xff]
      %v502 = vld [vmem:[#allocation2 + $0x140] sm:$0xff]
      %v503 = vld [vmem:[#allocation2 + $0x148] sm:$0x3]
      %v504 = vld [vmem:[#allocation2 + $0x150] sm:$0xff]
      %v505 = vld [vmem:[#allocation2 + $0x158] sm:$0xff]
      %v506 = vld [vmem:[#allocation2 + $0x160] sm:$0x3]
      %v507 = vld [vmem:[#allocation2 + $0x168] sm:$0xff]
      %v508 = vld [vmem:[#allocation2 + $0x170] sm:$0xff]
      %v509 = vld [vmem:[#allocation2 + $0x178] sm:$0x3]
      %v510 = vld [vmem:[#allocation2 + $0x180] sm:$0xff]
      %v511 = vld [vmem:[#allocation2 + $0x188] sm:$0xff]
      %v512 = vld [vmem:[#allocation2 + $0x190] sm:$0x3]
      %v513 = vld [vmem:[#allocation2 + $0x198] sm:$0xff]
      %v514 = vld [vmem:[#allocation2 + $0x1a0] sm:$0xff]
      %v515 = vld [vmem:[#allocation2 + $0x1a8] sm:$0x3]
      %516 = vst.msk [vmem:[#allocation3] sm:$0xff] %vm383, %v462
      %517 = vst.msk [vmem:[#allocation3 + $0x8] sm:$0xff] %vm383, %v463
      %518 = vst.msk [vmem:[#allocation3 + $0x10] sm:$0xff] %vm383, %v465
      %519 = vst.msk [vmem:[#allocation3 + $0x18] sm:$0xff] %vm383, %v466
      %520 = vst.msk [vmem:[#allocation3 + $0x20] sm:$0xff] %vm383, %v468
      %521 = vst.msk [vmem:[#allocation3 + $0x28] sm:$0xff] %vm383, %v469
      %522 = vst.msk [vmem:[#allocation3 + $0x30] sm:$0xff] %vm383, %v471
      %523 = vst.msk [vmem:[#allocation3 + $0x38] sm:$0xff] %vm383, %v472
      %524 = vst.msk [vmem:[#allocation3 + $0x40] sm:$0xff] %vm383, %v474
      %525 = vst.msk [vmem:[#allocation3 + $0x48] sm:$0xff] %vm383, %v475
      %526 = vst.msk [vmem:[#allocation3 + $0x50] sm:$0xff] %vm383, %v477
      %527 = vst.msk [vmem:[#allocation3 + $0x58] sm:$0xff] %vm383, %v478
      %528 = vst.msk [vmem:[#allocation3 + $0x60] sm:$0xff] %vm383, %v480
      %529 = vst.msk [vmem:[#allocation3 + $0x68] sm:$0xff] %vm383, %v481
      %530 = vst.msk [vmem:[#allocation3 + $0x70] sm:$0xff] %vm383, %v483
      %531 = vst.msk [vmem:[#allocation3 + $0x78] sm:$0xff] %vm383, %v484
      %532 = vst.msk [vmem:[#allocation3 + $0x80] sm:$0xff] %vm383, %v486
      %533 = vst.msk [vmem:[#allocation3 + $0x88] sm:$0xff] %vm383, %v487
      %534 = vst.msk [vmem:[#allocation3 + $0x90] sm:$0xff] %vm383, %v489
      %535 = vst.msk [vmem:[#allocation3 + $0x98] sm:$0xff] %vm383, %v490
      %536 = vst.msk [vmem:[#allocation3 + $0xa0] sm:$0xff] %vm383, %v492
      %537 = vst.msk [vmem:[#allocation3 + $0xa8] sm:$0xff] %vm383, %v493
      %538 = vst.msk [vmem:[#allocation3 + $0xb0] sm:$0xff] %vm383, %v495
      %539 = vst.msk [vmem:[#allocation3 + $0xb8] sm:$0xff] %vm383, %v496
      %540 = vst.msk [vmem:[#allocation3 + $0xc0] sm:$0xff] %vm383, %v498
      %541 = vst.msk [vmem:[#allocation3 + $0xc8] sm:$0xff] %vm383, %v499
      %542 = vst.msk [vmem:[#allocation3 + $0xd0] sm:$0xff] %vm383, %v501
      %543 = vst.msk [vmem:[#allocation3 + $0xd8] sm:$0xff] %vm383, %v502
      %544 = vst.msk [vmem:[#allocation3 + $0xe0] sm:$0xff] %vm383, %v504
      %545 = vst.msk [vmem:[#allocation3 + $0xe8] sm:$0xff] %vm383, %v505
      %546 = vst.msk [vmem:[#allocation3 + $0xf0] sm:$0xff] %vm383, %v507
      %547 = vst.msk [vmem:[#allocation3 + $0xf8] sm:$0xff] %vm383, %v508
      %vm596 = vcmask 1046528
      %v597 = vrot.slane %v462, 1
      %v598 = vrot.slane %v463, 1
      %v599 = vsel %vm596, %v597, %v598
      %v600 = vrot.slane %v464, 1
      %v601 = vsel %vm596, %v598, %v600
      %v602 = vrot.slane %v465, 1
      %v603 = vrot.slane %v466, 1
      %v604 = vsel %vm596, %v602, %v603
      %v605 = vrot.slane %v467, 1
      %v606 = vsel %vm596, %v603, %v605
      %v607 = vrot.slane %v468, 1
      %v608 = vrot.slane %v469, 1
      %v609 = vsel %vm596, %v607, %v608
      %v610 = vrot.slane %v470, 1
      %v611 = vsel %vm596, %v608, %v610
      %v612 = vrot.slane %v471, 1
      %v613 = vrot.slane %v472, 1
      %v614 = vsel %vm596, %v612, %v613
      %v615 = vrot.slane %v473, 1
      %v616 = vsel %vm596, %v613, %v615
      %v617 = vrot.slane %v474, 1
      %v618 = vrot.slane %v475, 1
      %v619 = vsel %vm596, %v617, %v618
      %v620 = vrot.slane %v476, 1
      %v621 = vsel %vm596, %v618, %v620
      %v622 = vrot.slane %v477, 1
      %v623 = vrot.slane %v478, 1
      %v624 = vsel %vm596, %v622, %v623
      %v625 = vrot.slane %v479, 1
      %v626 = vsel %vm596, %v623, %v625
      %v627 = vrot.slane %v480, 1
      %v628 = vrot.slane %v481, 1
      %v629 = vsel %vm596, %v627, %v628
      %v630 = vrot.slane %v482, 1
      %v631 = vsel %vm596, %v628, %v630
      %v632 = vrot.slane %v483, 1
      %v633 = vrot.slane %v484, 1
      %v634 = vsel %vm596, %v632, %v633
      %v635 = vrot.slane %v485, 1
      %v636 = vsel %vm596, %v633, %v635
      %v637 = vrot.slane %v486, 1
      %v638 = vrot.slane %v487, 1
      %v639 = vsel %vm596, %v637, %v638
      %v640 = vrot.slane %v488, 1
      %v641 = vsel %vm596, %v638, %v640
      %v642 = vrot.slane %v489, 1
      %v643 = vrot.slane %v490, 1
      %v644 = vsel %vm596, %v642, %v643
      %v645 = vrot.slane %v491, 1
      %v646 = vsel %vm596, %v643, %v645
      %v647 = vrot.slane %v492, 1
      %v648 = vrot.slane %v493, 1
      %v649 = vsel %vm596, %v647, %v648
      %v650 = vrot.slane %v494, 1
      %v651 = vsel %vm596, %v648, %v650
      %v652 = vrot.slane %v495, 1
      %v653 = vrot.slane %v496, 1
      %v654 = vsel %vm596, %v652, %v653
      %v655 = vrot.slane %v497, 1
      %v656 = vsel %vm596, %v653, %v655
      %v657 = vrot.slane %v498, 1
      %v658 = vrot.slane %v499, 1
      %v659 = vsel %vm596, %v657, %v658
      %v660 = vrot.slane %v500, 1
      %v661 = vsel %vm596, %v658, %v660
      %v662 = vrot.slane %v501, 1
      %v663 = vrot.slane %v502, 1
      %v664 = vsel %vm596, %v662, %v663
      %v665 = vrot.slane %v503, 1
      %v666 = vsel %vm596, %v663, %v665
      %v667 = vrot.slane %v504, 1
      %v668 = vrot.slane %v505, 1
      %v669 = vsel %vm596, %v667, %v668
      %v670 = vrot.slane %v506, 1
      %v671 = vsel %vm596, %v668, %v670
      %v672 = vrot.slane %v507, 1
      %v673 = vrot.slane %v508, 1
      %v674 = vsel %vm596, %v672, %v673
      %v675 = vrot.slane %v509, 1
      %v676 = vsel %vm596, %v673, %v675
      %677 = vrot.lane.b32.xlu0 %v599, 4
      %v678 = vpop.permute.xlu0 %677
      %679 = vrot.lane.b32.xlu0 %v601, 4
      %v680 = vpop.permute.xlu0 %679
      %681 = vrot.lane.b32.xlu0 %v604, 4
      %v682 = vpop.permute.xlu0 %681
      %683 = vrot.lane.b32.xlu0 %v606, 4
      %v684 = vpop.permute.xlu0 %683
      %685 = vrot.lane.b32.xlu0 %v609, 4
      %v686 = vpop.permute.xlu0 %685
      %687 = vrot.lane.b32.xlu0 %v611, 4
      %v688 = vpop.permute.xlu0 %687
      %689 = vrot.lane.b32.xlu0 %v614, 4
      %v690 = vpop.permute.xlu0 %689
      %691 = vrot.lane.b32.xlu0 %v616, 4
      %v692 = vpop.permute.xlu0 %691
      %693 = vrot.lane.b32.xlu0 %v619, 4
      %v694 = vpop.permute.xlu0 %693
      %695 = vrot.lane.b32.xlu0 %v621, 4
      %v696 = vpop.permute.xlu0 %695
      %697 = vrot.lane.b32.xlu0 %v624, 4
      %v698 = vpop.permute.xlu0 %697
      %699 = vrot.lane.b32.xlu0 %v626, 4
      %v700 = vpop.permute.xlu0 %699
      %701 = vrot.lane.b32.xlu0 %v629, 4
      %v702 = vpop.permute.xlu0 %701
      %703 = vrot.lane.b32.xlu0 %v631, 4
      %v704 = vpop.permute.xlu0 %703
      %705 = vrot.lane.b32.xlu0 %v634, 4
      %v706 = vpop.permute.xlu0 %705
      %707 = vrot.lane.b32.xlu0 %v636, 4
      %v708 = vpop.permute.xlu0 %707
      %709 = vrot.lane.b32.xlu0 %v639, 4
      %v710 = vpop.permute.xlu0 %709
      %711 = vrot.lane.b32.xlu0 %v641, 4
      %v712 = vpop.permute.xlu0 %711
      %713 = vrot.lane.b32.xlu0 %v644, 4
      %v714 = vpop.permute.xlu0 %713
      %715 = vrot.lane.b32.xlu0 %v646, 4
      %v716 = vpop.permute.xlu0 %715
      %717 = vrot.lane.b32.xlu0 %v649, 4
      %v718 = vpop.permute.xlu0 %717
      %719 = vrot.lane.b32.xlu0 %v651, 4
      %v720 = vpop.permute.xlu0 %719
      %721 = vrot.lane.b32.xlu0 %v654, 4
      %v722 = vpop.permute.xlu0 %721
      %723 = vrot.lane.b32.xlu0 %v656, 4
      %v724 = vpop.permute.xlu0 %723
      %725 = vrot.lane.b32.xlu0 %v659, 4
      %v726 = vpop.permute.xlu0 %725
      %727 = vrot.lane.b32.xlu0 %v661, 4
      %v728 = vpop.permute.xlu0 %727
      %729 = vrot.lane.b32.xlu0 %v664, 4
      %v730 = vpop.permute.xlu0 %729
      %731 = vrot.lane.b32.xlu0 %v666, 4
      %v732 = vpop.permute.xlu0 %731
      %733 = vrot.lane.b32.xlu0 %v669, 4
      %v734 = vpop.permute.xlu0 %733
      %735 = vrot.lane.b32.xlu0 %v671, 4
      %v736 = vpop.permute.xlu0 %735
      %737 = vrot.lane.b32.xlu0 %v674, 4
      %v738 = vpop.permute.xlu0 %737
      %739 = vrot.lane.b32.xlu0 %v676, 4
      %v740 = vpop.permute.xlu0 %739
      %vm773 = vcmask 64544
      %774 = vst.msk [vmem:[#allocation3] sm:$0xff] %vm773, %v678
      %775 = vst.msk [vmem:[#allocation3 + $0x8] sm:$0xff] %vm773, %v680
      %776 = vst.msk [vmem:[#allocation3 + $0x10] sm:$0xff] %vm773, %v682
      %777 = vst.msk [vmem:[#allocation3 + $0x18] sm:$0xff] %vm773, %v684
      %778 = vst.msk [vmem:[#allocation3 + $0x20] sm:$0xff] %vm773, %v686
      %779 = vst.msk [vmem:[#allocation3 + $0x28] sm:$0xff] %vm773, %v688
      %780 = vst.msk [vmem:[#allocation3 + $0x30] sm:$0xff] %vm773, %v690
      %781 = vst.msk [vmem:[#allocation3 + $0x38] sm:$0xff] %vm773, %v692
      %782 = vst.msk [vmem:[#allocation3 + $0x40] sm:$0xff] %vm773, %v694
      %783 = vst.msk [vmem:[#allocation3 + $0x48] sm:$0xff] %vm773, %v696
      %784 = vst.msk [vmem:[#allocation3 + $0x50] sm:$0xff] %vm773, %v698
      %785 = vst.msk [vmem:[#allocation3 + $0x58] sm:$0xff] %vm773, %v700
      %786 = vst.msk [vmem:[#allocation3 + $0x60] sm:$0xff] %vm773, %v702
      %787 = vst.msk [vmem:[#allocation3 + $0x68] sm:$0xff] %vm773, %v704
      %788 = vst.msk [vmem:[#allocation3 + $0x70] sm:$0xff] %vm773, %v706
      %789 = vst.msk [vmem:[#allocation3 + $0x78] sm:$0xff] %vm773, %v708
      %790 = vst.msk [vmem:[#allocation3 + $0x80] sm:$0xff] %vm773, %v710
      %791 = vst.msk [vmem:[#allocation3 + $0x88] sm:$0xff] %vm773, %v712
      %792 = vst.msk [vmem:[#allocation3 + $0x90] sm:$0xff] %vm773, %v714
      %793 = vst.msk [vmem:[#allocation3 + $0x98] sm:$0xff] %vm773, %v716
      %794 = vst.msk [vmem:[#allocation3 + $0xa0] sm:$0xff] %vm773, %v718
      %795 = vst.msk [vmem:[#allocation3 + $0xa8] sm:$0xff] %vm773, %v720
      %796 = vst.msk [vmem:[#allocation3 + $0xb0] sm:$0xff] %vm773, %v722
      %797 = vst.msk [vmem:[#allocation3 + $0xb8] sm:$0xff] %vm773, %v724
      %798 = vst.msk [vmem:[#allocation3 + $0xc0] sm:$0xff] %vm773, %v726
      %799 = vst.msk [vmem:[#allocation3 + $0xc8] sm:$0xff] %vm773, %v728
      %800 = vst.msk [vmem:[#allocation3 + $0xd0] sm:$0xff] %vm773, %v730
      %801 = vst.msk [vmem:[#allocation3 + $0xd8] sm:$0xff] %vm773, %v732
      %802 = vst.msk [vmem:[#allocation3 + $0xe0] sm:$0xff] %vm773, %v734
      %803 = vst.msk [vmem:[#allocation3 + $0xe8] sm:$0xff] %vm773, %v736
      %804 = vst.msk [vmem:[#allocation3 + $0xf0] sm:$0xff] %vm773, %v738
      %805 = vst.msk [vmem:[#allocation3 + $0xf8] sm:$0xff] %vm773, %v740
      %vm806 = vcmask 1045504
      %v807 = vrot.slane %v462, 2
      %v808 = vrot.slane %v463, 2
      %v809 = vsel %vm806, %v807, %v808
      %v810 = vrot.slane %v464, 2
      %v811 = vsel %vm806, %v808, %v810
      %v812 = vrot.slane %v465, 2
      %v813 = vrot.slane %v466, 2
      %v814 = vsel %vm806, %v812, %v813
      %v815 = vrot.slane %v467, 2
      %v816 = vsel %vm806, %v813, %v815
      %v817 = vrot.slane %v468, 2
      %v818 = vrot.slane %v469, 2
      %v819 = vsel %vm806, %v817, %v818
      %v820 = vrot.slane %v470, 2
      %v821 = vsel %vm806, %v818, %v820
      %v822 = vrot.slane %v471, 2
      %v823 = vrot.slane %v472, 2
      %v824 = vsel %vm806, %v822, %v823
      %v825 = vrot.slane %v473, 2
      %v826 = vsel %vm806, %v823, %v825
      %v827 = vrot.slane %v474, 2
      %v828 = vrot.slane %v475, 2
      %v829 = vsel %vm806, %v827, %v828
      %v830 = vrot.slane %v476, 2
      %v831 = vsel %vm806, %v828, %v830
      %v832 = vrot.slane %v477, 2
      %v833 = vrot.slane %v478, 2
      %v834 = vsel %vm806, %v832, %v833
      %v835 = vrot.slane %v479, 2
      %v836 = vsel %vm806, %v833, %v835
      %v837 = vrot.slane %v480, 2
      %v838 = vrot.slane %v481, 2
      %v839 = vsel %vm806, %v837, %v838
      %v840 = vrot.slane %v482, 2
      %v841 = vsel %vm806, %v838, %v840
      %v842 = vrot.slane %v483, 2
      %v843 = vrot.slane %v484, 2
      %v844 = vsel %vm806, %v842, %v843
      %v845 = vrot.slane %v485, 2
      %v846 = vsel %vm806, %v843, %v845
      %v847 = vrot.slane %v486, 2
      %v848 = vrot.slane %v487, 2
      %v849 = vsel %vm806, %v847, %v848
      %v850 = vrot.slane %v488, 2
      %v851 = vsel %vm806, %v848, %v850
      %v852 = vrot.slane %v489, 2
      %v853 = vrot.slane %v490, 2
      %v854 = vsel %vm806, %v852, %v853
      %v855 = vrot.slane %v491, 2
      %v856 = vsel %vm806, %v853, %v855
      %v857 = vrot.slane %v492, 2
      %v858 = vrot.slane %v493, 2
      %v859 = vsel %vm806, %v857, %v858
      %v860 = vrot.slane %v494, 2
      %v861 = vsel %vm806, %v858, %v860
      %v862 = vrot.slane %v495, 2
      %v863 = vrot.slane %v496, 2
      %v864 = vsel %vm806, %v862, %v863
      %v865 = vrot.slane %v497, 2
      %v866 = vsel %vm806, %v863, %v865
      %v867 = vrot.slane %v498, 2
      %v868 = vrot.slane %v499, 2
      %v869 = vsel %vm806, %v867, %v868
      %v870 = vrot.slane %v500, 2
      %v871 = vsel %vm806, %v868, %v870
      %v872 = vrot.slane %v501, 2
      %v873 = vrot.slane %v502, 2
      %v874 = vsel %vm806, %v872, %v873
      %v875 = vrot.slane %v503, 2
      %v876 = vsel %vm806, %v873, %v875
      %v877 = vrot.slane %v504, 2
      %v878 = vrot.slane %v505, 2
      %v879 = vsel %vm806, %v877, %v878
      %v880 = vrot.slane %v506, 2
      %v881 = vsel %vm806, %v878, %v880
      %v882 = vrot.slane %v507, 2
      %v883 = vrot.slane %v508, 2
      %v884 = vsel %vm806, %v882, %v883
      %v885 = vrot.slane %v509, 2
      %v886 = vsel %vm806, %v883, %v885
      %887 = vrot.lane.b32.xlu0 %v809, 8
      %v888 = vpop.permute.xlu0 %887
      %889 = vrot.lane.b32.xlu0 %v811, 8
      %v890 = vpop.permute.xlu0 %889
      %891 = vrot.lane.b32.xlu0 %v814, 8
      %v892 = vpop.permute.xlu0 %891
      %893 = vrot.lane.b32.xlu0 %v816, 8
      %v894 = vpop.permute.xlu0 %893
      %895 = vrot.lane.b32.xlu0 %v819, 8
      %v896 = vpop.permute.xlu0 %895
      %897 = vrot.lane.b32.xlu0 %v821, 8
      %v898 = vpop.permute.xlu0 %897
      %899 = vrot.lane.b32.xlu0 %v824, 8
      %v900 = vpop.permute.xlu0 %899
      %901 = vrot.lane.b32.xlu0 %v826, 8
      %v902 = vpop.permute.xlu0 %901
      %903 = vrot.lane.b32.xlu0 %v829, 8
      %v904 = vpop.permute.xlu0 %903
      %905 = vrot.lane.b32.xlu0 %v831, 8
      %v906 = vpop.permute.xlu0 %905
      %907 = vrot.lane.b32.xlu0 %v834, 8
      %v908 = vpop.permute.xlu0 %907
      %909 = vrot.lane.b32.xlu0 %v836, 8
      %v910 = vpop.permute.xlu0 %909
      %911 = vrot.lane.b32.xlu0 %v839, 8
      %v912 = vpop.permute.xlu0 %911
      %913 = vrot.lane.b32.xlu0 %v841, 8
      %v914 = vpop.permute.xlu0 %913
      %915 = vrot.lane.b32.xlu0 %v844, 8
      %v916 = vpop.permute.xlu0 %915
      %917 = vrot.lane.b32.xlu0 %v846, 8
      %v918 = vpop.permute.xlu0 %917
      %919 = vrot.lane.b32.xlu0 %v849, 8
      %v920 = vpop.permute.xlu0 %919
      %921 = vrot.lane.b32.xlu0 %v851, 8
      %v922 = vpop.permute.xlu0 %921
      %923 = vrot.lane.b32.xlu0 %v854, 8
      %v924 = vpop.permute.xlu0 %923
      %925 = vrot.lane.b32.xlu0 %v856, 8
      %v926 = vpop.permute.xlu0 %925
      %927 = vrot.lane.b32.xlu0 %v859, 8
      %v928 = vpop.permute.xlu0 %927
      %929 = vrot.lane.b32.xlu0 %v861, 8
      %v930 = vpop.permute.xlu0 %929
      %931 = vrot.lane.b32.xlu0 %v864, 8
      %v932 = vpop.permute.xlu0 %931
      %933 = vrot.lane.b32.xlu0 %v866, 8
      %v934 = vpop.permute.xlu0 %933
      %935 = vrot.lane.b32.xlu0 %v869, 8
      %v936 = vpop.permute.xlu0 %935
      %937 = vrot.lane.b32.xlu0 %v871, 8
      %v938 = vpop.permute.xlu0 %937
      %939 = vrot.lane.b32.xlu0 %v874, 8
      %v940 = vpop.permute.xlu0 %939
      %941 = vrot.lane.b32.xlu0 %v876, 8
      %v942 = vpop.permute.xlu0 %941
      %943 = vrot.lane.b32.xlu0 %v879, 8
      %v944 = vpop.permute.xlu0 %943
      %945 = vrot.lane.b32.xlu0 %v881, 8
      %v946 = vpop.permute.xlu0 %945
      %947 = vrot.lane.b32.xlu0 %v884, 8
      %v948 = vpop.permute.xlu0 %947
      %949 = vrot.lane.b32.xlu0 %v886, 8
      %v950 = vpop.permute.xlu0 %949
      %vm983 = vcmask 97344
      %984 = vst.msk [vmem:[#allocation3] sm:$0xff] %vm983, %v888
      %985 = vst.msk [vmem:[#allocation3 + $0x8] sm:$0xff] %vm983, %v890
      %986 = vst.msk [vmem:[#allocation3 + $0x10] sm:$0xff] %vm983, %v892
      %987 = vst.msk [vmem:[#allocation3 + $0x18] sm:$0xff] %vm983, %v894
      %988 = vst.msk [vmem:[#allocation3 + $0x20] sm:$0xff] %vm983, %v896
      %989 = vst.msk [vmem:[#allocation3 + $0x28] sm:$0xff] %vm983, %v898
      %990 = vst.msk [vmem:[#allocation3 + $0x30] sm:$0xff] %vm983, %v900
      %991 = vst.msk [vmem:[#allocation3 + $0x38] sm:$0xff] %vm983, %v902
      %992 = vst.msk [vmem:[#allocation3 + $0x40] sm:$0xff] %vm983, %v904
      %993 = vst.msk [vmem:[#allocation3 + $0x48] sm:$0xff] %vm983, %v906
      %994 = vst.msk [vmem:[#allocation3 + $0x50] sm:$0xff] %vm983, %v908
      %995 = vst.msk [vmem:[#allocation3 + $0x58] sm:$0xff] %vm983, %v910
      %996 = vst.msk [vmem:[#allocation3 + $0x60] sm:$0xff] %vm983, %v912
      %997 = vst.msk [vmem:[#allocation3 + $0x68] sm:$0xff] %vm983, %v914
      %998 = vst.msk [vmem:[#allocation3 + $0x70] sm:$0xff] %vm983, %v916
      %999 = vst.msk [vmem:[#allocation3 + $0x78] sm:$0xff] %vm983, %v918
      %1000 = vst.msk [vmem:[#allocation3 + $0x80] sm:$0xff] %vm983, %v920
      %1001 = vst.msk [vmem:[#allocation3 + $0x88] sm:$0xff] %vm983, %v922
      %1002 = vst.msk [vmem:[#allocation3 + $0x90] sm:$0xff] %vm983, %v924
      %1003 = vst.msk [vmem:[#allocation3 + $0x98] sm:$0xff] %vm983, %v926
      %1004 = vst.msk [vmem:[#allocation3 + $0xa0] sm:$0xff] %vm983, %v928
      %1005 = vst.msk [vmem:[#allocation3 + $0xa8] sm:$0xff] %vm983, %v930
      %1006 = vst.msk [vmem:[#allocation3 + $0xb0] sm:$0xff] %vm983, %v932
      %1007 = vst.msk [vmem:[#allocation3 + $0xb8] sm:$0xff] %vm983, %v934
      %1008 = vst.msk [vmem:[#allocation3 + $0xc0] sm:$0xff] %vm983, %v936
      %1009 = vst.msk [vmem:[#allocation3 + $0xc8] sm:$0xff] %vm983, %v938
      %1010 = vst.msk [vmem:[#allocation3 + $0xd0] sm:$0xff] %vm983, %v940
      %1011 = vst.msk [vmem:[#allocation3 + $0xd8] sm:$0xff] %vm983, %v942
      %1012 = vst.msk [vmem:[#allocation3 + $0xe0] sm:$0xff] %vm983, %v944
      %1013 = vst.msk [vmem:[#allocation3 + $0xe8] sm:$0xff] %vm983, %v946
      %1014 = vst.msk [vmem:[#allocation3 + $0xf0] sm:$0xff] %vm983, %v948
      %1015 = vst.msk [vmem:[#allocation3 + $0xf8] sm:$0xff] %vm983, %v950
      %1018 = vrot.lane.b32.xlu0 %v465, 12
      %v1019 = vpop.permute.xlu0 %1018
      %1020 = vrot.lane.b32.xlu0 %v466, 12
      %v1021 = vpop.permute.xlu0 %1020
      %1022 = vrot.lane.b32.xlu0 %v468, 12
      %v1023 = vpop.permute.xlu0 %1022
      %1024 = vrot.lane.b32.xlu0 %v469, 12
      %v1025 = vpop.permute.xlu0 %1024
      %1026 = vrot.lane.b32.xlu0 %v471, 12
      %v1027 = vpop.permute.xlu0 %1026
      %1028 = vrot.lane.b32.xlu0 %v472, 12
      %v1029 = vpop.permute.xlu0 %1028
      %1030 = vrot.lane.b32.xlu0 %v474, 12
      %v1031 = vpop.permute.xlu0 %1030
      %1032 = vrot.lane.b32.xlu0 %v475, 12
      %v1033 = vpop.permute.xlu0 %1032
      %1034 = vrot.lane.b32.xlu0 %v477, 12
      %v1035 = vpop.permute.xlu0 %1034
      %1036 = vrot.lane.b32.xlu0 %v478, 12
      %v1037 = vpop.permute.xlu0 %1036
      %1038 = vrot.lane.b32.xlu0 %v480, 12
      %v1039 = vpop.permute.xlu0 %1038
      %1040 = vrot.lane.b32.xlu0 %v481, 12
      %v1041 = vpop.permute.xlu0 %1040
      %1042 = vrot.lane.b32.xlu0 %v483, 12
      %v1043 = vpop.permute.xlu0 %1042
      %1044 = vrot.lane.b32.xlu0 %v484, 12
      %v1045 = vpop.permute.xlu0 %1044
      %1046 = vrot.lane.b32.xlu0 %v486, 12
      %v1047 = vpop.permute.xlu0 %1046
      %1048 = vrot.lane.b32.xlu0 %v487, 12
      %v1049 = vpop.permute.xlu0 %1048
      %1050 = vrot.lane.b32.xlu0 %v489, 12
      %v1051 = vpop.permute.xlu0 %1050
      %1052 = vrot.lane.b32.xlu0 %v490, 12
      %v1053 = vpop.permute.xlu0 %1052
      %1054 = vrot.lane.b32.xlu0 %v492, 12
      %v1055 = vpop.permute.xlu0 %1054
      %1056 = vrot.lane.b32.xlu0 %v493, 12
      %v1057 = vpop.permute.xlu0 %1056
      %1058 = vrot.lane.b32.xlu0 %v495, 12
      %v1059 = vpop.permute.xlu0 %1058
      %1060 = vrot.lane.b32.xlu0 %v496, 12
      %v1061 = vpop.permute.xlu0 %1060
      %1062 = vrot.lane.b32.xlu0 %v498, 12
      %v1063 = vpop.permute.xlu0 %1062
      %1064 = vrot.lane.b32.xlu0 %v499, 12
      %v1065 = vpop.permute.xlu0 %1064
      %1066 = vrot.lane.b32.xlu0 %v501, 12
      %v1067 = vpop.permute.xlu0 %1066
      %1068 = vrot.lane.b32.xlu0 %v502, 12
      %v1069 = vpop.permute.xlu0 %1068
      %1070 = vrot.lane.b32.xlu0 %v504, 12
      %v1071 = vpop.permute.xlu0 %1070
      %1072 = vrot.lane.b32.xlu0 %v505, 12
      %v1073 = vpop.permute.xlu0 %1072
      %1074 = vrot.lane.b32.xlu0 %v507, 12
      %v1075 = vpop.permute.xlu0 %1074
      %1076 = vrot.lane.b32.xlu0 %v508, 12
      %v1077 = vpop.permute.xlu0 %1076
      %1078 = vrot.lane.b32.xlu0 %v510, 12
      %v1079 = vpop.permute.xlu0 %1078
      %1080 = vrot.lane.b32.xlu0 %v511, 12
      %v1081 = vpop.permute.xlu0 %1080
      %vm1114 = vcmask 130144
      %1115 = vst.msk [vmem:[#allocation3] sm:$0xff] %vm1114, %v1019
      %1116 = vst.msk [vmem:[#allocation3 + $0x8] sm:$0xff] %vm1114, %v1021
      %1117 = vst.msk [vmem:[#allocation3 + $0x10] sm:$0xff] %vm1114, %v1023
      %1118 = vst.msk [vmem:[#allocation3 + $0x18] sm:$0xff] %vm1114, %v1025
      %1119 = vst.msk [vmem:[#allocation3 + $0x20] sm:$0xff] %vm1114, %v1027
      %1120 = vst.msk [vmem:[#allocation3 + $0x28] sm:$0xff] %vm1114, %v1029
      %1121 = vst.msk [vmem:[#allocation3 + $0x30] sm:$0xff] %vm1114, %v1031
      %1122 = vst.msk [vmem:[#allocation3 + $0x38] sm:$0xff] %vm1114, %v1033
      %1123 = vst.msk [vmem:[#allocation3 + $0x40] sm:$0xff] %vm1114, %v1035
      %1124 = vst.msk [vmem:[#allocation3 + $0x48] sm:$0xff] %vm1114, %v1037
      %1125 = vst.msk [vmem:[#allocation3 + $0x50] sm:$0xff] %vm1114, %v1039
      %1126 = vst.msk [vmem:[#allocation3 + $0x58] sm:$0xff] %vm1114, %v1041
      %1127 = vst.msk [vmem:[#allocation3 + $0x60] sm:$0xff] %vm1114, %v1043
      %1128 = vst.msk [vmem:[#allocation3 + $0x68] sm:$0xff] %vm1114, %v1045
      %1129 = vst.msk [vmem:[#allocation3 + $0x70] sm:$0xff] %vm1114, %v1047
      %1130 = vst.msk [vmem:[#allocation3 + $0x78] sm:$0xff] %vm1114, %v1049
      %1131 = vst.msk [vmem:[#allocation3 + $0x80] sm:$0xff] %vm1114, %v1051
      %1132 = vst.msk [vmem:[#allocation3 + $0x88] sm:$0xff] %vm1114, %v1053
      %1133 = vst.msk [vmem:[#allocation3 + $0x90] sm:$0xff] %vm1114, %v1055
      %1134 = vst.msk [vmem:[#allocation3 + $0x98] sm:$0xff] %vm1114, %v1057
      %1135 = vst.msk [vmem:[#allocation3 + $0xa0] sm:$0xff] %vm1114, %v1059
      %1136 = vst.msk [vmem:[#allocation3 + $0xa8] sm:$0xff] %vm1114, %v1061
      %1137 = vst.msk [vmem:[#allocation3 + $0xb0] sm:$0xff] %vm1114, %v1063
      %1138 = vst.msk [vmem:[#allocation3 + $0xb8] sm:$0xff] %vm1114, %v1065
      %1139 = vst.msk [vmem:[#allocation3 + $0xc0] sm:$0xff] %vm1114, %v1067
      %1140 = vst.msk [vmem:[#allocation3 + $0xc8] sm:$0xff] %vm1114, %v1069
      %1141 = vst.msk [vmem:[#allocation3 + $0xd0] sm:$0xff] %vm1114, %v1071
      %1142 = vst.msk [vmem:[#allocation3 + $0xd8] sm:$0xff] %vm1114, %v1073
      %1143 = vst.msk [vmem:[#allocation3 + $0xe0] sm:$0xff] %vm1114, %v1075
      %1144 = vst.msk [vmem:[#allocation3 + $0xe8] sm:$0xff] %vm1114, %v1077
      %1145 = vst.msk [vmem:[#allocation3 + $0xf0] sm:$0xff] %vm1114, %v1079
      %1146 = vst.msk [vmem:[#allocation3 + $0xf8] sm:$0xff] %vm1114, %v1081
      %v1148 = vrot.slane %v510, 1
      %v1149 = vrot.slane %v511, 1
      %v1150 = vsel %vm596, %v1148, %v1149
      %v1151 = vrot.slane %v512, 1
      %v1152 = vsel %vm596, %v1149, %v1151
      %1153 = vrot.lane.b32.xlu0 %v604, 16
      %v1154 = vpop.permute.xlu0 %1153
      %1155 = vrot.lane.b32.xlu0 %v606, 16
      %v1156 = vpop.permute.xlu0 %1155
      %1157 = vrot.lane.b32.xlu0 %v609, 16
      %v1158 = vpop.permute.xlu0 %1157
      %1159 = vrot.lane.b32.xlu0 %v611, 16
      %v1160 = vpop.permute.xlu0 %1159
      %1161 = vrot.lane.b32.xlu0 %v614, 16
      %v1162 = vpop.permute.xlu0 %1161
      %1163 = vrot.lane.b32.xlu0 %v616, 16
      %v1164 = vpop.permute.xlu0 %1163
      %1165 = vrot.lane.b32.xlu0 %v619, 16
      %v1166 = vpop.permute.xlu0 %1165
      %1167 = vrot.lane.b32.xlu0 %v621, 16
      %v1168 = vpop.permute.xlu0 %1167
      %1169 = vrot.lane.b32.xlu0 %v624, 16
      %v1170 = vpop.permute.xlu0 %1169
      %1171 = vrot.lane.b32.xlu0 %v626, 16
      %v1172 = vpop.permute.xlu0 %1171
      %1173 = vrot.lane.b32.xlu0 %v629, 16
      %v1174 = vpop.permute.xlu0 %1173
      %1175 = vrot.lane.b32.xlu0 %v631, 16
      %v1176 = vpop.permute.xlu0 %1175
      %1177 = vrot.lane.b32.xlu0 %v634, 16
      %v1178 = vpop.permute.xlu0 %1177
      %1179 = vrot.lane.b32.xlu0 %v636, 16
      %v1180 = vpop.permute.xlu0 %1179
      %1181 = vrot.lane.b32.xlu0 %v639, 16
      %v1182 = vpop.permute.xlu0 %1181
      %1183 = vrot.lane.b32.xlu0 %v641, 16
      %v1184 = vpop.permute.xlu0 %1183
      %1185 = vrot.lane.b32.xlu0 %v644, 16
      %v1186 = vpop.permute.xlu0 %1185
      %1187 = vrot.lane.b32.xlu0 %v646, 16
      %v1188 = vpop.permute.xlu0 %1187
      %1189 = vrot.lane.b32.xlu0 %v649, 16
      %v1190 = vpop.permute.xlu0 %1189
      %1191 = vrot.lane.b32.xlu0 %v651, 16
      %v1192 = vpop.permute.xlu0 %1191
      %1193 = vrot.lane.b32.xlu0 %v654, 16
      %v1194 = vpop.permute.xlu0 %1193
      %1195 = vrot.lane.b32.xlu0 %v656, 16
      %v1196 = vpop.permute.xlu0 %1195
      %1197 = vrot.lane.b32.xlu0 %v659, 16
      %v1198 = vpop.permute.xlu0 %1197
      %1199 = vrot.lane.b32.xlu0 %v661, 16
      %v1200 = vpop.permute.xlu0 %1199
      %1201 = vrot.lane.b32.xlu0 %v664, 16
      %v1202 = vpop.permute.xlu0 %1201
      %1203 = vrot.lane.b32.xlu0 %v666, 16
      %v1204 = vpop.permute.xlu0 %1203
      %1205 = vrot.lane.b32.xlu0 %v669, 16
      %v1206 = vpop.permute.xlu0 %1205
      %1207 = vrot.lane.b32.xlu0 %v671, 16
      %v1208 = vpop.permute.xlu0 %1207
      %1209 = vrot.lane.b32.xlu0 %v674, 16
      %v1210 = vpop.permute.xlu0 %1209
      %1211 = vrot.lane.b32.xlu0 %v676, 16
      %v1212 = vpop.permute.xlu0 %1211
      %1213 = vrot.lane.b32.xlu0 %v1150, 16
      %v1214 = vpop.permute.xlu0 %1213
      %1215 = vrot.lane.b32.xlu0 %v1152, 16
      %v1216 = vpop.permute.xlu0 %1215
      %vm1249 = vcmask 162944
      %1250 = vst.msk [vmem:[#allocation3] sm:$0xff] %vm1249, %v1154
      %1251 = vst.msk [vmem:[#allocation3 + $0x8] sm:$0xff] %vm1249, %v1156
      %1252 = vst.msk [vmem:[#allocation3 + $0x10] sm:$0xff] %vm1249, %v1158
      %1253 = vst.msk [vmem:[#allocation3 + $0x18] sm:$0xff] %vm1249, %v1160
      %1254 = vst.msk [vmem:[#allocation3 + $0x20] sm:$0xff] %vm1249, %v1162
      %1255 = vst.msk [vmem:[#allocation3 + $0x28] sm:$0xff] %vm1249, %v1164
      %1256 = vst.msk [vmem:[#allocation3 + $0x30] sm:$0xff] %vm1249, %v1166
      %1257 = vst.msk [vmem:[#allocation3 + $0x38] sm:$0xff] %vm1249, %v1168
      %1258 = vst.msk [vmem:[#allocation3 + $0x40] sm:$0xff] %vm1249, %v1170
      %1259 = vst.msk [vmem:[#allocation3 + $0x48] sm:$0xff] %vm1249, %v1172
      %1260 = vst.msk [vmem:[#allocation3 + $0x50] sm:$0xff] %vm1249, %v1174
      %1261 = vst.msk [vmem:[#allocation3 + $0x58] sm:$0xff] %vm1249, %v1176
      %1262 = vst.msk [vmem:[#allocation3 + $0x60] sm:$0xff] %vm1249, %v1178
      %1263 = vst.msk [vmem:[#allocation3 + $0x68] sm:$0xff] %vm1249, %v1180
      %1264 = vst.msk [vmem:[#allocation3 + $0x70] sm:$0xff] %vm1249, %v1182
      %1265 = vst.msk [vmem:[#allocation3 + $0x78] sm:$0xff] %vm1249, %v1184
      %1266 = vst.msk [vmem:[#allocation3 + $0x80] sm:$0xff] %vm1249, %v1186
      %1267 = vst.msk [vmem:[#allocation3 + $0x88] sm:$0xff] %vm1249, %v1188
      %1268 = vst.msk [vmem:[#allocation3 + $0x90] sm:$0xff] %vm1249, %v1190
      %1269 = vst.msk [vmem:[#allocation3 + $0x98] sm:$0xff] %vm1249, %v1192
      %1270 = vst.msk [vmem:[#allocation3 + $0xa0] sm:$0xff] %vm1249, %v1194
      %1271 = vst.msk [vmem:[#allocation3 + $0xa8] sm:$0xff] %vm1249, %v1196
      %1272 = vst.msk [vmem:[#allocation3 + $0xb0] sm:$0xff] %vm1249, %v1198
      %1273 = vst.msk [vmem:[#allocation3 + $0xb8] sm:$0xff] %vm1249, %v1200
      %1274 = vst.msk [vmem:[#allocation3 + $0xc0] sm:$0xff] %vm1249, %v1202
      %1275 = vst.msk [vmem:[#allocation3 + $0xc8] sm:$0xff] %vm1249, %v1204
      %1276 = vst.msk [vmem:[#allocation3 + $0xd0] sm:$0xff] %vm1249, %v1206
      %1277 = vst.msk [vmem:[#allocation3 + $0xd8] sm:$0xff] %vm1249, %v1208
      %1278 = vst.msk [vmem:[#allocation3 + $0xe0] sm:$0xff] %vm1249, %v1210
      %1279 = vst.msk [vmem:[#allocation3 + $0xe8] sm:$0xff] %vm1249, %v1212
      %1280 = vst.msk [vmem:[#allocation3 + $0xf0] sm:$0xff] %vm1249, %v1214
      %1281 = vst.msk [vmem:[#allocation3 + $0xf8] sm:$0xff] %vm1249, %v1216
      %v1282 = vrot.slane %v510, 2
      %v1283 = vrot.slane %v511, 2
      %v1284 = vsel %vm806, %v1282, %v1283
      %v1285 = vrot.slane %v512, 2
      %v1286 = vsel %vm806, %v1283, %v1285
      %1287 = vrot.lane.b32.xlu0 %v814, 20
      %v1288 = vpop.permute.xlu0 %1287
      %1289 = vrot.lane.b32.xlu0 %v816, 20
      %v1290 = vpop.permute.xlu0 %1289
      %1291 = vrot.lane.b32.xlu0 %v819, 20
      %v1292 = vpop.permute.xlu0 %1291
      %1293 = vrot.lane.b32.xlu0 %v821, 20
      %v1294 = vpop.permute.xlu0 %1293
      %1295 = vrot.lane.b32.xlu0 %v824, 20
      %v1296 = vpop.permute.xlu0 %1295
      %1297 = vrot.lane.b32.xlu0 %v826, 20
      %v1298 = vpop.permute.xlu0 %1297
      %1299 = vrot.lane.b32.xlu0 %v829, 20
      %v1300 = vpop.permute.xlu0 %1299
      %1301 = vrot.lane.b32.xlu0 %v831, 20
      %v1302 = vpop.permute.xlu0 %1301
      %1303 = vrot.lane.b32.xlu0 %v834, 20
      %v1304 = vpop.permute.xlu0 %1303
      %1305 = vrot.lane.b32.xlu0 %v836, 20
      %v1306 = vpop.permute.xlu0 %1305
      %1307 = vrot.lane.b32.xlu0 %v839, 20
      %v1308 = vpop.permute.xlu0 %1307
      %1309 = vrot.lane.b32.xlu0 %v841, 20
      %v1310 = vpop.permute.xlu0 %1309
      %1311 = vrot.lane.b32.xlu0 %v844, 20
      %v1312 = vpop.permute.xlu0 %1311
      %1313 = vrot.lane.b32.xlu0 %v846, 20
      %v1314 = vpop.permute.xlu0 %1313
      %1315 = vrot.lane.b32.xlu0 %v849, 20
      %v1316 = vpop.permute.xlu0 %1315
      %1317 = vrot.lane.b32.xlu0 %v851, 20
      %v1318 = vpop.permute.xlu0 %1317
      %1319 = vrot.lane.b32.xlu0 %v854, 20
      %v1320 = vpop.permute.xlu0 %1319
      %1321 = vrot.lane.b32.xlu0 %v856, 20
      %v1322 = vpop.permute.xlu0 %1321
      %1323 = vrot.lane.b32.xlu0 %v859, 20
      %v1324 = vpop.permute.xlu0 %1323
      %1325 = vrot.lane.b32.xlu0 %v861, 20
      %v1326 = vpop.permute.xlu0 %1325
      %1327 = vrot.lane.b32.xlu0 %v864, 20
      %v1328 = vpop.permute.xlu0 %1327
      %1329 = vrot.lane.b32.xlu0 %v866, 20
      %v1330 = vpop.permute.xlu0 %1329
      %1331 = vrot.lane.b32.xlu0 %v869, 20
      %v1332 = vpop.permute.xlu0 %1331
      %1333 = vrot.lane.b32.xlu0 %v871, 20
      %v1334 = vpop.permute.xlu0 %1333
      %1335 = vrot.lane.b32.xlu0 %v874, 20
      %v1336 = vpop.permute.xlu0 %1335
      %1337 = vrot.lane.b32.xlu0 %v876, 20
      %v1338 = vpop.permute.xlu0 %1337
      %1339 = vrot.lane.b32.xlu0 %v879, 20
      %v1340 = vpop.permute.xlu0 %1339
      %1341 = vrot.lane.b32.xlu0 %v881, 20
      %v1342 = vpop.permute.xlu0 %1341
      %1343 = vrot.lane.b32.xlu0 %v884, 20
      %v1344 = vpop.permute.xlu0 %1343
      %1345 = vrot.lane.b32.xlu0 %v886, 20
      %v1346 = vpop.permute.xlu0 %1345
      %1347 = vrot.lane.b32.xlu0 %v1284, 20
      %v1348 = vpop.permute.xlu0 %1347
      %1349 = vrot.lane.b32.xlu0 %v1286, 20
      %v1350 = vpop.permute.xlu0 %1349
      %vm1383 = vcmask 195744
      %1384 = vst.msk [vmem:[#allocation3] sm:$0xff] %vm1383, %v1288
      %1385 = vst.msk [vmem:[#allocation3 + $0x8] sm:$0xff] %vm1383, %v1290
      %1386 = vst.msk [vmem:[#allocation3 + $0x10] sm:$0xff] %vm1383, %v1292
      %1387 = vst.msk [vmem:[#allocation3 + $0x18] sm:$0xff] %vm1383, %v1294
      %1388 = vst.msk [vmem:[#allocation3 + $0x20] sm:$0xff] %vm1383, %v1296
      %1389 = vst.msk [vmem:[#allocation3 + $0x28] sm:$0xff] %vm1383, %v1298
      %1390 = vst.msk [vmem:[#allocation3 + $0x30] sm:$0xff] %vm1383, %v1300
      %1391 = vst.msk [vmem:[#allocation3 + $0x38] sm:$0xff] %vm1383, %v1302
      %1392 = vst.msk [vmem:[#allocation3 + $0x40] sm:$0xff] %vm1383, %v1304
      %1393 = vst.msk [vmem:[#allocation3 + $0x48] sm:$0xff] %vm1383, %v1306
      %1394 = vst.msk [vmem:[#allocation3 + $0x50] sm:$0xff] %vm1383, %v1308
      %1395 = vst.msk [vmem:[#allocation3 + $0x58] sm:$0xff] %vm1383, %v1310
      %1396 = vst.msk [vmem:[#allocation3 + $0x60] sm:$0xff] %vm1383, %v1312
      %1397 = vst.msk [vmem:[#allocation3 + $0x68] sm:$0xff] %vm1383, %v1314
      %1398 = vst.msk [vmem:[#allocation3 + $0x70] sm:$0xff] %vm1383, %v1316
      %1399 = vst.msk [vmem:[#allocation3 + $0x78] sm:$0xff] %vm1383, %v1318
      %1400 = vst.msk [vmem:[#allocation3 + $0x80] sm:$0xff] %vm1383, %v1320
      %1401 = vst.msk [vmem:[#allocation3 + $0x88] sm:$0xff] %vm1383, %v1322
      %1402 = vst.msk [vmem:[#allocation3 + $0x90] sm:$0xff] %vm1383, %v1324
      %1403 = vst.msk [vmem:[#allocation3 + $0x98] sm:$0xff] %vm1383, %v1326
      %1404 = vst.msk [vmem:[#allocation3 + $0xa0] sm:$0xff] %vm1383, %v1328
      %1405 = vst.msk [vmem:[#allocation3 + $0xa8] sm:$0xff] %vm1383, %v1330
      %1406 = vst.msk [vmem:[#allocation3 + $0xb0] sm:$0xff] %vm1383, %v1332
      %1407 = vst.msk [vmem:[#allocation3 + $0xb8] sm:$0xff] %vm1383, %v1334
      %1408 = vst.msk [vmem:[#allocation3 + $0xc0] sm:$0xff] %vm1383, %v1336
      %1409 = vst.msk [vmem:[#allocation3 + $0xc8] sm:$0xff] %vm1383, %v1338
      %1410 = vst.msk [vmem:[#allocation3 + $0xd0] sm:$0xff] %vm1383, %v1340
      %1411 = vst.msk [vmem:[#allocation3 + $0xd8] sm:$0xff] %vm1383, %v1342
      %1412 = vst.msk [vmem:[#allocation3 + $0xe0] sm:$0xff] %vm1383, %v1344
      %1413 = vst.msk [vmem:[#allocation3 + $0xe8] sm:$0xff] %vm1383, %v1346
      %1414 = vst.msk [vmem:[#allocation3 + $0xf0] sm:$0xff] %vm1383, %v1348
      %1415 = vst.msk [vmem:[#allocation3 + $0xf8] sm:$0xff] %vm1383, %v1350
      %1418 = vrot.lane.b32.xlu0 %v468, 24
      %v1419 = vpop.permute.xlu0 %1418
      %1420 = vrot.lane.b32.xlu0 %v469, 24
      %v1421 = vpop.permute.xlu0 %1420
      %1422 = vrot.lane.b32.xlu0 %v471, 24
      %v1423 = vpop.permute.xlu0 %1422
      %1424 = vrot.lane.b32.xlu0 %v472, 24
      %v1425 = vpop.permute.xlu0 %1424
      %1426 = vrot.lane.b32.xlu0 %v474, 24
      %v1427 = vpop.permute.xlu0 %1426
      %1428 = vrot.lane.b32.xlu0 %v475, 24
      %v1429 = vpop.permute.xlu0 %1428
      %1430 = vrot.lane.b32.xlu0 %v477, 24
      %v1431 = vpop.permute.xlu0 %1430
      %1432 = vrot.lane.b32.xlu0 %v478, 24
      %v1433 = vpop.permute.xlu0 %1432
      %1434 = vrot.lane.b32.xlu0 %v480, 24
      %v1435 = vpop.permute.xlu0 %1434
      %1436 = vrot.lane.b32.xlu0 %v481, 24
      %v1437 = vpop.permute.xlu0 %1436
      %1438 = vrot.lane.b32.xlu0 %v483, 24
      %v1439 = vpop.permute.xlu0 %1438
      %1440 = vrot.lane.b32.xlu0 %v484, 24
      %v1441 = vpop.permute.xlu0 %1440
      %1442 = vrot.lane.b32.xlu0 %v486, 24
      %v1443 = vpop.permute.xlu0 %1442
      %1444 = vrot.lane.b32.xlu0 %v487, 24
      %v1445 = vpop.permute.xlu0 %1444
      %1446 = vrot.lane.b32.xlu0 %v489, 24
      %v1447 = vpop.permute.xlu0 %1446
      %1448 = vrot.lane.b32.xlu0 %v490, 24
      %v1449 = vpop.permute.xlu0 %1448
      %1450 = vrot.lane.b32.xlu0 %v492, 24
      %v1451 = vpop.permute.xlu0 %1450
      %1452 = vrot.lane.b32.xlu0 %v493, 24
      %v1453 = vpop.permute.xlu0 %1452
      %1454 = vrot.lane.b32.xlu0 %v495, 24
      %v1455 = vpop.permute.xlu0 %1454
      %1456 = vrot.lane.b32.xlu0 %v496, 24
      %v1457 = vpop.permute.xlu0 %1456
      %1458 = vrot.lane.b32.xlu0 %v498, 24
      %v1459 = vpop.permute.xlu0 %1458
      %1460 = vrot.lane.b32.xlu0 %v499, 24
      %v1461 = vpop.permute.xlu0 %1460
      %1462 = vrot.lane.b32.xlu0 %v501, 24
      %v1463 = vpop.permute.xlu0 %1462
      %1464 = vrot.lane.b32.xlu0 %v502, 24
      %v1465 = vpop.permute.xlu0 %1464
      %1466 = vrot.lane.b32.xlu0 %v504, 24
      %v1467 = vpop.permute.xlu0 %1466
      %1468 = vrot.lane.b32.xlu0 %v505, 24
      %v1469 = vpop.permute.xlu0 %1468
      %1470 = vrot.lane.b32.xlu0 %v507, 24
      %v1471 = vpop.permute.xlu0 %1470
      %1472 = vrot.lane.b32.xlu0 %v508, 24
      %v1473 = vpop.permute.xlu0 %1472
      %1474 = vrot.lane.b32.xlu0 %v510, 24
      %v1475 = vpop.permute.xlu0 %1474
      %1476 = vrot.lane.b32.xlu0 %v511, 24
      %v1477 = vpop.permute.xlu0 %1476
      %1478 = vrot.lane.b32.xlu0 %v513, 24
      %v1479 = vpop.permute.xlu0 %1478
      %1480 = vrot.lane.b32.xlu0 %v514, 24
      %v1481 = vpop.permute.xlu0 %1480
      %vm1514 = vcmask 228544
      %1515 = vst.msk [vmem:[#allocation3] sm:$0xff] %vm1514, %v1419
      %1516 = vst.msk [vmem:[#allocation3 + $0x8] sm:$0xff] %vm1514, %v1421
      %1517 = vst.msk [vmem:[#allocation3 + $0x10] sm:$0xff] %vm1514, %v1423
      %1518 = vst.msk [vmem:[#allocation3 + $0x18] sm:$0xff] %vm1514, %v1425
      %1519 = vst.msk [vmem:[#allocation3 + $0x20] sm:$0xff] %vm1514, %v1427
      %1520 = vst.msk [vmem:[#allocation3 + $0x28] sm:$0xff] %vm1514, %v1429
      %1521 = vst.msk [vmem:[#allocation3 + $0x30] sm:$0xff] %vm1514, %v1431
      %1522 = vst.msk [vmem:[#allocation3 + $0x38] sm:$0xff] %vm1514, %v1433
      %1523 = vst.msk [vmem:[#allocation3 + $0x40] sm:$0xff] %vm1514, %v1435
      %1524 = vst.msk [vmem:[#allocation3 + $0x48] sm:$0xff] %vm1514, %v1437
      %1525 = vst.msk [vmem:[#allocation3 + $0x50] sm:$0xff] %vm1514, %v1439
      %1526 = vst.msk [vmem:[#allocation3 + $0x58] sm:$0xff] %vm1514, %v1441
      %1527 = vst.msk [vmem:[#allocation3 + $0x60] sm:$0xff] %vm1514, %v1443
      %1528 = vst.msk [vmem:[#allocation3 + $0x68] sm:$0xff] %vm1514, %v1445
      %1529 = vst.msk [vmem:[#allocation3 + $0x70] sm:$0xff] %vm1514, %v1447
      %1530 = vst.msk [vmem:[#allocation3 + $0x78] sm:$0xff] %vm1514, %v1449
      %1531 = vst.msk [vmem:[#allocation3 + $0x80] sm:$0xff] %vm1514, %v1451
      %1532 = vst.msk [vmem:[#allocation3 + $0x88] sm:$0xff] %vm1514, %v1453
      %1533 = vst.msk [vmem:[#allocation3 + $0x90] sm:$0xff] %vm1514, %v1455
      %1534 = vst.msk [vmem:[#allocation3 + $0x98] sm:$0xff] %vm1514, %v1457
      %1535 = vst.msk [vmem:[#allocation3 + $0xa0] sm:$0xff] %vm1514, %v1459
      %1536 = vst.msk [vmem:[#allocation3 + $0xa8] sm:$0xff] %vm1514, %v1461
      %1537 = vst.msk [vmem:[#allocation3 + $0xb0] sm:$0xff] %vm1514, %v1463
      %1538 = vst.msk [vmem:[#allocation3 + $0xb8] sm:$0xff] %vm1514, %v1465
      %1539 = vst.msk [vmem:[#allocation3 + $0xc0] sm:$0xff] %vm1514, %v1467
      %1540 = vst.msk [vmem:[#allocation3 + $0xc8] sm:$0xff] %vm1514, %v1469
      %1541 = vst.msk [vmem:[#allocation3 + $0xd0] sm:$0xff] %vm1514, %v1471
      %1542 = vst.msk [vmem:[#allocation3 + $0xd8] sm:$0xff] %vm1514, %v1473
      %1543 = vst.msk [vmem:[#allocation3 + $0xe0] sm:$0xff] %vm1514, %v1475
      %1544 = vst.msk [vmem:[#allocation3 + $0xe8] sm:$0xff] %vm1514, %v1477
      %1545 = vst.msk [vmem:[#allocation3 + $0xf0] sm:$0xff] %vm1514, %v1479
      %1546 = vst.msk [vmem:[#allocation3 + $0xf8] sm:$0xff] %vm1514, %v1481
      %v1548 = vrot.slane %v513, 1
      %v1549 = vrot.slane %v514, 1
      %v1550 = vsel %vm596, %v1548, %v1549
      %v1551 = vrot.slane %v515, 1
      %v1552 = vsel %vm596, %v1549, %v1551
      %1553 = vrot.lane.b32.xlu0 %v609, 28
      %v1554 = vpop.permute.xlu0 %1553
      %1555 = vrot.lane.b32.xlu0 %v611, 28
      %v1556 = vpop.permute.xlu0 %1555
      %1557 = vrot.lane.b32.xlu0 %v614, 28
      %v1558 = vpop.permute.xlu0 %1557
      %1559 = vrot.lane.b32.xlu0 %v616, 28
      %v1560 = vpop.permute.xlu0 %1559
      %1561 = vrot.lane.b32.xlu0 %v619, 28
      %v1562 = vpop.permute.xlu0 %1561
      %1563 = vrot.lane.b32.xlu0 %v621, 28
      %v1564 = vpop.permute.xlu0 %1563
      %1565 = vrot.lane.b32.xlu0 %v624, 28
      %v1566 = vpop.permute.xlu0 %1565
      %1567 = vrot.lane.b32.xlu0 %v626, 28
      %v1568 = vpop.permute.xlu0 %1567
      %1569 = vrot.lane.b32.xlu0 %v629, 28
      %v1570 = vpop.permute.xlu0 %1569
      %1571 = vrot.lane.b32.xlu0 %v631, 28
      %v1572 = vpop.permute.xlu0 %1571
      %1573 = vrot.lane.b32.xlu0 %v634, 28
      %v1574 = vpop.permute.xlu0 %1573
      %1575 = vrot.lane.b32.xlu0 %v636, 28
      %v1576 = vpop.permute.xlu0 %1575
      %1577 = vrot.lane.b32.xlu0 %v639, 28
      %v1578 = vpop.permute.xlu0 %1577
      %1579 = vrot.lane.b32.xlu0 %v641, 28
      %v1580 = vpop.permute.xlu0 %1579
      %1581 = vrot.lane.b32.xlu0 %v644, 28
      %v1582 = vpop.permute.xlu0 %1581
      %1583 = vrot.lane.b32.xlu0 %v646, 28
      %v1584 = vpop.permute.xlu0 %1583
      %1585 = vrot.lane.b32.xlu0 %v649, 28
      %v1586 = vpop.permute.xlu0 %1585
      %1587 = vrot.lane.b32.xlu0 %v651, 28
      %v1588 = vpop.permute.xlu0 %1587
      %1589 = vrot.lane.b32.xlu0 %v654, 28
      %v1590 = vpop.permute.xlu0 %1589
      %1591 = vrot.lane.b32.xlu0 %v656, 28
      %v1592 = vpop.permute.xlu0 %1591
      %1593 = vrot.lane.b32.xlu0 %v659, 28
      %v1594 = vpop.permute.xlu0 %1593
      %1595 = vrot.lane.b32.xlu0 %v661, 28
      %v1596 = vpop.permute.xlu0 %1595
      %1597 = vrot.lane.b32.xlu0 %v664, 28
      %v1598 = vpop.permute.xlu0 %1597
      %1599 = vrot.lane.b32.xlu0 %v666, 28
      %v1600 = vpop.permute.xlu0 %1599
      %1601 = vrot.lane.b32.xlu0 %v669, 28
      %v1602 = vpop.permute.xlu0 %1601
      %1603 = vrot.lane.b32.xlu0 %v671, 28
      %v1604 = vpop.permute.xlu0 %1603
      %1605 = vrot.lane.b32.xlu0 %v674, 28
      %v1606 = vpop.permute.xlu0 %1605
      %1607 = vrot.lane.b32.xlu0 %v676, 28
      %v1608 = vpop.permute.xlu0 %1607
      %1609 = vrot.lane.b32.xlu0 %v1150, 28
      %v1610 = vpop.permute.xlu0 %1609
      %1611 = vrot.lane.b32.xlu0 %v1152, 28
      %v1612 = vpop.permute.xlu0 %1611
      %1613 = vrot.lane.b32.xlu0 %v1550, 28
      %v1614 = vpop.permute.xlu0 %1613
      %1615 = vrot.lane.b32.xlu0 %v1552, 28
      %v1616 = vpop.permute.xlu0 %1615
      %vm1649 = vcmask 261344
      %1650 = vst.msk [vmem:[#allocation3] sm:$0xff] %vm1649, %v1554
      %1651 = vst.msk [vmem:[#allocation3 + $0x8] sm:$0xff] %vm1649, %v1556
      %1652 = vst.msk [vmem:[#allocation3 + $0x10] sm:$0xff] %vm1649, %v1558
      %1653 = vst.msk [vmem:[#allocation3 + $0x18] sm:$0xff] %vm1649, %v1560
      %1654 = vst.msk [vmem:[#allocation3 + $0x20] sm:$0xff] %vm1649, %v1562
      %1655 = vst.msk [vmem:[#allocation3 + $0x28] sm:$0xff] %vm1649, %v1564
      %1656 = vst.msk [vmem:[#allocation3 + $0x30] sm:$0xff] %vm1649, %v1566
      %1657 = vst.msk [vmem:[#allocation3 + $0x38] sm:$0xff] %vm1649, %v1568
      %1658 = vst.msk [vmem:[#allocation3 + $0x40] sm:$0xff] %vm1649, %v1570
      %1659 = vst.msk [vmem:[#allocation3 + $0x48] sm:$0xff] %vm1649, %v1572
      %1660 = vst.msk [vmem:[#allocation3 + $0x50] sm:$0xff] %vm1649, %v1574
      %1661 = vst.msk [vmem:[#allocation3 + $0x58] sm:$0xff] %vm1649, %v1576
      %1662 = vst.msk [vmem:[#allocation3 + $0x60] sm:$0xff] %vm1649, %v1578
      %1663 = vst.msk [vmem:[#allocation3 + $0x68] sm:$0xff] %vm1649, %v1580
      %1664 = vst.msk [vmem:[#allocation3 + $0x70] sm:$0xff] %vm1649, %v1582
      %1665 = vst.msk [vmem:[#allocation3 + $0x78] sm:$0xff] %vm1649, %v1584
      %1666 = vst.msk [vmem:[#allocation3 + $0x80] sm:$0xff] %vm1649, %v1586
      %1667 = vst.msk [vmem:[#allocation3 + $0x88] sm:$0xff] %vm1649, %v1588
      %1668 = vst.msk [vmem:[#allocation3 + $0x90] sm:$0xff] %vm1649, %v1590
      %1669 = vst.msk [vmem:[#allocation3 + $0x98] sm:$0xff] %vm1649, %v1592
      %1670 = vst.msk [vmem:[#allocation3 + $0xa0] sm:$0xff] %vm1649, %v1594
      %1671 = vst.msk [vmem:[#allocation3 + $0xa8] sm:$0xff] %vm1649, %v1596
      %1672 = vst.msk [vmem:[#allocation3 + $0xb0] sm:$0xff] %vm1649, %v1598
      %1673 = vst.msk [vmem:[#allocation3 + $0xb8] sm:$0xff] %vm1649, %v1600
      %1674 = vst.msk [vmem:[#allocation3 + $0xc0] sm:$0xff] %vm1649, %v1602
      %1675 = vst.msk [vmem:[#allocation3 + $0xc8] sm:$0xff] %vm1649, %v1604
      %1676 = vst.msk [vmem:[#allocation3 + $0xd0] sm:$0xff] %vm1649, %v1606
      %1677 = vst.msk [vmem:[#allocation3 + $0xd8] sm:$0xff] %vm1649, %v1608
      %1678 = vst.msk [vmem:[#allocation3 + $0xe0] sm:$0xff] %vm1649, %v1610
      %1679 = vst.msk [vmem:[#allocation3 + $0xe8] sm:$0xff] %vm1649, %v1612
      %1680 = vst.msk [vmem:[#allocation3 + $0xf0] sm:$0xff] %vm1649, %v1614
      %1681 = vst.msk [vmem:[#allocation3 + $0xf8] sm:$0xff] %vm1649, %v1616
      %v1682 = vrot.slane %v513, 2
      %v1683 = vrot.slane %v514, 2
      %v1684 = vsel %vm806, %v1682, %v1683
      %v1685 = vrot.slane %v515, 2
      %v1686 = vsel %vm806, %v1683, %v1685
      %1687 = vrot.lane.b32.xlu0 %v819, 32
      %v1688 = vpop.permute.xlu0 %1687
      %1689 = vrot.lane.b32.xlu0 %v821, 32
      %v1690 = vpop.permute.xlu0 %1689
      %1691 = vrot.lane.b32.xlu0 %v824, 32
      %v1692 = vpop.permute.xlu0 %1691
      %1693 = vrot.lane.b32.xlu0 %v826, 32
      %v1694 = vpop.permute.xlu0 %1693
      %1695 = vrot.lane.b32.xlu0 %v829, 32
      %v1696 = vpop.permute.xlu0 %1695
      %1697 = vrot.lane.b32.xlu0 %v831, 32
      %v1698 = vpop.permute.xlu0 %1697
      %1699 = vrot.lane.b32.xlu0 %v834, 32
      %v1700 = vpop.permute.xlu0 %1699
      %1701 = vrot.lane.b32.xlu0 %v836, 32
      %v1702 = vpop.permute.xlu0 %1701
      %1703 = vrot.lane.b32.xlu0 %v839, 32
      %v1704 = vpop.permute.xlu0 %1703
      %1705 = vrot.lane.b32.xlu0 %v841, 32
      %v1706 = vpop.permute.xlu0 %1705
      %1707 = vrot.lane.b32.xlu0 %v844, 32
      %v1708 = vpop.permute.xlu0 %1707
      %1709 = vrot.lane.b32.xlu0 %v846, 32
      %v1710 = vpop.permute.xlu0 %1709
      %1711 = vrot.lane.b32.xlu0 %v849, 32
      %v1712 = vpop.permute.xlu0 %1711
      %1713 = vrot.lane.b32.xlu0 %v851, 32
      %v1714 = vpop.permute.xlu0 %1713
      %1715 = vrot.lane.b32.xlu0 %v854, 32
      %v1716 = vpop.permute.xlu0 %1715
      %1717 = vrot.lane.b32.xlu0 %v856, 32
      %v1718 = vpop.permute.xlu0 %1717
      %1719 = vrot.lane.b32.xlu0 %v859, 32
      %v1720 = vpop.permute.xlu0 %1719
      %1721 = vrot.lane.b32.xlu0 %v861, 32
      %v1722 = vpop.permute.xlu0 %1721
      %1723 = vrot.lane.b32.xlu0 %v864, 32
      %v1724 = vpop.permute.xlu0 %1723
      %1725 = vrot.lane.b32.xlu0 %v866, 32
      %v1726 = vpop.permute.xlu0 %1725
      %1727 = vrot.lane.b32.xlu0 %v869, 32
      %v1728 = vpop.permute.xlu0 %1727
      %1729 = vrot.lane.b32.xlu0 %v871, 32
      %v1730 = vpop.permute.xlu0 %1729
      %1731 = vrot.lane.b32.xlu0 %v874, 32
      %v1732 = vpop.permute.xlu0 %1731
      %1733 = vrot.lane.b32.xlu0 %v876, 32
      %v1734 = vpop.permute.xlu0 %1733
      %1735 = vrot.lane.b32.xlu0 %v879, 32
      %v1736 = vpop.permute.xlu0 %1735
      %1737 = vrot.lane.b32.xlu0 %v881, 32
      %v1738 = vpop.permute.xlu0 %1737
      %1739 = vrot.lane.b32.xlu0 %v884, 32
      %v1740 = vpop.permute.xlu0 %1739
      %1741 = vrot.lane.b32.xlu0 %v886, 32
      %v1742 = vpop.permute.xlu0 %1741
      %1743 = vrot.lane.b32.xlu0 %v1284, 32
      %v1744 = vpop.permute.xlu0 %1743
      %1745 = vrot.lane.b32.xlu0 %v1286, 32
      %v1746 = vpop.permute.xlu0 %1745
      %1747 = vrot.lane.b32.xlu0 %v1684, 32
      %v1748 = vpop.permute.xlu0 %1747
      %1749 = vrot.lane.b32.xlu0 %v1686, 32
      %v1750 = vpop.permute.xlu0 %1749
      %vm1783 = vcmask 294144
      %1784 = vst.msk [vmem:[#allocation3] sm:$0xff] %vm1783, %v1688
      %1785 = vst.msk [vmem:[#allocation3 + $0x8] sm:$0xff] %vm1783, %v1690
      %1786 = vst.msk [vmem:[#allocation3 + $0x10] sm:$0xff] %vm1783, %v1692
      %1787 = vst.msk [vmem:[#allocation3 + $0x18] sm:$0xff] %vm1783, %v1694
      %1788 = vst.msk [vmem:[#allocation3 + $0x20] sm:$0xff] %vm1783, %v1696
      %1789 = vst.msk [vmem:[#allocation3 + $0x28] sm:$0xff] %vm1783, %v1698
      %1790 = vst.msk [vmem:[#allocation3 + $0x30] sm:$0xff] %vm1783, %v1700
      %1791 = vst.msk [vmem:[#allocation3 + $0x38] sm:$0xff] %vm1783, %v1702
      %1792 = vst.msk [vmem:[#allocation3 + $0x40] sm:$0xff] %vm1783, %v1704
      %1793 = vst.msk [vmem:[#allocation3 + $0x48] sm:$0xff] %vm1783, %v1706
      %1794 = vst.msk [vmem:[#allocation3 + $0x50] sm:$0xff] %vm1783, %v1708
      %1795 = vst.msk [vmem:[#allocation3 + $0x58] sm:$0xff] %vm1783, %v1710
      %1796 = vst.msk [vmem:[#allocation3 + $0x60] sm:$0xff] %vm1783, %v1712
      %1797 = vst.msk [vmem:[#allocation3 + $0x68] sm:$0xff] %vm1783, %v1714
      %1798 = vst.msk [vmem:[#allocation3 + $0x70] sm:$0xff] %vm1783, %v1716
      %1799 = vst.msk [vmem:[#allocation3 + $0x78] sm:$0xff] %vm1783, %v1718
      %1800 = vst.msk [vmem:[#allocation3 + $0x80] sm:$0xff] %vm1783, %v1720
      %1801 = vst.msk [vmem:[#allocation3 + $0x88] sm:$0xff] %vm1783, %v1722
      %1802 = vst.msk [vmem:[#allocation3 + $0x90] sm:$0xff] %vm1783, %v1724
      %1803 = vst.msk [vmem:[#allocation3 + $0x98] sm:$0xff] %vm1783, %v1726
      %1804 = vst.msk [vmem:[#allocation3 + $0xa0] sm:$0xff] %vm1783, %v1728
      %1805 = vst.msk [vmem:[#allocation3 + $0xa8] sm:$0xff] %vm1783, %v1730
      %1806 = vst.msk [vmem:[#allocation3 + $0xb0] sm:$0xff] %vm1783, %v1732
      %1807 = vst.msk [vmem:[#allocation3 + $0xb8] sm:$0xff] %vm1783, %v1734
      %1808 = vst.msk [vmem:[#allocation3 + $0xc0] sm:$0xff] %vm1783, %v1736
      %1809 = vst.msk [vmem:[#allocation3 + $0xc8] sm:$0xff] %vm1783, %v1738
      %1810 = vst.msk [vmem:[#allocation3 + $0xd0] sm:$0xff] %vm1783, %v1740
      %1811 = vst.msk [vmem:[#allocation3 + $0xd8] sm:$0xff] %vm1783, %v1742
      %1812 = vst.msk [vmem:[#allocation3 + $0xe0] sm:$0xff] %vm1783, %v1744
      %1813 = vst.msk [vmem:[#allocation3 + $0xe8] sm:$0xff] %vm1783, %v1746
      %1814 = vst.msk [vmem:[#allocation3 + $0xf0] sm:$0xff] %vm1783, %v1748
      %1815 = vst.msk [vmem:[#allocation3 + $0xf8] sm:$0xff] %vm1783, %v1750
      %v1816 = vld [vmem:[#allocation3] sm:$0xff]
      %v1817 = vld [vmem:[#allocation3 + $0x8] sm:$0xff]
      %v1818 = vld [vmem:[#allocation3 + $0x10] sm:$0xff]
      %v1819 = vld [vmem:[#allocation3 + $0x18] sm:$0xff]
      %v1820 = vld [vmem:[#allocation3 + $0x20] sm:$0xff]
      %v1821 = vld [vmem:[#allocation3 + $0x28] sm:$0xff]
      %v1822 = vld [vmem:[#allocation3 + $0x30] sm:$0xff]
      %v1823 = vld [vmem:[#allocation3 + $0x38] sm:$0xff]
      %v1824 = vld [vmem:[#allocation3 + $0x40] sm:$0xff]
      %v1825 = vld [vmem:[#allocation3 + $0x48] sm:$0xff]
      %v1826 = vld [vmem:[#allocation3 + $0x50] sm:$0xff]
      %v1827 = vld [vmem:[#allocation3 + $0x58] sm:$0xff]
      %v1828 = vld [vmem:[#allocation3 + $0x60] sm:$0xff]
      %v1829 = vld [vmem:[#allocation3 + $0x68] sm:$0xff]
      %v1830 = vld [vmem:[#allocation3 + $0x70] sm:$0xff]
      %v1831 = vld [vmem:[#allocation3 + $0x78] sm:$0xff]
      %v1832 = vld [vmem:[#allocation3 + $0x80] sm:$0xff]
      %v1833 = vld [vmem:[#allocation3 + $0x88] sm:$0xff]
      %v1834 = vld [vmem:[#allocation3 + $0x90] sm:$0xff]
      %v1835 = vld [vmem:[#allocation3 + $0x98] sm:$0xff]
      %v1836 = vld [vmem:[#allocation3 + $0xa0] sm:$0xff]
      %v1837 = vld [vmem:[#allocation3 + $0xa8] sm:$0xff]
      %v1838 = vld [vmem:[#allocation3 + $0xb0] sm:$0xff]
      %v1839 = vld [vmem:[#allocation3 + $0xb8] sm:$0xff]
      %v1840 = vld [vmem:[#allocation3 + $0xc0] sm:$0xff]
      %v1841 = vld [vmem:[#allocation3 + $0xc8] sm:$0xff]
      %v1842 = vld [vmem:[#allocation3 + $0xd0] sm:$0xff]
      %v1843 = vld [vmem:[#allocation3 + $0xd8] sm:$0xff]
      %v1844 = vld [vmem:[#allocation3 + $0xe0] sm:$0xff]
      %v1845 = vld [vmem:[#allocation3 + $0xe8] sm:$0xff]
      %v1846 = vld [vmem:[#allocation3 + $0xf0] sm:$0xff]
      %v1847 = vld [vmem:[#allocation3 + $0xf8] sm:$0xff]
      %v1848 = vld [vmem:[%s1] sm:$0xff]
      %v1849 = vld [vmem:[%s1 + $0x8] sm:$0xff]
      %v1850 = vld [vmem:[%s1 + $0x10] sm:$0xff]
      %v1851 = vld [vmem:[%s1 + $0x18] sm:$0xff]
      %v1852 = vld [vmem:[%s1 + $0x20] sm:$0xf]
      %vm1853 = vcmask 293888
      %v1855 = vsel %vm1853, %v1816, 0
      %v1858 = vsel %vm1853, %v1817, 0
      %v1861 = vsel %vm1853, %v1818, 0
      %v1864 = vsel %vm1853, %v1819, 0
      %v1867 = vsel %vm1853, %v1820, 0
      %v1870 = vsel %vm1853, %v1821, 0
      %v1873 = vsel %vm1853, %v1822, 0
      %v1876 = vsel %vm1853, %v1823, 0
      %v1879 = vsel %vm1853, %v1824, 0
      %v1882 = vsel %vm1853, %v1825, 0
      %v1885 = vsel %vm1853, %v1826, 0
      %v1888 = vsel %vm1853, %v1827, 0
      %v1891 = vsel %vm1853, %v1828, 0
      %v1894 = vsel %vm1853, %v1829, 0
      %v1897 = vsel %vm1853, %v1830, 0
      %v1900 = vsel %vm1853, %v1831, 0
      %v1903 = vsel %vm1853, %v1832, 0
      %v1906 = vsel %vm1853, %v1833, 0
      %v1909 = vsel %vm1853, %v1834, 0
      %v1912 = vsel %vm1853, %v1835, 0
      %v1915 = vsel %vm1853, %v1836, 0
      %v1918 = vsel %vm1853, %v1837, 0
      %v1921 = vsel %vm1853, %v1838, 0
      %v1924 = vsel %vm1853, %v1839, 0
      %v1927 = vsel %vm1853, %v1840, 0
      %v1930 = vsel %vm1853, %v1841, 0
      %v1933 = vsel %vm1853, %v1842, 0
      %v1936 = vsel %vm1853, %v1843, 0
      %v1939 = vsel %vm1853, %v1844, 0
      %v1942 = vsel %vm1853, %v1845, 0
      %v1945 = vsel %vm1853, %v1846, 0
      %v1948 = vsel %vm1853, %v1847, 0
      %vm1950 = vcmask 1043456
      %v1952 = vsel %vm1950, %v1852, 0
      %1954 = vmatpush.msra.mxu0 0.0
      %1955 = vmatpush.msra.mxu0 0.0
      %1956 = vmatpush.msra.mxu0 0.0
      %1957 = vmatpush.msra.mxu0 0.0
      %1958 = vmatpush.msra.mxu0 0.0
      %1959 = vmatpush.msra.mxu0 0.0
      %1960 = vmatpush.msra.mxu0 0.0
      %1961 = vmatpush.msra.mxu0 0.0
      %1962 = vmatpush.msra.mxu0 0.0
      %1963 = vmatpush.msra.mxu0 0.0
      %1964 = vmatpush.msra.mxu0 0.0
      %1965 = vmatpush.msra.mxu0 %v1952
      %1966 = vmatpush.msra.mxu0 %v1851
      %1967 = vmatpush.msra.mxu0 %v1850
      %1968 = vmatpush.msra.mxu0 %v1849
      %1969 = vmatpush.msra.mxu0 %v1848
      %1970 = vmatmul.f32.gmra.mxu0 %v1855
      %v1971 = vpop.f32.mrf.mxu0
      %v1972 = vadd.f32 0.0, %v1971
      %1973 = vmatmul.f32.gmra.mxu0 %v1858
      %v1974 = vpop.f32.mrf.mxu0
      %v1975 = vadd.f32 0.0, %v1974
      %1976 = vmatmul.f32.gmra.mxu0 %v1861
      %v1977 = vpop.f32.mrf.mxu0
      %v1978 = vadd.f32 0.0, %v1977
      %1979 = vmatmul.f32.gmra.mxu0 %v1864
      %v1980 = vpop.f32.mrf.mxu0
      %v1981 = vadd.f32 0.0, %v1980
      %1982 = vmatmul.f32.gmra.mxu0 %v1867
      %v1983 = vpop.f32.mrf.mxu0
      %v1984 = vadd.f32 0.0, %v1983
      %1985 = vmatmul.f32.gmra.mxu0 %v1870
      %v1986 = vpop.f32.mrf.mxu0
      %v1987 = vadd.f32 0.0, %v1986
      %1988 = vmatmul.f32.gmra.mxu0 %v1873
      %v1989 = vpop.f32.mrf.mxu0
      %v1990 = vadd.f32 0.0, %v1989
      %1991 = vmatmul.f32.gmra.mxu0 %v1876
      %v1992 = vpop.f32.mrf.mxu0
      %v1993 = vadd.f32 0.0, %v1992
      %1994 = vmatmul.f32.gmra.mxu0 %v1879
      %v1995 = vpop.f32.mrf.mxu0
      %v1996 = vadd.f32 0.0, %v1995
      %1997 = vmatmul.f32.gmra.mxu0 %v1882
      %v1998 = vpop.f32.mrf.mxu0
      %v1999 = vadd.f32 0.0, %v1998
      %2000 = vmatmul.f32.gmra.mxu0 %v1885
      %v2001 = vpop.f32.mrf.mxu0
      %v2002 = vadd.f32 0.0, %v2001
      %2003 = vmatmul.f32.gmra.mxu0 %v1888
      %v2004 = vpop.f32.mrf.mxu0
      %v2005 = vadd.f32 0.0, %v2004
      %2006 = vmatmul.f32.gmra.mxu0 %v1891
      %v2007 = vpop.f32.mrf.mxu0
      %v2008 = vadd.f32 0.0, %v2007
      %2009 = vmatmul.f32.gmra.mxu0 %v1894
      %v2010 = vpop.f32.mrf.mxu0
      %v2011 = vadd.f32 0.0, %v2010
      %2012 = vmatmul.f32.gmra.mxu0 %v1897
      %v2013 = vpop.f32.mrf.mxu0
      %v2014 = vadd.f32 0.0, %v2013
      %2015 = vmatmul.f32.gmra.mxu0 %v1900
      %v2016 = vpop.f32.mrf.mxu0
      %v2017 = vadd.f32 0.0, %v2016
      %2018 = vmatmul.f32.gmra.mxu0 %v1903
      %v2019 = vpop.f32.mrf.mxu0
      %v2020 = vadd.f32 0.0, %v2019
      %2021 = vmatmul.f32.gmra.mxu0 %v1906
      %v2022 = vpop.f32.mrf.mxu0
      %v2023 = vadd.f32 0.0, %v2022
      %2024 = vmatmul.f32.gmra.mxu0 %v1909
      %v2025 = vpop.f32.mrf.mxu0
      %v2026 = vadd.f32 0.0, %v2025
      %2027 = vmatmul.f32.gmra.mxu0 %v1912
      %v2028 = vpop.f32.mrf.mxu0
      %v2029 = vadd.f32 0.0, %v2028
      %2030 = vmatmul.f32.gmra.mxu0 %v1915
      %v2031 = vpop.f32.mrf.mxu0
      %v2032 = vadd.f32 0.0, %v2031
      %2033 = vmatmul.f32.gmra.mxu0 %v1918
      %v2034 = vpop.f32.mrf.mxu0
      %v2035 = vadd.f32 0.0, %v2034
      %2036 = vmatmul.f32.gmra.mxu0 %v1921
      %v2037 = vpop.f32.mrf.mxu0
      %v2038 = vadd.f32 0.0, %v2037
      %2039 = vmatmul.f32.gmra.mxu0 %v1924
      %v2040 = vpop.f32.mrf.mxu0
      %v2041 = vadd.f32 0.0, %v2040
      %2042 = vmatmul.f32.gmra.mxu0 %v1927
      %v2043 = vpop.f32.mrf.mxu0
      %v2044 = vadd.f32 0.0, %v2043
      %2045 = vmatmul.f32.gmra.mxu0 %v1930
      %v2046 = vpop.f32.mrf.mxu0
      %v2047 = vadd.f32 0.0, %v2046
      %2048 = vmatmul.f32.gmra.mxu0 %v1933
      %v2049 = vpop.f32.mrf.mxu0
      %v2050 = vadd.f32 0.0, %v2049
      %2051 = vmatmul.f32.gmra.mxu0 %v1936
      %v2052 = vpop.f32.mrf.mxu0
      %v2053 = vadd.f32 0.0, %v2052
      %2054 = vmatmul.f32.gmra.mxu0 %v1939
      %v2055 = vpop.f32.mrf.mxu0
      %v2056 = vadd.f32 0.0, %v2055
      %2057 = vmatmul.f32.gmra.mxu0 %v1942
      %v2058 = vpop.f32.mrf.mxu0
      %v2059 = vadd.f32 0.0, %v2058
      %2060 = vmatmul.f32.gmra.mxu0 %v1945
      %v2061 = vpop.f32.mrf.mxu0
      %v2062 = vadd.f32 0.0, %v2061
      %2063 = vmatmul.f32.gmra.mxu0 %v1948
      %v2064 = vpop.f32.mrf.mxu0
      %v2065 = vadd.f32 0.0, %v2064
      %2066 = vdwg.mxu0
      %vm2067 = vcmask 64512
      %2068 = vst.msk [vmem:[%s333] sm:$0xff] %vm2067, %v1972
      %2069 = vst.msk [vmem:[%s333 + $0x8] sm:$0xff] %vm2067, %v1975
      %2070 = vst.msk [vmem:[%s333 + $0x10] sm:$0xff] %vm2067, %v1978
      %2071 = vst.msk [vmem:[%s333 + $0x18] sm:$0xff] %vm2067, %v1981
      %2072 = vst.msk [vmem:[%s333 + $0x20] sm:$0xff] %vm2067, %v1984
      %2073 = vst.msk [vmem:[%s333 + $0x28] sm:$0xff] %vm2067, %v1987
      %2074 = vst.msk [vmem:[%s333 + $0x30] sm:$0xff] %vm2067, %v1990
      %2075 = vst.msk [vmem:[%s333 + $0x38] sm:$0xff] %vm2067, %v1993
      %2076 = vst.msk [vmem:[%s333 + $0x40] sm:$0xff] %vm2067, %v1996
      %2077 = vst.msk [vmem:[%s333 + $0x48] sm:$0xff] %vm2067, %v1999
      %2078 = vst.msk [vmem:[%s333 + $0x50] sm:$0xff] %vm2067, %v2002
      %2079 = vst.msk [vmem:[%s333 + $0x58] sm:$0xff] %vm2067, %v2005
      %2080 = vst.msk [vmem:[%s333 + $0x60] sm:$0xff] %vm2067, %v2008
      %2081 = vst.msk [vmem:[%s333 + $0x68] sm:$0xff] %vm2067, %v2011
      %2082 = vst.msk [vmem:[%s333 + $0x70] sm:$0xff] %vm2067, %v2014
      %2083 = vst.msk [vmem:[%s333 + $0x78] sm:$0xff] %vm2067, %v2017
      %2084 = vst.msk [vmem:[%s333 + $0x80] sm:$0xff] %vm2067, %v2020
      %2085 = vst.msk [vmem:[%s333 + $0x88] sm:$0xff] %vm2067, %v2023
      %2086 = vst.msk [vmem:[%s333 + $0x90] sm:$0xff] %vm2067, %v2026
      %2087 = vst.msk [vmem:[%s333 + $0x98] sm:$0xff] %vm2067, %v2029
      %2088 = vst.msk [vmem:[%s333 + $0xa0] sm:$0xff] %vm2067, %v2032
      %2089 = vst.msk [vmem:[%s333 + $0xa8] sm:$0xff] %vm2067, %v2035
      %2090 = vst.msk [vmem:[%s333 + $0xb0] sm:$0xff] %vm2067, %v2038
      %2091 = vst.msk [vmem:[%s333 + $0xb8] sm:$0xff] %vm2067, %v2041
      %2092 = vst.msk [vmem:[%s333 + $0xc0] sm:$0xff] %vm2067, %v2044
      %2093 = vst.msk [vmem:[%s333 + $0xc8] sm:$0xff] %vm2067, %v2047
      %2094 = vst.msk [vmem:[%s333 + $0xd0] sm:$0xff] %vm2067, %v2050
      %2095 = vst.msk [vmem:[%s333 + $0xd8] sm:$0xff] %vm2067, %v2053
      %2096 = vst.msk [vmem:[%s333 + $0xe0] sm:$0xff] %vm2067, %v2056
      %2097 = vst.msk [vmem:[%s333 + $0xe8] sm:$0xff] %vm2067, %v2059
      %2098 = vst.msk [vmem:[%s333 + $0xf0] sm:$0xff] %vm2067, %v2062
      %2099 = vst.msk [vmem:[%s333 + $0xf8] sm:$0xff] %vm2067, %v2065
      %v2100 = vsel %vm2067, %v1972, 0.0
      %v2101 = vsel %vm2067, %v1975, 0.0
      %v2102 = vadd.f32 %v2100, %v2101
      %v2103 = vsel %vm2067, %v1978, 0.0
      %v2104 = vadd.f32 %v2102, %v2103
      %v2105 = vsel %vm2067, %v1981, 0.0
      %v2106 = vadd.f32 %v2104, %v2105
      %v2107 = vsel %vm2067, %v1984, 0.0
      %v2108 = vadd.f32 %v2106, %v2107
      %v2109 = vsel %vm2067, %v1987, 0.0
      %v2110 = vadd.f32 %v2108, %v2109
      %v2111 = vsel %vm2067, %v1990, 0.0
      %v2112 = vadd.f32 %v2110, %v2111
      %v2113 = vsel %vm2067, %v1993, 0.0
      %v2114 = vadd.f32 %v2112, %v2113
      %v2115 = vsel %vm2067, %v1996, 0.0
      %v2116 = vadd.f32 %v2114, %v2115
      %v2117 = vsel %vm2067, %v1999, 0.0
      %v2118 = vadd.f32 %v2116, %v2117
      %v2119 = vsel %vm2067, %v2002, 0.0
      %v2120 = vadd.f32 %v2118, %v2119
      %v2121 = vsel %vm2067, %v2005, 0.0
      %v2122 = vadd.f32 %v2120, %v2121
      %v2123 = vsel %vm2067, %v2008, 0.0
      %v2124 = vadd.f32 %v2122, %v2123
      %v2125 = vsel %vm2067, %v2011, 0.0
      %v2126 = vadd.f32 %v2124, %v2125
      %v2127 = vsel %vm2067, %v2014, 0.0
      %v2128 = vadd.f32 %v2126, %v2127
      %v2129 = vsel %vm2067, %v2017, 0.0
      %v2130 = vadd.f32 %v2128, %v2129
      %v2131 = vsel %vm2067, %v2020, 0.0
      %v2132 = vadd.f32 %v2130, %v2131
      %v2133 = vsel %vm2067, %v2023, 0.0
      %v2134 = vadd.f32 %v2132, %v2133
      %v2135 = vsel %vm2067, %v2026, 0.0
      %v2136 = vadd.f32 %v2134, %v2135
      %v2137 = vsel %vm2067, %v2029, 0.0
      %v2138 = vadd.f32 %v2136, %v2137
      %v2139 = vsel %vm2067, %v2032, 0.0
      %v2140 = vadd.f32 %v2138, %v2139
      %v2141 = vsel %vm2067, %v2035, 0.0
      %v2142 = vadd.f32 %v2140, %v2141
      %v2143 = vsel %vm2067, %v2038, 0.0
      %v2144 = vadd.f32 %v2142, %v2143
      %v2145 = vsel %vm2067, %v2041, 0.0
      %v2146 = vadd.f32 %v2144, %v2145
      %v2147 = vsel %vm2067, %v2044, 0.0
      %v2148 = vadd.f32 %v2146, %v2147
      %v2149 = vsel %vm2067, %v2047, 0.0
      %v2150 = vadd.f32 %v2148, %v2149
      %v2151 = vsel %vm2067, %v2050, 0.0
      %v2152 = vadd.f32 %v2150, %v2151
      %v2153 = vsel %vm2067, %v2053, 0.0
      %v2154 = vadd.f32 %v2152, %v2153
      %v2155 = vsel %vm2067, %v2056, 0.0
      %v2156 = vadd.f32 %v2154, %v2155
      %v2157 = vsel %vm2067, %v2059, 0.0
      %v2158 = vadd.f32 %v2156, %v2157
      %v2159 = vsel %vm2067, %v2062, 0.0
      %v2160 = vadd.f32 %v2158, %v2159
      %v2161 = vsel %vm2067, %v2065, 0.0
      %v2162 = vadd.f32 %v2160, %v2161
      %v2163 = vrot.slane %v2162, 4
      %v2164 = vadd.f32 %v2162, %v2163
      %v2165 = vrot.slane %v2164, 2
      %v2166 = vadd.f32 %v2164, %v2165
      %v2167 = vrot.slane %v2166, 1
      %v2168 = vadd.f32 %v2166, %v2167
      %vm2169 = vcmask 57344
      %2170 = vst.msk [vmem:[%s336] sm:$0x1] %vm2169, %v2168
      %v2171 = vmul.f32 %v1972, %v1972
      %v2172 = vmul.f32 %v1975, %v1975
      %v2173 = vmul.f32 %v1978, %v1978
      %v2174 = vmul.f32 %v1981, %v1981
      %v2175 = vmul.f32 %v1984, %v1984
      %v2176 = vmul.f32 %v1987, %v1987
      %v2177 = vmul.f32 %v1990, %v1990
      %v2178 = vmul.f32 %v1993, %v1993
      %v2179 = vmul.f32 %v1996, %v1996
      %v2180 = vmul.f32 %v1999, %v1999
      %v2181 = vmul.f32 %v2002, %v2002
      %v2182 = vmul.f32 %v2005, %v2005
      %v2183 = vmul.f32 %v2008, %v2008
      %v2184 = vmul.f32 %v2011, %v2011
      %v2185 = vmul.f32 %v2014, %v2014
      %v2186 = vmul.f32 %v2017, %v2017
      %v2187 = vmul.f32 %v2020, %v2020
      %v2188 = vmul.f32 %v2023, %v2023
      %v2189 = vmul.f32 %v2026, %v2026
      %v2190 = vmul.f32 %v2029, %v2029
      %v2191 = vmul.f32 %v2032, %v2032
      %v2192 = vmul.f32 %v2035, %v2035
      %v2193 = vmul.f32 %v2038, %v2038
      %v2194 = vmul.f32 %v2041, %v2041
      %v2195 = vmul.f32 %v2044, %v2044
      %v2196 = vmul.f32 %v2047, %v2047
      %v2197 = vmul.f32 %v2050, %v2050
      %v2198 = vmul.f32 %v2053, %v2053
      %v2199 = vmul.f32 %v2056, %v2056
      %v2200 = vmul.f32 %v2059, %v2059
      %v2201 = vmul.f32 %v2062, %v2062
      %v2202 = vmul.f32 %v2065, %v2065
      %v2203 = vsel %vm2067, %v2171, 0.0
      %v2204 = vsel %vm2067, %v2172, 0.0
      %v2205 = vadd.f32 %v2203, %v2204
      %v2206 = vsel %vm2067, %v2173, 0.0
      %v2207 = vadd.f32 %v2205, %v2206
      %v2208 = vsel %vm2067, %v2174, 0.0
      %v2209 = vadd.f32 %v2207, %v2208
      %v2210 = vsel %vm2067, %v2175, 0.0
      %v2211 = vadd.f32 %v2209, %v2210
      %v2212 = vsel %vm2067, %v2176, 0.0
      %v2213 = vadd.f32 %v2211, %v2212
      %v2214 = vsel %vm2067, %v2177, 0.0
      %v2215 = vadd.f32 %v2213, %v2214
      %v2216 = vsel %vm2067, %v2178, 0.0
      %v2217 = vadd.f32 %v2215, %v2216
      %v2218 = vsel %vm2067, %v2179, 0.0
      %v2219 = vadd.f32 %v2217, %v2218
      %v2220 = vsel %vm2067, %v2180, 0.0
      %v2221 = vadd.f32 %v2219, %v2220
      %v2222 = vsel %vm2067, %v2181, 0.0
      %v2223 = vadd.f32 %v2221, %v2222
      %v2224 = vsel %vm2067, %v2182, 0.0
      %v2225 = vadd.f32 %v2223, %v2224
      %v2226 = vsel %vm2067, %v2183, 0.0
      %v2227 = vadd.f32 %v2225, %v2226
      %v2228 = vsel %vm2067, %v2184, 0.0
      %v2229 = vadd.f32 %v2227, %v2228
      %v2230 = vsel %vm2067, %v2185, 0.0
      %v2231 = vadd.f32 %v2229, %v2230
      %v2232 = vsel %vm2067, %v2186, 0.0
      %v2233 = vadd.f32 %v2231, %v2232
      %v2234 = vsel %vm2067, %v2187, 0.0
      %v2235 = vadd.f32 %v2233, %v2234
      %v2236 = vsel %vm2067, %v2188, 0.0
      %v2237 = vadd.f32 %v2235, %v2236
      %v2238 = vsel %vm2067, %v2189, 0.0
      %v2239 = vadd.f32 %v2237, %v2238
      %v2240 = vsel %vm2067, %v2190, 0.0
      %v2241 = vadd.f32 %v2239, %v2240
      %v2242 = vsel %vm2067, %v2191, 0.0
      %v2243 = vadd.f32 %v2241, %v2242
      %v2244 = vsel %vm2067, %v2192, 0.0
      %v2245 = vadd.f32 %v2243, %v2244
      %v2246 = vsel %vm2067, %v2193, 0.0
      %v2247 = vadd.f32 %v2245, %v2246
      %v2248 = vsel %vm2067, %v2194, 0.0
      %v2249 = vadd.f32 %v2247, %v2248
      %v2250 = vsel %vm2067, %v2195, 0.0
      %v2251 = vadd.f32 %v2249, %v2250
      %v2252 = vsel %vm2067, %v2196, 0.0
      %v2253 = vadd.f32 %v2251, %v2252
      %v2254 = vsel %vm2067, %v2197, 0.0
      %v2255 = vadd.f32 %v2253, %v2254
      %v2256 = vsel %vm2067, %v2198, 0.0
      %v2257 = vadd.f32 %v2255, %v2256
      %v2258 = vsel %vm2067, %v2199, 0.0
      %v2259 = vadd.f32 %v2257, %v2258
      %v2260 = vsel %vm2067, %v2200, 0.0
      %v2261 = vadd.f32 %v2259, %v2260
      %v2262 = vsel %vm2067, %v2201, 0.0
      %v2263 = vadd.f32 %v2261, %v2262
      %v2264 = vsel %vm2067, %v2202, 0.0
      %v2265 = vadd.f32 %v2263, %v2264
      %v2266 = vrot.slane %v2265, 4
      %v2267 = vadd.f32 %v2265, %v2266
      %v2268 = vrot.slane %v2267, 2
      %v2269 = vadd.f32 %v2267, %v2268
      %v2270 = vrot.slane %v2269, 1
      %v2271 = vadd.f32 %v2269, %v2270
      %2272 = vst.msk [vmem:[%s339] sm:$0x1] %vm2169, %v2271
      %v2273 = vld [vmem:[%s2] sm:$0xf]
      %v2275 = vsel %vm383, %v351, 0
      %v2278 = vsel %vm383, %v352, 0
      %v2281 = vsel %vm383, %v353, 0
      %v2284 = vsel %vm383, %v354, 0
      %v2287 = vsel %vm383, %v355, 0
      %v2290 = vsel %vm383, %v356, 0
      %v2293 = vsel %vm383, %v357, 0
      %v2296 = vsel %vm383, %v358, 0
      %v2299 = vsel %vm383, %v359, 0
      %v2302 = vsel %vm383, %v360, 0
      %v2305 = vsel %vm383, %v361, 0
      %v2308 = vsel %vm383, %v362, 0
      %v2311 = vsel %vm383, %v363, 0
      %v2314 = vsel %vm383, %v364, 0
      %v2317 = vsel %vm383, %v365, 0
      %v2320 = vsel %vm383, %v366, 0
      %v2323 = vsel %vm383, %v367, 0
      %v2326 = vsel %vm383, %v368, 0
      %v2329 = vsel %vm383, %v369, 0
      %v2332 = vsel %vm383, %v370, 0
      %v2335 = vsel %vm383, %v371, 0
      %v2338 = vsel %vm383, %v372, 0
      %v2341 = vsel %vm383, %v373, 0
      %v2344 = vsel %vm383, %v374, 0
      %v2347 = vsel %vm383, %v375, 0
      %v2350 = vsel %vm383, %v376, 0
      %v2353 = vsel %vm383, %v377, 0
      %v2356 = vsel %vm383, %v378, 0
      %v2359 = vsel %vm383, %v379, 0
      %v2362 = vsel %vm383, %v380, 0
      %v2365 = vsel %vm383, %v381, 0
      %v2368 = vsel %vm383, %v382, 0
      %v2371 = vsel %vm1950, %v2273, 0
      %2373 = vmatpush.msra.mxu0 0.0
      %2374 = vmatpush.msra.mxu0 0.0
      %2375 = vmatpush.msra.mxu0 0.0
      %2376 = vmatpush.msra.mxu0 0.0
      %2377 = vmatpush.msra.mxu0 0.0
      %2378 = vmatpush.msra.mxu0 0.0
      %2379 = vmatpush.msra.mxu0 0.0
      %2380 = vmatpush.msra.mxu0 0.0
      %2381 = vmatpush.msra.mxu0 0.0
      %2382 = vmatpush.msra.mxu0 0.0
      %2383 = vmatpush.msra.mxu0 0.0
      %2384 = vmatpush.msra.mxu0 0.0
      %2385 = vmatpush.msra.mxu0 0.0
      %2386 = vmatpush.msra.mxu0 0.0
      %2387 = vmatpush.msra.mxu0 0.0
      %2388 = vmatpush.msra.mxu0 %v2371
      %2389 = vmatmul.f32.gmra.mxu0 %v2275
      %v2390 = vpop.f32.mrf.mxu0
      %v2391 = vadd.f32 0.0, %v2390
      %2392 = vmatmul.f32.gmra.mxu0 %v2278
      %v2393 = vpop.f32.mrf.mxu0
      %v2394 = vadd.f32 0.0, %v2393
      %2395 = vmatmul.f32.gmra.mxu0 %v2281
      %v2396 = vpop.f32.mrf.mxu0
      %v2397 = vadd.f32 0.0, %v2396
      %2398 = vmatmul.f32.gmra.mxu0 %v2284
      %v2399 = vpop.f32.mrf.mxu0
      %v2400 = vadd.f32 0.0, %v2399
      %2401 = vmatmul.f32.gmra.mxu0 %v2287
      %v2402 = vpop.f32.mrf.mxu0
      %v2403 = vadd.f32 0.0, %v2402
      %2404 = vmatmul.f32.gmra.mxu0 %v2290
      %v2405 = vpop.f32.mrf.mxu0
      %v2406 = vadd.f32 0.0, %v2405
      %2407 = vmatmul.f32.gmra.mxu0 %v2293
      %v2408 = vpop.f32.mrf.mxu0
      %v2409 = vadd.f32 0.0, %v2408
      %2410 = vmatmul.f32.gmra.mxu0 %v2296
      %v2411 = vpop.f32.mrf.mxu0
      %v2412 = vadd.f32 0.0, %v2411
      %2413 = vmatmul.f32.gmra.mxu0 %v2299
      %v2414 = vpop.f32.mrf.mxu0
      %v2415 = vadd.f32 0.0, %v2414
      %2416 = vmatmul.f32.gmra.mxu0 %v2302
      %v2417 = vpop.f32.mrf.mxu0
      %v2418 = vadd.f32 0.0, %v2417
      %2419 = vmatmul.f32.gmra.mxu0 %v2305
      %v2420 = vpop.f32.mrf.mxu0
      %v2421 = vadd.f32 0.0, %v2420
      %2422 = vmatmul.f32.gmra.mxu0 %v2308
      %v2423 = vpop.f32.mrf.mxu0
      %v2424 = vadd.f32 0.0, %v2423
      %2425 = vmatmul.f32.gmra.mxu0 %v2311
      %v2426 = vpop.f32.mrf.mxu0
      %v2427 = vadd.f32 0.0, %v2426
      %2428 = vmatmul.f32.gmra.mxu0 %v2314
      %v2429 = vpop.f32.mrf.mxu0
      %v2430 = vadd.f32 0.0, %v2429
      %2431 = vmatmul.f32.gmra.mxu0 %v2317
      %v2432 = vpop.f32.mrf.mxu0
      %v2433 = vadd.f32 0.0, %v2432
      %2434 = vmatmul.f32.gmra.mxu0 %v2320
      %v2435 = vpop.f32.mrf.mxu0
      %v2436 = vadd.f32 0.0, %v2435
      %2437 = vmatmul.f32.gmra.mxu0 %v2323
      %v2438 = vpop.f32.mrf.mxu0
      %v2439 = vadd.f32 0.0, %v2438
      %2440 = vmatmul.f32.gmra.mxu0 %v2326
      %v2441 = vpop.f32.mrf.mxu0
      %v2442 = vadd.f32 0.0, %v2441
      %2443 = vmatmul.f32.gmra.mxu0 %v2329
      %v2444 = vpop.f32.mrf.mxu0
      %v2445 = vadd.f32 0.0, %v2444
      %2446 = vmatmul.f32.gmra.mxu0 %v2332
      %v2447 = vpop.f32.mrf.mxu0
      %v2448 = vadd.f32 0.0, %v2447
      %2449 = vmatmul.f32.gmra.mxu0 %v2335
      %v2450 = vpop.f32.mrf.mxu0
      %v2451 = vadd.f32 0.0, %v2450
      %2452 = vmatmul.f32.gmra.mxu0 %v2338
      %v2453 = vpop.f32.mrf.mxu0
      %v2454 = vadd.f32 0.0, %v2453
      %2455 = vmatmul.f32.gmra.mxu0 %v2341
      %v2456 = vpop.f32.mrf.mxu0
      %v2457 = vadd.f32 0.0, %v2456
      %2458 = vmatmul.f32.gmra.mxu0 %v2344
      %v2459 = vpop.f32.mrf.mxu0
      %v2460 = vadd.f32 0.0, %v2459
      %2461 = vmatmul.f32.gmra.mxu0 %v2347
      %v2462 = vpop.f32.mrf.mxu0
      %v2463 = vadd.f32 0.0, %v2462
      %2464 = vmatmul.f32.gmra.mxu0 %v2350
      %v2465 = vpop.f32.mrf.mxu0
      %v2466 = vadd.f32 0.0, %v2465
      %2467 = vmatmul.f32.gmra.mxu0 %v2353
      %v2468 = vpop.f32.mrf.mxu0
      %v2469 = vadd.f32 0.0, %v2468
      %2470 = vmatmul.f32.gmra.mxu0 %v2356
      %v2471 = vpop.f32.mrf.mxu0
      %v2472 = vadd.f32 0.0, %v2471
      %2473 = vmatmul.f32.gmra.mxu0 %v2359
      %v2474 = vpop.f32.mrf.mxu0
      %v2475 = vadd.f32 0.0, %v2474
      %2476 = vmatmul.f32.gmra.mxu0 %v2362
      %v2477 = vpop.f32.mrf.mxu0
      %v2478 = vadd.f32 0.0, %v2477
      %2479 = vmatmul.f32.gmra.mxu0 %v2365
      %v2480 = vpop.f32.mrf.mxu0
      %v2481 = vadd.f32 0.0, %v2480
      %2482 = vmatmul.f32.gmra.mxu0 %v2368
      %v2483 = vpop.f32.mrf.mxu0
      %v2484 = vadd.f32 0.0, %v2483
      %2485 = vdwg.mxu0
      %2486 = vst.msk [vmem:[%s344] sm:$0xff] %vm2067, %v2391
      %2487 = vst.msk [vmem:[%s344 + $0x8] sm:$0xff] %vm2067, %v2394
      %2488 = vst.msk [vmem:[%s344 + $0x10] sm:$0xff] %vm2067, %v2397
      %2489 = vst.msk [vmem:[%s344 + $0x18] sm:$0xff] %vm2067, %v2400
      %2490 = vst.msk [vmem:[%s344 + $0x20] sm:$0xff] %vm2067, %v2403
      %2491 = vst.msk [vmem:[%s344 + $0x28] sm:$0xff] %vm2067, %v2406
      %2492 = vst.msk [vmem:[%s344 + $0x30] sm:$0xff] %vm2067, %v2409
      %2493 = vst.msk [vmem:[%s344 + $0x38] sm:$0xff] %vm2067, %v2412
      %2494 = vst.msk [vmem:[%s344 + $0x40] sm:$0xff] %vm2067, %v2415
      %2495 = vst.msk [vmem:[%s344 + $0x48] sm:$0xff] %vm2067, %v2418
      %2496 = vst.msk [vmem:[%s344 + $0x50] sm:$0xff] %vm2067, %v2421
      %2497 = vst.msk [vmem:[%s344 + $0x58] sm:$0xff] %vm2067, %v2424
      %2498 = vst.msk [vmem:[%s344 + $0x60] sm:$0xff] %vm2067, %v2427
      %2499 = vst.msk [vmem:[%s344 + $0x68] sm:$0xff] %vm2067, %v2430
      %2500 = vst.msk [vmem:[%s344 + $0x70] sm:$0xff] %vm2067, %v2433
      %2501 = vst.msk [vmem:[%s344 + $0x78] sm:$0xff] %vm2067, %v2436
      %2502 = vst.msk [vmem:[%s344 + $0x80] sm:$0xff] %vm2067, %v2439
      %2503 = vst.msk [vmem:[%s344 + $0x88] sm:$0xff] %vm2067, %v2442
      %2504 = vst.msk [vmem:[%s344 + $0x90] sm:$0xff] %vm2067, %v2445
      %2505 = vst.msk [vmem:[%s344 + $0x98] sm:$0xff] %vm2067, %v2448
      %2506 = vst.msk [vmem:[%s344 + $0xa0] sm:$0xff] %vm2067, %v2451
      %2507 = vst.msk [vmem:[%s344 + $0xa8] sm:$0xff] %vm2067, %v2454
      %2508 = vst.msk [vmem:[%s344 + $0xb0] sm:$0xff] %vm2067, %v2457
      %2509 = vst.msk [vmem:[%s344 + $0xb8] sm:$0xff] %vm2067, %v2460
      %2510 = vst.msk [vmem:[%s344 + $0xc0] sm:$0xff] %vm2067, %v2463
      %2511 = vst.msk [vmem:[%s344 + $0xc8] sm:$0xff] %vm2067, %v2466
      %2512 = vst.msk [vmem:[%s344 + $0xd0] sm:$0xff] %vm2067, %v2469
      %2513 = vst.msk [vmem:[%s344 + $0xd8] sm:$0xff] %vm2067, %v2472
      %2514 = vst.msk [vmem:[%s344 + $0xe0] sm:$0xff] %vm2067, %v2475
      %2515 = vst.msk [vmem:[%s344 + $0xe8] sm:$0xff] %vm2067, %v2478
      %2516 = vst.msk [vmem:[%s344 + $0xf0] sm:$0xff] %vm2067, %v2481
      %2517 = vst.msk [vmem:[%s344 + $0xf8] sm:$0xff] %vm2067, %v2484
      %v2518 = vsel %vm2067, %v2391, 0.0
      %v2519 = vsel %vm2067, %v2394, 0.0
      %v2520 = vadd.f32 %v2518, %v2519
      %v2521 = vsel %vm2067, %v2397, 0.0
      %v2522 = vadd.f32 %v2520, %v2521
      %v2523 = vsel %vm2067, %v2400, 0.0
      %v2524 = vadd.f32 %v2522, %v2523
      %v2525 = vsel %vm2067, %v2403, 0.0
      %v2526 = vadd.f32 %v2524, %v2525
      %v2527 = vsel %vm2067, %v2406, 0.0
      %v2528 = vadd.f32 %v2526, %v2527
      %v2529 = vsel %vm2067, %v2409, 0.0
      %v2530 = vadd.f32 %v2528, %v2529
      %v2531 = vsel %vm2067, %v2412, 0.0
      %v2532 = vadd.f32 %v2530, %v2531
      %v2533 = vsel %vm2067, %v2415, 0.0
      %v2534 = vadd.f32 %v2532, %v2533
      %v2535 = vsel %vm2067, %v2418, 0.0
      %v2536 = vadd.f32 %v2534, %v2535
      %v2537 = vsel %vm2067, %v2421, 0.0
      %v2538 = vadd.f32 %v2536, %v2537
      %v2539 = vsel %vm2067, %v2424, 0.0
      %v2540 = vadd.f32 %v2538, %v2539
      %v2541 = vsel %vm2067, %v2427, 0.0
      %v2542 = vadd.f32 %v2540, %v2541
      %v2543 = vsel %vm2067, %v2430, 0.0
      %v2544 = vadd.f32 %v2542, %v2543
      %v2545 = vsel %vm2067, %v2433, 0.0
      %v2546 = vadd.f32 %v2544, %v2545
      %v2547 = vsel %vm2067, %v2436, 0.0
      %v2548 = vadd.f32 %v2546, %v2547
      %v2549 = vsel %vm2067, %v2439, 0.0
      %v2550 = vadd.f32 %v2548, %v2549
      %v2551 = vsel %vm2067, %v2442, 0.0
      %v2552 = vadd.f32 %v2550, %v2551
      %v2553 = vsel %vm2067, %v2445, 0.0
      %v2554 = vadd.f32 %v2552, %v2553
      %v2555 = vsel %vm2067, %v2448, 0.0
      %v2556 = vadd.f32 %v2554, %v2555
      %v2557 = vsel %vm2067, %v2451, 0.0
      %v2558 = vadd.f32 %v2556, %v2557
      %v2559 = vsel %vm2067, %v2454, 0.0
      %v2560 = vadd.f32 %v2558, %v2559
      %v2561 = vsel %vm2067, %v2457, 0.0
      %v2562 = vadd.f32 %v2560, %v2561
      %v2563 = vsel %vm2067, %v2460, 0.0
      %v2564 = vadd.f32 %v2562, %v2563
      %v2565 = vsel %vm2067, %v2463, 0.0
      %v2566 = vadd.f32 %v2564, %v2565
      %v2567 = vsel %vm2067, %v2466, 0.0
      %v2568 = vadd.f32 %v2566, %v2567
      %v2569 = vsel %vm2067, %v2469, 0.0
      %v2570 = vadd.f32 %v2568, %v2569
      %v2571 = vsel %vm2067, %v2472, 0.0
      %v2572 = vadd.f32 %v2570, %v2571
      %v2573 = vsel %vm2067, %v2475, 0.0
      %v2574 = vadd.f32 %v2572, %v2573
      %v2575 = vsel %vm2067, %v2478, 0.0
      %v2576 = vadd.f32 %v2574, %v2575
      %v2577 = vsel %vm2067, %v2481, 0.0
      %v2578 = vadd.f32 %v2576, %v2577
      %v2579 = vsel %vm2067, %v2484, 0.0
      %v2580 = vadd.f32 %v2578, %v2579
      %v2581 = vrot.slane %v2580, 4
      %v2582 = vadd.f32 %v2580, %v2581
      %v2583 = vrot.slane %v2582, 2
      %v2584 = vadd.f32 %v2582, %v2583
      %v2585 = vrot.slane %v2584, 1
      %v2586 = vadd.f32 %v2584, %v2585
      %2587 = vst.msk [vmem:[%s347] sm:$0x1] %vm2169, %v2586
      %v2588 = vmul.f32 %v2391, %v2391
      %v2589 = vmul.f32 %v2394, %v2394
      %v2590 = vmul.f32 %v2397, %v2397
      %v2591 = vmul.f32 %v2400, %v2400
      %v2592 = vmul.f32 %v2403, %v2403
      %v2593 = vmul.f32 %v2406, %v2406
      %v2594 = vmul.f32 %v2409, %v2409
      %v2595 = vmul.f32 %v2412, %v2412
      %v2596 = vmul.f32 %v2415, %v2415
      %v2597 = vmul.f32 %v2418, %v2418
      %v2598 = vmul.f32 %v2421, %v2421
      %v2599 = vmul.f32 %v2424, %v2424
      %v2600 = vmul.f32 %v2427, %v2427
      %v2601 = vmul.f32 %v2430, %v2430
      %v2602 = vmul.f32 %v2433, %v2433
      %v2603 = vmul.f32 %v2436, %v2436
      %v2604 = vmul.f32 %v2439, %v2439
      %v2605 = vmul.f32 %v2442, %v2442
      %v2606 = vmul.f32 %v2445, %v2445
      %v2607 = vmul.f32 %v2448, %v2448
      %v2608 = vmul.f32 %v2451, %v2451
      %v2609 = vmul.f32 %v2454, %v2454
      %v2610 = vmul.f32 %v2457, %v2457
      %v2611 = vmul.f32 %v2460, %v2460
      %v2612 = vmul.f32 %v2463, %v2463
      %v2613 = vmul.f32 %v2466, %v2466
      %v2614 = vmul.f32 %v2469, %v2469
      %v2615 = vmul.f32 %v2472, %v2472
      %v2616 = vmul.f32 %v2475, %v2475
      %v2617 = vmul.f32 %v2478, %v2478
      %v2618 = vmul.f32 %v2481, %v2481
      %v2619 = vmul.f32 %v2484, %v2484
      %v2620 = vsel %vm2067, %v2588, 0.0
      %v2621 = vsel %vm2067, %v2589, 0.0
      %v2622 = vadd.f32 %v2620, %v2621
      %v2623 = vsel %vm2067, %v2590, 0.0
      %v2624 = vadd.f32 %v2622, %v2623
      %v2625 = vsel %vm2067, %v2591, 0.0
      %v2626 = vadd.f32 %v2624, %v2625
      %v2627 = vsel %vm2067, %v2592, 0.0
      %v2628 = vadd.f32 %v2626, %v2627
      %v2629 = vsel %vm2067, %v2593, 0.0
      %v2630 = vadd.f32 %v2628, %v2629
      %v2631 = vsel %vm2067, %v2594, 0.0
      %v2632 = vadd.f32 %v2630, %v2631
      %v2633 = vsel %vm2067, %v2595, 0.0
      %v2634 = vadd.f32 %v2632, %v2633
      %v2635 = vsel %vm2067, %v2596, 0.0
      %v2636 = vadd.f32 %v2634, %v2635
      %v2637 = vsel %vm2067, %v2597, 0.0
      %v2638 = vadd.f32 %v2636, %v2637
      %v2639 = vsel %vm2067, %v2598, 0.0
      %v2640 = vadd.f32 %v2638, %v2639
      %v2641 = vsel %vm2067, %v2599, 0.0
      %v2642 = vadd.f32 %v2640, %v2641
      %v2643 = vsel %vm2067, %v2600, 0.0
      %v2644 = vadd.f32 %v2642, %v2643
      %v2645 = vsel %vm2067, %v2601, 0.0
      %v2646 = vadd.f32 %v2644, %v2645
      %v2647 = vsel %vm2067, %v2602, 0.0
      %v2648 = vadd.f32 %v2646, %v2647
      %v2649 = vsel %vm2067, %v2603, 0.0
      %v2650 = vadd.f32 %v2648, %v2649
      %v2651 = vsel %vm2067, %v2604, 0.0
      %v2652 = vadd.f32 %v2650, %v2651
      %v2653 = vsel %vm2067, %v2605, 0.0
      %v2654 = vadd.f32 %v2652, %v2653
      %v2655 = vsel %vm2067, %v2606, 0.0
      %v2656 = vadd.f32 %v2654, %v2655
      %v2657 = vsel %vm2067, %v2607, 0.0
      %v2658 = vadd.f32 %v2656, %v2657
      %v2659 = vsel %vm2067, %v2608, 0.0
      %v2660 = vadd.f32 %v2658, %v2659
      %v2661 = vsel %vm2067, %v2609, 0.0
      %v2662 = vadd.f32 %v2660, %v2661
      %v2663 = vsel %vm2067, %v2610, 0.0
      %v2664 = vadd.f32 %v2662, %v2663
      %v2665 = vsel %vm2067, %v2611, 0.0
      %v2666 = vadd.f32 %v2664, %v2665
      %v2667 = vsel %vm2067, %v2612, 0.0
      %v2668 = vadd.f32 %v2666, %v2667
      %v2669 = vsel %vm2067, %v2613, 0.0
      %v2670 = vadd.f32 %v2668, %v2669
      %v2671 = vsel %vm2067, %v2614, 0.0
      %v2672 = vadd.f32 %v2670, %v2671
      %v2673 = vsel %vm2067, %v2615, 0.0
      %v2674 = vadd.f32 %v2672, %v2673
      %v2675 = vsel %vm2067, %v2616, 0.0
      %v2676 = vadd.f32 %v2674, %v2675
      %v2677 = vsel %vm2067, %v2617, 0.0
      %v2678 = vadd.f32 %v2676, %v2677
      %v2679 = vsel %vm2067, %v2618, 0.0
      %v2680 = vadd.f32 %v2678, %v2679
      %v2681 = vsel %vm2067, %v2619, 0.0
      %v2682 = vadd.f32 %v2680, %v2681
      %v2683 = vrot.slane %v2682, 4
      %v2684 = vadd.f32 %v2682, %v2683
      %v2685 = vrot.slane %v2684, 2
      %v2686 = vadd.f32 %v2684, %v2685
      %v2687 = vrot.slane %v2686, 1
      %v2688 = vadd.f32 %v2686, %v2687
      %2689 = vst.msk [vmem:[%s350] sm:$0x1] %vm2169, %v2688
      %p2690 = scmp.lt.s32.totalorder %s20, 1
      %s2691 = scalar_select %p2690, %s20, 1
      %s2692 = smul.addr %s2691, 32
      %s2693 = smul.addr %s2692, 8
      %s2694 = scalar_lea.vmem %s3, %s2693
      %p2695 = scmp.lt.s32.totalorder %s20, 1
      %s2696 = scalar_select %p2695, %s20, 1
      %s2697 = scalar_lea.vmem %s4, %s2696
      %p2698 = scmp.lt.s32.totalorder %s20, 1
      %s2699 = scalar_select %p2698, %s20, 1
      %s2700 = scalar_lea.vmem %s5, %s2699
      %p2701 = scmp.lt.s32.totalorder %s20, 1
      %s2702 = scalar_select %p2701, %s20, 1
      %s2703 = smul.addr %s2702, 32
      %s2704 = smul.addr %s2703, 8
      %s2705 = scalar_lea.vmem %s6, %s2704
      %p2706 = scmp.lt.s32.totalorder %s20, 1
      %s2707 = scalar_select %p2706, %s20, 1
      %s2708 = scalar_lea.vmem %s7, %s2707
      %p2709 = scmp.lt.s32.totalorder %s20, 1
      %s2710 = scalar_select %p2709, %s20, 1
      %s2711 = scalar_lea.vmem %s8, %s2710
      // Predicated region
      $region33: #{basic_block_forward.3} parent=31 // pred_check
        %p2712 = pneg %p106
      $region34: #{basic_block_forward.3} parent=31 // pred_check_branch
        %2714 = sbr.rel (%p2712) target = $region36
      $region35: #{basic_block_forward.3} parent=31 // pred_region
        _
      $region36: #{basic_block_forward.3} parent=31 // pred_fallthru
        _
      // Predicated region
      $region37: #{basic_block_forward.3} parent=31 // pred_check
        %p2715 = pneg %p132
      $region38: #{basic_block_forward.3} parent=31 // pred_check_branch
        %2717 = sbr.rel (%p2715) target = $region40
      $region39: #{basic_block_forward.3} parent=31 // pred_region
        _
      $region40: #{basic_block_forward.3} parent=31 // pred_fallthru
        _
      // Predicated region
      $region41: #{basic_block_forward.3} parent=31 // pred_check
        %p2718 = pneg %p158
      $region42: #{basic_block_forward.3} parent=31 // pred_check_branch
        %2720 = sbr.rel (%p2718) target = $region44
      $region43: #{basic_block_forward.3} parent=31 // pred_region
        _
      $region44: #{basic_block_forward.3} parent=31 // pred_fallthru
        _
      // Predicated region
      $region45: #{basic_block_forward.3} parent=31 // pred_check
        %p2721 = pneg %p184
      $region46: #{basic_block_forward.3} parent=31 // pred_check_branch
        %2723 = sbr.rel (%p2721) target = $region48
      $region47: #{basic_block_forward.3} parent=31 // pred_region
        _
      $region48: #{basic_block_forward.3} parent=31 // pred_fallthru
        _
      // Predicated region
      $region49: #{basic_block_forward.3} parent=31 // pred_check
        %p2724 = pneg %p210
      $region50: #{basic_block_forward.3} parent=31 // pred_check_branch
        %2726 = sbr.rel (%p2724) target = $region52
      $region51: #{basic_block_forward.3} parent=31 // pred_region
        _
      $region52: #{basic_block_forward.3} parent=31 // pred_fallthru
        _
      // Predicated region
      $region53: #{basic_block_forward.3} parent=31 // pred_check
        %p2727 = pneg %p236
      $region54: #{basic_block_forward.3} parent=31 // pred_check_branch
        %2729 = sbr.rel (%p2727) target = $region56
      $region55: #{basic_block_forward.3} parent=31 // pred_region
        _
      $region56: #{basic_block_forward.3} parent=31 // pred_fallthru
        _
    $region32: #{basic_block_forward.3} parent=5 // pred_fallthru
      _
    %p2730 = scmp.le.s32.totalorder 2, %s15
    // Predicated region
    $region57: #{basic_block_forward.3} parent=5 // pred_check
      %p2731 = pneg %p2730
    $region58: #{basic_block_forward.3} parent=5 // pred_check_branch
      %2733 = sbr.rel (%p2731) target = $region60
    $region59: #{basic_block_forward.3} parent=5 // pred_region
      %s2734 = ssub.s32 %s15, 2
      // Predicated region
      $region61: #{basic_block_forward.3} parent=59 // pred_check
        %p2735 = pneg %p112
      $region62: #{basic_block_forward.3} parent=59 // pred_check_branch
        %2737 = sbr.rel (%p2735) target = $region64
      $region63: #{basic_block_forward.3} parent=59 // pred_region
        %p2738 = scmp.lt.s32.totalorder %s21, 1
        %s2739 = scalar_select %p2738, %s21, 1
        %s2740 = smul.addr %s2739, 32
        %s2741 = smul.addr %s2740, 8
        %s2742 = scalar_lea.vmem %s3, %s2741
      $region64: #{basic_block_forward.3} parent=59 // pred_fallthru
        _
      // Predicated region
      $region65: #{basic_block_forward.3} parent=59 // pred_check
        %p2743 = pneg %p138
      $region66: #{basic_block_forward.3} parent=59 // pred_check_branch
        %2745 = sbr.rel (%p2743) target = $region68
      $region67: #{basic_block_forward.3} parent=59 // pred_region
        %p2746 = scmp.lt.s32.totalorder %s21, 1
        %s2747 = scalar_select %p2746, %s21, 1
        %s2748 = scalar_lea.vmem %s4, %s2747
      $region68: #{basic_block_forward.3} parent=59 // pred_fallthru
        _
      // Predicated region
      $region69: #{basic_block_forward.3} parent=59 // pred_check
        %p2749 = pneg %p164
      $region70: #{basic_block_forward.3} parent=59 // pred_check_branch
        %2751 = sbr.rel (%p2749) target = $region72
      $region71: #{basic_block_forward.3} parent=59 // pred_region
        %p2752 = scmp.lt.s32.totalorder %s21, 1
        %s2753 = scalar_select %p2752, %s21, 1
        %s2754 = scalar_lea.vmem %s5, %s2753
      $region72: #{basic_block_forward.3} parent=59 // pred_fallthru
        _
      // Predicated region
      $region73: #{basic_block_forward.3} parent=59 // pred_check
        %p2755 = pneg %p190
      $region74: #{basic_block_forward.3} parent=59 // pred_check_branch
        %2757 = sbr.rel (%p2755) target = $region76
      $region75: #{basic_block_forward.3} parent=59 // pred_region
        %p2758 = scmp.lt.s32.totalorder %s21, 1
        %s2759 = scalar_select %p2758, %s21, 1
        %s2760 = smul.addr %s2759, 32
        %s2761 = smul.addr %s2760, 8
        %s2762 = scalar_lea.vmem %s6, %s2761
      $region76: #{basic_block_forward.3} parent=59 // pred_fallthru
        _
      // Predicated region
      $region77: #{basic_block_forward.3} parent=59 // pred_check
        %p2763 = pneg %p216
      $region78: #{basic_block_forward.3} parent=59 // pred_check_branch
        %2765 = sbr.rel (%p2763) target = $region80
      $region79: #{basic_block_forward.3} parent=59 // pred_region
        %p2766 = scmp.lt.s32.totalorder %s21, 1
        %s2767 = scalar_select %p2766, %s21, 1
        %s2768 = scalar_lea.vmem %s7, %s2767
      $region80: #{basic_block_forward.3} parent=59 // pred_fallthru
        _
      // Predicated region
      $region81: #{basic_block_forward.3} parent=59 // pred_check
        %p2769 = pneg %p242
      $region82: #{basic_block_forward.3} parent=59 // pred_check_branch
        %2771 = sbr.rel (%p2769) target = $region84
      $region83: #{basic_block_forward.3} parent=59 // pred_region
        %p2772 = scmp.lt.s32.totalorder %s21, 1
        %s2773 = scalar_select %p2772, %s21, 1
        %s2774 = scalar_lea.vmem %s8, %s2773
      $region84: #{basic_block_forward.3} parent=59 // pred_fallthru
        _
    $region60: #{basic_block_forward.3} parent=5 // pred_fallthru
      _
  $region6: #{basic_block_forward.3} parent=0 // loop_footer
    %s19 = sadd.s32 1, %s15
  $region7: #{basic_block_forward.3} parent=0 // loop_footer_branch
    %14 = sbr.rel target = $region3
  $region8: #{basic_block_forward.3} parent=0 // loop_exit
    _

</llo_original>
